<compile_context>
chip_gen: v6e
topology: v6e:2x2x1
jax: 0.10.0
libtpu: 0.0.40
codegen_flags: <defaults>
</compile_context>

<pallas_src>
import functools

import jax
import jax.numpy as jnp
from jax.experimental import pallas as pl
from jax.experimental.pallas import tpu as pltpu

D_MODEL = 128
D_FF = 2048          # PyTorch TransformerEncoderLayer default dim_feedforward
N_TOK = 5
EPS = 1e-5           # LayerNorm default eps


def _round_up(n, m):
    return ((n + m - 1) // m) * m


def _layernorm(x, gamma, beta):
    mu = jnp.mean(x, axis=-1, keepdims=True)
    xc = x - mu
    var = jnp.mean(xc * xc, axis=-1, keepdims=True)
    return xc * jax.lax.rsqrt(var + EPS) * gamma + beta


def encoder_kernel(num_head, approx_recip,
                   x_ref,                               # (TB, 5*D_in)      f32
                   wemb_ref, bemb_ref,                  # (5*D_in, 640), (1, 640)
                   wqkv_ref, bqkv_ref,                  # (640, 1920), (1, 1920)
                   wseg_ref, wexp_ref,                  # (640, 128), (128, 640) 0/1
                   wo_ref, bo_ref,                      # (128, 128), (1, 128)
                   ln1w_ref, ln1b_ref,                  # (1, 128) each
                   w1_ref, b1_ref, w2_ref, b2_ref,      # FF weights
                   ln2w_ref, ln2b_ref,                  # (1, 128) each
                   whead_ref, bhead_ref,                # (640, OUT_PAD), (1, OUT_PAD)
                   out_ref):                            # (TB, OUT_PAD)     f32
    tb = x_ref.shape[0]
    m = tb * N_TOK
    nh = num_head

    def mm(a, w_ref):
        # bf16 (or f32) MXU operands, f32 accumulation.
        return jnp.dot(a.astype(w_ref.dtype), w_ref[...],
                       preferred_element_type=jnp.float32)

    # ---- fused block-diagonal embedders + ReLU ---------------------------
    h640 = jnp.maximum(mm(x_ref[...], wemb_ref) + bemb_ref[...], 0.0)   # (TB, 640)
    h = h640.reshape(m, D_MODEL)                       # (TB*5, 128) token rows

    # ---- fused per-token QKV in batch-row layout --------------------------
    # (block-diagonal weights; 1/sqrt(dh) already folded into the q columns)
    qkv = mm(h640, wqkv_ref) + bqkv_ref[...]           # (TB, 1920)
    q = [qkv[:, t * 3 * D_MODEL             : t * 3 * D_MODEL + D_MODEL] for t in range(N_TOK)]
    k = [qkv[:, t * 3 * D_MODEL + D_MODEL   : t * 3 * D_MODEL + 2 * D_MODEL] for t in range(N_TOK)]
    v = [qkv[:, t * 3 * D_MODEL + 2 * D_MODEL: t * 3 * D_MODEL + 3 * D_MODEL] for t in range(N_TOK)]

    # ---- multi-head attention without tiny batched matmuls ---------------
    # scores: s_j[:, i*nh + h] = sum_d q_i[:, h*dh+d] * k_j[:, h*dh+d]
    s = []
    for j in range(N_TOK):
        qk_j = jnp.concatenate([q[i] * k[j] for i in range(N_TOK)], axis=1)  # (TB, 640)
        s.append(mm(qk_j, wseg_ref))                   # (TB, 128); lanes >= 5*nh are 0
    # softmax over the key axis (element-wise across the 5 lane-aligned slabs)
    m_max = s[0]
    for j in range(1, N_TOK):
        m_max = jnp.maximum(m_max, s[j])
    p = [jnp.exp(s[j] - m_max) for j in range(N_TOK)]
    denom = p[0]
    for j in range(1, N_TOK):
        denom = denom + p[j]
    inv = pl.reciprocal(denom, approx=approx_recip)
    # P @ V:  out640[:, i*128 + h*dh + d] = sum_j p_j[:, i*nh+h] * v_j[:, h*dh+d]
    out640 = None
    for j in range(N_TOK):
        p_j = p[j] * inv                               # (TB, 128)
        pexp = mm(p_j, wexp_ref)                       # (TB, 640) head-prob broadcast
        vtile = jnp.concatenate([v[j]] * N_TOK, axis=1)  # (TB, 640)
        contrib = pexp * vtile
        out640 = contrib if out640 is None else out640 + contrib

    attn = mm(out640.reshape(m, D_MODEL), wo_ref) + bo_ref[...]      # (TB*5, 128)
    h = _layernorm(h + attn, ln1w_ref[...], ln1b_ref[...])

    # ---- feed-forward (the FLOP-dominant matmuls, M = TB*5) ---------------
    ff = jnp.maximum(mm(h, w1_ref) + b1_ref[...], 0.0)
    ff = mm(ff, w2_ref) + b2_ref[...]
    h = _layernorm(h + ff, ln2w_ref[...], ln2b_ref[...])

    # ---- fused block-diagonal latent heads, lane-dense padded slab --------
    out_ref[...] = mm(h.reshape(tb, N_TOK * D_MODEL), whead_ref) + bhead_ref[...]


_PARAM_ORDER = ["wemb", "bemb", "wqkv", "bqkv", "wseg", "wexp", "wo", "bo",
                "ln1_w", "ln1_b", "w1", "b1", "w2", "b2",
                "ln2_w", "ln2_b", "whead", "bhead"]


def pack_params(p, num_head, param_dtype=jnp.bfloat16):
    """Pack weights into fused, matmul-friendly (and optionally bf16) forms."""
    nh = num_head
    dh = D_MODEL // nh
    assert D_MODEL % nh == 0 and N_TOK * nh <= D_MODEL
    latent = p["w_mean"].shape[-1]

    def block_diag(ws):                        # (N, K, M) -> (N*K, N*M)
        n, kk, mo = ws.shape
        out = jnp.zeros((n * kk, n * mo), ws.dtype)
        for i in range(n):
            out = out.at[i * kk:(i + 1) * kk, i * mo:(i + 1) * mo].set(ws[i])
        return out

    # fold the attention scale into the q projection
    scale = 1.0 / (dh ** 0.5)
    w_tok = jnp.concatenate([p["wq"] * scale, p["wk"], p["wv"]], axis=1)   # (128, 384)
    b_tok = jnp.concatenate([p["b_qkv"][0] * scale, p["b_qkv"][1],
                             p["b_qkv"][2]], axis=0).reshape(1, -1)        # (1, 384)
    wqkv_bd = block_diag(jnp.broadcast_to(w_tok, (N_TOK, D_MODEL, 3 * D_MODEL)))
    bqkv_bd = jnp.tile(b_tok, (1, N_TOK))                                  # (1, 1920)

    # static 0/1 matrices for the attention segment-sum / expand matmuls
    r = jnp.arange(N_TOK * D_MODEL)
    col = (r // D_MODEL) * nh + (r % D_MODEL) // dh
    wseg = jax.nn.one_hot(col, D_MODEL, dtype=jnp.float32)                 # (640, 128)
    wexp = (jnp.arange(D_MODEL)[:, None] == col[None, :]).astype(jnp.float32)  # (128, 640)

    out_width = 2 * N_TOK * latent
    out_pad = _round_up(out_width, 128)
    whead = jnp.concatenate([block_diag(p["w_mean"]),
                             block_diag(p["w_var"])], axis=1)              # (640, 10*latent)
    whead = jnp.pad(whead, ((0, 0), (0, out_pad - out_width)))
    bhead = jnp.concatenate([p["b_mean"].reshape(1, -1),
                             p["b_var"].reshape(1, -1)], axis=1)
    bhead = jnp.pad(bhead, ((0, 0), (0, out_pad - out_width)))

    def w(a):  # matmul operands -> param_dtype (bf16 by default)
        return a.astype(param_dtype)

    def b(a):  # biases / LN params stay f32 (added after f32 accumulation)
        return a.astype(jnp.float32)

    return {
        "wemb": w(block_diag(p["w_emb"])), "bemb": b(p["b_emb"].reshape(1, -1)),
        "wqkv": w(wqkv_bd), "bqkv": b(bqkv_bd),
        "wseg": w(wseg), "wexp": w(wexp),
        "wo": w(p["wo"]), "bo": b(p["bo"]),
        "ln1_w": b(p["ln1_w"]), "ln1_b": b(p["ln1_b"]),
        "w1": w(p["w1"]), "b1": b(p["b1"]), "w2": w(p["w2"]), "b2": b(p["b2"]),
        "ln2_w": b(p["ln2_w"]), "ln2_b": b(p["ln2_b"]),
        "whead": w(whead), "bhead": b(bhead),
    }


def variational_encoder(x, packed, num_head, latent_dim, tb=128):
    B, S, d_in = x.shape
    assert S == N_TOK
    assert D_MODEL % num_head == 0 and N_TOK * num_head <= D_MODEL

    # Batch-tile sizing: clamp for tiny batches, then balance TB across grid
    # steps so padded-batch waste is small (padded rows are garbage compute).
    tb = min(tb, _round_up(B, 8))
    g = -(-B // tb)                        # number of grid steps
    tb = _round_up(-(-B // g), 8)
    b_pad = g * tb

    xf = x.reshape(B, N_TOK * d_in).astype(jnp.float32)
    if b_pad != B:
        xf = jnp.pad(xf, ((0, b_pad - B), (0, 0)))

    out_pad = packed["whead"].shape[1]
    nlat = N_TOK * latent_dim
    fast = packed["w1"].dtype != jnp.float32   # bf16 weights -> approx reciprocal

    def full_spec(arr):
        nd = arr.ndim
        return pl.BlockSpec(arr.shape, lambda b, _nd=nd: (0,) * _nd)

    in_specs = [pl.BlockSpec((tb, N_TOK * d_in), lambda b: (b, 0))]
    in_specs += [full_spec(packed[name]) for name in _PARAM_ORDER]
    out_specs = pl.BlockSpec((tb, out_pad), lambda b: (b, 0))
    out_shape = jax.ShapeDtypeStruct((b_pad, out_pad), jnp.float32)

    kern = functools.partial(encoder_kernel, num_head, fast)
    vmem_bytes = (32 if fast else 48) * 1024 * 1024
    out = pl.pallas_call(
        kern,
        grid=(b_pad // tb,),
        in_specs=in_specs,
        out_specs=out_specs,
        out_shape=out_shape,
        compiler_params=pltpu.CompilerParams(
            dimension_semantics=("parallel",),
            vmem_limit_bytes=vmem_bytes),
    )(xf, *[packed[name] for name in _PARAM_ORDER])

    out = out[:B]
    mean = out[:, :nlat].reshape(B, N_TOK, latent_dim)
    log_var = out[:, nlat:2 * nlat].reshape(B, N_TOK, latent_dim)
    return mean, log_var


# ---------------------------------------------------------------------------
# Deterministic parameter construction (PyTorch-style uniform fan-in init).
# ---------------------------------------------------------------------------
def make_params(key, input_dim, latent_dim):
    def lin(k, fan_in, shape):
        bound = 1.0 / (fan_in ** 0.5)
        return jax.random.uniform(k, shape, jnp.float32, -bound, bound)

    keys = jax.random.split(key, 24)
    p = {}
    # 5 embedders, stored transposed (x @ W form), stacked over tokens.
    p["w_emb"] = lin(keys[0], input_dim, (N_TOK, input_dim, D_MODEL))
    p["b_emb"] = lin(keys[1], input_dim, (N_TOK, D_MODEL))
    # attention in_proj (q,k,v) + out_proj
    p["wq"] = lin(keys[2], D_MODEL, (D_MODEL, D_MODEL))
    p["wk"] = lin(keys[3], D_MODEL, (D_MODEL, D_MODEL))
    p["wv"] = lin(keys[4], D_MODEL, (D_MODEL, D_MODEL))
    p["b_qkv"] = lin(keys[5], D_MODEL, (3, D_MODEL))
    p["wo"] = lin(keys[6], D_MODEL, (D_MODEL, D_MODEL))
    p["bo"] = lin(keys[7], D_MODEL, (1, D_MODEL))
    # layernorms
    p["ln1_w"] = jnp.ones((1, D_MODEL), jnp.float32)
    p["ln1_b"] = jnp.zeros((1, D_MODEL), jnp.float32)
    p["ln2_w"] = jnp.ones((1, D_MODEL), jnp.float32)
    p["ln2_b"] = jnp.zeros((1, D_MODEL), jnp.float32)
    # feed-forward
    p["w1"] = lin(keys[8], D_MODEL, (D_MODEL, D_FF))
    p["b1"] = lin(keys[9], D_MODEL, (1, D_FF))
    p["w2"] = lin(keys[10], D_FF, (D_FF, D_MODEL))
    p["b2"] = lin(keys[11], D_FF, (1, D_MODEL))
    # 5 mean heads + 5 log_var heads, stacked over tokens (transposed).
    p["w_mean"] = lin(keys[12], D_MODEL, (N_TOK, D_MODEL, latent_dim))
    p["b_mean"] = lin(keys[13], D_MODEL, (N_TOK, latent_dim))
    p["w_var"] = lin(keys[14], D_MODEL, (N_TOK, D_MODEL, latent_dim))
    p["b_var"] = lin(keys[15], D_MODEL, (N_TOK, latent_dim))
    return p


# ---------------------------------------------------------------------------
# Pure-JAX f32 reference for correctness checking.
# ---------------------------------------------------------------------------
def reference(x, p, num_head):
    B, S, _ = x.shape
    h = jnp.maximum(jnp.einsum("bsd,sdk->bsk", x, p["w_emb"]) + p["b_emb"][None], 0.0)
    q = h @ p["wq"] + p["b_qkv"][0]
    k = h @ p["wk"] + p["b_qkv"][1]
    v = h @ p["wv"] + p["b_qkv"][2]
    dh = D_MODEL // num_head
    qh = q.reshape(B, S, num_head, dh).transpose(0, 2, 1, 3)
    kh = k.reshape(B, S, num_head, dh).transpose(0, 2, 1, 3)
    vh = v.reshape(B, S, num_head, dh).transpose(0, 2, 1, 3)
    s = jnp.einsum("bhqd,bhkd->bhqk", qh, kh) / jnp.sqrt(dh)
    a = jax.nn.softmax(s, axis=-1)
    o = jnp.einsum("bhqk,bhkd->bhqd", a, vh).transpose(0, 2, 1, 3).reshape(B, S, D_MODEL)
    o = o @ p["wo"] + p["bo"][0]

    def ln(z, g, b):
        mu = z.mean(-1, keepdims=True)
        var = ((z - mu) ** 2).mean(-1, keepdims=True)
        return (z - mu) / jnp.sqrt(var + EPS) * g + b

    h = ln(h + o, p["ln1_w"][0], p["ln1_b"][0])
    ff = jnp.maximum(h @ p["w1"] + p["b1"][0], 0.0) @ p["w2"] + p["b2"][0]
    h = ln(h + ff, p["ln2_w"][0], p["ln2_b"][0])
    mean = jnp.einsum("bsd,sdk->bsk", h, p["w_mean"]) + p["b_mean"][None]
    logv = jnp.einsum("bsd,sdk->bsk", h, p["w_var"]) + p["b_var"][None]
    return mean, logv


if __name__ == "__main__":
    B, INPUT_DIM, LATENT_DIM, NUM_HEAD = 2, 16, 32, 4

    root = jax.random.PRNGKey(0)
    kx, kp = jax.random.split(root)
    x = jax.random.normal(kx, (B, N_TOK, INPUT_DIM), jnp.float32)
    params = make_params(kp, INPUT_DIM, LATENT_DIM)

    mean_ref, log_var_ref = reference(x, params, NUM_HEAD)

    # 1) f32-weight path: tight check of the restructured kernel math.
    packed_f32 = pack_params(params, NUM_HEAD, param_dtype=jnp.float32)
    mean32, logv32 = variational_encoder(x, packed_f32, NUM_HEAD, LATENT_DIM)
    jax.block_until_ready((mean32, logv32))
    assert jnp.allclose(mean32, mean_ref, atol=1e-4, rtol=1e-4)
    assert jnp.allclose(logv32, log_var_ref, atol=1e-4, rtol=1e-4)

    # 2) Default fast path: bf16 MXU operands (f32 accumulation) + approx recip.
    packed_bf16 = pack_params(params, NUM_HEAD)        # bf16 weights
    mean, log_var = variational_encoder(x, packed_bf16, NUM_HEAD, LATENT_DIM)
    jax.block_until_ready((mean, log_var))
    assert jnp.allclose(mean, mean_ref, atol=5e-2, rtol=5e-2)
    assert jnp.allclose(log_var, log_var_ref, atol=5e-2, rtol=5e-2)

    print("KERNEL_OK")
</pallas_src>

<mosaic_0001>
module attributes {stable_mosaic.version = 11 : i64} {
  func.func @encoder_kernel(%arg0: i32, %arg1: memref<8x80xf32, #tpu.memory_space<vmem>>, %arg2: memref<80x640xf32, #tpu.memory_space<vmem>>, %arg3: memref<1x640xf32, #tpu.memory_space<vmem>>, %arg4: memref<640x1920xf32, #tpu.memory_space<vmem>>, %arg5: memref<1x1920xf32, #tpu.memory_space<vmem>>, %arg6: memref<640x128xf32, #tpu.memory_space<vmem>>, %arg7: memref<128x640xf32, #tpu.memory_space<vmem>>, %arg8: memref<128x128xf32, #tpu.memory_space<vmem>>, %arg9: memref<1x128xf32, #tpu.memory_space<vmem>>, %arg10: memref<1x128xf32, #tpu.memory_space<vmem>>, %arg11: memref<1x128xf32, #tpu.memory_space<vmem>>, %arg12: memref<128x2048xf32, #tpu.memory_space<vmem>>, %arg13: memref<1x2048xf32, #tpu.memory_space<vmem>>, %arg14: memref<2048x128xf32, #tpu.memory_space<vmem>>, %arg15: memref<1x128xf32, #tpu.memory_space<vmem>>, %arg16: memref<1x128xf32, #tpu.memory_space<vmem>>, %arg17: memref<1x128xf32, #tpu.memory_space<vmem>>, %arg18: memref<640x384xf32, #tpu.memory_space<vmem>>, %arg19: memref<1x384xf32, #tpu.memory_space<vmem>>, %arg20: memref<8x384xf32, #tpu.memory_space<vmem>>) attributes {dimension_semantics = [#tpu.dimension_semantics<parallel>], iteration_bounds = array<i64: 1>, scalar_prefetch = 0 : i64, scratch_operands = 0 : i64, tpu.core_type = #tpu.core_type<tc>, window_params = [{transform_indices = @transform_0, window_bounds = array<i64: 8, 80>}, {pipeline_mode = #tpu.pipeline_mode<synchronous>, transform_indices = @transform_1, window_bounds = array<i64: 80, 640>}, {pipeline_mode = #tpu.pipeline_mode<synchronous>, transform_indices = @transform_2, window_bounds = array<i64: 1, 640>}, {pipeline_mode = #tpu.pipeline_mode<synchronous>, transform_indices = @transform_3, window_bounds = array<i64: 640, 1920>}, {pipeline_mode = #tpu.pipeline_mode<synchronous>, transform_indices = @transform_4, window_bounds = array<i64: 1, 1920>}, {pipeline_mode = #tpu.pipeline_mode<synchronous>, transform_indices = @transform_5, window_bounds = array<i64: 640, 128>}, {pipeline_mode = #tpu.pipeline_mode<synchronous>, transform_indices = @transform_6, window_bounds = array<i64: 128, 640>}, {pipeline_mode = #tpu.pipeline_mode<synchronous>, transform_indices = @transform_7, window_bounds = array<i64: 128, 128>}, {pipeline_mode = #tpu.pipeline_mode<synchronous>, transform_indices = @transform_8, window_bounds = array<i64: 1, 128>}, {pipeline_mode = #tpu.pipeline_mode<synchronous>, transform_indices = @transform_9, window_bounds = array<i64: 1, 128>}, {pipeline_mode = #tpu.pipeline_mode<synchronous>, transform_indices = @transform_10, window_bounds = array<i64: 1, 128>}, {pipeline_mode = #tpu.pipeline_mode<synchronous>, transform_indices = @transform_11, window_bounds = array<i64: 128, 2048>}, {pipeline_mode = #tpu.pipeline_mode<synchronous>, transform_indices = @transform_12, window_bounds = array<i64: 1, 2048>}, {pipeline_mode = #tpu.pipeline_mode<synchronous>, transform_indices = @transform_13, window_bounds = array<i64: 2048, 128>}, {pipeline_mode = #tpu.pipeline_mode<synchronous>, transform_indices = @transform_14, window_bounds = array<i64: 1, 128>}, {pipeline_mode = #tpu.pipeline_mode<synchronous>, transform_indices = @transform_15, window_bounds = array<i64: 1, 128>}, {pipeline_mode = #tpu.pipeline_mode<synchronous>, transform_indices = @transform_16, window_bounds = array<i64: 1, 128>}, {pipeline_mode = #tpu.pipeline_mode<synchronous>, transform_indices = @transform_17, window_bounds = array<i64: 640, 384>}, {pipeline_mode = #tpu.pipeline_mode<synchronous>, transform_indices = @transform_18, window_bounds = array<i64: 1, 384>}, {transform_indices = @transform_19, window_bounds = array<i64: 8, 384>}]} {
    %c0 = arith.constant 0 : index
    %c0_0 = arith.constant 0 : index
    %0 = vector.load %arg1[%c0, %c0_0] : memref<8x80xf32, #tpu.memory_space<vmem>>, vector<8x80xf32>
    %c0_1 = arith.constant 0 : index
    %c0_2 = arith.constant 0 : index
    %1 = vector.load %arg2[%c0_1, %c0_2] : memref<80x640xf32, #tpu.memory_space<vmem>>, vector<80x640xf32>
    %cst = arith.constant dense<0.000000e+00> : vector<8x640xf32>
    %2 = tpu.matmul %0, %1, %cst {dimension_numbers = #tpu.dot_dimension_numbers<[1], [0], [0], [1], [0, 0, 1, 1], [], []>} : vector<8x80xf32>, vector<80x640xf32>, vector<8x640xf32> -> vector<8x640xf32>
    %c0_3 = arith.constant 0 : index
    %c0_4 = arith.constant 0 : index
    %3 = vector.load %arg3[%c0_3, %c0_4] : memref<1x640xf32, #tpu.memory_space<vmem>>, vector<1x640xf32>
    %4 = vector.broadcast %3 : vector<1x640xf32> to vector<8x640xf32>
    %5 = arith.addf %2, %4 : vector<8x640xf32>
    %cst_5 = arith.constant 0.000000e+00 : f32
    %6 = vector.broadcast %cst_5 : f32 to vector<8x640xf32>
    %7 = arith.maximumf %5, %6 : vector<8x640xf32>
    %8 = vector.shape_cast %7 : vector<8x640xf32> to vector<40x128xf32>
    %c0_6 = arith.constant 0 : index
    %c0_7 = arith.constant 0 : index
    %9 = vector.load %arg4[%c0_6, %c0_7] : memref<640x1920xf32, #tpu.memory_space<vmem>>, vector<640x1920xf32>
    %cst_8 = arith.constant dense<0.000000e+00> : vector<8x1920xf32>
    %10 = tpu.matmul %7, %9, %cst_8 {dimension_numbers = #tpu.dot_dimension_numbers<[1], [0], [0], [1], [0, 0, 1, 1], [], []>} : vector<8x640xf32>, vector<640x1920xf32>, vector<8x1920xf32> -> vector<8x1920xf32>
    %c0_9 = arith.constant 0 : index
    %c0_10 = arith.constant 0 : index
    %11 = vector.load %arg5[%c0_9, %c0_10] : memref<1x1920xf32, #tpu.memory_space<vmem>>, vector<1x1920xf32>
    %12 = vector.broadcast %11 : vector<1x1920xf32> to vector<8x1920xf32>
    %13 = arith.addf %10, %12 : vector<8x1920xf32>
    %14 = vector.extract_strided_slice %13 {offsets = [0, 0], sizes = [8, 128], strides = [1, 1]} : vector<8x1920xf32> to vector<8x128xf32>
    %15 = vector.extract_strided_slice %13 {offsets = [0, 384], sizes = [8, 128], strides = [1, 1]} : vector<8x1920xf32> to vector<8x128xf32>
    %16 = vector.extract_strided_slice %13 {offsets = [0, 768], sizes = [8, 128], strides = [1, 1]} : vector<8x1920xf32> to vector<8x128xf32>
    %17 = vector.extract_strided_slice %13 {offsets = [0, 1152], sizes = [8, 128], strides = [1, 1]} : vector<8x1920xf32> to vector<8x128xf32>
    %18 = vector.extract_strided_slice %13 {offsets = [0, 1536], sizes = [8, 128], strides = [1, 1]} : vector<8x1920xf32> to vector<8x128xf32>
    %19 = vector.extract_strided_slice %13 {offsets = [0, 128], sizes = [8, 128], strides = [1, 1]} : vector<8x1920xf32> to vector<8x128xf32>
    %20 = vector.extract_strided_slice %13 {offsets = [0, 512], sizes = [8, 128], strides = [1, 1]} : vector<8x1920xf32> to vector<8x128xf32>
    %21 = vector.extract_strided_slice %13 {offsets = [0, 896], sizes = [8, 128], strides = [1, 1]} : vector<8x1920xf32> to vector<8x128xf32>
    %22 = vector.extract_strided_slice %13 {offsets = [0, 1280], sizes = [8, 128], strides = [1, 1]} : vector<8x1920xf32> to vector<8x128xf32>
    %23 = vector.extract_strided_slice %13 {offsets = [0, 1664], sizes = [8, 128], strides = [1, 1]} : vector<8x1920xf32> to vector<8x128xf32>
    %24 = vector.extract_strided_slice %13 {offsets = [0, 256], sizes = [8, 128], strides = [1, 1]} : vector<8x1920xf32> to vector<8x128xf32>
    %25 = vector.extract_strided_slice %13 {offsets = [0, 640], sizes = [8, 128], strides = [1, 1]} : vector<8x1920xf32> to vector<8x128xf32>
    %26 = vector.extract_strided_slice %13 {offsets = [0, 1024], sizes = [8, 128], strides = [1, 1]} : vector<8x1920xf32> to vector<8x128xf32>
    %27 = vector.extract_strided_slice %13 {offsets = [0, 1408], sizes = [8, 128], strides = [1, 1]} : vector<8x1920xf32> to vector<8x128xf32>
    %28 = vector.extract_strided_slice %13 {offsets = [0, 1792], sizes = [8, 128], strides = [1, 1]} : vector<8x1920xf32> to vector<8x128xf32>
    %29 = arith.mulf %14, %19 : vector<8x128xf32>
    %30 = arith.mulf %15, %19 : vector<8x128xf32>
    %31 = arith.mulf %16, %19 : vector<8x128xf32>
    %32 = arith.mulf %17, %19 : vector<8x128xf32>
    %33 = arith.mulf %18, %19 : vector<8x128xf32>
    %34 = tpu.concatenate %29, %30, %31, %32, %33 in 1 : vector<8x128xf32>, vector<8x128xf32>, vector<8x128xf32>, vector<8x128xf32>, vector<8x128xf32> -> vector<8x640xf32>
    %c0_11 = arith.constant 0 : index
    %c0_12 = arith.constant 0 : index
    %35 = vector.load %arg6[%c0_11, %c0_12] : memref<640x128xf32, #tpu.memory_space<vmem>>, vector<640x128xf32>
    %cst_13 = arith.constant dense<0.000000e+00> : vector<8x128xf32>
    %36 = tpu.matmul %34, %35, %cst_13 {dimension_numbers = #tpu.dot_dimension_numbers<[1], [0], [0], [1], [0, 0, 1, 1], [], []>} : vector<8x640xf32>, vector<640x128xf32>, vector<8x128xf32> -> vector<8x128xf32>
    %37 = arith.mulf %14, %20 : vector<8x128xf32>
    %38 = arith.mulf %15, %20 : vector<8x128xf32>
    %39 = arith.mulf %16, %20 : vector<8x128xf32>
    %40 = arith.mulf %17, %20 : vector<8x128xf32>
    %41 = arith.mulf %18, %20 : vector<8x128xf32>
    %42 = tpu.concatenate %37, %38, %39, %40, %41 in 1 : vector<8x128xf32>, vector<8x128xf32>, vector<8x128xf32>, vector<8x128xf32>, vector<8x128xf32> -> vector<8x640xf32>
    %c0_14 = arith.constant 0 : index
    %c0_15 = arith.constant 0 : index
    %43 = vector.load %arg6[%c0_14, %c0_15] : memref<640x128xf32, #tpu.memory_space<vmem>>, vector<640x128xf32>
    %cst_16 = arith.constant dense<0.000000e+00> : vector<8x128xf32>
    %44 = tpu.matmul %42, %43, %cst_16 {dimension_numbers = #tpu.dot_dimension_numbers<[1], [0], [0], [1], [0, 0, 1, 1], [], []>} : vector<8x640xf32>, vector<640x128xf32>, vector<8x128xf32> -> vector<8x128xf32>
    %45 = arith.mulf %14, %21 : vector<8x128xf32>
    %46 = arith.mulf %15, %21 : vector<8x128xf32>
    %47 = arith.mulf %16, %21 : vector<8x128xf32>
    %48 = arith.mulf %17, %21 : vector<8x128xf32>
    %49 = arith.mulf %18, %21 : vector<8x128xf32>
    %50 = tpu.concatenate %45, %46, %47, %48, %49 in 1 : vector<8x128xf32>, vector<8x128xf32>, vector<8x128xf32>, vector<8x128xf32>, vector<8x128xf32> -> vector<8x640xf32>
    %c0_17 = arith.constant 0 : index
    %c0_18 = arith.constant 0 : index
    %51 = vector.load %arg6[%c0_17, %c0_18] : memref<640x128xf32, #tpu.memory_space<vmem>>, vector<640x128xf32>
    %cst_19 = arith.constant dense<0.000000e+00> : vector<8x128xf32>
    %52 = tpu.matmul %50, %51, %cst_19 {dimension_numbers = #tpu.dot_dimension_numbers<[1], [0], [0], [1], [0, 0, 1, 1], [], []>} : vector<8x640xf32>, vector<640x128xf32>, vector<8x128xf32> -> vector<8x128xf32>
    %53 = arith.mulf %14, %22 : vector<8x128xf32>
    %54 = arith.mulf %15, %22 : vector<8x128xf32>
    %55 = arith.mulf %16, %22 : vector<8x128xf32>
    %56 = arith.mulf %17, %22 : vector<8x128xf32>
    %57 = arith.mulf %18, %22 : vector<8x128xf32>
    %58 = tpu.concatenate %53, %54, %55, %56, %57 in 1 : vector<8x128xf32>, vector<8x128xf32>, vector<8x128xf32>, vector<8x128xf32>, vector<8x128xf32> -> vector<8x640xf32>
    %c0_20 = arith.constant 0 : index
    %c0_21 = arith.constant 0 : index
    %59 = vector.load %arg6[%c0_20, %c0_21] : memref<640x128xf32, #tpu.memory_space<vmem>>, vector<640x128xf32>
    %cst_22 = arith.constant dense<0.000000e+00> : vector<8x128xf32>
    %60 = tpu.matmul %58, %59, %cst_22 {dimension_numbers = #tpu.dot_dimension_numbers<[1], [0], [0], [1], [0, 0, 1, 1], [], []>} : vector<8x640xf32>, vector<640x128xf32>, vector<8x128xf32> -> vector<8x128xf32>
    %61 = arith.mulf %14, %23 : vector<8x128xf32>
    %62 = arith.mulf %15, %23 : vector<8x128xf32>
    %63 = arith.mulf %16, %23 : vector<8x128xf32>
    %64 = arith.mulf %17, %23 : vector<8x128xf32>
    %65 = arith.mulf %18, %23 : vector<8x128xf32>
    %66 = tpu.concatenate %61, %62, %63, %64, %65 in 1 : vector<8x128xf32>, vector<8x128xf32>, vector<8x128xf32>, vector<8x128xf32>, vector<8x128xf32> -> vector<8x640xf32>
    %c0_23 = arith.constant 0 : index
    %c0_24 = arith.constant 0 : index
    %67 = vector.load %arg6[%c0_23, %c0_24] : memref<640x128xf32, #tpu.memory_space<vmem>>, vector<640x128xf32>
    %cst_25 = arith.constant dense<0.000000e+00> : vector<8x128xf32>
    %68 = tpu.matmul %66, %67, %cst_25 {dimension_numbers = #tpu.dot_dimension_numbers<[1], [0], [0], [1], [0, 0, 1, 1], [], []>} : vector<8x640xf32>, vector<640x128xf32>, vector<8x128xf32> -> vector<8x128xf32>
    %69 = arith.maximumf %36, %44 : vector<8x128xf32>
    %70 = arith.maximumf %69, %52 : vector<8x128xf32>
    %71 = arith.maximumf %70, %60 : vector<8x128xf32>
    %72 = arith.maximumf %71, %68 : vector<8x128xf32>
    %73 = arith.subf %36, %72 : vector<8x128xf32>
    %74 = math.exp %73 : vector<8x128xf32>
    %75 = arith.subf %44, %72 : vector<8x128xf32>
    %76 = math.exp %75 : vector<8x128xf32>
    %77 = arith.subf %52, %72 : vector<8x128xf32>
    %78 = math.exp %77 : vector<8x128xf32>
    %79 = arith.subf %60, %72 : vector<8x128xf32>
    %80 = math.exp %79 : vector<8x128xf32>
    %81 = arith.subf %68, %72 : vector<8x128xf32>
    %82 = math.exp %81 : vector<8x128xf32>
    %83 = arith.addf %74, %76 : vector<8x128xf32>
    %84 = arith.addf %83, %78 : vector<8x128xf32>
    %85 = arith.addf %84, %80 : vector<8x128xf32>
    %86 = arith.addf %85, %82 : vector<8x128xf32>
    %87 = tpu.reciprocal %86 : vector<8x128xf32> -> vector<8x128xf32>
    %88 = arith.mulf %74, %87 : vector<8x128xf32>
    %c0_26 = arith.constant 0 : index
    %c0_27 = arith.constant 0 : index
    %89 = vector.load %arg7[%c0_26, %c0_27] : memref<128x640xf32, #tpu.memory_space<vmem>>, vector<128x640xf32>
    %cst_28 = arith.constant dense<0.000000e+00> : vector<8x640xf32>
    %90 = tpu.matmul %88, %89, %cst_28 {dimension_numbers = #tpu.dot_dimension_numbers<[1], [0], [0], [1], [0, 0, 1, 1], [], []>} : vector<8x128xf32>, vector<128x640xf32>, vector<8x640xf32> -> vector<8x640xf32>
    %91 = tpu.concatenate %24, %24, %24, %24, %24 in 1 : vector<8x128xf32>, vector<8x128xf32>, vector<8x128xf32>, vector<8x128xf32>, vector<8x128xf32> -> vector<8x640xf32>
    %92 = arith.mulf %90, %91 : vector<8x640xf32>
    %93 = arith.mulf %76, %87 : vector<8x128xf32>
    %c0_29 = arith.constant 0 : index
    %c0_30 = arith.constant 0 : index
    %94 = vector.load %arg7[%c0_29, %c0_30] : memref<128x640xf32, #tpu.memory_space<vmem>>, vector<128x640xf32>
    %cst_31 = arith.constant dense<0.000000e+00> : vector<8x640xf32>
    %95 = tpu.matmul %93, %94, %cst_31 {dimension_numbers = #tpu.dot_dimension_numbers<[1], [0], [0], [1], [0, 0, 1, 1], [], []>} : vector<8x128xf32>, vector<128x640xf32>, vector<8x640xf32> -> vector<8x640xf32>
    %96 = tpu.concatenate %25, %25, %25, %25, %25 in 1 : vector<8x128xf32>, vector<8x128xf32>, vector<8x128xf32>, vector<8x128xf32>, vector<8x128xf32> -> vector<8x640xf32>
    %97 = arith.mulf %95, %96 : vector<8x640xf32>
    %98 = arith.addf %92, %97 : vector<8x640xf32>
    %99 = arith.mulf %78, %87 : vector<8x128xf32>
    %c0_32 = arith.constant 0 : index
    %c0_33 = arith.constant 0 : index
    %100 = vector.load %arg7[%c0_32, %c0_33] : memref<128x640xf32, #tpu.memory_space<vmem>>, vector<128x640xf32>
    %cst_34 = arith.constant dense<0.000000e+00> : vector<8x640xf32>
    %101 = tpu.matmul %99, %100, %cst_34 {dimension_numbers = #tpu.dot_dimension_numbers<[1], [0], [0], [1], [0, 0, 1, 1], [], []>} : vector<8x128xf32>, vector<128x640xf32>, vector<8x640xf32> -> vector<8x640xf32>
    %102 = tpu.concatenate %26, %26, %26, %26, %26 in 1 : vector<8x128xf32>, vector<8x128xf32>, vector<8x128xf32>, vector<8x128xf32>, vector<8x128xf32> -> vector<8x640xf32>
    %103 = arith.mulf %101, %102 : vector<8x640xf32>
    %104 = arith.addf %98, %103 : vector<8x640xf32>
    %105 = arith.mulf %80, %87 : vector<8x128xf32>
    %c0_35 = arith.constant 0 : index
    %c0_36 = arith.constant 0 : index
    %106 = vector.load %arg7[%c0_35, %c0_36] : memref<128x640xf32, #tpu.memory_space<vmem>>, vector<128x640xf32>
    %cst_37 = arith.constant dense<0.000000e+00> : vector<8x640xf32>
    %107 = tpu.matmul %105, %106, %cst_37 {dimension_numbers = #tpu.dot_dimension_numbers<[1], [0], [0], [1], [0, 0, 1, 1], [], []>} : vector<8x128xf32>, vector<128x640xf32>, vector<8x640xf32> -> vector<8x640xf32>
    %108 = tpu.concatenate %27, %27, %27, %27, %27 in 1 : vector<8x128xf32>, vector<8x128xf32>, vector<8x128xf32>, vector<8x128xf32>, vector<8x128xf32> -> vector<8x640xf32>
    %109 = arith.mulf %107, %108 : vector<8x640xf32>
    %110 = arith.addf %104, %109 : vector<8x640xf32>
    %111 = arith.mulf %82, %87 : vector<8x128xf32>
    %c0_38 = arith.constant 0 : index
    %c0_39 = arith.constant 0 : index
    %112 = vector.load %arg7[%c0_38, %c0_39] : memref<128x640xf32, #tpu.memory_space<vmem>>, vector<128x640xf32>
    %cst_40 = arith.constant dense<0.000000e+00> : vector<8x640xf32>
    %113 = tpu.matmul %111, %112, %cst_40 {dimension_numbers = #tpu.dot_dimension_numbers<[1], [0], [0], [1], [0, 0, 1, 1], [], []>} : vector<8x128xf32>, vector<128x640xf32>, vector<8x640xf32> -> vector<8x640xf32>
    %114 = tpu.concatenate %28, %28, %28, %28, %28 in 1 : vector<8x128xf32>, vector<8x128xf32>, vector<8x128xf32>, vector<8x128xf32>, vector<8x128xf32> -> vector<8x640xf32>
    %115 = arith.mulf %113, %114 : vector<8x640xf32>
    %116 = arith.addf %110, %115 : vector<8x640xf32>
    %117 = vector.shape_cast %116 : vector<8x640xf32> to vector<40x128xf32>
    %c0_41 = arith.constant 0 : index
    %c0_42 = arith.constant 0 : index
    %118 = vector.load %arg8[%c0_41, %c0_42] : memref<128x128xf32, #tpu.memory_space<vmem>>, vector<128x128xf32>
    %cst_43 = arith.constant dense<0.000000e+00> : vector<40x128xf32>
    %119 = tpu.matmul %117, %118, %cst_43 {dimension_numbers = #tpu.dot_dimension_numbers<[1], [0], [0], [1], [0, 0, 1, 1], [], []>} : vector<40x128xf32>, vector<128x128xf32>, vector<40x128xf32> -> vector<40x128xf32>
    %c0_44 = arith.constant 0 : index
    %c0_45 = arith.constant 0 : index
    %120 = vector.load %arg9[%c0_44, %c0_45] : memref<1x128xf32, #tpu.memory_space<vmem>>, vector<1x128xf32>
    %121 = vector.broadcast %120 : vector<1x128xf32> to vector<40x128xf32>
    %122 = arith.addf %119, %121 : vector<40x128xf32>
    %123 = arith.addf %8, %122 : vector<40x128xf32>
    %c0_46 = arith.constant 0 : index
    %c0_47 = arith.constant 0 : index
    %124 = vector.load %arg10[%c0_46, %c0_47] : memref<1x128xf32, #tpu.memory_space<vmem>>, vector<1x128xf32>
    %c0_48 = arith.constant 0 : index
    %c0_49 = arith.constant 0 : index
    %125 = vector.load %arg11[%c0_48, %c0_49] : memref<1x128xf32, #tpu.memory_space<vmem>>, vector<1x128xf32>
    %cst_50 = arith.constant dense<0.000000e+00> : vector<40xf32>
    %126 = vector.multi_reduction <add>, %123, %cst_50 [1] : vector<40x128xf32> to vector<40xf32>
    %127 = vector.shape_cast %126 : vector<40xf32> to vector<40x1xf32>
    %cst_51 = arith.constant 1.280000e+02 : f32
    %128 = vector.broadcast %cst_51 : f32 to vector<40x1xf32>
    %129 = arith.divf %127, %128 : vector<40x1xf32>
    %130 = vector.broadcast %129 : vector<40x1xf32> to vector<40x128xf32>
    %131 = arith.subf %123, %130 : vector<40x128xf32>
    %132 = arith.mulf %131, %131 : vector<40x128xf32>
    %cst_52 = arith.constant dense<0.000000e+00> : vector<40xf32>
    %133 = vector.multi_reduction <add>, %132, %cst_52 [1] : vector<40x128xf32> to vector<40xf32>
    %134 = vector.shape_cast %133 : vector<40xf32> to vector<40x1xf32>
    %cst_53 = arith.constant 1.280000e+02 : f32
    %135 = vector.broadcast %cst_53 : f32 to vector<40x1xf32>
    %136 = arith.divf %134, %135 : vector<40x1xf32>
    %cst_54 = arith.constant 9.99999974E-6 : f32
    %137 = vector.broadcast %cst_54 : f32 to vector<40x1xf32>
    %138 = arith.addf %136, %137 : vector<40x1xf32>
    %139 = math.rsqrt %138 : vector<40x1xf32>
    %140 = vector.broadcast %139 : vector<40x1xf32> to vector<40x128xf32>
    %141 = arith.mulf %131, %140 : vector<40x128xf32>
    %142 = vector.broadcast %124 : vector<1x128xf32> to vector<40x128xf32>
    %143 = arith.mulf %141, %142 : vector<40x128xf32>
    %144 = vector.broadcast %125 : vector<1x128xf32> to vector<40x128xf32>
    %145 = arith.addf %143, %144 : vector<40x128xf32>
    %c0_55 = arith.constant 0 : index
    %c0_56 = arith.constant 0 : index
    %146 = vector.load %arg12[%c0_55, %c0_56] : memref<128x2048xf32, #tpu.memory_space<vmem>>, vector<128x2048xf32>
    %cst_57 = arith.constant dense<0.000000e+00> : vector<40x2048xf32>
    %147 = tpu.matmul %145, %146, %cst_57 {dimension_numbers = #tpu.dot_dimension_numbers<[1], [0], [0], [1], [0, 0, 1, 1], [], []>} : vector<40x128xf32>, vector<128x2048xf32>, vector<40x2048xf32> -> vector<40x2048xf32>
    %c0_58 = arith.constant 0 : index
    %c0_59 = arith.constant 0 : index
    %148 = vector.load %arg13[%c0_58, %c0_59] : memref<1x2048xf32, #tpu.memory_space<vmem>>, vector<1x2048xf32>
    %149 = vector.broadcast %148 : vector<1x2048xf32> to vector<40x2048xf32>
    %150 = arith.addf %147, %149 : vector<40x2048xf32>
    %cst_60 = arith.constant 0.000000e+00 : f32
    %151 = vector.broadcast %cst_60 : f32 to vector<40x2048xf32>
    %152 = arith.maximumf %150, %151 : vector<40x2048xf32>
    %c0_61 = arith.constant 0 : index
    %c0_62 = arith.constant 0 : index
    %153 = vector.load %arg14[%c0_61, %c0_62] : memref<2048x128xf32, #tpu.memory_space<vmem>>, vector<2048x128xf32>
    %cst_63 = arith.constant dense<0.000000e+00> : vector<40x128xf32>
    %154 = tpu.matmul %152, %153, %cst_63 {dimension_numbers = #tpu.dot_dimension_numbers<[1], [0], [0], [1], [0, 0, 1, 1], [], []>} : vector<40x2048xf32>, vector<2048x128xf32>, vector<40x128xf32> -> vector<40x128xf32>
    %c0_64 = arith.constant 0 : index
    %c0_65 = arith.constant 0 : index
    %155 = vector.load %arg15[%c0_64, %c0_65] : memref<1x128xf32, #tpu.memory_space<vmem>>, vector<1x128xf32>
    %156 = vector.broadcast %155 : vector<1x128xf32> to vector<40x128xf32>
    %157 = arith.addf %154, %156 : vector<40x128xf32>
    %158 = arith.addf %145, %157 : vector<40x128xf32>
    %c0_66 = arith.constant 0 : index
    %c0_67 = arith.constant 0 : index
    %159 = vector.load %arg16[%c0_66, %c0_67] : memref<1x128xf32, #tpu.memory_space<vmem>>, vector<1x128xf32>
    %c0_68 = arith.constant 0 : index
    %c0_69 = arith.constant 0 : index
    %160 = vector.load %arg17[%c0_68, %c0_69] : memref<1x128xf32, #tpu.memory_space<vmem>>, vector<1x128xf32>
    %cst_70 = arith.constant dense<0.000000e+00> : vector<40xf32>
    %161 = vector.multi_reduction <add>, %158, %cst_70 [1] : vector<40x128xf32> to vector<40xf32>
    %162 = vector.shape_cast %161 : vector<40xf32> to vector<40x1xf32>
    %cst_71 = arith.constant 1.280000e+02 : f32
    %163 = vector.broadcast %cst_71 : f32 to vector<40x1xf32>
    %164 = arith.divf %162, %163 : vector<40x1xf32>
    %165 = vector.broadcast %164 : vector<40x1xf32> to vector<40x128xf32>
    %166 = arith.subf %158, %165 : vector<40x128xf32>
    %167 = arith.mulf %166, %166 : vector<40x128xf32>
    %cst_72 = arith.constant dense<0.000000e+00> : vector<40xf32>
    %168 = vector.multi_reduction <add>, %167, %cst_72 [1] : vector<40x128xf32> to vector<40xf32>
    %169 = vector.shape_cast %168 : vector<40xf32> to vector<40x1xf32>
    %cst_73 = arith.constant 1.280000e+02 : f32
    %170 = vector.broadcast %cst_73 : f32 to vector<40x1xf32>
    %171 = arith.divf %169, %170 : vector<40x1xf32>
    %cst_74 = arith.constant 9.99999974E-6 : f32
    %172 = vector.broadcast %cst_74 : f32 to vector<40x1xf32>
    %173 = arith.addf %171, %172 : vector<40x1xf32>
    %174 = math.rsqrt %173 : vector<40x1xf32>
    %175 = vector.broadcast %174 : vector<40x1xf32> to vector<40x128xf32>
    %176 = arith.mulf %166, %175 : vector<40x128xf32>
    %177 = vector.broadcast %159 : vector<1x128xf32> to vector<40x128xf32>
    %178 = arith.mulf %176, %177 : vector<40x128xf32>
    %179 = vector.broadcast %160 : vector<1x128xf32> to vector<40x128xf32>
    %180 = arith.addf %178, %179 : vector<40x128xf32>
    %181 = vector.shape_cast %180 : vector<40x128xf32> to vector<8x640xf32>
    %c0_75 = arith.constant 0 : index
    %c0_76 = arith.constant 0 : index
    %182 = vector.load %arg18[%c0_75, %c0_76] : memref<640x384xf32, #tpu.memory_space<vmem>>, vector<640x384xf32>
    %cst_77 = arith.constant dense<0.000000e+00> : vector<8x384xf32>
    %183 = tpu.matmul %181, %182, %cst_77 {dimension_numbers = #tpu.dot_dimension_numbers<[1], [0], [0], [1], [0, 0, 1, 1], [], []>} : vector<8x640xf32>, vector<640x384xf32>, vector<8x384xf32> -> vector<8x384xf32>
    %c0_78 = arith.constant 0 : index
    %c0_79 = arith.constant 0 : index
    %184 = vector.load %arg19[%c0_78, %c0_79] : memref<1x384xf32, #tpu.memory_space<vmem>>, vector<1x384xf32>
    %185 = vector.broadcast %184 : vector<1x384xf32> to vector<8x384xf32>
    %186 = arith.addf %183, %185 : vector<8x384xf32>
    %c0_80 = arith.constant 0 : index
    %c0_81 = arith.constant 0 : index
    %187 = vector.load %arg20[%c0_80, %c0_81] : memref<8x384xf32, #tpu.memory_space<vmem>>, vector<8x384xf32>
    tpu.vector_store %arg20[%c0_80, %c0_81], %186 {strides = array<i32>} : memref<8x384xf32, #tpu.memory_space<vmem>>, vector<8x384xf32>,
    return
  }
  func.func @transform_0(%arg0: i32) -> (i32, i32) {
    %c0_i32 = arith.constant 0 : i32
    %c0_i32_0 = arith.constant 0 : i32
    return %arg0, %c0_i32 : i32, i32
  }
  func.func @transform_1(%arg0: i32) -> (i32, i32) {
    %c0_i32 = arith.constant 0 : i32
    %c0_i32_0 = arith.constant 0 : i32
    %c0_i32_1 = arith.constant 0 : i32
    return %c0_i32, %c0_i32_0 : i32, i32
  }
  func.func @transform_2(%arg0: i32) -> (i32, i32) {
    %c0_i32 = arith.constant 0 : i32
    %c0_i32_0 = arith.constant 0 : i32
    %c0_i32_1 = arith.constant 0 : i32
    return %c0_i32, %c0_i32_0 : i32, i32
  }
  func.func @transform_3(%arg0: i32) -> (i32, i32) {
    %c0_i32 = arith.constant 0 : i32
    %c0_i32_0 = arith.constant 0 : i32
    %c0_i32_1 = arith.constant 0 : i32
    return %c0_i32, %c0_i32_0 : i32, i32
  }
  func.func @transform_4(%arg0: i32) -> (i32, i32) {
    %c0_i32 = arith.constant 0 : i32
    %c0_i32_0 = arith.constant 0 : i32
    %c0_i32_1 = arith.constant 0 : i32
    return %c0_i32, %c0_i32_0 : i32, i32
  }
  func.func @transform_5(%arg0: i32) -> (i32, i32) {
    %c0_i32 = arith.constant 0 : i32
    %c0_i32_0 = arith.constant 0 : i32
    %c0_i32_1 = arith.constant 0 : i32
    return %c0_i32, %c0_i32_0 : i32, i32
  }
  func.func @transform_6(%arg0: i32) -> (i32, i32) {
    %c0_i32 = arith.constant 0 : i32
    %c0_i32_0 = arith.constant 0 : i32
    %c0_i32_1 = arith.constant 0 : i32
    return %c0_i32, %c0_i32_0 : i32, i32
  }
  func.func @transform_7(%arg0: i32) -> (i32, i32) {
    %c0_i32 = arith.constant 0 : i32
    %c0_i32_0 = arith.constant 0 : i32
    %c0_i32_1 = arith.constant 0 : i32
    return %c0_i32, %c0_i32_0 : i32, i32
  }
  func.func @transform_8(%arg0: i32) -> (i32, i32) {
    %c0_i32 = arith.constant 0 : i32
    %c0_i32_0 = arith.constant 0 : i32
    %c0_i32_1 = arith.constant 0 : i32
    return %c0_i32, %c0_i32_0 : i32, i32
  }
  func.func @transform_9(%arg0: i32) -> (i32, i32) {
    %c0_i32 = arith.constant 0 : i32
    %c0_i32_0 = arith.constant 0 : i32
    %c0_i32_1 = arith.constant 0 : i32
    return %c0_i32, %c0_i32_0 : i32, i32
  }
  func.func @transform_10(%arg0: i32) -> (i32, i32) {
    %c0_i32 = arith.constant 0 : i32
    %c0_i32_0 = arith.constant 0 : i32
    %c0_i32_1 = arith.constant 0 : i32
    return %c0_i32, %c0_i32_0 : i32, i32
  }
  func.func @transform_11(%arg0: i32) -> (i32, i32) {
    %c0_i32 = arith.constant 0 : i32
    %c0_i32_0 = arith.constant 0 : i32
    %c0_i32_1 = arith.constant 0 : i32
    return %c0_i32, %c0_i32_0 : i32, i32
  }
  func.func @transform_12(%arg0: i32) -> (i32, i32) {
    %c0_i32 = arith.constant 0 : i32
    %c0_i32_0 = arith.constant 0 : i32
    %c0_i32_1 = arith.constant 0 : i32
    return %c0_i32, %c0_i32_0 : i32, i32
  }
  func.func @transform_13(%arg0: i32) -> (i32, i32) {
    %c0_i32 = arith.constant 0 : i32
    %c0_i32_0 = arith.constant 0 : i32
    %c0_i32_1 = arith.constant 0 : i32
    return %c0_i32, %c0_i32_0 : i32, i32
  }
  func.func @transform_14(%arg0: i32) -> (i32, i32) {
    %c0_i32 = arith.constant 0 : i32
    %c0_i32_0 = arith.constant 0 : i32
    %c0_i32_1 = arith.constant 0 : i32
    return %c0_i32, %c0_i32_0 : i32, i32
  }
  func.func @transform_15(%arg0: i32) -> (i32, i32) {
    %c0_i32 = arith.constant 0 : i32
    %c0_i32_0 = arith.constant 0 : i32
    %c0_i32_1 = arith.constant 0 : i32
    return %c0_i32, %c0_i32_0 : i32, i32
  }
  func.func @transform_16(%arg0: i32) -> (i32, i32) {
    %c0_i32 = arith.constant 0 : i32
    %c0_i32_0 = arith.constant 0 : i32
    %c0_i32_1 = arith.constant 0 : i32
    return %c0_i32, %c0_i32_0 : i32, i32
  }
  func.func @transform_17(%arg0: i32) -> (i32, i32) {
    %c0_i32 = arith.constant 0 : i32
    %c0_i32_0 = arith.constant 0 : i32
    %c0_i32_1 = arith.constant 0 : i32
    return %c0_i32, %c0_i32_0 : i32, i32
  }
  func.func @transform_18(%arg0: i32) -> (i32, i32) {
    %c0_i32 = arith.constant 0 : i32
    %c0_i32_0 = arith.constant 0 : i32
    %c0_i32_1 = arith.constant 0 : i32
    return %c0_i32, %c0_i32_0 : i32, i32
  }
  func.func @transform_19(%arg0: i32) -> (i32, i32) {
    %c0_i32 = arith.constant 0 : i32
    %c0_i32_0 = arith.constant 0 : i32
    return %arg0, %c0_i32 : i32, i32
  }
}

</mosaic_0001>

<llo_original>
// kernel: tpu_custom_call.1
$region0: #{tpu_custom_call.1}
  #allocation0 [shape = 'u32[]', space=smem, size = 0x4, offset = 0x4, fixed_abs, tag = 'smem constant byte address 0x4 - core index']
  #allocation1 [shape = 'u32[144,128]{1,0:T(1,128)}', space=vmem, size = 0x12000, scoped, tag = 'internal scratch']
  %s0 = inlined_call_operand.hbm [shape: f32[8,80], index: 0, kind: input, shape index: {}]
  %s1 = inlined_call_operand.hbm [shape: f32[80,640], index: 1, kind: input, shape index: {}]
  %s2 = inlined_call_operand.hbm [shape: f32[1,640], index: 2, kind: input, shape index: {}]
  %s3 = inlined_call_operand.hbm [shape: f32[640,1920], index: 3, kind: input, shape index: {}]
  %s4 = inlined_call_operand.hbm [shape: f32[1,1920], index: 4, kind: input, shape index: {}]
  %s5 = inlined_call_operand.hbm [shape: f32[640,128], index: 5, kind: input, shape index: {}]
  %s6 = inlined_call_operand.hbm [shape: f32[128,640], index: 6, kind: input, shape index: {}]
  %s7 = inlined_call_operand.hbm [shape: f32[128,128], index: 7, kind: input, shape index: {}]
  %s8 = inlined_call_operand.hbm [shape: f32[1,128], index: 8, kind: input, shape index: {}]
  %s9 = inlined_call_operand.hbm [shape: f32[1,128], index: 9, kind: input, shape index: {}]
  %s10 = inlined_call_operand.hbm [shape: f32[1,128], index: 10, kind: input, shape index: {}]
  %s11 = inlined_call_operand.hbm [shape: f32[128,2048], index: 11, kind: input, shape index: {}]
  %s12 = inlined_call_operand.hbm [shape: f32[1,2048], index: 12, kind: input, shape index: {}]
  %s13 = inlined_call_operand.hbm [shape: f32[2048,128], index: 13, kind: input, shape index: {}]
  %s14 = inlined_call_operand.hbm [shape: f32[1,128], index: 14, kind: input, shape index: {}]
  %s15 = inlined_call_operand.hbm [shape: f32[1,128], index: 15, kind: input, shape index: {}]
  %s16 = inlined_call_operand.hbm [shape: f32[1,128], index: 16, kind: input, shape index: {}]
  %s17 = inlined_call_operand.hbm [shape: f32[640,384], index: 17, kind: input, shape index: {}]
  %s18 = inlined_call_operand.hbm [shape: f32[1,384], index: 18, kind: input, shape index: {}]
  %s19 = inlined_call_operand.hbm [shape: f32[8,384], index: 19, kind: output, shape index: {}]
  %s20 = sld [smem:[#allocation0]]
  $region162: #{tpu_custom_call.1} parent=0
    _
  %s22 = ssub.s32 1, %s20
  %s23 = scalar_select 0, %s22, %s20
  $region1: #{tpu_custom_call.1} parent=0
    #allocation2 [shape = 'u8[4096]{0}', space=vmem, size = 0x1000, scoped, tag = 'input window, operand 0, single buffered']
    #allocation3 [shape = 's32[1]{0}', space=sflag, size = 0x4, scoped, tag = 'scoped memory for tpu_custom_call.1']
    #allocation4 [shape = 's32[1]{0}', space=sflag, size = 0x4, scoped, tag = 'scoped memory for tpu_custom_call.1']
    #allocation5 [shape = 'u8[204800]{0}', space=vmem, size = 0x32000, scoped, tag = 'input window, operand 1, single buffered']
    #allocation6 [shape = 's32[1]{0}', space=sflag, size = 0x4, scoped, tag = 'scoped memory for tpu_custom_call.1']
    #allocation7 [shape = 'u8[2560]{0}', space=vmem, size = 0xc00, scoped, tag = 'input window, operand 2, single buffered']
    #allocation8 [shape = 'u8[4915200]{0}', space=vmem, size = 0x4b0000, scoped, tag = 'input window, operand 3, single buffered']
    #allocation9 [shape = 's32[1]{0}', space=sflag, size = 0x4, scoped, tag = 'scoped memory for tpu_custom_call.1']
    #allocation10 [shape = 'u8[7680]{0}', space=vmem, size = 0x2000, scoped, tag = 'input window, operand 4, single buffered']
    #allocation11 [shape = 'u8[327680]{0}', space=vmem, size = 0x50000, scoped, tag = 'input window, operand 5, single buffered']
    #allocation12 [shape = 's32[1]{0}', space=sflag, size = 0x4, scoped, tag = 'scoped memory for tpu_custom_call.1']
    #allocation13 [shape = 'u8[327680]{0}', space=vmem, size = 0x50000, scoped, tag = 'input window, operand 6, single buffered']
    #allocation14 [shape = 'u8[65536]{0}', space=vmem, size = 0x10000, scoped, tag = 'input window, operand 7, single buffered']
    #allocation15 [shape = 's32[1]{0}', space=sflag, size = 0x4, scoped, tag = 'scoped memory for tpu_custom_call.1']
    #allocation16 [shape = 'u8[512]{0}', space=vmem, size = 0x400, scoped, tag = 'input window, operand 8, single buffered']
    #allocation17 [shape = 'u8[512]{0}', space=vmem, size = 0x400, scoped, tag = 'input window, operand 9, single buffered']
    #allocation18 [shape = 's32[1]{0}', space=sflag, size = 0x4, scoped, tag = 'scoped memory for tpu_custom_call.1']
    #allocation19 [shape = 'u8[512]{0}', space=vmem, size = 0x400, scoped, tag = 'input window, operand 10, single buffered']
    #allocation20 [shape = 'u8[1048576]{0}', space=vmem, size = 0x100000, scoped, tag = 'input window, operand 11, single buffered']
    #allocation21 [shape = 's32[1]{0}', space=sflag, size = 0x4, scoped, tag = 'scoped memory for tpu_custom_call.1']
    #allocation22 [shape = 'u8[8192]{0}', space=vmem, size = 0x2000, scoped, tag = 'input window, operand 12, single buffered']
    #allocation23 [shape = 'u8[1048576]{0}', space=vmem, size = 0x100000, scoped, tag = 'input window, operand 13, single buffered']
    #allocation24 [shape = 's32[1]{0}', space=sflag, size = 0x4, scoped, tag = 'scoped memory for tpu_custom_call.1']
    #allocation25 [shape = 'u8[512]{0}', space=vmem, size = 0x400, scoped, tag = 'input window, operand 14, single buffered']
    #allocation26 [shape = 'u8[512]{0}', space=vmem, size = 0x400, scoped, tag = 'input window, operand 15, single buffered']
    #allocation27 [shape = 's32[1]{0}', space=sflag, size = 0x4, scoped, tag = 'scoped memory for tpu_custom_call.1']
    #allocation28 [shape = 'u8[512]{0}', space=vmem, size = 0x400, scoped, tag = 'input window, operand 16, single buffered']
    #allocation29 [shape = 'u8[983040]{0}', space=vmem, size = 0xf0000, scoped, tag = 'input window, operand 17, single buffered']
    #allocation30 [shape = 's32[1]{0}', space=sflag, size = 0x4, scoped, tag = 'scoped memory for tpu_custom_call.1']
    #allocation31 [shape = 'u8[1536]{0}', space=vmem, size = 0x800, scoped, tag = 'input window, operand 18, single buffered']
    #allocation32 [shape = 'u8[12288]{0}', space=vmem, size = 0x3000, scoped, tag = 'output window, operand 0, single buffered']
    %24 = vsyncpa [#allocation3], 0
    %25 = vsyncpa [#allocation6], 0
    %26 = vsyncpa [#allocation9], 0
    %27 = vsyncpa [#allocation12], 0
    %28 = vsyncpa [#allocation15], 0
    %29 = vsyncpa [#allocation18], 0
    %30 = vsyncpa [#allocation21], 0
    %31 = vsyncpa [#allocation24], 0
    %32 = vsyncpa [#allocation27], 0
    %33 = vsyncpa [#allocation30], 0
    %34 = vsyncpa [#allocation4], 0
    // Predicated region
    $region2: #{tpu_custom_call.1} parent=1 // pred_check
      _
    $region3: #{tpu_custom_call.1} parent=1 // pred_check_branch
      %36 = sbr.rel (0) target = $region5
    $region4: #{tpu_custom_call.1} parent=1 // pred_region
      %s38 = ssub.s32 128, 128
      %39 = vsyncadd [#allocation3], %s38
      %s41 = sshll.u32 [#allocation2], 4
      %s42 = int_to_ptr.vmem [resolvable:$true] %s41
      %44 = dma.hbm_to_vmem [thread:$0]  %s0, 128, %s42, [#allocation3]
    $region5: #{tpu_custom_call.1} parent=1 // pred_fallthru
      _
    // Predicated region
    $region6: #{tpu_custom_call.1} parent=1 // pred_check
      _
    $region7: #{tpu_custom_call.1} parent=1 // pred_check_branch
      %46 = sbr.rel (0) target = $region9
    $region8: #{tpu_custom_call.1} parent=1 // pred_region
      %s48 = ssub.s32 6400, 6400
      %49 = vsyncadd [#allocation6], %s48
      %s50 = sshll.u32 [#allocation5], 4
      %s51 = int_to_ptr.vmem [resolvable:$true] %s50
      %56 = dma.hbm_to_vmem [thread:$0]  %s1, 6400, %s51, [#allocation6], 640, 640, 40
    $region9: #{tpu_custom_call.1} parent=1 // pred_fallthru
      _
    // Predicated region
    $region10: #{tpu_custom_call.1} parent=1 // pred_check
      _
    $region11: #{tpu_custom_call.1} parent=1 // pred_check_branch
      %58 = sbr.rel (0) target = $region13
    $region12: #{tpu_custom_call.1} parent=1 // pred_region
      %s60 = ssub.s32 80, 80
      %61 = vsyncadd [#allocation6], %s60
      %s63 = sshll.u32 [#allocation7], 4
      %s64 = int_to_ptr.vmem [resolvable:$true] %s63
      %66 = dma.hbm_to_vmem [thread:$0]  %s2, 80, %s64, [#allocation6]
    $region13: #{tpu_custom_call.1} parent=1 // pred_fallthru
      _
    // Predicated region
    $region14: #{tpu_custom_call.1} parent=1 // pred_check
      _
    $region15: #{tpu_custom_call.1} parent=1 // pred_check_branch
      %68 = sbr.rel (0) target = $region17
    $region16: #{tpu_custom_call.1} parent=1 // pred_region
      %s70 = ssub.s32 153600, 153600
      %71 = vsyncadd [#allocation9], %s70
      %s72 = sshll.u32 [#allocation8], 4
      %s73 = int_to_ptr.vmem [resolvable:$true] %s72
      %78 = dma.hbm_to_vmem [thread:$0]  %s3, 153600, %s73, [#allocation9], 1920, 1920, 120
    $region17: #{tpu_custom_call.1} parent=1 // pred_fallthru
      _
    // Predicated region
    $region18: #{tpu_custom_call.1} parent=1 // pred_check
      _
    $region19: #{tpu_custom_call.1} parent=1 // pred_check_branch
      %80 = sbr.rel (0) target = $region21
    $region20: #{tpu_custom_call.1} parent=1 // pred_region
      %s82 = ssub.s32 240, 240
      %83 = vsyncadd [#allocation9], %s82
      %s85 = sshll.u32 [#allocation10], 4
      %s86 = int_to_ptr.vmem [resolvable:$true] %s85
      %88 = dma.hbm_to_vmem [thread:$0]  %s4, 240, %s86, [#allocation9]
    $region21: #{tpu_custom_call.1} parent=1 // pred_fallthru
      _
    // Predicated region
    $region22: #{tpu_custom_call.1} parent=1 // pred_check
      _
    $region23: #{tpu_custom_call.1} parent=1 // pred_check_branch
      %90 = sbr.rel (0) target = $region25
    $region24: #{tpu_custom_call.1} parent=1 // pred_region
      %s92 = ssub.s32 10240, 10240
      %93 = vsyncadd [#allocation12], %s92
      %s94 = sshll.u32 [#allocation11], 4
      %s95 = int_to_ptr.vmem [resolvable:$true] %s94
      %100 = dma.hbm_to_vmem [thread:$0]  %s5, 10240, %s95, [#allocation12], 128, 128, 8
    $region25: #{tpu_custom_call.1} parent=1 // pred_fallthru
      _
    // Predicated region
    $region26: #{tpu_custom_call.1} parent=1 // pred_check
      _
    $region27: #{tpu_custom_call.1} parent=1 // pred_check_branch
      %102 = sbr.rel (0) target = $region29
    $region28: #{tpu_custom_call.1} parent=1 // pred_region
      %s104 = ssub.s32 10240, 10240
      %105 = vsyncadd [#allocation12], %s104
      %s106 = sshll.u32 [#allocation13], 4
      %s107 = int_to_ptr.vmem [resolvable:$true] %s106
      %112 = dma.hbm_to_vmem [thread:$0]  %s6, 10240, %s107, [#allocation12], 640, 640, 40
    $region29: #{tpu_custom_call.1} parent=1 // pred_fallthru
      _
    // Predicated region
    $region30: #{tpu_custom_call.1} parent=1 // pred_check
      _
    $region31: #{tpu_custom_call.1} parent=1 // pred_check_branch
      %114 = sbr.rel (0) target = $region33
    $region32: #{tpu_custom_call.1} parent=1 // pred_region
      %s116 = ssub.s32 2048, 2048
      %117 = vsyncadd [#allocation15], %s116
      %s118 = sshll.u32 [#allocation14], 4
      %s119 = int_to_ptr.vmem [resolvable:$true] %s118
      %124 = dma.hbm_to_vmem [thread:$0]  %s7, 2048, %s119, [#allocation15], 128, 128, 8
    $region33: #{tpu_custom_call.1} parent=1 // pred_fallthru
      _
    // Predicated region
    $region34: #{tpu_custom_call.1} parent=1 // pred_check
      _
    $region35: #{tpu_custom_call.1} parent=1 // pred_check_branch
      %126 = sbr.rel (0) target = $region37
    $region36: #{tpu_custom_call.1} parent=1 // pred_region
      %s128 = ssub.s32 16, 16
      %129 = vsyncadd [#allocation15], %s128
      %s131 = sshll.u32 [#allocation16], 4
      %s132 = int_to_ptr.vmem [resolvable:$true] %s131
      %134 = dma.hbm_to_vmem [thread:$0]  %s8, 16, %s132, [#allocation15]
    $region37: #{tpu_custom_call.1} parent=1 // pred_fallthru
      _
    // Predicated region
    $region38: #{tpu_custom_call.1} parent=1 // pred_check
      _
    $region39: #{tpu_custom_call.1} parent=1 // pred_check_branch
      %136 = sbr.rel (0) target = $region41
    $region40: #{tpu_custom_call.1} parent=1 // pred_region
      %s138 = ssub.s32 16, 16
      %139 = vsyncadd [#allocation18], %s138
      %s141 = sshll.u32 [#allocation17], 4
      %s142 = int_to_ptr.vmem [resolvable:$true] %s141
      %144 = dma.hbm_to_vmem [thread:$0]  %s9, 16, %s142, [#allocation18]
    $region41: #{tpu_custom_call.1} parent=1 // pred_fallthru
      _
    // Predicated region
    $region42: #{tpu_custom_call.1} parent=1 // pred_check
      _
    $region43: #{tpu_custom_call.1} parent=1 // pred_check_branch
      %146 = sbr.rel (0) target = $region45
    $region44: #{tpu_custom_call.1} parent=1 // pred_region
      %s148 = ssub.s32 16, 16
      %149 = vsyncadd [#allocation18], %s148
      %s151 = sshll.u32 [#allocation19], 4
      %s152 = int_to_ptr.vmem [resolvable:$true] %s151
      %154 = dma.hbm_to_vmem [thread:$0]  %s10, 16, %s152, [#allocation18]
    $region45: #{tpu_custom_call.1} parent=1 // pred_fallthru
      _
    // Predicated region
    $region46: #{tpu_custom_call.1} parent=1 // pred_check
      _
    $region47: #{tpu_custom_call.1} parent=1 // pred_check_branch
      %156 = sbr.rel (0) target = $region49
    $region48: #{tpu_custom_call.1} parent=1 // pred_region
      %s158 = ssub.s32 32768, 32768
      %159 = vsyncadd [#allocation21], %s158
      %s160 = sshll.u32 [#allocation20], 4
      %s161 = int_to_ptr.vmem [resolvable:$true] %s160
      %166 = dma.hbm_to_vmem [thread:$0]  %s11, 32768, %s161, [#allocation21], 2048, 2048, 128
    $region49: #{tpu_custom_call.1} parent=1 // pred_fallthru
      _
    // Predicated region
    $region50: #{tpu_custom_call.1} parent=1 // pred_check
      _
    $region51: #{tpu_custom_call.1} parent=1 // pred_check_branch
      %168 = sbr.rel (0) target = $region53
    $region52: #{tpu_custom_call.1} parent=1 // pred_region
      %s170 = ssub.s32 256, 256
      %171 = vsyncadd [#allocation21], %s170
      %s173 = sshll.u32 [#allocation22], 4
      %s174 = int_to_ptr.vmem [resolvable:$true] %s173
      %176 = dma.hbm_to_vmem [thread:$0]  %s12, 256, %s174, [#allocation21]
    $region53: #{tpu_custom_call.1} parent=1 // pred_fallthru
      _
    // Predicated region
    $region54: #{tpu_custom_call.1} parent=1 // pred_check
      _
    $region55: #{tpu_custom_call.1} parent=1 // pred_check_branch
      %178 = sbr.rel (0) target = $region57
    $region56: #{tpu_custom_call.1} parent=1 // pred_region
      %s180 = ssub.s32 32768, 32768
      %181 = vsyncadd [#allocation24], %s180
      %s182 = sshll.u32 [#allocation23], 4
      %s183 = int_to_ptr.vmem [resolvable:$true] %s182
      %188 = dma.hbm_to_vmem [thread:$0]  %s13, 32768, %s183, [#allocation24], 128, 128, 8
    $region57: #{tpu_custom_call.1} parent=1 // pred_fallthru
      _
    // Predicated region
    $region58: #{tpu_custom_call.1} parent=1 // pred_check
      _
    $region59: #{tpu_custom_call.1} parent=1 // pred_check_branch
      %190 = sbr.rel (0) target = $region61
    $region60: #{tpu_custom_call.1} parent=1 // pred_region
      %s192 = ssub.s32 16, 16
      %193 = vsyncadd [#allocation24], %s192
      %s195 = sshll.u32 [#allocation25], 4
      %s196 = int_to_ptr.vmem [resolvable:$true] %s195
      %198 = dma.hbm_to_vmem [thread:$0]  %s14, 16, %s196, [#allocation24]
    $region61: #{tpu_custom_call.1} parent=1 // pred_fallthru
      _
    // Predicated region
    $region62: #{tpu_custom_call.1} parent=1 // pred_check
      _
    $region63: #{tpu_custom_call.1} parent=1 // pred_check_branch
      %200 = sbr.rel (0) target = $region65
    $region64: #{tpu_custom_call.1} parent=1 // pred_region
      %s202 = ssub.s32 16, 16
      %203 = vsyncadd [#allocation27], %s202
      %s205 = sshll.u32 [#allocation26], 4
      %s206 = int_to_ptr.vmem [resolvable:$true] %s205
      %208 = dma.hbm_to_vmem [thread:$0]  %s15, 16, %s206, [#allocation27]
    $region65: #{tpu_custom_call.1} parent=1 // pred_fallthru
      _
    // Predicated region
    $region66: #{tpu_custom_call.1} parent=1 // pred_check
      _
    $region67: #{tpu_custom_call.1} parent=1 // pred_check_branch
      %210 = sbr.rel (0) target = $region69
    $region68: #{tpu_custom_call.1} parent=1 // pred_region
      %s212 = ssub.s32 16, 16
      %213 = vsyncadd [#allocation27], %s212
      %s215 = sshll.u32 [#allocation28], 4
      %s216 = int_to_ptr.vmem [resolvable:$true] %s215
      %218 = dma.hbm_to_vmem [thread:$0]  %s16, 16, %s216, [#allocation27]
    $region69: #{tpu_custom_call.1} parent=1 // pred_fallthru
      _
    // Predicated region
    $region70: #{tpu_custom_call.1} parent=1 // pred_check
      _
    $region71: #{tpu_custom_call.1} parent=1 // pred_check_branch
      %220 = sbr.rel (0) target = $region73
    $region72: #{tpu_custom_call.1} parent=1 // pred_region
      %s222 = ssub.s32 30720, 30720
      %223 = vsyncadd [#allocation30], %s222
      %s224 = sshll.u32 [#allocation29], 4
      %s225 = int_to_ptr.vmem [resolvable:$true] %s224
      %230 = dma.hbm_to_vmem [thread:$0]  %s17, 30720, %s225, [#allocation30], 384, 384, 24
    $region73: #{tpu_custom_call.1} parent=1 // pred_fallthru
      _
    // Predicated region
    $region74: #{tpu_custom_call.1} parent=1 // pred_check
      _
    $region75: #{tpu_custom_call.1} parent=1 // pred_check_branch
      %232 = sbr.rel (0) target = $region77
    $region76: #{tpu_custom_call.1} parent=1 // pred_region
      %s234 = ssub.s32 48, 48
      %235 = vsyncadd [#allocation30], %s234
      %s237 = sshll.u32 [#allocation31], 4
      %s238 = int_to_ptr.vmem [resolvable:$true] %s237
      %240 = dma.hbm_to_vmem [thread:$0]  %s18, 48, %s238, [#allocation30]
    $region77: #{tpu_custom_call.1} parent=1 // pred_fallthru
      _
    // Predicated region
    $region78: #{tpu_custom_call.1} parent=1 // pred_check
      _
    $region79: #{tpu_custom_call.1} parent=1 // pred_check_branch
      %242 = sbr.rel (0) target = $region81
    $region80: #{tpu_custom_call.1} parent=1 // pred_region
      %243 = dma.done [#allocation3], 128
    $region81: #{tpu_custom_call.1} parent=1 // pred_fallthru
      _
    // Predicated region
    $region82: #{tpu_custom_call.1} parent=1 // pred_check
      _
    $region83: #{tpu_custom_call.1} parent=1 // pred_check_branch
      %245 = sbr.rel (0) target = $region85
    $region84: #{tpu_custom_call.1} parent=1 // pred_region
      %246 = dma.done [#allocation6], 6400
    $region85: #{tpu_custom_call.1} parent=1 // pred_fallthru
      _
    // Predicated region
    $region86: #{tpu_custom_call.1} parent=1 // pred_check
      _
    $region87: #{tpu_custom_call.1} parent=1 // pred_check_branch
      %248 = sbr.rel (0) target = $region89
    $region88: #{tpu_custom_call.1} parent=1 // pred_region
      %249 = dma.done [#allocation6], 80
    $region89: #{tpu_custom_call.1} parent=1 // pred_fallthru
      _
    // Predicated region
    $region90: #{tpu_custom_call.1} parent=1 // pred_check
      _
    $region91: #{tpu_custom_call.1} parent=1 // pred_check_branch
      %251 = sbr.rel (0) target = $region93
    $region92: #{tpu_custom_call.1} parent=1 // pred_region
      %252 = dma.done [#allocation9], 153600
    $region93: #{tpu_custom_call.1} parent=1 // pred_fallthru
      _
    // Predicated region
    $region94: #{tpu_custom_call.1} parent=1 // pred_check
      _
    $region95: #{tpu_custom_call.1} parent=1 // pred_check_branch
      %254 = sbr.rel (0) target = $region97
    $region96: #{tpu_custom_call.1} parent=1 // pred_region
      %255 = dma.done [#allocation9], 240
    $region97: #{tpu_custom_call.1} parent=1 // pred_fallthru
      _
    // Predicated region
    $region98: #{tpu_custom_call.1} parent=1 // pred_check
      _
    $region99: #{tpu_custom_call.1} parent=1 // pred_check_branch
      %257 = sbr.rel (0) target = $region101
    $region100: #{tpu_custom_call.1} parent=1 // pred_region
      %258 = dma.done [#allocation12], 10240
    $region101: #{tpu_custom_call.1} parent=1 // pred_fallthru
      _
    // Predicated region
    $region102: #{tpu_custom_call.1} parent=1 // pred_check
      _
    $region103: #{tpu_custom_call.1} parent=1 // pred_check_branch
      %260 = sbr.rel (0) target = $region105
    $region104: #{tpu_custom_call.1} parent=1 // pred_region
      %261 = dma.done [#allocation12], 10240
    $region105: #{tpu_custom_call.1} parent=1 // pred_fallthru
      _
    // Predicated region
    $region106: #{tpu_custom_call.1} parent=1 // pred_check
      _
    $region107: #{tpu_custom_call.1} parent=1 // pred_check_branch
      %263 = sbr.rel (0) target = $region109
    $region108: #{tpu_custom_call.1} parent=1 // pred_region
      %264 = dma.done [#allocation15], 2048
    $region109: #{tpu_custom_call.1} parent=1 // pred_fallthru
      _
    // Predicated region
    $region110: #{tpu_custom_call.1} parent=1 // pred_check
      _
    $region111: #{tpu_custom_call.1} parent=1 // pred_check_branch
      %266 = sbr.rel (0) target = $region113
    $region112: #{tpu_custom_call.1} parent=1 // pred_region
      %267 = dma.done [#allocation15], 16
    $region113: #{tpu_custom_call.1} parent=1 // pred_fallthru
      _
    // Predicated region
    $region114: #{tpu_custom_call.1} parent=1 // pred_check
      _
    $region115: #{tpu_custom_call.1} parent=1 // pred_check_branch
      %269 = sbr.rel (0) target = $region117
    $region116: #{tpu_custom_call.1} parent=1 // pred_region
      %270 = dma.done [#allocation18], 16
    $region117: #{tpu_custom_call.1} parent=1 // pred_fallthru
      _
    // Predicated region
    $region118: #{tpu_custom_call.1} parent=1 // pred_check
      _
    $region119: #{tpu_custom_call.1} parent=1 // pred_check_branch
      %272 = sbr.rel (0) target = $region121
    $region120: #{tpu_custom_call.1} parent=1 // pred_region
      %273 = dma.done [#allocation18], 16
    $region121: #{tpu_custom_call.1} parent=1 // pred_fallthru
      _
    // Predicated region
    $region122: #{tpu_custom_call.1} parent=1 // pred_check
      _
    $region123: #{tpu_custom_call.1} parent=1 // pred_check_branch
      %275 = sbr.rel (0) target = $region125
    $region124: #{tpu_custom_call.1} parent=1 // pred_region
      %276 = dma.done [#allocation21], 32768
    $region125: #{tpu_custom_call.1} parent=1 // pred_fallthru
      _
    // Predicated region
    $region126: #{tpu_custom_call.1} parent=1 // pred_check
      _
    $region127: #{tpu_custom_call.1} parent=1 // pred_check_branch
      %278 = sbr.rel (0) target = $region129
    $region128: #{tpu_custom_call.1} parent=1 // pred_region
      %279 = dma.done [#allocation21], 256
    $region129: #{tpu_custom_call.1} parent=1 // pred_fallthru
      _
    // Predicated region
    $region130: #{tpu_custom_call.1} parent=1 // pred_check
      _
    $region131: #{tpu_custom_call.1} parent=1 // pred_check_branch
      %281 = sbr.rel (0) target = $region133
    $region132: #{tpu_custom_call.1} parent=1 // pred_region
      %282 = dma.done [#allocation24], 32768
    $region133: #{tpu_custom_call.1} parent=1 // pred_fallthru
      _
    // Predicated region
    $region134: #{tpu_custom_call.1} parent=1 // pred_check
      _
    $region135: #{tpu_custom_call.1} parent=1 // pred_check_branch
      %284 = sbr.rel (0) target = $region137
    $region136: #{tpu_custom_call.1} parent=1 // pred_region
      %285 = dma.done [#allocation24], 16
    $region137: #{tpu_custom_call.1} parent=1 // pred_fallthru
      _
    // Predicated region
    $region138: #{tpu_custom_call.1} parent=1 // pred_check
      _
    $region139: #{tpu_custom_call.1} parent=1 // pred_check_branch
      %287 = sbr.rel (0) target = $region141
    $region140: #{tpu_custom_call.1} parent=1 // pred_region
      %288 = dma.done [#allocation27], 16
    $region141: #{tpu_custom_call.1} parent=1 // pred_fallthru
      _
    // Predicated region
    $region142: #{tpu_custom_call.1} parent=1 // pred_check
      _
    $region143: #{tpu_custom_call.1} parent=1 // pred_check_branch
      %290 = sbr.rel (0) target = $region145
    $region144: #{tpu_custom_call.1} parent=1 // pred_region
      %291 = dma.done [#allocation27], 16
    $region145: #{tpu_custom_call.1} parent=1 // pred_fallthru
      _
    // Predicated region
    $region146: #{tpu_custom_call.1} parent=1 // pred_check
      _
    $region147: #{tpu_custom_call.1} parent=1 // pred_check_branch
      %293 = sbr.rel (0) target = $region149
    $region148: #{tpu_custom_call.1} parent=1 // pred_region
      %294 = dma.done [#allocation30], 30720
    $region149: #{tpu_custom_call.1} parent=1 // pred_fallthru
      _
    // Predicated region
    $region150: #{tpu_custom_call.1} parent=1 // pred_check
      _
    $region151: #{tpu_custom_call.1} parent=1 // pred_check_branch
      %296 = sbr.rel (0) target = $region153
    $region152: #{tpu_custom_call.1} parent=1 // pred_region
      %297 = dma.done [#allocation30], 48
    $region153: #{tpu_custom_call.1} parent=1 // pred_fallthru
      _
    %v298 = vld [vmem:[#allocation2] sm:$0xff]
    %v299 = vld [vmem:[#allocation5] sm:$0xff]
    %v300 = vld [vmem:[#allocation5 + $0x8] sm:$0xff]
    %v301 = vld [vmem:[#allocation5 + $0x10] sm:$0xff]
    %v302 = vld [vmem:[#allocation5 + $0x18] sm:$0xff]
    %v303 = vld [vmem:[#allocation5 + $0x20] sm:$0xff]
    %v304 = vld [vmem:[#allocation5 + $0x28] sm:$0xff]
    %v305 = vld [vmem:[#allocation5 + $0x30] sm:$0xff]
    %v306 = vld [vmem:[#allocation5 + $0x38] sm:$0xff]
    %v307 = vld [vmem:[#allocation5 + $0x40] sm:$0xff]
    %v308 = vld [vmem:[#allocation5 + $0x48] sm:$0xff]
    %v309 = vld [vmem:[#allocation5 + $0x50] sm:$0xff]
    %v310 = vld [vmem:[#allocation5 + $0x58] sm:$0xff]
    %v311 = vld [vmem:[#allocation5 + $0x60] sm:$0xff]
    %v312 = vld [vmem:[#allocation5 + $0x68] sm:$0xff]
    %v313 = vld [vmem:[#allocation5 + $0x70] sm:$0xff]
    %v314 = vld [vmem:[#allocation5 + $0x78] sm:$0xff]
    %v315 = vld [vmem:[#allocation5 + $0x80] sm:$0xff]
    %v316 = vld [vmem:[#allocation5 + $0x88] sm:$0xff]
    %v317 = vld [vmem:[#allocation5 + $0x90] sm:$0xff]
    %v318 = vld [vmem:[#allocation5 + $0x98] sm:$0xff]
    %v319 = vld [vmem:[#allocation5 + $0xa0] sm:$0xff]
    %v320 = vld [vmem:[#allocation5 + $0xa8] sm:$0xff]
    %v321 = vld [vmem:[#allocation5 + $0xb0] sm:$0xff]
    %v322 = vld [vmem:[#allocation5 + $0xb8] sm:$0xff]
    %v323 = vld [vmem:[#allocation5 + $0xc0] sm:$0xff]
    %v324 = vld [vmem:[#allocation5 + $0xc8] sm:$0xff]
    %v325 = vld [vmem:[#allocation5 + $0xd0] sm:$0xff]
    %v326 = vld [vmem:[#allocation5 + $0xd8] sm:$0xff]
    %v327 = vld [vmem:[#allocation5 + $0xe0] sm:$0xff]
    %v328 = vld [vmem:[#allocation5 + $0xe8] sm:$0xff]
    %v329 = vld [vmem:[#allocation5 + $0xf0] sm:$0xff]
    %v330 = vld [vmem:[#allocation5 + $0xf8] sm:$0xff]
    %v331 = vld [vmem:[#allocation5 + $0x100] sm:$0xff]
    %v332 = vld [vmem:[#allocation5 + $0x108] sm:$0xff]
    %v333 = vld [vmem:[#allocation5 + $0x110] sm:$0xff]
    %v334 = vld [vmem:[#allocation5 + $0x118] sm:$0xff]
    %v335 = vld [vmem:[#allocation5 + $0x120] sm:$0xff]
    %v336 = vld [vmem:[#allocation5 + $0x128] sm:$0xff]
    %v337 = vld [vmem:[#allocation5 + $0x130] sm:$0xff]
    %v338 = vld [vmem:[#allocation5 + $0x138] sm:$0xff]
    %v339 = vld [vmem:[#allocation5 + $0x140] sm:$0xff]
    %v340 = vld [vmem:[#allocation5 + $0x148] sm:$0xff]
    %v341 = vld [vmem:[#allocation5 + $0x150] sm:$0xff]
    %v342 = vld [vmem:[#allocation5 + $0x158] sm:$0xff]
    %v343 = vld [vmem:[#allocation5 + $0x160] sm:$0xff]
    %v344 = vld [vmem:[#allocation5 + $0x168] sm:$0xff]
    %v345 = vld [vmem:[#allocation5 + $0x170] sm:$0xff]
    %v346 = vld [vmem:[#allocation5 + $0x178] sm:$0xff]
    %v347 = vld [vmem:[#allocation5 + $0x180] sm:$0xff]
    %v348 = vld [vmem:[#allocation5 + $0x188] sm:$0xff]
    %v349 = vld [vmem:[#allocation7] sm:$0x1f]
    %v351 = vlaneseq
    %v352 = vshrl.u32 %v351, 7
    %v353 = vsub.s32 0, %v352
    %v354 = vrot.slane %v349, %v353
    %v355 = vlaneseq
    %v356 = vshrl.u32 %v355, 7
    %v357 = vsub.s32 1, %v356
    %v358 = vrot.slane %v349, %v357
    %v359 = vlaneseq
    %v360 = vshrl.u32 %v359, 7
    %v361 = vsub.s32 2, %v360
    %v362 = vrot.slane %v349, %v361
    %v363 = vlaneseq
    %v364 = vshrl.u32 %v363, 7
    %v365 = vsub.s32 3, %v364
    %v366 = vrot.slane %v349, %v365
    %v367 = vlaneseq
    %v368 = vshrl.u32 %v367, 7
    %v369 = vsub.s32 4, %v368
    %v370 = vrot.slane %v349, %v369
    %vm376 = vcmask 654336
    %v378 = vsel %vm376, %v298, 0
    %380 = vmatprep.subr.mxu0 0.0
    %381 = vmatpush1.msra.mxu0 0.0
    %382 = vmatprep.subr.mxu0 0.0
    %383 = vmatpush1.msra.mxu0 0.0
    %384 = vmatprep.subr.mxu0 0.0
    %385 = vmatpush1.msra.mxu0 0.0
    %386 = vmatprep.subr.mxu0 0.0
    %387 = vmatpush1.msra.mxu0 0.0
    %388 = vmatprep.subr.mxu0 0.0
    %389 = vmatpush1.msra.mxu0 0.0
    %390 = vmatprep.subr.mxu0 0.0
    %391 = vmatpush1.msra.mxu0 0.0
    %392 = vmatprep.subr.mxu0 %v345
    %393 = vmatpush1.msra.mxu0 %v344
    %394 = vmatprep.subr.mxu0 %v340
    %395 = vmatpush1.msra.mxu0 %v339
    %396 = vmatprep.subr.mxu0 %v335
    %397 = vmatpush1.msra.mxu0 %v334
    %398 = vmatprep.subr.mxu0 %v330
    %399 = vmatpush1.msra.mxu0 %v329
    %400 = vmatprep.subr.mxu0 %v325
    %401 = vmatpush1.msra.mxu0 %v324
    %402 = vmatprep.subr.mxu0 %v320
    %403 = vmatpush1.msra.mxu0 %v319
    %404 = vmatprep.subr.mxu0 %v315
    %405 = vmatpush1.msra.mxu0 %v314
    %406 = vmatprep.subr.mxu0 %v310
    %407 = vmatpush1.msra.mxu0 %v309
    %408 = vmatprep.subr.mxu0 %v305
    %409 = vmatpush1.msra.mxu0 %v304
    %410 = vmatprep.subr.mxu0 %v300
    %411 = vmatpush1.msra.mxu0 %v299
    %412 = vmatprep.subr.mxu0 0.0
    %413 = vmatpush2.msra.mxu0 0.0
    %414 = vmatprep.subr.mxu0 0.0
    %415 = vmatpush2.msra.mxu0 0.0
    %416 = vmatprep.subr.mxu0 0.0
    %417 = vmatpush2.msra.mxu0 0.0
    %418 = vmatprep.subr.mxu0 0.0
    %419 = vmatpush2.msra.mxu0 0.0
    %420 = vmatprep.subr.mxu0 0.0
    %421 = vmatpush2.msra.mxu0 0.0
    %422 = vmatprep.subr.mxu0 0.0
    %423 = vmatpush2.msra.mxu0 0.0
    %424 = vmatprep.subr.mxu0 0.0
    %425 = vmatpush2.msra.mxu0 0.0
    %426 = vmatprep.subr.mxu0 0.0
    %427 = vmatpush2.msra.mxu0 0.0
    %428 = vmatprep.subr.mxu0 0.0
    %429 = vmatpush2.msra.mxu0 0.0
    %430 = vmatprep.subr.mxu0 0.0
    %431 = vmatpush2.msra.mxu0 0.0
    %432 = vmatprep.subr.mxu0 0.0
    %433 = vmatpush2.msra.mxu0 0.0
    %434 = vmatprep.subr.mxu0 0.0
    %435 = vmatpush2.msra.mxu0 0.0
    %436 = vmatprep.subr.mxu0 0.0
    %437 = vmatpush2.msra.mxu0 0.0
    %438 = vmatprep.subr.mxu0 0.0
    %439 = vmatpush2.msra.mxu0 0.0
    %440 = vmatprep.subr.mxu0 0.0
    %441 = vmatpush2.msra.mxu0 0.0
    %442 = vmatprep.subr.mxu0 0.0
    %443 = vmatpush2.msra.mxu0 0.0
    %444 = vmatprep.mubr.f32.mxu0 0.0
    %445 = vmatmul.mubr.f32.gmra.mxu0 %v378
    %v446 = vpop.f32.mrf.mxu0
    %v447 = vadd.f32 %v354, %v446
    %v448 = vpop.f32.mrf.mxu0
    %v449 = vadd.f32 %v358, %v448
    %450 = vdwg.mxu0
    %451 = vmatprep.subr.mxu0 0.0
    %452 = vmatpush1.msra.mxu0 0.0
    %453 = vmatprep.subr.mxu0 0.0
    %454 = vmatpush1.msra.mxu0 0.0
    %455 = vmatprep.subr.mxu0 0.0
    %456 = vmatpush1.msra.mxu0 0.0
    %457 = vmatprep.subr.mxu0 0.0
    %458 = vmatpush1.msra.mxu0 0.0
    %459 = vmatprep.subr.mxu0 0.0
    %460 = vmatpush1.msra.mxu0 0.0
    %461 = vmatprep.subr.mxu0 0.0
    %462 = vmatpush1.msra.mxu0 0.0
    %463 = vmatprep.subr.mxu0 %v347
    %464 = vmatpush1.msra.mxu0 %v346
    %465 = vmatprep.subr.mxu0 %v342
    %466 = vmatpush1.msra.mxu0 %v341
    %467 = vmatprep.subr.mxu0 %v337
    %468 = vmatpush1.msra.mxu0 %v336
    %469 = vmatprep.subr.mxu0 %v332
    %470 = vmatpush1.msra.mxu0 %v331
    %471 = vmatprep.subr.mxu0 %v327
    %472 = vmatpush1.msra.mxu0 %v326
    %473 = vmatprep.subr.mxu0 %v322
    %474 = vmatpush1.msra.mxu0 %v321
    %475 = vmatprep.subr.mxu0 %v317
    %476 = vmatpush1.msra.mxu0 %v316
    %477 = vmatprep.subr.mxu0 %v312
    %478 = vmatpush1.msra.mxu0 %v311
    %479 = vmatprep.subr.mxu0 %v307
    %480 = vmatpush1.msra.mxu0 %v306
    %481 = vmatprep.subr.mxu0 %v302
    %482 = vmatpush1.msra.mxu0 %v301
    %483 = vmatprep.subr.mxu0 0.0
    %484 = vmatpush2.msra.mxu0 0.0
    %485 = vmatprep.subr.mxu0 0.0
    %486 = vmatpush2.msra.mxu0 0.0
    %487 = vmatprep.subr.mxu0 0.0
    %488 = vmatpush2.msra.mxu0 0.0
    %489 = vmatprep.subr.mxu0 0.0
    %490 = vmatpush2.msra.mxu0 0.0
    %491 = vmatprep.subr.mxu0 0.0
    %492 = vmatpush2.msra.mxu0 0.0
    %493 = vmatprep.subr.mxu0 0.0
    %494 = vmatpush2.msra.mxu0 0.0
    %495 = vmatprep.subr.mxu0 0.0
    %496 = vmatpush2.msra.mxu0 0.0
    %497 = vmatprep.subr.mxu0 0.0
    %498 = vmatpush2.msra.mxu0 0.0
    %499 = vmatprep.subr.mxu0 0.0
    %500 = vmatpush2.msra.mxu0 0.0
    %501 = vmatprep.subr.mxu0 0.0
    %502 = vmatpush2.msra.mxu0 0.0
    %503 = vmatprep.subr.mxu0 0.0
    %504 = vmatpush2.msra.mxu0 0.0
    %505 = vmatprep.subr.mxu0 0.0
    %506 = vmatpush2.msra.mxu0 0.0
    %507 = vmatprep.subr.mxu0 0.0
    %508 = vmatpush2.msra.mxu0 0.0
    %509 = vmatprep.subr.mxu0 0.0
    %510 = vmatpush2.msra.mxu0 0.0
    %511 = vmatprep.subr.mxu0 0.0
    %512 = vmatpush2.msra.mxu0 0.0
    %513 = vmatprep.subr.mxu0 0.0
    %514 = vmatpush2.msra.mxu0 0.0
    %515 = vmatprep.mubr.f32.mxu0 0.0
    %516 = vmatmul.mubr.f32.gmra.mxu0 %v378
    %v517 = vpop.f32.mrf.mxu0
    %v518 = vadd.f32 %v362, %v517
    %v519 = vpop.f32.mrf.mxu0
    %v520 = vadd.f32 %v366, %v519
    %521 = vdwg.mxu0
    %522 = vmatprep.subr.mxu0 0.0
    %523 = vmatpush1.msra.mxu0 0.0
    %524 = vmatprep.subr.mxu0 0.0
    %525 = vmatpush1.msra.mxu0 0.0
    %526 = vmatprep.subr.mxu0 0.0
    %527 = vmatpush1.msra.mxu0 0.0
    %528 = vmatprep.subr.mxu0 0.0
    %529 = vmatpush1.msra.mxu0 0.0
    %530 = vmatprep.subr.mxu0 0.0
    %531 = vmatpush1.msra.mxu0 0.0
    %532 = vmatprep.subr.mxu0 0.0
    %533 = vmatpush1.msra.mxu0 0.0
    %534 = vmatprep.subr.mxu0 0.0
    %535 = vmatpush1.msra.mxu0 %v348
    %536 = vmatprep.subr.mxu0 0.0
    %537 = vmatpush1.msra.mxu0 %v343
    %538 = vmatprep.subr.mxu0 0.0
    %539 = vmatpush1.msra.mxu0 %v338
    %540 = vmatprep.subr.mxu0 0.0
    %541 = vmatpush1.msra.mxu0 %v333
    %542 = vmatprep.subr.mxu0 0.0
    %543 = vmatpush1.msra.mxu0 %v328
    %544 = vmatprep.subr.mxu0 0.0
    %545 = vmatpush1.msra.mxu0 %v323
    %546 = vmatprep.subr.mxu0 0.0
    %547 = vmatpush1.msra.mxu0 %v318
    %548 = vmatprep.subr.mxu0 0.0
    %549 = vmatpush1.msra.mxu0 %v313
    %550 = vmatprep.subr.mxu0 0.0
    %551 = vmatpush1.msra.mxu0 %v308
    %552 = vmatprep.subr.mxu0 0.0
    %553 = vmatpush1.msra.mxu0 %v303
    %554 = vmatprep.subr.mxu0 0.0
    %555 = vmatpush2.msra.mxu0 0.0
    %556 = vmatprep.subr.mxu0 0.0
    %557 = vmatpush2.msra.mxu0 0.0
    %558 = vmatprep.subr.mxu0 0.0
    %559 = vmatpush2.msra.mxu0 0.0
    %560 = vmatprep.subr.mxu0 0.0
    %561 = vmatpush2.msra.mxu0 0.0
    %562 = vmatprep.subr.mxu0 0.0
    %563 = vmatpush2.msra.mxu0 0.0
    %564 = vmatprep.subr.mxu0 0.0
    %565 = vmatpush2.msra.mxu0 0.0
    %566 = vmatprep.subr.mxu0 0.0
    %567 = vmatpush2.msra.mxu0 0.0
    %568 = vmatprep.subr.mxu0 0.0
    %569 = vmatpush2.msra.mxu0 0.0
    %570 = vmatprep.subr.mxu0 0.0
    %571 = vmatpush2.msra.mxu0 0.0
    %572 = vmatprep.subr.mxu0 0.0
    %573 = vmatpush2.msra.mxu0 0.0
    %574 = vmatprep.subr.mxu0 0.0
    %575 = vmatpush2.msra.mxu0 0.0
    %576 = vmatprep.subr.mxu0 0.0
    %577 = vmatpush2.msra.mxu0 0.0
    %578 = vmatprep.subr.mxu0 0.0
    %579 = vmatpush2.msra.mxu0 0.0
    %580 = vmatprep.subr.mxu0 0.0
    %581 = vmatpush2.msra.mxu0 0.0
    %582 = vmatprep.subr.mxu0 0.0
    %583 = vmatpush2.msra.mxu0 0.0
    %584 = vmatprep.subr.mxu0 0.0
    %585 = vmatpush2.msra.mxu0 0.0
    %586 = vmatprep.mubr.f32.mxu0 0.0
    %587 = vmatmul.mubr.f32.gmra.mxu0 %v378
    %v588 = vpop.f32.mrf.mxu0
    %v589 = vadd.f32 %v370, %v588
    %v590 = vpop.f32.mrf.mxu0
    %591 = vdwg.mxu0
    %v592 = vmax.f32 %v447, 0.0
    %v593 = vmax.f32 %v449, 0.0
    %v594 = vmax.f32 %v518, 0.0
    %v595 = vmax.f32 %v520, 0.0
    %v596 = vmax.f32 %v589, 0.0
    %vm597 = vcmask 1040384
    %v598 = vsel %vm597, %v592, 0.0
    %v599 = vrot.slane %v593, 7
    %vm600 = vcmask 1041409
    %v601 = vsel %vm600, %v599, %v598
    %v602 = vrot.slane %v594, 6
    %vm603 = vcmask 1042434
    %v604 = vsel %vm603, %v602, %v601
    %v605 = vrot.slane %v595, 5
    %vm606 = vcmask 1043459
    %v607 = vsel %vm606, %v605, %v604
    %v608 = vrot.slane %v596, 4
    %vm609 = vcmask 1044484
    %v610 = vsel %vm609, %v608, %v607
    %v611 = vrot.slane %v592, 4
    %vm612 = vcmask 1045509
    %v613 = vsel %vm612, %v611, %v610
    %v614 = vrot.slane %v593, 3
    %vm615 = vcmask 1046534
    %v616 = vsel %vm615, %v614, %v613
    %v617 = vrot.slane %v594, 2
    %vm618 = vcmask 1047559
    %v619 = vsel %vm618, %v617, %v616
    %v620 = vrot.slane %v595, 1
    %v621 = vsel %vm597, %v620, 0.0
    %v622 = vsel %vm600, %v596, %v621
    %v623 = vsel %vm603, %v592, %v622
    %v624 = vsel %vm606, %v599, %v623
    %v625 = vsel %vm609, %v602, %v624
    %v626 = vsel %vm612, %v605, %v625
    %v627 = vsel %vm615, %v608, %v626
    %v628 = vsel %vm618, %v611, %v627
    %v629 = vsel %vm597, %v614, 0.0
    %v630 = vsel %vm600, %v617, %v629
    %v631 = vsel %vm603, %v620, %v630
    %v632 = vsel %vm606, %v596, %v631
    %v633 = vsel %vm609, %v592, %v632
    %v634 = vsel %vm612, %v599, %v633
    %v635 = vsel %vm615, %v602, %v634
    %v636 = vsel %vm618, %v605, %v635
    %v637 = vsel %vm597, %v608, 0.0
    %v638 = vsel %vm600, %v611, %v637
    %v639 = vsel %vm603, %v614, %v638
    %v640 = vsel %vm606, %v617, %v639
    %v641 = vsel %vm609, %v620, %v640
    %v642 = vsel %vm612, %v596, %v641
    %v643 = vsel %vm615, %v592, %v642
    %v644 = vsel %vm618, %v599, %v643
    %v645 = vsel %vm597, %v602, 0.0
    %v646 = vsel %vm600, %v605, %v645
    %v647 = vsel %vm603, %v608, %v646
    %v648 = vsel %vm606, %v611, %v647
    %v649 = vsel %vm609, %v614, %v648
    %v650 = vsel %vm612, %v617, %v649
    %v651 = vsel %vm615, %v620, %v650
    %v652 = vsel %vm618, %v596, %v651
    %v653 = vld [vmem:[#allocation8] sm:$0xff]
    %v654 = vld [vmem:[#allocation8 + $0x8] sm:$0xff]
    %v655 = vld [vmem:[#allocation8 + $0x10] sm:$0xff]
    %v656 = vld [vmem:[#allocation8 + $0x18] sm:$0xff]
    %v657 = vld [vmem:[#allocation8 + $0x20] sm:$0xff]
    %v658 = vld [vmem:[#allocation8 + $0x28] sm:$0xff]
    %v659 = vld [vmem:[#allocation8 + $0x30] sm:$0xff]
    %v660 = vld [vmem:[#allocation8 + $0x38] sm:$0xff]
    %v661 = vld [vmem:[#allocation8 + $0x40] sm:$0xff]
    %v662 = vld [vmem:[#allocation8 + $0x48] sm:$0xff]
    %v663 = vld [vmem:[#allocation8 + $0x50] sm:$0xff]
    %v664 = vld [vmem:[#allocation8 + $0x58] sm:$0xff]
    %v665 = vld [vmem:[#allocation8 + $0x60] sm:$0xff]
    %v666 = vld [vmem:[#allocation8 + $0x68] sm:$0xff]
    %v667 = vld [vmem:[#allocation8 + $0x70] sm:$0xff]
    %v668 = vld [vmem:[#allocation8 + $0x78] sm:$0xff]
    %v669 = vld [vmem:[#allocation8 + $0x80] sm:$0xff]
    %v670 = vld [vmem:[#allocation8 + $0x88] sm:$0xff]
    %v671 = vld [vmem:[#allocation8 + $0x90] sm:$0xff]
    %v672 = vld [vmem:[#allocation8 + $0x98] sm:$0xff]
    %v673 = vld [vmem:[#allocation8 + $0xa0] sm:$0xff]
    %v674 = vld [vmem:[#allocation8 + $0xa8] sm:$0xff]
    %v675 = vld [vmem:[#allocation8 + $0xb0] sm:$0xff]
    %v676 = vld [vmem:[#allocation8 + $0xb8] sm:$0xff]
    %v677 = vld [vmem:[#allocation8 + $0xc0] sm:$0xff]
    %v678 = vld [vmem:[#allocation8 + $0xc8] sm:$0xff]
    %v679 = vld [vmem:[#allocation8 + $0xd0] sm:$0xff]
    %v680 = vld [vmem:[#allocation8 + $0xd8] sm:$0xff]
    %v681 = vld [vmem:[#allocation8 + $0xe0] sm:$0xff]
    %v682 = vld [vmem:[#allocation8 + $0xe8] sm:$0xff]
    %v683 = vld [vmem:[#allocation8 + $0xf0] sm:$0xff]
    %v684 = vld [vmem:[#allocation8 + $0xf8] sm:$0xff]
    %v685 = vld [vmem:[#allocation8 + $0x100] sm:$0xff]
    %v686 = vld [vmem:[#allocation8 + $0x108] sm:$0xff]
    %v687 = vld [vmem:[#allocation8 + $0x110] sm:$0xff]
    %v688 = vld [vmem:[#allocation8 + $0x118] sm:$0xff]
    %v689 = vld [vmem:[#allocation8 + $0x120] sm:$0xff]
    %v690 = vld [vmem:[#allocation8 + $0x128] sm:$0xff]
    %v691 = vld [vmem:[#allocation8 + $0x130] sm:$0xff]
    %v692 = vld [vmem:[#allocation8 + $0x138] sm:$0xff]
    %v693 = vld [vmem:[#allocation8 + $0x140] sm:$0xff]
    %v694 = vld [vmem:[#allocation8 + $0x148] sm:$0xff]
    %v695 = vld [vmem:[#allocation8 + $0x150] sm:$0xff]
    %v696 = vld [vmem:[#allocation8 + $0x158] sm:$0xff]
    %v697 = vld [vmem:[#allocation8 + $0x160] sm:$0xff]
    %v698 = vld [vmem:[#allocation8 + $0x168] sm:$0xff]
    %v699 = vld [vmem:[#allocation8 + $0x170] sm:$0xff]
    %v700 = vld [vmem:[#allocation8 + $0x178] sm:$0xff]
    %v701 = vld [vmem:[#allocation8 + $0x180] sm:$0xff]
    %v702 = vld [vmem:[#allocation8 + $0x188] sm:$0xff]
    %v703 = vld [vmem:[#allocation8 + $0x190] sm:$0xff]
    %v704 = vld [vmem:[#allocation8 + $0x198] sm:$0xff]
    %v705 = vld [vmem:[#allocation8 + $0x1a0] sm:$0xff]
    %v706 = vld [vmem:[#allocation8 + $0x1a8] sm:$0xff]
    %v707 = vld [vmem:[#allocation8 + $0x1b0] sm:$0xff]
    %v708 = vld [vmem:[#allocation8 + $0x1b8] sm:$0xff]
    %v709 = vld [vmem:[#allocation8 + $0x1c0] sm:$0xff]
    %v710 = vld [vmem:[#allocation8 + $0x1c8] sm:$0xff]
    %v711 = vld [vmem:[#allocation8 + $0x1d0] sm:$0xff]
    %v712 = vld [vmem:[#allocation8 + $0x1d8] sm:$0xff]
    %v713 = vld [vmem:[#allocation8 + $0x1e0] sm:$0xff]
    %v714 = vld [vmem:[#allocation8 + $0x1e8] sm:$0xff]
    %v715 = vld [vmem:[#allocation8 + $0x1f0] sm:$0xff]
    %v716 = vld [vmem:[#allocation8 + $0x1f8] sm:$0xff]
    %v717 = vld [vmem:[#allocation8 + $0x200] sm:$0xff]
    %v718 = vld [vmem:[#allocation8 + $0x208] sm:$0xff]
    %v719 = vld [vmem:[#allocation8 + $0x210] sm:$0xff]
    %v720 = vld [vmem:[#allocation8 + $0x218] sm:$0xff]
    %v721 = vld [vmem:[#allocation8 + $0x220] sm:$0xff]
    %v722 = vld [vmem:[#allocation8 + $0x228] sm:$0xff]
    %v723 = vld [vmem:[#allocation8 + $0x230] sm:$0xff]
    %v724 = vld [vmem:[#allocation8 + $0x238] sm:$0xff]
    %v725 = vld [vmem:[#allocation8 + $0x240] sm:$0xff]
    %v726 = vld [vmem:[#allocation8 + $0x248] sm:$0xff]
    %v727 = vld [vmem:[#allocation8 + $0x250] sm:$0xff]
    %v728 = vld [vmem:[#allocation8 + $0x258] sm:$0xff]
    %v729 = vld [vmem:[#allocation8 + $0x260] sm:$0xff]
    %v730 = vld [vmem:[#allocation8 + $0x268] sm:$0xff]
    %v731 = vld [vmem:[#allocation8 + $0x270] sm:$0xff]
    %v732 = vld [vmem:[#allocation8 + $0x278] sm:$0xff]
    %v733 = vld [vmem:[#allocation8 + $0x280] sm:$0xff]
    %v734 = vld [vmem:[#allocation8 + $0x288] sm:$0xff]
    %v735 = vld [vmem:[#allocation8 + $0x290] sm:$0xff]
    %v736 = vld [vmem:[#allocation8 + $0x298] sm:$0xff]
    %v737 = vld [vmem:[#allocation8 + $0x2a0] sm:$0xff]
    %v738 = vld [vmem:[#allocation8 + $0x2a8] sm:$0xff]
    %v739 = vld [vmem:[#allocation8 + $0x2b0] sm:$0xff]
    %v740 = vld [vmem:[#allocation8 + $0x2b8] sm:$0xff]
    %v741 = vld [vmem:[#allocation8 + $0x2c0] sm:$0xff]
    %v742 = vld [vmem:[#allocation8 + $0x2c8] sm:$0xff]
    %v743 = vld [vmem:[#allocation8 + $0x2d0] sm:$0xff]
    %v744 = vld [vmem:[#allocation8 + $0x2d8] sm:$0xff]
    %v745 = vld [vmem:[#allocation8 + $0x2e0] sm:$0xff]
    %v746 = vld [vmem:[#allocation8 + $0x2e8] sm:$0xff]
    %v747 = vld [vmem:[#allocation8 + $0x2f0] sm:$0xff]
    %v748 = vld [vmem:[#allocation8 + $0x2f8] sm:$0xff]
    %v749 = vld [vmem:[#allocation8 + $0x300] sm:$0xff]
    %v750 = vld [vmem:[#allocation8 + $0x308] sm:$0xff]
    %v751 = vld [vmem:[#allocation8 + $0x310] sm:$0xff]
    %v752 = vld [vmem:[#allocation8 + $0x318] sm:$0xff]
    %v753 = vld [vmem:[#allocation8 + $0x320] sm:$0xff]
    %v754 = vld [vmem:[#allocation8 + $0x328] sm:$0xff]
    %v755 = vld [vmem:[#allocation8 + $0x330] sm:$0xff]
    %v756 = vld [vmem:[#allocation8 + $0x338] sm:$0xff]
    %v757 = vld [vmem:[#allocation8 + $0x340] sm:$0xff]
    %v758 = vld [vmem:[#allocation8 + $0x348] sm:$0xff]
    %v759 = vld [vmem:[#allocation8 + $0x350] sm:$0xff]
    %v760 = vld [vmem:[#allocation8 + $0x358] sm:$0xff]
    %v761 = vld [vmem:[#allocation8 + $0x360] sm:$0xff]
    %v762 = vld [vmem:[#allocation8 + $0x368] sm:$0xff]
    %v763 = vld [vmem:[#allocation8 + $0x370] sm:$0xff]
    %v764 = vld [vmem:[#allocation8 + $0x378] sm:$0xff]
    %v765 = vld [vmem:[#allocation8 + $0x380] sm:$0xff]
    %v766 = vld [vmem:[#allocation8 + $0x388] sm:$0xff]
    %v767 = vld [vmem:[#allocation8 + $0x390] sm:$0xff]
    %v768 = vld [vmem:[#allocation8 + $0x398] sm:$0xff]
    %v769 = vld [vmem:[#allocation8 + $0x3a0] sm:$0xff]
    %v770 = vld [vmem:[#allocation8 + $0x3a8] sm:$0xff]
    %v771 = vld [vmem:[#allocation8 + $0x3b0] sm:$0xff]
    %v772 = vld [vmem:[#allocation8 + $0x3b8] sm:$0xff]
    %v773 = vld [vmem:[#allocation8 + $0x3c0] sm:$0xff]
    %v774 = vld [vmem:[#allocation8 + $0x3c8] sm:$0xff]
    %v775 = vld [vmem:[#allocation8 + $0x3d0] sm:$0xff]
    %v776 = vld [vmem:[#allocation8 + $0x3d8] sm:$0xff]
    %v777 = vld [vmem:[#allocation8 + $0x3e0] sm:$0xff]
    %v778 = vld [vmem:[#allocation8 + $0x3e8] sm:$0xff]
    %v779 = vld [vmem:[#allocation8 + $0x3f0] sm:$0xff]
    %v780 = vld [vmem:[#allocation8 + $0x3f8] sm:$0xff]
    %v781 = vld [vmem:[#allocation8 + $0x400] sm:$0xff]
    %v782 = vld [vmem:[#allocation8 + $0x408] sm:$0xff]
    %v783 = vld [vmem:[#allocation8 + $0x410] sm:$0xff]
    %v784 = vld [vmem:[#allocation8 + $0x418] sm:$0xff]
    %v785 = vld [vmem:[#allocation8 + $0x420] sm:$0xff]
    %v786 = vld [vmem:[#allocation8 + $0x428] sm:$0xff]
    %v787 = vld [vmem:[#allocation8 + $0x430] sm:$0xff]
    %v788 = vld [vmem:[#allocation8 + $0x438] sm:$0xff]
    %v789 = vld [vmem:[#allocation8 + $0x440] sm:$0xff]
    %v790 = vld [vmem:[#allocation8 + $0x448] sm:$0xff]
    %v791 = vld [vmem:[#allocation8 + $0x450] sm:$0xff]
    %v792 = vld [vmem:[#allocation8 + $0x458] sm:$0xff]
    %v793 = vld [vmem:[#allocation8 + $0x460] sm:$0xff]
    %v794 = vld [vmem:[#allocation8 + $0x468] sm:$0xff]
    %v795 = vld [vmem:[#allocation8 + $0x470] sm:$0xff]
    %v796 = vld [vmem:[#allocation8 + $0x478] sm:$0xff]
    %v797 = vld [vmem:[#allocation8 + $0x480] sm:$0xff]
    %v798 = vld [vmem:[#allocation8 + $0x488] sm:$0xff]
    %v799 = vld [vmem:[#allocation8 + $0x490] sm:$0xff]
    %v800 = vld [vmem:[#allocation8 + $0x498] sm:$0xff]
    %v801 = vld [vmem:[#allocation8 + $0x4a0] sm:$0xff]
    %v802 = vld [vmem:[#allocation8 + $0x4a8] sm:$0xff]
    %v803 = vld [vmem:[#allocation8 + $0x4b0] sm:$0xff]
    %v804 = vld [vmem:[#allocation8 + $0x4b8] sm:$0xff]
    %v805 = vld [vmem:[#allocation8 + $0x4c0] sm:$0xff]
    %v806 = vld [vmem:[#allocation8 + $0x4c8] sm:$0xff]
    %v807 = vld [vmem:[#allocation8 + $0x4d0] sm:$0xff]
    %v808 = vld [vmem:[#allocation8 + $0x4d8] sm:$0xff]
    %v809 = vld [vmem:[#allocation8 + $0x4e0] sm:$0xff]
    %v810 = vld [vmem:[#allocation8 + $0x4e8] sm:$0xff]
    %v811 = vld [vmem:[#allocation8 + $0x4f0] sm:$0xff]
    %v812 = vld [vmem:[#allocation8 + $0x4f8] sm:$0xff]
    %v813 = vld [vmem:[#allocation8 + $0x500] sm:$0xff]
    %v814 = vld [vmem:[#allocation8 + $0x508] sm:$0xff]
    %v815 = vld [vmem:[#allocation8 + $0x510] sm:$0xff]
    %v816 = vld [vmem:[#allocation8 + $0x518] sm:$0xff]
    %v817 = vld [vmem:[#allocation8 + $0x520] sm:$0xff]
    %v818 = vld [vmem:[#allocation8 + $0x528] sm:$0xff]
    %v819 = vld [vmem:[#allocation8 + $0x530] sm:$0xff]
    %v820 = vld [vmem:[#allocation8 + $0x538] sm:$0xff]
    %v821 = vld [vmem:[#allocation8 + $0x540] sm:$0xff]
    %v822 = vld [vmem:[#allocation8 + $0x548] sm:$0xff]
    %v823 = vld [vmem:[#allocation8 + $0x550] sm:$0xff]
    %v824 = vld [vmem:[#allocation8 + $0x558] sm:$0xff]
    %v825 = vld [vmem:[#allocation8 + $0x560] sm:$0xff]
    %v826 = vld [vmem:[#allocation8 + $0x568] sm:$0xff]
    %v827 = vld [vmem:[#allocation8 + $0x570] sm:$0xff]
    %v828 = vld [vmem:[#allocation8 + $0x578] sm:$0xff]
    %v829 = vld [vmem:[#allocation8 + $0x580] sm:$0xff]
    %v830 = vld [vmem:[#allocation8 + $0x588] sm:$0xff]
    %v831 = vld [vmem:[#allocation8 + $0x590] sm:$0xff]
    %v832 = vld [vmem:[#allocation8 + $0x598] sm:$0xff]
    %v833 = vld [vmem:[#allocation8 + $0x5a0] sm:$0xff]
    %v834 = vld [vmem:[#allocation8 + $0x5a8] sm:$0xff]
    %v835 = vld [vmem:[#allocation8 + $0x5b0] sm:$0xff]
    %v836 = vld [vmem:[#allocation8 + $0x5b8] sm:$0xff]
    %v837 = vld [vmem:[#allocation8 + $0x5c0] sm:$0xff]
    %v838 = vld [vmem:[#allocation8 + $0x5c8] sm:$0xff]
    %v839 = vld [vmem:[#allocation8 + $0x5d0] sm:$0xff]
    %v840 = vld [vmem:[#allocation8 + $0x5d8] sm:$0xff]
    %v841 = vld [vmem:[#allocation8 + $0x5e0] sm:$0xff]
    %v842 = vld [vmem:[#allocation8 + $0x5e8] sm:$0xff]
    %v843 = vld [vmem:[#allocation8 + $0x5f0] sm:$0xff]
    %v844 = vld [vmem:[#allocation8 + $0x5f8] sm:$0xff]
    %v845 = vld [vmem:[#allocation8 + $0x600] sm:$0xff]
    %v846 = vld [vmem:[#allocation8 + $0x608] sm:$0xff]
    %v847 = vld [vmem:[#allocation8 + $0x610] sm:$0xff]
    %v848 = vld [vmem:[#allocation8 + $0x618] sm:$0xff]
    %v849 = vld [vmem:[#allocation8 + $0x620] sm:$0xff]
    %v850 = vld [vmem:[#allocation8 + $0x628] sm:$0xff]
    %v851 = vld [vmem:[#allocation8 + $0x630] sm:$0xff]
    %v852 = vld [vmem:[#allocation8 + $0x638] sm:$0xff]
    %v853 = vld [vmem:[#allocation8 + $0x640] sm:$0xff]
    %v854 = vld [vmem:[#allocation8 + $0x648] sm:$0xff]
    %v855 = vld [vmem:[#allocation8 + $0x650] sm:$0xff]
    %v856 = vld [vmem:[#allocation8 + $0x658] sm:$0xff]
    %v857 = vld [vmem:[#allocation8 + $0x660] sm:$0xff]
    %v858 = vld [vmem:[#allocation8 + $0x668] sm:$0xff]
    %v859 = vld [vmem:[#allocation8 + $0x670] sm:$0xff]
    %v860 = vld [vmem:[#allocation8 + $0x678] sm:$0xff]
    %v861 = vld [vmem:[#allocation8 + $0x680] sm:$0xff]
    %v862 = vld [vmem:[#allocation8 + $0x688] sm:$0xff]
    %v863 = vld [vmem:[#allocation8 + $0x690] sm:$0xff]
    %v864 = vld [vmem:[#allocation8 + $0x698] sm:$0xff]
    %v865 = vld [vmem:[#allocation8 + $0x6a0] sm:$0xff]
    %v866 = vld [vmem:[#allocation8 + $0x6a8] sm:$0xff]
    %v867 = vld [vmem:[#allocation8 + $0x6b0] sm:$0xff]
    %v868 = vld [vmem:[#allocation8 + $0x6b8] sm:$0xff]
    %v869 = vld [vmem:[#allocation8 + $0x6c0] sm:$0xff]
    %v870 = vld [vmem:[#allocation8 + $0x6c8] sm:$0xff]
    %v871 = vld [vmem:[#allocation8 + $0x6d0] sm:$0xff]
    %v872 = vld [vmem:[#allocation8 + $0x6d8] sm:$0xff]
    %v873 = vld [vmem:[#allocation8 + $0x6e0] sm:$0xff]
    %v874 = vld [vmem:[#allocation8 + $0x6e8] sm:$0xff]
    %v875 = vld [vmem:[#allocation8 + $0x6f0] sm:$0xff]
    %v876 = vld [vmem:[#allocation8 + $0x6f8] sm:$0xff]
    %v877 = vld [vmem:[#allocation8 + $0x700] sm:$0xff]
    %v878 = vld [vmem:[#allocation8 + $0x708] sm:$0xff]
    %v879 = vld [vmem:[#allocation8 + $0x710] sm:$0xff]
    %v880 = vld [vmem:[#allocation8 + $0x718] sm:$0xff]
    %v881 = vld [vmem:[#allocation8 + $0x720] sm:$0xff]
    %v882 = vld [vmem:[#allocation8 + $0x728] sm:$0xff]
    %v883 = vld [vmem:[#allocation8 + $0x730] sm:$0xff]
    %v884 = vld [vmem:[#allocation8 + $0x738] sm:$0xff]
    %v885 = vld [vmem:[#allocation8 + $0x740] sm:$0xff]
    %v886 = vld [vmem:[#allocation8 + $0x748] sm:$0xff]
    %v887 = vld [vmem:[#allocation8 + $0x750] sm:$0xff]
    %v888 = vld [vmem:[#allocation8 + $0x758] sm:$0xff]
    %v889 = vld [vmem:[#allocation8 + $0x760] sm:$0xff]
    %v890 = vld [vmem:[#allocation8 + $0x768] sm:$0xff]
    %v891 = vld [vmem:[#allocation8 + $0x770] sm:$0xff]
    %v892 = vld [vmem:[#allocation8 + $0x778] sm:$0xff]
    %v893 = vld [vmem:[#allocation8 + $0x780] sm:$0xff]
    %v894 = vld [vmem:[#allocation8 + $0x788] sm:$0xff]
    %v895 = vld [vmem:[#allocation8 + $0x790] sm:$0xff]
    %v896 = vld [vmem:[#allocation8 + $0x798] sm:$0xff]
    %v897 = vld [vmem:[#allocation8 + $0x7a0] sm:$0xff]
    %v898 = vld [vmem:[#allocation8 + $0x7a8] sm:$0xff]
    %v899 = vld [vmem:[#allocation8 + $0x7b0] sm:$0xff]
    %v900 = vld [vmem:[#allocation8 + $0x7b8] sm:$0xff]
    %v901 = vld [vmem:[#allocation8 + $0x7c0] sm:$0xff]
    %v902 = vld [vmem:[#allocation8 + $0x7c8] sm:$0xff]
    %v903 = vld [vmem:[#allocation8 + $0x7d0] sm:$0xff]
    %v904 = vld [vmem:[#allocation8 + $0x7d8] sm:$0xff]
    %v905 = vld [vmem:[#allocation8 + $0x7e0] sm:$0xff]
    %v906 = vld [vmem:[#allocation8 + $0x7e8] sm:$0xff]
    %v907 = vld [vmem:[#allocation8 + $0x7f0] sm:$0xff]
    %v908 = vld [vmem:[#allocation8 + $0x7f8] sm:$0xff]
    %v909 = vld [vmem:[#allocation8 + $0x800] sm:$0xff]
    %v910 = vld [vmem:[#allocation8 + $0x808] sm:$0xff]
    %v911 = vld [vmem:[#allocation8 + $0x810] sm:$0xff]
    %v912 = vld [vmem:[#allocation8 + $0x818] sm:$0xff]
    %v913 = vld [vmem:[#allocation8 + $0x820] sm:$0xff]
    %v914 = vld [vmem:[#allocation8 + $0x828] sm:$0xff]
    %v915 = vld [vmem:[#allocation8 + $0x830] sm:$0xff]
    %v916 = vld [vmem:[#allocation8 + $0x838] sm:$0xff]
    %v917 = vld [vmem:[#allocation8 + $0x840] sm:$0xff]
    %v918 = vld [vmem:[#allocation8 + $0x848] sm:$0xff]
    %v919 = vld [vmem:[#allocation8 + $0x850] sm:$0xff]
    %v920 = vld [vmem:[#allocation8 + $0x858] sm:$0xff]
    %v921 = vld [vmem:[#allocation8 + $0x860] sm:$0xff]
    %v922 = vld [vmem:[#allocation8 + $0x868] sm:$0xff]
    %v923 = vld [vmem:[#allocation8 + $0x870] sm:$0xff]
    %v924 = vld [vmem:[#allocation8 + $0x878] sm:$0xff]
    %v925 = vld [vmem:[#allocation8 + $0x880] sm:$0xff]
    %v926 = vld [vmem:[#allocation8 + $0x888] sm:$0xff]
    %v927 = vld [vmem:[#allocation8 + $0x890] sm:$0xff]
    %v928 = vld [vmem:[#allocation8 + $0x898] sm:$0xff]
    %v929 = vld [vmem:[#allocation8 + $0x8a0] sm:$0xff]
    %v930 = vld [vmem:[#allocation8 + $0x8a8] sm:$0xff]
    %v931 = vld [vmem:[#allocation8 + $0x8b0] sm:$0xff]
    %v932 = vld [vmem:[#allocation8 + $0x8b8] sm:$0xff]
    %v933 = vld [vmem:[#allocation8 + $0x8c0] sm:$0xff]
    %v934 = vld [vmem:[#allocation8 + $0x8c8] sm:$0xff]
    %v935 = vld [vmem:[#allocation8 + $0x8d0] sm:$0xff]
    %v936 = vld [vmem:[#allocation8 + $0x8d8] sm:$0xff]
    %v937 = vld [vmem:[#allocation8 + $0x8e0] sm:$0xff]
    %v938 = vld [vmem:[#allocation8 + $0x8e8] sm:$0xff]
    %v939 = vld [vmem:[#allocation8 + $0x8f0] sm:$0xff]
    %v940 = vld [vmem:[#allocation8 + $0x8f8] sm:$0xff]
    %v941 = vld [vmem:[#allocation8 + $0x900] sm:$0xff]
    %v942 = vld [vmem:[#allocation8 + $0x908] sm:$0xff]
    %v943 = vld [vmem:[#allocation8 + $0x910] sm:$0xff]
    %v944 = vld [vmem:[#allocation8 + $0x918] sm:$0xff]
    %v945 = vld [vmem:[#allocation8 + $0x920] sm:$0xff]
    %v946 = vld [vmem:[#allocation8 + $0x928] sm:$0xff]
    %v947 = vld [vmem:[#allocation8 + $0x930] sm:$0xff]
    %v948 = vld [vmem:[#allocation8 + $0x938] sm:$0xff]
    %v949 = vld [vmem:[#allocation8 + $0x940] sm:$0xff]
    %v950 = vld [vmem:[#allocation8 + $0x948] sm:$0xff]
    %v951 = vld [vmem:[#allocation8 + $0x950] sm:$0xff]
    %v952 = vld [vmem:[#allocation8 + $0x958] sm:$0xff]
    %v953 = vld [vmem:[#allocation8 + $0x960] sm:$0xff]
    %v954 = vld [vmem:[#allocation8 + $0x968] sm:$0xff]
    %v955 = vld [vmem:[#allocation8 + $0x970] sm:$0xff]
    %v956 = vld [vmem:[#allocation8 + $0x978] sm:$0xff]
    %v957 = vld [vmem:[#allocation8 + $0x980] sm:$0xff]
    %v958 = vld [vmem:[#allocation8 + $0x988] sm:$0xff]
    %v959 = vld [vmem:[#allocation8 + $0x990] sm:$0xff]
    %v960 = vld [vmem:[#allocation8 + $0x998] sm:$0xff]
    %v961 = vld [vmem:[#allocation8 + $0x9a0] sm:$0xff]
    %v962 = vld [vmem:[#allocation8 + $0x9a8] sm:$0xff]
    %v963 = vld [vmem:[#allocation8 + $0x9b0] sm:$0xff]
    %v964 = vld [vmem:[#allocation8 + $0x9b8] sm:$0xff]
    %v965 = vld [vmem:[#allocation8 + $0x9c0] sm:$0xff]
    %v966 = vld [vmem:[#allocation8 + $0x9c8] sm:$0xff]
    %v967 = vld [vmem:[#allocation8 + $0x9d0] sm:$0xff]
    %v968 = vld [vmem:[#allocation8 + $0x9d8] sm:$0xff]
    %v969 = vld [vmem:[#allocation8 + $0x9e0] sm:$0xff]
    %v970 = vld [vmem:[#allocation8 + $0x9e8] sm:$0xff]
    %v971 = vld [vmem:[#allocation8 + $0x9f0] sm:$0xff]
    %v972 = vld [vmem:[#allocation8 + $0x9f8] sm:$0xff]
    %v973 = vld [vmem:[#allocation8 + $0xa00] sm:$0xff]
    %v974 = vld [vmem:[#allocation8 + $0xa08] sm:$0xff]
    %v975 = vld [vmem:[#allocation8 + $0xa10] sm:$0xff]
    %v976 = vld [vmem:[#allocation8 + $0xa18] sm:$0xff]
    %v977 = vld [vmem:[#allocation8 + $0xa20] sm:$0xff]
    %v978 = vld [vmem:[#allocation8 + $0xa28] sm:$0xff]
    %v979 = vld [vmem:[#allocation8 + $0xa30] sm:$0xff]
    %v980 = vld [vmem:[#allocation8 + $0xa38] sm:$0xff]
    %v981 = vld [vmem:[#allocation8 + $0xa40] sm:$0xff]
    %v982 = vld [vmem:[#allocation8 + $0xa48] sm:$0xff]
    %v983 = vld [vmem:[#allocation8 + $0xa50] sm:$0xff]
    %v984 = vld [vmem:[#allocation8 + $0xa58] sm:$0xff]
    %v985 = vld [vmem:[#allocation8 + $0xa60] sm:$0xff]
    %v986 = vld [vmem:[#allocation8 + $0xa68] sm:$0xff]
    %v987 = vld [vmem:[#allocation8 + $0xa70] sm:$0xff]
    %v988 = vld [vmem:[#allocation8 + $0xa78] sm:$0xff]
    %v989 = vld [vmem:[#allocation8 + $0xa80] sm:$0xff]
    %v990 = vld [vmem:[#allocation8 + $0xa88] sm:$0xff]
    %v991 = vld [vmem:[#allocation8 + $0xa90] sm:$0xff]
    %v992 = vld [vmem:[#allocation8 + $0xa98] sm:$0xff]
    %v993 = vld [vmem:[#allocation8 + $0xaa0] sm:$0xff]
    %v994 = vld [vmem:[#allocation8 + $0xaa8] sm:$0xff]
    %v995 = vld [vmem:[#allocation8 + $0xab0] sm:$0xff]
    %v996 = vld [vmem:[#allocation8 + $0xab8] sm:$0xff]
    %v997 = vld [vmem:[#allocation8 + $0xac0] sm:$0xff]
    %v998 = vld [vmem:[#allocation8 + $0xac8] sm:$0xff]
    %v999 = vld [vmem:[#allocation8 + $0xad0] sm:$0xff]
    %v1000 = vld [vmem:[#allocation8 + $0xad8] sm:$0xff]
    %v1001 = vld [vmem:[#allocation8 + $0xae0] sm:$0xff]
    %v1002 = vld [vmem:[#allocation8 + $0xae8] sm:$0xff]
    %v1003 = vld [vmem:[#allocation8 + $0xaf0] sm:$0xff]
    %v1004 = vld [vmem:[#allocation8 + $0xaf8] sm:$0xff]
    %v1005 = vld [vmem:[#allocation8 + $0xb00] sm:$0xff]
    %v1006 = vld [vmem:[#allocation8 + $0xb08] sm:$0xff]
    %v1007 = vld [vmem:[#allocation8 + $0xb10] sm:$0xff]
    %v1008 = vld [vmem:[#allocation8 + $0xb18] sm:$0xff]
    %v1009 = vld [vmem:[#allocation8 + $0xb20] sm:$0xff]
    %v1010 = vld [vmem:[#allocation8 + $0xb28] sm:$0xff]
    %v1011 = vld [vmem:[#allocation8 + $0xb30] sm:$0xff]
    %v1012 = vld [vmem:[#allocation8 + $0xb38] sm:$0xff]
    %v1013 = vld [vmem:[#allocation8 + $0xb40] sm:$0xff]
    %v1014 = vld [vmem:[#allocation8 + $0xb48] sm:$0xff]
    %v1015 = vld [vmem:[#allocation8 + $0xb50] sm:$0xff]
    %v1016 = vld [vmem:[#allocation8 + $0xb58] sm:$0xff]
    %v1017 = vld [vmem:[#allocation8 + $0xb60] sm:$0xff]
    %v1018 = vld [vmem:[#allocation8 + $0xb68] sm:$0xff]
    %v1019 = vld [vmem:[#allocation8 + $0xb70] sm:$0xff]
    %v1020 = vld [vmem:[#allocation8 + $0xb78] sm:$0xff]
    %v1021 = vld [vmem:[#allocation8 + $0xb80] sm:$0xff]
    %v1022 = vld [vmem:[#allocation8 + $0xb88] sm:$0xff]
    %v1023 = vld [vmem:[#allocation8 + $0xb90] sm:$0xff]
    %v1024 = vld [vmem:[#allocation8 + $0xb98] sm:$0xff]
    %v1025 = vld [vmem:[#allocation8 + $0xba0] sm:$0xff]
    %v1026 = vld [vmem:[#allocation8 + $0xba8] sm:$0xff]
    %v1027 = vld [vmem:[#allocation8 + $0xbb0] sm:$0xff]
    %v1028 = vld [vmem:[#allocation8 + $0xbb8] sm:$0xff]
    %v1029 = vld [vmem:[#allocation8 + $0xbc0] sm:$0xff]
    %v1030 = vld [vmem:[#allocation8 + $0xbc8] sm:$0xff]
    %v1031 = vld [vmem:[#allocation8 + $0xbd0] sm:$0xff]
    %v1032 = vld [vmem:[#allocation8 + $0xbd8] sm:$0xff]
    %v1033 = vld [vmem:[#allocation8 + $0xbe0] sm:$0xff]
    %v1034 = vld [vmem:[#allocation8 + $0xbe8] sm:$0xff]
    %v1035 = vld [vmem:[#allocation8 + $0xbf0] sm:$0xff]
    %v1036 = vld [vmem:[#allocation8 + $0xbf8] sm:$0xff]
    %v1037 = vld [vmem:[#allocation8 + $0xc00] sm:$0xff]
    %v1038 = vld [vmem:[#allocation8 + $0xc08] sm:$0xff]
    %v1039 = vld [vmem:[#allocation8 + $0xc10] sm:$0xff]
    %v1040 = vld [vmem:[#allocation8 + $0xc18] sm:$0xff]
    %v1041 = vld [vmem:[#allocation8 + $0xc20] sm:$0xff]
    %v1042 = vld [vmem:[#allocation8 + $0xc28] sm:$0xff]
    %v1043 = vld [vmem:[#allocation8 + $0xc30] sm:$0xff]
    %v1044 = vld [vmem:[#allocation8 + $0xc38] sm:$0xff]
    %v1045 = vld [vmem:[#allocation8 + $0xc40] sm:$0xff]
    %v1046 = vld [vmem:[#allocation8 + $0xc48] sm:$0xff]
    %v1047 = vld [vmem:[#allocation8 + $0xc50] sm:$0xff]
    %v1048 = vld [vmem:[#allocation8 + $0xc58] sm:$0xff]
    %v1049 = vld [vmem:[#allocation8 + $0xc60] sm:$0xff]
    %v1050 = vld [vmem:[#allocation8 + $0xc68] sm:$0xff]
    %v1051 = vld [vmem:[#allocation8 + $0xc70] sm:$0xff]
    %v1052 = vld [vmem:[#allocation8 + $0xc78] sm:$0xff]
    %v1053 = vld [vmem:[#allocation8 + $0xc80] sm:$0xff]
    %v1054 = vld [vmem:[#allocation8 + $0xc88] sm:$0xff]
    %v1055 = vld [vmem:[#allocation8 + $0xc90] sm:$0xff]
    %v1056 = vld [vmem:[#allocation8 + $0xc98] sm:$0xff]
    %v1057 = vld [vmem:[#allocation8 + $0xca0] sm:$0xff]
    %v1058 = vld [vmem:[#allocation8 + $0xca8] sm:$0xff]
    %v1059 = vld [vmem:[#allocation8 + $0xcb0] sm:$0xff]
    %v1060 = vld [vmem:[#allocation8 + $0xcb8] sm:$0xff]
    %v1061 = vld [vmem:[#allocation8 + $0xcc0] sm:$0xff]
    %v1062 = vld [vmem:[#allocation8 + $0xcc8] sm:$0xff]
    %v1063 = vld [vmem:[#allocation8 + $0xcd0] sm:$0xff]
    %v1064 = vld [vmem:[#allocation8 + $0xcd8] sm:$0xff]
    %v1065 = vld [vmem:[#allocation8 + $0xce0] sm:$0xff]
    %v1066 = vld [vmem:[#allocation8 + $0xce8] sm:$0xff]
    %v1067 = vld [vmem:[#allocation8 + $0xcf0] sm:$0xff]
    %v1068 = vld [vmem:[#allocation8 + $0xcf8] sm:$0xff]
    %v1069 = vld [vmem:[#allocation8 + $0xd00] sm:$0xff]
    %v1070 = vld [vmem:[#allocation8 + $0xd08] sm:$0xff]
    %v1071 = vld [vmem:[#allocation8 + $0xd10] sm:$0xff]
    %v1072 = vld [vmem:[#allocation8 + $0xd18] sm:$0xff]
    %v1073 = vld [vmem:[#allocation8 + $0xd20] sm:$0xff]
    %v1074 = vld [vmem:[#allocation8 + $0xd28] sm:$0xff]
    %v1075 = vld [vmem:[#allocation8 + $0xd30] sm:$0xff]
    %v1076 = vld [vmem:[#allocation8 + $0xd38] sm:$0xff]
    %v1077 = vld [vmem:[#allocation8 + $0xd40] sm:$0xff]
    %v1078 = vld [vmem:[#allocation8 + $0xd48] sm:$0xff]
    %v1079 = vld [vmem:[#allocation8 + $0xd50] sm:$0xff]
    %v1080 = vld [vmem:[#allocation8 + $0xd58] sm:$0xff]
    %v1081 = vld [vmem:[#allocation8 + $0xd60] sm:$0xff]
    %v1082 = vld [vmem:[#allocation8 + $0xd68] sm:$0xff]
    %v1083 = vld [vmem:[#allocation8 + $0xd70] sm:$0xff]
    %v1084 = vld [vmem:[#allocation8 + $0xd78] sm:$0xff]
    %v1085 = vld [vmem:[#allocation8 + $0xd80] sm:$0xff]
    %v1086 = vld [vmem:[#allocation8 + $0xd88] sm:$0xff]
    %v1087 = vld [vmem:[#allocation8 + $0xd90] sm:$0xff]
    %v1088 = vld [vmem:[#allocation8 + $0xd98] sm:$0xff]
    %v1089 = vld [vmem:[#allocation8 + $0xda0] sm:$0xff]
    %v1090 = vld [vmem:[#allocation8 + $0xda8] sm:$0xff]
    %v1091 = vld [vmem:[#allocation8 + $0xdb0] sm:$0xff]
    %v1092 = vld [vmem:[#allocation8 + $0xdb8] sm:$0xff]
    %v1093 = vld [vmem:[#allocation8 + $0xdc0] sm:$0xff]
    %v1094 = vld [vmem:[#allocation8 + $0xdc8] sm:$0xff]
    %v1095 = vld [vmem:[#allocation8 + $0xdd0] sm:$0xff]
    %v1096 = vld [vmem:[#allocation8 + $0xdd8] sm:$0xff]
    %v1097 = vld [vmem:[#allocation8 + $0xde0] sm:$0xff]
    %v1098 = vld [vmem:[#allocation8 + $0xde8] sm:$0xff]
    %v1099 = vld [vmem:[#allocation8 + $0xdf0] sm:$0xff]
    %v1100 = vld [vmem:[#allocation8 + $0xdf8] sm:$0xff]
    %v1101 = vld [vmem:[#allocation8 + $0xe00] sm:$0xff]
    %v1102 = vld [vmem:[#allocation8 + $0xe08] sm:$0xff]
    %v1103 = vld [vmem:[#allocation8 + $0xe10] sm:$0xff]
    %v1104 = vld [vmem:[#allocation8 + $0xe18] sm:$0xff]
    %v1105 = vld [vmem:[#allocation8 + $0xe20] sm:$0xff]
    %v1106 = vld [vmem:[#allocation8 + $0xe28] sm:$0xff]
    %v1107 = vld [vmem:[#allocation8 + $0xe30] sm:$0xff]
    %v1108 = vld [vmem:[#allocation8 + $0xe38] sm:$0xff]
    %v1109 = vld [vmem:[#allocation8 + $0xe40] sm:$0xff]
    %v1110 = vld [vmem:[#allocation8 + $0xe48] sm:$0xff]
    %v1111 = vld [vmem:[#allocation8 + $0xe50] sm:$0xff]
    %v1112 = vld [vmem:[#allocation8 + $0xe58] sm:$0xff]
    %v1113 = vld [vmem:[#allocation8 + $0xe60] sm:$0xff]
    %v1114 = vld [vmem:[#allocation8 + $0xe68] sm:$0xff]
    %v1115 = vld [vmem:[#allocation8 + $0xe70] sm:$0xff]
    %v1116 = vld [vmem:[#allocation8 + $0xe78] sm:$0xff]
    %v1117 = vld [vmem:[#allocation8 + $0xe80] sm:$0xff]
    %v1118 = vld [vmem:[#allocation8 + $0xe88] sm:$0xff]
    %v1119 = vld [vmem:[#allocation8 + $0xe90] sm:$0xff]
    %v1120 = vld [vmem:[#allocation8 + $0xe98] sm:$0xff]
    %v1121 = vld [vmem:[#allocation8 + $0xea0] sm:$0xff]
    %v1122 = vld [vmem:[#allocation8 + $0xea8] sm:$0xff]
    %v1123 = vld [vmem:[#allocation8 + $0xeb0] sm:$0xff]
    %v1124 = vld [vmem:[#allocation8 + $0xeb8] sm:$0xff]
    %v1125 = vld [vmem:[#allocation8 + $0xec0] sm:$0xff]
    %v1126 = vld [vmem:[#allocation8 + $0xec8] sm:$0xff]
    %v1127 = vld [vmem:[#allocation8 + $0xed0] sm:$0xff]
    %v1128 = vld [vmem:[#allocation8 + $0xed8] sm:$0xff]
    %v1129 = vld [vmem:[#allocation8 + $0xee0] sm:$0xff]
    %v1130 = vld [vmem:[#allocation8 + $0xee8] sm:$0xff]
    %v1131 = vld [vmem:[#allocation8 + $0xef0] sm:$0xff]
    %v1132 = vld [vmem:[#allocation8 + $0xef8] sm:$0xff]
    %v1133 = vld [vmem:[#allocation8 + $0xf00] sm:$0xff]
    %v1134 = vld [vmem:[#allocation8 + $0xf08] sm:$0xff]
    %v1135 = vld [vmem:[#allocation8 + $0xf10] sm:$0xff]
    %v1136 = vld [vmem:[#allocation8 + $0xf18] sm:$0xff]
    %v1137 = vld [vmem:[#allocation8 + $0xf20] sm:$0xff]
    %v1138 = vld [vmem:[#allocation8 + $0xf28] sm:$0xff]
    %v1139 = vld [vmem:[#allocation8 + $0xf30] sm:$0xff]
    %v1140 = vld [vmem:[#allocation8 + $0xf38] sm:$0xff]
    %v1141 = vld [vmem:[#allocation8 + $0xf40] sm:$0xff]
    %v1142 = vld [vmem:[#allocation8 + $0xf48] sm:$0xff]
    %v1143 = vld [vmem:[#allocation8 + $0xf50] sm:$0xff]
    %v1144 = vld [vmem:[#allocation8 + $0xf58] sm:$0xff]
    %v1145 = vld [vmem:[#allocation8 + $0xf60] sm:$0xff]
    %v1146 = vld [vmem:[#allocation8 + $0xf68] sm:$0xff]
    %v1147 = vld [vmem:[#allocation8 + $0xf70] sm:$0xff]
    %v1148 = vld [vmem:[#allocation8 + $0xf78] sm:$0xff]
    %v1149 = vld [vmem:[#allocation8 + $0xf80] sm:$0xff]
    %v1150 = vld [vmem:[#allocation8 + $0xf88] sm:$0xff]
    %v1151 = vld [vmem:[#allocation8 + $0xf90] sm:$0xff]
    %v1152 = vld [vmem:[#allocation8 + $0xf98] sm:$0xff]
    %v1153 = vld [vmem:[#allocation8 + $0xfa0] sm:$0xff]
    %v1154 = vld [vmem:[#allocation8 + $0xfa8] sm:$0xff]
    %v1155 = vld [vmem:[#allocation8 + $0xfb0] sm:$0xff]
    %v1156 = vld [vmem:[#allocation8 + $0xfb8] sm:$0xff]
    %v1157 = vld [vmem:[#allocation8 + $0xfc0] sm:$0xff]
    %v1158 = vld [vmem:[#allocation8 + $0xfc8] sm:$0xff]
    %v1159 = vld [vmem:[#allocation8 + $0xfd0] sm:$0xff]
    %v1160 = vld [vmem:[#allocation8 + $0xfd8] sm:$0xff]
    %v1161 = vld [vmem:[#allocation8 + $0xfe0] sm:$0xff]
    %v1162 = vld [vmem:[#allocation8 + $0xfe8] sm:$0xff]
    %v1163 = vld [vmem:[#allocation8 + $0xff0] sm:$0xff]
    %v1164 = vld [vmem:[#allocation8 + $0xff8] sm:$0xff]
    %v1165 = vld [vmem:[#allocation8 + $0x1000] sm:$0xff]
    %v1166 = vld [vmem:[#allocation8 + $0x1008] sm:$0xff]
    %v1167 = vld [vmem:[#allocation8 + $0x1010] sm:$0xff]
    %v1168 = vld [vmem:[#allocation8 + $0x1018] sm:$0xff]
    %v1169 = vld [vmem:[#allocation8 + $0x1020] sm:$0xff]
    %v1170 = vld [vmem:[#allocation8 + $0x1028] sm:$0xff]
    %v1171 = vld [vmem:[#allocation8 + $0x1030] sm:$0xff]
    %v1172 = vld [vmem:[#allocation8 + $0x1038] sm:$0xff]
    %v1173 = vld [vmem:[#allocation8 + $0x1040] sm:$0xff]
    %v1174 = vld [vmem:[#allocation8 + $0x1048] sm:$0xff]
    %v1175 = vld [vmem:[#allocation8 + $0x1050] sm:$0xff]
    %v1176 = vld [vmem:[#allocation8 + $0x1058] sm:$0xff]
    %v1177 = vld [vmem:[#allocation8 + $0x1060] sm:$0xff]
    %v1178 = vld [vmem:[#allocation8 + $0x1068] sm:$0xff]
    %v1179 = vld [vmem:[#allocation8 + $0x1070] sm:$0xff]
    %v1180 = vld [vmem:[#allocation8 + $0x1078] sm:$0xff]
    %v1181 = vld [vmem:[#allocation8 + $0x1080] sm:$0xff]
    %v1182 = vld [vmem:[#allocation8 + $0x1088] sm:$0xff]
    %v1183 = vld [vmem:[#allocation8 + $0x1090] sm:$0xff]
    %v1184 = vld [vmem:[#allocation8 + $0x1098] sm:$0xff]
    %v1185 = vld [vmem:[#allocation8 + $0x10a0] sm:$0xff]
    %v1186 = vld [vmem:[#allocation8 + $0x10a8] sm:$0xff]
    %v1187 = vld [vmem:[#allocation8 + $0x10b0] sm:$0xff]
    %v1188 = vld [vmem:[#allocation8 + $0x10b8] sm:$0xff]
    %v1189 = vld [vmem:[#allocation8 + $0x10c0] sm:$0xff]
    %v1190 = vld [vmem:[#allocation8 + $0x10c8] sm:$0xff]
    %v1191 = vld [vmem:[#allocation8 + $0x10d0] sm:$0xff]
    %v1192 = vld [vmem:[#allocation8 + $0x10d8] sm:$0xff]
    %v1193 = vld [vmem:[#allocation8 + $0x10e0] sm:$0xff]
    %v1194 = vld [vmem:[#allocation8 + $0x10e8] sm:$0xff]
    %v1195 = vld [vmem:[#allocation8 + $0x10f0] sm:$0xff]
    %v1196 = vld [vmem:[#allocation8 + $0x10f8] sm:$0xff]
    %v1197 = vld [vmem:[#allocation8 + $0x1100] sm:$0xff]
    %v1198 = vld [vmem:[#allocation8 + $0x1108] sm:$0xff]
    %v1199 = vld [vmem:[#allocation8 + $0x1110] sm:$0xff]
    %v1200 = vld [vmem:[#allocation8 + $0x1118] sm:$0xff]
    %v1201 = vld [vmem:[#allocation8 + $0x1120] sm:$0xff]
    %v1202 = vld [vmem:[#allocation8 + $0x1128] sm:$0xff]
    %v1203 = vld [vmem:[#allocation8 + $0x1130] sm:$0xff]
    %v1204 = vld [vmem:[#allocation8 + $0x1138] sm:$0xff]
    %v1205 = vld [vmem:[#allocation8 + $0x1140] sm:$0xff]
    %v1206 = vld [vmem:[#allocation8 + $0x1148] sm:$0xff]
    %v1207 = vld [vmem:[#allocation8 + $0x1150] sm:$0xff]
    %v1208 = vld [vmem:[#allocation8 + $0x1158] sm:$0xff]
    %v1209 = vld [vmem:[#allocation8 + $0x1160] sm:$0xff]
    %v1210 = vld [vmem:[#allocation8 + $0x1168] sm:$0xff]
    %v1211 = vld [vmem:[#allocation8 + $0x1170] sm:$0xff]
    %v1212 = vld [vmem:[#allocation8 + $0x1178] sm:$0xff]
    %v1213 = vld [vmem:[#allocation8 + $0x1180] sm:$0xff]
    %v1214 = vld [vmem:[#allocation8 + $0x1188] sm:$0xff]
    %v1215 = vld [vmem:[#allocation8 + $0x1190] sm:$0xff]
    %v1216 = vld [vmem:[#allocation8 + $0x1198] sm:$0xff]
    %v1217 = vld [vmem:[#allocation8 + $0x11a0] sm:$0xff]
    %v1218 = vld [vmem:[#allocation8 + $0x11a8] sm:$0xff]
    %v1219 = vld [vmem:[#allocation8 + $0x11b0] sm:$0xff]
    %v1220 = vld [vmem:[#allocation8 + $0x11b8] sm:$0xff]
    %v1221 = vld [vmem:[#allocation8 + $0x11c0] sm:$0xff]
    %v1222 = vld [vmem:[#allocation8 + $0x11c8] sm:$0xff]
    %v1223 = vld [vmem:[#allocation8 + $0x11d0] sm:$0xff]
    %v1224 = vld [vmem:[#allocation8 + $0x11d8] sm:$0xff]
    %v1225 = vld [vmem:[#allocation8 + $0x11e0] sm:$0xff]
    %v1226 = vld [vmem:[#allocation8 + $0x11e8] sm:$0xff]
    %v1227 = vld [vmem:[#allocation8 + $0x11f0] sm:$0xff]
    %v1228 = vld [vmem:[#allocation8 + $0x11f8] sm:$0xff]
    %v1229 = vld [vmem:[#allocation8 + $0x1200] sm:$0xff]
    %v1230 = vld [vmem:[#allocation8 + $0x1208] sm:$0xff]
    %v1231 = vld [vmem:[#allocation8 + $0x1210] sm:$0xff]
    %v1232 = vld [vmem:[#allocation8 + $0x1218] sm:$0xff]
    %v1233 = vld [vmem:[#allocation8 + $0x1220] sm:$0xff]
    %v1234 = vld [vmem:[#allocation8 + $0x1228] sm:$0xff]
    %v1235 = vld [vmem:[#allocation8 + $0x1230] sm:$0xff]
    %v1236 = vld [vmem:[#allocation8 + $0x1238] sm:$0xff]
    %v1237 = vld [vmem:[#allocation8 + $0x1240] sm:$0xff]
    %v1238 = vld [vmem:[#allocation8 + $0x1248] sm:$0xff]
    %v1239 = vld [vmem:[#allocation8 + $0x1250] sm:$0xff]
    %v1240 = vld [vmem:[#allocation8 + $0x1258] sm:$0xff]
    %v1241 = vld [vmem:[#allocation8 + $0x1260] sm:$0xff]
    %v1242 = vld [vmem:[#allocation8 + $0x1268] sm:$0xff]
    %v1243 = vld [vmem:[#allocation8 + $0x1270] sm:$0xff]
    %v1244 = vld [vmem:[#allocation8 + $0x1278] sm:$0xff]
    %v1245 = vld [vmem:[#allocation8 + $0x1280] sm:$0xff]
    %v1246 = vld [vmem:[#allocation8 + $0x1288] sm:$0xff]
    %v1247 = vld [vmem:[#allocation8 + $0x1290] sm:$0xff]
    %v1248 = vld [vmem:[#allocation8 + $0x1298] sm:$0xff]
    %v1249 = vld [vmem:[#allocation8 + $0x12a0] sm:$0xff]
    %v1250 = vld [vmem:[#allocation8 + $0x12a8] sm:$0xff]
    %v1251 = vld [vmem:[#allocation8 + $0x12b0] sm:$0xff]
    %v1252 = vld [vmem:[#allocation8 + $0x12b8] sm:$0xff]
    %v1253 = vld [vmem:[#allocation8 + $0x12c0] sm:$0xff]
    %v1254 = vld [vmem:[#allocation8 + $0x12c8] sm:$0xff]
    %v1255 = vld [vmem:[#allocation8 + $0x12d0] sm:$0xff]
    %v1256 = vld [vmem:[#allocation8 + $0x12d8] sm:$0xff]
    %v1257 = vld [vmem:[#allocation8 + $0x12e0] sm:$0xff]
    %v1258 = vld [vmem:[#allocation8 + $0x12e8] sm:$0xff]
    %v1259 = vld [vmem:[#allocation8 + $0x12f0] sm:$0xff]
    %v1260 = vld [vmem:[#allocation8 + $0x12f8] sm:$0xff]
    %v1261 = vld [vmem:[#allocation8 + $0x1300] sm:$0xff]
    %v1262 = vld [vmem:[#allocation8 + $0x1308] sm:$0xff]
    %v1263 = vld [vmem:[#allocation8 + $0x1310] sm:$0xff]
    %v1264 = vld [vmem:[#allocation8 + $0x1318] sm:$0xff]
    %v1265 = vld [vmem:[#allocation8 + $0x1320] sm:$0xff]
    %v1266 = vld [vmem:[#allocation8 + $0x1328] sm:$0xff]
    %v1267 = vld [vmem:[#allocation8 + $0x1330] sm:$0xff]
    %v1268 = vld [vmem:[#allocation8 + $0x1338] sm:$0xff]
    %v1269 = vld [vmem:[#allocation8 + $0x1340] sm:$0xff]
    %v1270 = vld [vmem:[#allocation8 + $0x1348] sm:$0xff]
    %v1271 = vld [vmem:[#allocation8 + $0x1350] sm:$0xff]
    %v1272 = vld [vmem:[#allocation8 + $0x1358] sm:$0xff]
    %v1273 = vld [vmem:[#allocation8 + $0x1360] sm:$0xff]
    %v1274 = vld [vmem:[#allocation8 + $0x1368] sm:$0xff]
    %v1275 = vld [vmem:[#allocation8 + $0x1370] sm:$0xff]
    %v1276 = vld [vmem:[#allocation8 + $0x1378] sm:$0xff]
    %v1277 = vld [vmem:[#allocation8 + $0x1380] sm:$0xff]
    %v1278 = vld [vmem:[#allocation8 + $0x1388] sm:$0xff]
    %v1279 = vld [vmem:[#allocation8 + $0x1390] sm:$0xff]
    %v1280 = vld [vmem:[#allocation8 + $0x1398] sm:$0xff]
    %v1281 = vld [vmem:[#allocation8 + $0x13a0] sm:$0xff]
    %v1282 = vld [vmem:[#allocation8 + $0x13a8] sm:$0xff]
    %v1283 = vld [vmem:[#allocation8 + $0x13b0] sm:$0xff]
    %v1284 = vld [vmem:[#allocation8 + $0x13b8] sm:$0xff]
    %v1285 = vld [vmem:[#allocation8 + $0x13c0] sm:$0xff]
    %v1286 = vld [vmem:[#allocation8 + $0x13c8] sm:$0xff]
    %v1287 = vld [vmem:[#allocation8 + $0x13d0] sm:$0xff]
    %v1288 = vld [vmem:[#allocation8 + $0x13d8] sm:$0xff]
    %v1289 = vld [vmem:[#allocation8 + $0x13e0] sm:$0xff]
    %v1290 = vld [vmem:[#allocation8 + $0x13e8] sm:$0xff]
    %v1291 = vld [vmem:[#allocation8 + $0x13f0] sm:$0xff]
    %v1292 = vld [vmem:[#allocation8 + $0x13f8] sm:$0xff]
    %v1293 = vld [vmem:[#allocation8 + $0x1400] sm:$0xff]
    %v1294 = vld [vmem:[#allocation8 + $0x1408] sm:$0xff]
    %v1295 = vld [vmem:[#allocation8 + $0x1410] sm:$0xff]
    %v1296 = vld [vmem:[#allocation8 + $0x1418] sm:$0xff]
    %v1297 = vld [vmem:[#allocation8 + $0x1420] sm:$0xff]
    %v1298 = vld [vmem:[#allocation8 + $0x1428] sm:$0xff]
    %v1299 = vld [vmem:[#allocation8 + $0x1430] sm:$0xff]
    %v1300 = vld [vmem:[#allocation8 + $0x1438] sm:$0xff]
    %v1301 = vld [vmem:[#allocation8 + $0x1440] sm:$0xff]
    %v1302 = vld [vmem:[#allocation8 + $0x1448] sm:$0xff]
    %v1303 = vld [vmem:[#allocation8 + $0x1450] sm:$0xff]
    %v1304 = vld [vmem:[#allocation8 + $0x1458] sm:$0xff]
    %v1305 = vld [vmem:[#allocation8 + $0x1460] sm:$0xff]
    %v1306 = vld [vmem:[#allocation8 + $0x1468] sm:$0xff]
    %v1307 = vld [vmem:[#allocation8 + $0x1470] sm:$0xff]
    %v1308 = vld [vmem:[#allocation8 + $0x1478] sm:$0xff]
    %v1309 = vld [vmem:[#allocation8 + $0x1480] sm:$0xff]
    %v1310 = vld [vmem:[#allocation8 + $0x1488] sm:$0xff]
    %v1311 = vld [vmem:[#allocation8 + $0x1490] sm:$0xff]
    %v1312 = vld [vmem:[#allocation8 + $0x1498] sm:$0xff]
    %v1313 = vld [vmem:[#allocation8 + $0x14a0] sm:$0xff]
    %v1314 = vld [vmem:[#allocation8 + $0x14a8] sm:$0xff]
    %v1315 = vld [vmem:[#allocation8 + $0x14b0] sm:$0xff]
    %v1316 = vld [vmem:[#allocation8 + $0x14b8] sm:$0xff]
    %v1317 = vld [vmem:[#allocation8 + $0x14c0] sm:$0xff]
    %v1318 = vld [vmem:[#allocation8 + $0x14c8] sm:$0xff]
    %v1319 = vld [vmem:[#allocation8 + $0x14d0] sm:$0xff]
    %v1320 = vld [vmem:[#allocation8 + $0x14d8] sm:$0xff]
    %v1321 = vld [vmem:[#allocation8 + $0x14e0] sm:$0xff]
    %v1322 = vld [vmem:[#allocation8 + $0x14e8] sm:$0xff]
    %v1323 = vld [vmem:[#allocation8 + $0x14f0] sm:$0xff]
    %v1324 = vld [vmem:[#allocation8 + $0x14f8] sm:$0xff]
    %v1325 = vld [vmem:[#allocation8 + $0x1500] sm:$0xff]
    %v1326 = vld [vmem:[#allocation8 + $0x1508] sm:$0xff]
    %v1327 = vld [vmem:[#allocation8 + $0x1510] sm:$0xff]
    %v1328 = vld [vmem:[#allocation8 + $0x1518] sm:$0xff]
    %v1329 = vld [vmem:[#allocation8 + $0x1520] sm:$0xff]
    %v1330 = vld [vmem:[#allocation8 + $0x1528] sm:$0xff]
    %v1331 = vld [vmem:[#allocation8 + $0x1530] sm:$0xff]
    %v1332 = vld [vmem:[#allocation8 + $0x1538] sm:$0xff]
    %v1333 = vld [vmem:[#allocation8 + $0x1540] sm:$0xff]
    %v1334 = vld [vmem:[#allocation8 + $0x1548] sm:$0xff]
    %v1335 = vld [vmem:[#allocation8 + $0x1550] sm:$0xff]
    %v1336 = vld [vmem:[#allocation8 + $0x1558] sm:$0xff]
    %v1337 = vld [vmem:[#allocation8 + $0x1560] sm:$0xff]
    %v1338 = vld [vmem:[#allocation8 + $0x1568] sm:$0xff]
    %v1339 = vld [vmem:[#allocation8 + $0x1570] sm:$0xff]
    %v1340 = vld [vmem:[#allocation8 + $0x1578] sm:$0xff]
    %v1341 = vld [vmem:[#allocation8 + $0x1580] sm:$0xff]
    %v1342 = vld [vmem:[#allocation8 + $0x1588] sm:$0xff]
    %v1343 = vld [vmem:[#allocation8 + $0x1590] sm:$0xff]
    %v1344 = vld [vmem:[#allocation8 + $0x1598] sm:$0xff]
    %v1345 = vld [vmem:[#allocation8 + $0x15a0] sm:$0xff]
    %v1346 = vld [vmem:[#allocation8 + $0x15a8] sm:$0xff]
    %v1347 = vld [vmem:[#allocation8 + $0x15b0] sm:$0xff]
    %v1348 = vld [vmem:[#allocation8 + $0x15b8] sm:$0xff]
    %v1349 = vld [vmem:[#allocation8 + $0x15c0] sm:$0xff]
    %v1350 = vld [vmem:[#allocation8 + $0x15c8] sm:$0xff]
    %v1351 = vld [vmem:[#allocation8 + $0x15d0] sm:$0xff]
    %v1352 = vld [vmem:[#allocation8 + $0x15d8] sm:$0xff]
    %v1353 = vld [vmem:[#allocation8 + $0x15e0] sm:$0xff]
    %v1354 = vld [vmem:[#allocation8 + $0x15e8] sm:$0xff]
    %v1355 = vld [vmem:[#allocation8 + $0x15f0] sm:$0xff]
    %v1356 = vld [vmem:[#allocation8 + $0x15f8] sm:$0xff]
    %v1357 = vld [vmem:[#allocation8 + $0x1600] sm:$0xff]
    %v1358 = vld [vmem:[#allocation8 + $0x1608] sm:$0xff]
    %v1359 = vld [vmem:[#allocation8 + $0x1610] sm:$0xff]
    %v1360 = vld [vmem:[#allocation8 + $0x1618] sm:$0xff]
    %v1361 = vld [vmem:[#allocation8 + $0x1620] sm:$0xff]
    %v1362 = vld [vmem:[#allocation8 + $0x1628] sm:$0xff]
    %v1363 = vld [vmem:[#allocation8 + $0x1630] sm:$0xff]
    %v1364 = vld [vmem:[#allocation8 + $0x1638] sm:$0xff]
    %v1365 = vld [vmem:[#allocation8 + $0x1640] sm:$0xff]
    %v1366 = vld [vmem:[#allocation8 + $0x1648] sm:$0xff]
    %v1367 = vld [vmem:[#allocation8 + $0x1650] sm:$0xff]
    %v1368 = vld [vmem:[#allocation8 + $0x1658] sm:$0xff]
    %v1369 = vld [vmem:[#allocation8 + $0x1660] sm:$0xff]
    %v1370 = vld [vmem:[#allocation8 + $0x1668] sm:$0xff]
    %v1371 = vld [vmem:[#allocation8 + $0x1670] sm:$0xff]
    %v1372 = vld [vmem:[#allocation8 + $0x1678] sm:$0xff]
    %v1373 = vld [vmem:[#allocation8 + $0x1680] sm:$0xff]
    %v1374 = vld [vmem:[#allocation8 + $0x1688] sm:$0xff]
    %v1375 = vld [vmem:[#allocation8 + $0x1690] sm:$0xff]
    %v1376 = vld [vmem:[#allocation8 + $0x1698] sm:$0xff]
    %v1377 = vld [vmem:[#allocation8 + $0x16a0] sm:$0xff]
    %v1378 = vld [vmem:[#allocation8 + $0x16a8] sm:$0xff]
    %v1379 = vld [vmem:[#allocation8 + $0x16b0] sm:$0xff]
    %v1380 = vld [vmem:[#allocation8 + $0x16b8] sm:$0xff]
    %v1381 = vld [vmem:[#allocation8 + $0x16c0] sm:$0xff]
    %v1382 = vld [vmem:[#allocation8 + $0x16c8] sm:$0xff]
    %v1383 = vld [vmem:[#allocation8 + $0x16d0] sm:$0xff]
    %v1384 = vld [vmem:[#allocation8 + $0x16d8] sm:$0xff]
    %v1385 = vld [vmem:[#allocation8 + $0x16e0] sm:$0xff]
    %v1386 = vld [vmem:[#allocation8 + $0x16e8] sm:$0xff]
    %v1387 = vld [vmem:[#allocation8 + $0x16f0] sm:$0xff]
    %v1388 = vld [vmem:[#allocation8 + $0x16f8] sm:$0xff]
    %v1389 = vld [vmem:[#allocation8 + $0x1700] sm:$0xff]
    %v1390 = vld [vmem:[#allocation8 + $0x1708] sm:$0xff]
    %v1391 = vld [vmem:[#allocation8 + $0x1710] sm:$0xff]
    %v1392 = vld [vmem:[#allocation8 + $0x1718] sm:$0xff]
    %v1393 = vld [vmem:[#allocation8 + $0x1720] sm:$0xff]
    %v1394 = vld [vmem:[#allocation8 + $0x1728] sm:$0xff]
    %v1395 = vld [vmem:[#allocation8 + $0x1730] sm:$0xff]
    %v1396 = vld [vmem:[#allocation8 + $0x1738] sm:$0xff]
    %v1397 = vld [vmem:[#allocation8 + $0x1740] sm:$0xff]
    %v1398 = vld [vmem:[#allocation8 + $0x1748] sm:$0xff]
    %v1399 = vld [vmem:[#allocation8 + $0x1750] sm:$0xff]
    %v1400 = vld [vmem:[#allocation8 + $0x1758] sm:$0xff]
    %v1401 = vld [vmem:[#allocation8 + $0x1760] sm:$0xff]
    %v1402 = vld [vmem:[#allocation8 + $0x1768] sm:$0xff]
    %v1403 = vld [vmem:[#allocation8 + $0x1770] sm:$0xff]
    %v1404 = vld [vmem:[#allocation8 + $0x1778] sm:$0xff]
    %v1405 = vld [vmem:[#allocation8 + $0x1780] sm:$0xff]
    %v1406 = vld [vmem:[#allocation8 + $0x1788] sm:$0xff]
    %v1407 = vld [vmem:[#allocation8 + $0x1790] sm:$0xff]
    %v1408 = vld [vmem:[#allocation8 + $0x1798] sm:$0xff]
    %v1409 = vld [vmem:[#allocation8 + $0x17a0] sm:$0xff]
    %v1410 = vld [vmem:[#allocation8 + $0x17a8] sm:$0xff]
    %v1411 = vld [vmem:[#allocation8 + $0x17b0] sm:$0xff]
    %v1412 = vld [vmem:[#allocation8 + $0x17b8] sm:$0xff]
    %v1413 = vld [vmem:[#allocation8 + $0x17c0] sm:$0xff]
    %v1414 = vld [vmem:[#allocation8 + $0x17c8] sm:$0xff]
    %v1415 = vld [vmem:[#allocation8 + $0x17d0] sm:$0xff]
    %v1416 = vld [vmem:[#allocation8 + $0x17d8] sm:$0xff]
    %v1417 = vld [vmem:[#allocation8 + $0x17e0] sm:$0xff]
    %v1418 = vld [vmem:[#allocation8 + $0x17e8] sm:$0xff]
    %v1419 = vld [vmem:[#allocation8 + $0x17f0] sm:$0xff]
    %v1420 = vld [vmem:[#allocation8 + $0x17f8] sm:$0xff]
    %v1421 = vld [vmem:[#allocation8 + $0x1800] sm:$0xff]
    %v1422 = vld [vmem:[#allocation8 + $0x1808] sm:$0xff]
    %v1423 = vld [vmem:[#allocation8 + $0x1810] sm:$0xff]
    %v1424 = vld [vmem:[#allocation8 + $0x1818] sm:$0xff]
    %v1425 = vld [vmem:[#allocation8 + $0x1820] sm:$0xff]
    %v1426 = vld [vmem:[#allocation8 + $0x1828] sm:$0xff]
    %v1427 = vld [vmem:[#allocation8 + $0x1830] sm:$0xff]
    %v1428 = vld [vmem:[#allocation8 + $0x1838] sm:$0xff]
    %v1429 = vld [vmem:[#allocation8 + $0x1840] sm:$0xff]
    %v1430 = vld [vmem:[#allocation8 + $0x1848] sm:$0xff]
    %v1431 = vld [vmem:[#allocation8 + $0x1850] sm:$0xff]
    %v1432 = vld [vmem:[#allocation8 + $0x1858] sm:$0xff]
    %v1433 = vld [vmem:[#allocation8 + $0x1860] sm:$0xff]
    %v1434 = vld [vmem:[#allocation8 + $0x1868] sm:$0xff]
    %v1435 = vld [vmem:[#allocation8 + $0x1870] sm:$0xff]
    %v1436 = vld [vmem:[#allocation8 + $0x1878] sm:$0xff]
    %v1437 = vld [vmem:[#allocation8 + $0x1880] sm:$0xff]
    %v1438 = vld [vmem:[#allocation8 + $0x1888] sm:$0xff]
    %v1439 = vld [vmem:[#allocation8 + $0x1890] sm:$0xff]
    %v1440 = vld [vmem:[#allocation8 + $0x1898] sm:$0xff]
    %v1441 = vld [vmem:[#allocation8 + $0x18a0] sm:$0xff]
    %v1442 = vld [vmem:[#allocation8 + $0x18a8] sm:$0xff]
    %v1443 = vld [vmem:[#allocation8 + $0x18b0] sm:$0xff]
    %v1444 = vld [vmem:[#allocation8 + $0x18b8] sm:$0xff]
    %v1445 = vld [vmem:[#allocation8 + $0x18c0] sm:$0xff]
    %v1446 = vld [vmem:[#allocation8 + $0x18c8] sm:$0xff]
    %v1447 = vld [vmem:[#allocation8 + $0x18d0] sm:$0xff]
    %v1448 = vld [vmem:[#allocation8 + $0x18d8] sm:$0xff]
    %v1449 = vld [vmem:[#allocation8 + $0x18e0] sm:$0xff]
    %v1450 = vld [vmem:[#allocation8 + $0x18e8] sm:$0xff]
    %v1451 = vld [vmem:[#allocation8 + $0x18f0] sm:$0xff]
    %v1452 = vld [vmem:[#allocation8 + $0x18f8] sm:$0xff]
    %v1453 = vld [vmem:[#allocation8 + $0x1900] sm:$0xff]
    %v1454 = vld [vmem:[#allocation8 + $0x1908] sm:$0xff]
    %v1455 = vld [vmem:[#allocation8 + $0x1910] sm:$0xff]
    %v1456 = vld [vmem:[#allocation8 + $0x1918] sm:$0xff]
    %v1457 = vld [vmem:[#allocation8 + $0x1920] sm:$0xff]
    %v1458 = vld [vmem:[#allocation8 + $0x1928] sm:$0xff]
    %v1459 = vld [vmem:[#allocation8 + $0x1930] sm:$0xff]
    %v1460 = vld [vmem:[#allocation8 + $0x1938] sm:$0xff]
    %v1461 = vld [vmem:[#allocation8 + $0x1940] sm:$0xff]
    %v1462 = vld [vmem:[#allocation8 + $0x1948] sm:$0xff]
    %v1463 = vld [vmem:[#allocation8 + $0x1950] sm:$0xff]
    %v1464 = vld [vmem:[#allocation8 + $0x1958] sm:$0xff]
    %v1465 = vld [vmem:[#allocation8 + $0x1960] sm:$0xff]
    %v1466 = vld [vmem:[#allocation8 + $0x1968] sm:$0xff]
    %v1467 = vld [vmem:[#allocation8 + $0x1970] sm:$0xff]
    %v1468 = vld [vmem:[#allocation8 + $0x1978] sm:$0xff]
    %v1469 = vld [vmem:[#allocation8 + $0x1980] sm:$0xff]
    %v1470 = vld [vmem:[#allocation8 + $0x1988] sm:$0xff]
    %v1471 = vld [vmem:[#allocation8 + $0x1990] sm:$0xff]
    %v1472 = vld [vmem:[#allocation8 + $0x1998] sm:$0xff]
    %v1473 = vld [vmem:[#allocation8 + $0x19a0] sm:$0xff]
    %v1474 = vld [vmem:[#allocation8 + $0x19a8] sm:$0xff]
    %v1475 = vld [vmem:[#allocation8 + $0x19b0] sm:$0xff]
    %v1476 = vld [vmem:[#allocation8 + $0x19b8] sm:$0xff]
    %v1477 = vld [vmem:[#allocation8 + $0x19c0] sm:$0xff]
    %v1478 = vld [vmem:[#allocation8 + $0x19c8] sm:$0xff]
    %v1479 = vld [vmem:[#allocation8 + $0x19d0] sm:$0xff]
    %v1480 = vld [vmem:[#allocation8 + $0x19d8] sm:$0xff]
    %v1481 = vld [vmem:[#allocation8 + $0x19e0] sm:$0xff]
    %v1482 = vld [vmem:[#allocation8 + $0x19e8] sm:$0xff]
    %v1483 = vld [vmem:[#allocation8 + $0x19f0] sm:$0xff]
    %v1484 = vld [vmem:[#allocation8 + $0x19f8] sm:$0xff]
    %v1485 = vld [vmem:[#allocation8 + $0x1a00] sm:$0xff]
    %v1486 = vld [vmem:[#allocation8 + $0x1a08] sm:$0xff]
    %v1487 = vld [vmem:[#allocation8 + $0x1a10] sm:$0xff]
    %v1488 = vld [vmem:[#allocation8 + $0x1a18] sm:$0xff]
    %v1489 = vld [vmem:[#allocation8 + $0x1a20] sm:$0xff]
    %v1490 = vld [vmem:[#allocation8 + $0x1a28] sm:$0xff]
    %v1491 = vld [vmem:[#allocation8 + $0x1a30] sm:$0xff]
    %v1492 = vld [vmem:[#allocation8 + $0x1a38] sm:$0xff]
    %v1493 = vld [vmem:[#allocation8 + $0x1a40] sm:$0xff]
    %v1494 = vld [vmem:[#allocation8 + $0x1a48] sm:$0xff]
    %v1495 = vld [vmem:[#allocation8 + $0x1a50] sm:$0xff]
    %v1496 = vld [vmem:[#allocation8 + $0x1a58] sm:$0xff]
    %v1497 = vld [vmem:[#allocation8 + $0x1a60] sm:$0xff]
    %v1498 = vld [vmem:[#allocation8 + $0x1a68] sm:$0xff]
    %v1499 = vld [vmem:[#allocation8 + $0x1a70] sm:$0xff]
    %v1500 = vld [vmem:[#allocation8 + $0x1a78] sm:$0xff]
    %v1501 = vld [vmem:[#allocation8 + $0x1a80] sm:$0xff]
    %v1502 = vld [vmem:[#allocation8 + $0x1a88] sm:$0xff]
    %v1503 = vld [vmem:[#allocation8 + $0x1a90] sm:$0xff]
    %v1504 = vld [vmem:[#allocation8 + $0x1a98] sm:$0xff]
    %v1505 = vld [vmem:[#allocation8 + $0x1aa0] sm:$0xff]
    %v1506 = vld [vmem:[#allocation8 + $0x1aa8] sm:$0xff]
    %v1507 = vld [vmem:[#allocation8 + $0x1ab0] sm:$0xff]
    %v1508 = vld [vmem:[#allocation8 + $0x1ab8] sm:$0xff]
    %v1509 = vld [vmem:[#allocation8 + $0x1ac0] sm:$0xff]
    %v1510 = vld [vmem:[#allocation8 + $0x1ac8] sm:$0xff]
    %v1511 = vld [vmem:[#allocation8 + $0x1ad0] sm:$0xff]
    %v1512 = vld [vmem:[#allocation8 + $0x1ad8] sm:$0xff]
    %v1513 = vld [vmem:[#allocation8 + $0x1ae0] sm:$0xff]
    %v1514 = vld [vmem:[#allocation8 + $0x1ae8] sm:$0xff]
    %v1515 = vld [vmem:[#allocation8 + $0x1af0] sm:$0xff]
    %v1516 = vld [vmem:[#allocation8 + $0x1af8] sm:$0xff]
    %v1517 = vld [vmem:[#allocation8 + $0x1b00] sm:$0xff]
    %v1518 = vld [vmem:[#allocation8 + $0x1b08] sm:$0xff]
    %v1519 = vld [vmem:[#allocation8 + $0x1b10] sm:$0xff]
    %v1520 = vld [vmem:[#allocation8 + $0x1b18] sm:$0xff]
    %v1521 = vld [vmem:[#allocation8 + $0x1b20] sm:$0xff]
    %v1522 = vld [vmem:[#allocation8 + $0x1b28] sm:$0xff]
    %v1523 = vld [vmem:[#allocation8 + $0x1b30] sm:$0xff]
    %v1524 = vld [vmem:[#allocation8 + $0x1b38] sm:$0xff]
    %v1525 = vld [vmem:[#allocation8 + $0x1b40] sm:$0xff]
    %v1526 = vld [vmem:[#allocation8 + $0x1b48] sm:$0xff]
    %v1527 = vld [vmem:[#allocation8 + $0x1b50] sm:$0xff]
    %v1528 = vld [vmem:[#allocation8 + $0x1b58] sm:$0xff]
    %v1529 = vld [vmem:[#allocation8 + $0x1b60] sm:$0xff]
    %v1530 = vld [vmem:[#allocation8 + $0x1b68] sm:$0xff]
    %v1531 = vld [vmem:[#allocation8 + $0x1b70] sm:$0xff]
    %v1532 = vld [vmem:[#allocation8 + $0x1b78] sm:$0xff]
    %v1533 = vld [vmem:[#allocation8 + $0x1b80] sm:$0xff]
    %v1534 = vld [vmem:[#allocation8 + $0x1b88] sm:$0xff]
    %v1535 = vld [vmem:[#allocation8 + $0x1b90] sm:$0xff]
    %v1536 = vld [vmem:[#allocation8 + $0x1b98] sm:$0xff]
    %v1537 = vld [vmem:[#allocation8 + $0x1ba0] sm:$0xff]
    %v1538 = vld [vmem:[#allocation8 + $0x1ba8] sm:$0xff]
    %v1539 = vld [vmem:[#allocation8 + $0x1bb0] sm:$0xff]
    %v1540 = vld [vmem:[#allocation8 + $0x1bb8] sm:$0xff]
    %v1541 = vld [vmem:[#allocation8 + $0x1bc0] sm:$0xff]
    %v1542 = vld [vmem:[#allocation8 + $0x1bc8] sm:$0xff]
    %v1543 = vld [vmem:[#allocation8 + $0x1bd0] sm:$0xff]
    %v1544 = vld [vmem:[#allocation8 + $0x1bd8] sm:$0xff]
    %v1545 = vld [vmem:[#allocation8 + $0x1be0] sm:$0xff]
    %v1546 = vld [vmem:[#allocation8 + $0x1be8] sm:$0xff]
    %v1547 = vld [vmem:[#allocation8 + $0x1bf0] sm:$0xff]
    %v1548 = vld [vmem:[#allocation8 + $0x1bf8] sm:$0xff]
    %v1549 = vld [vmem:[#allocation8 + $0x1c00] sm:$0xff]
    %v1550 = vld [vmem:[#allocation8 + $0x1c08] sm:$0xff]
    %v1551 = vld [vmem:[#allocation8 + $0x1c10] sm:$0xff]
    %v1552 = vld [vmem:[#allocation8 + $0x1c18] sm:$0xff]
    %v1553 = vld [vmem:[#allocation8 + $0x1c20] sm:$0xff]
    %v1554 = vld [vmem:[#allocation8 + $0x1c28] sm:$0xff]
    %v1555 = vld [vmem:[#allocation8 + $0x1c30] sm:$0xff]
    %v1556 = vld [vmem:[#allocation8 + $0x1c38] sm:$0xff]
    %v1557 = vld [vmem:[#allocation8 + $0x1c40] sm:$0xff]
    %v1558 = vld [vmem:[#allocation8 + $0x1c48] sm:$0xff]
    %v1559 = vld [vmem:[#allocation8 + $0x1c50] sm:$0xff]
    %v1560 = vld [vmem:[#allocation8 + $0x1c58] sm:$0xff]
    %v1561 = vld [vmem:[#allocation8 + $0x1c60] sm:$0xff]
    %v1562 = vld [vmem:[#allocation8 + $0x1c68] sm:$0xff]
    %v1563 = vld [vmem:[#allocation8 + $0x1c70] sm:$0xff]
    %v1564 = vld [vmem:[#allocation8 + $0x1c78] sm:$0xff]
    %v1565 = vld [vmem:[#allocation8 + $0x1c80] sm:$0xff]
    %v1566 = vld [vmem:[#allocation8 + $0x1c88] sm:$0xff]
    %v1567 = vld [vmem:[#allocation8 + $0x1c90] sm:$0xff]
    %v1568 = vld [vmem:[#allocation8 + $0x1c98] sm:$0xff]
    %v1569 = vld [vmem:[#allocation8 + $0x1ca0] sm:$0xff]
    %v1570 = vld [vmem:[#allocation8 + $0x1ca8] sm:$0xff]
    %v1571 = vld [vmem:[#allocation8 + $0x1cb0] sm:$0xff]
    %v1572 = vld [vmem:[#allocation8 + $0x1cb8] sm:$0xff]
    %v1573 = vld [vmem:[#allocation8 + $0x1cc0] sm:$0xff]
    %v1574 = vld [vmem:[#allocation8 + $0x1cc8] sm:$0xff]
    %v1575 = vld [vmem:[#allocation8 + $0x1cd0] sm:$0xff]
    %v1576 = vld [vmem:[#allocation8 + $0x1cd8] sm:$0xff]
    %v1577 = vld [vmem:[#allocation8 + $0x1ce0] sm:$0xff]
    %v1578 = vld [vmem:[#allocation8 + $0x1ce8] sm:$0xff]
    %v1579 = vld [vmem:[#allocation8 + $0x1cf0] sm:$0xff]
    %v1580 = vld [vmem:[#allocation8 + $0x1cf8] sm:$0xff]
    %v1581 = vld [vmem:[#allocation8 + $0x1d00] sm:$0xff]
    %v1582 = vld [vmem:[#allocation8 + $0x1d08] sm:$0xff]
    %v1583 = vld [vmem:[#allocation8 + $0x1d10] sm:$0xff]
    %v1584 = vld [vmem:[#allocation8 + $0x1d18] sm:$0xff]
    %v1585 = vld [vmem:[#allocation8 + $0x1d20] sm:$0xff]
    %v1586 = vld [vmem:[#allocation8 + $0x1d28] sm:$0xff]
    %v1587 = vld [vmem:[#allocation8 + $0x1d30] sm:$0xff]
    %v1588 = vld [vmem:[#allocation8 + $0x1d38] sm:$0xff]
    %v1589 = vld [vmem:[#allocation8 + $0x1d40] sm:$0xff]
    %v1590 = vld [vmem:[#allocation8 + $0x1d48] sm:$0xff]
    %v1591 = vld [vmem:[#allocation8 + $0x1d50] sm:$0xff]
    %v1592 = vld [vmem:[#allocation8 + $0x1d58] sm:$0xff]
    %v1593 = vld [vmem:[#allocation8 + $0x1d60] sm:$0xff]
    %v1594 = vld [vmem:[#allocation8 + $0x1d68] sm:$0xff]
    %v1595 = vld [vmem:[#allocation8 + $0x1d70] sm:$0xff]
    %v1596 = vld [vmem:[#allocation8 + $0x1d78] sm:$0xff]
    %v1597 = vld [vmem:[#allocation8 + $0x1d80] sm:$0xff]
    %v1598 = vld [vmem:[#allocation8 + $0x1d88] sm:$0xff]
    %v1599 = vld [vmem:[#allocation8 + $0x1d90] sm:$0xff]
    %v1600 = vld [vmem:[#allocation8 + $0x1d98] sm:$0xff]
    %v1601 = vld [vmem:[#allocation8 + $0x1da0] sm:$0xff]
    %v1602 = vld [vmem:[#allocation8 + $0x1da8] sm:$0xff]
    %v1603 = vld [vmem:[#allocation8 + $0x1db0] sm:$0xff]
    %v1604 = vld [vmem:[#allocation8 + $0x1db8] sm:$0xff]
    %v1605 = vld [vmem:[#allocation8 + $0x1dc0] sm:$0xff]
    %v1606 = vld [vmem:[#allocation8 + $0x1dc8] sm:$0xff]
    %v1607 = vld [vmem:[#allocation8 + $0x1dd0] sm:$0xff]
    %v1608 = vld [vmem:[#allocation8 + $0x1dd8] sm:$0xff]
    %v1609 = vld [vmem:[#allocation8 + $0x1de0] sm:$0xff]
    %v1610 = vld [vmem:[#allocation8 + $0x1de8] sm:$0xff]
    %v1611 = vld [vmem:[#allocation8 + $0x1df0] sm:$0xff]
    %v1612 = vld [vmem:[#allocation8 + $0x1df8] sm:$0xff]
    %v1613 = vld [vmem:[#allocation8 + $0x1e00] sm:$0xff]
    %v1614 = vld [vmem:[#allocation8 + $0x1e08] sm:$0xff]
    %v1615 = vld [vmem:[#allocation8 + $0x1e10] sm:$0xff]
    %v1616 = vld [vmem:[#allocation8 + $0x1e18] sm:$0xff]
    %v1617 = vld [vmem:[#allocation8 + $0x1e20] sm:$0xff]
    %v1618 = vld [vmem:[#allocation8 + $0x1e28] sm:$0xff]
    %v1619 = vld [vmem:[#allocation8 + $0x1e30] sm:$0xff]
    %v1620 = vld [vmem:[#allocation8 + $0x1e38] sm:$0xff]
    %v1621 = vld [vmem:[#allocation8 + $0x1e40] sm:$0xff]
    %v1622 = vld [vmem:[#allocation8 + $0x1e48] sm:$0xff]
    %v1623 = vld [vmem:[#allocation8 + $0x1e50] sm:$0xff]
    %v1624 = vld [vmem:[#allocation8 + $0x1e58] sm:$0xff]
    %v1625 = vld [vmem:[#allocation8 + $0x1e60] sm:$0xff]
    %v1626 = vld [vmem:[#allocation8 + $0x1e68] sm:$0xff]
    %v1627 = vld [vmem:[#allocation8 + $0x1e70] sm:$0xff]
    %v1628 = vld [vmem:[#allocation8 + $0x1e78] sm:$0xff]
    %v1629 = vld [vmem:[#allocation8 + $0x1e80] sm:$0xff]
    %v1630 = vld [vmem:[#allocation8 + $0x1e88] sm:$0xff]
    %v1631 = vld [vmem:[#allocation8 + $0x1e90] sm:$0xff]
    %v1632 = vld [vmem:[#allocation8 + $0x1e98] sm:$0xff]
    %v1633 = vld [vmem:[#allocation8 + $0x1ea0] sm:$0xff]
    %v1634 = vld [vmem:[#allocation8 + $0x1ea8] sm:$0xff]
    %v1635 = vld [vmem:[#allocation8 + $0x1eb0] sm:$0xff]
    %v1636 = vld [vmem:[#allocation8 + $0x1eb8] sm:$0xff]
    %v1637 = vld [vmem:[#allocation8 + $0x1ec0] sm:$0xff]
    %v1638 = vld [vmem:[#allocation8 + $0x1ec8] sm:$0xff]
    %v1639 = vld [vmem:[#allocation8 + $0x1ed0] sm:$0xff]
    %v1640 = vld [vmem:[#allocation8 + $0x1ed8] sm:$0xff]
    %v1641 = vld [vmem:[#allocation8 + $0x1ee0] sm:$0xff]
    %v1642 = vld [vmem:[#allocation8 + $0x1ee8] sm:$0xff]
    %v1643 = vld [vmem:[#allocation8 + $0x1ef0] sm:$0xff]
    %v1644 = vld [vmem:[#allocation8 + $0x1ef8] sm:$0xff]
    %v1645 = vld [vmem:[#allocation8 + $0x1f00] sm:$0xff]
    %v1646 = vld [vmem:[#allocation8 + $0x1f08] sm:$0xff]
    %v1647 = vld [vmem:[#allocation8 + $0x1f10] sm:$0xff]
    %v1648 = vld [vmem:[#allocation8 + $0x1f18] sm:$0xff]
    %v1649 = vld [vmem:[#allocation8 + $0x1f20] sm:$0xff]
    %v1650 = vld [vmem:[#allocation8 + $0x1f28] sm:$0xff]
    %v1651 = vld [vmem:[#allocation8 + $0x1f30] sm:$0xff]
    %v1652 = vld [vmem:[#allocation8 + $0x1f38] sm:$0xff]
    %v1653 = vld [vmem:[#allocation8 + $0x1f40] sm:$0xff]
    %v1654 = vld [vmem:[#allocation8 + $0x1f48] sm:$0xff]
    %v1655 = vld [vmem:[#allocation8 + $0x1f50] sm:$0xff]
    %v1656 = vld [vmem:[#allocation8 + $0x1f58] sm:$0xff]
    %v1657 = vld [vmem:[#allocation8 + $0x1f60] sm:$0xff]
    %v1658 = vld [vmem:[#allocation8 + $0x1f68] sm:$0xff]
    %v1659 = vld [vmem:[#allocation8 + $0x1f70] sm:$0xff]
    %v1660 = vld [vmem:[#allocation8 + $0x1f78] sm:$0xff]
    %v1661 = vld [vmem:[#allocation8 + $0x1f80] sm:$0xff]
    %v1662 = vld [vmem:[#allocation8 + $0x1f88] sm:$0xff]
    %v1663 = vld [vmem:[#allocation8 + $0x1f90] sm:$0xff]
    %v1664 = vld [vmem:[#allocation8 + $0x1f98] sm:$0xff]
    %v1665 = vld [vmem:[#allocation8 + $0x1fa0] sm:$0xff]
    %v1666 = vld [vmem:[#allocation8 + $0x1fa8] sm:$0xff]
    %v1667 = vld [vmem:[#allocation8 + $0x1fb0] sm:$0xff]
    %v1668 = vld [vmem:[#allocation8 + $0x1fb8] sm:$0xff]
    %v1669 = vld [vmem:[#allocation8 + $0x1fc0] sm:$0xff]
    %v1670 = vld [vmem:[#allocation8 + $0x1fc8] sm:$0xff]
    %v1671 = vld [vmem:[#allocation8 + $0x1fd0] sm:$0xff]
    %v1672 = vld [vmem:[#allocation8 + $0x1fd8] sm:$0xff]
    %v1673 = vld [vmem:[#allocation8 + $0x1fe0] sm:$0xff]
    %v1674 = vld [vmem:[#allocation8 + $0x1fe8] sm:$0xff]
    %v1675 = vld [vmem:[#allocation8 + $0x1ff0] sm:$0xff]
    %v1676 = vld [vmem:[#allocation8 + $0x1ff8] sm:$0xff]
    %v1677 = vld [vmem:[#allocation8 + $0x2000] sm:$0xff]
    %v1678 = vld [vmem:[#allocation8 + $0x2008] sm:$0xff]
    %v1679 = vld [vmem:[#allocation8 + $0x2010] sm:$0xff]
    %v1680 = vld [vmem:[#allocation8 + $0x2018] sm:$0xff]
    %v1681 = vld [vmem:[#allocation8 + $0x2020] sm:$0xff]
    %v1682 = vld [vmem:[#allocation8 + $0x2028] sm:$0xff]
    %v1683 = vld [vmem:[#allocation8 + $0x2030] sm:$0xff]
    %v1684 = vld [vmem:[#allocation8 + $0x2038] sm:$0xff]
    %v1685 = vld [vmem:[#allocation8 + $0x2040] sm:$0xff]
    %v1686 = vld [vmem:[#allocation8 + $0x2048] sm:$0xff]
    %v1687 = vld [vmem:[#allocation8 + $0x2050] sm:$0xff]
    %v1688 = vld [vmem:[#allocation8 + $0x2058] sm:$0xff]
    %v1689 = vld [vmem:[#allocation8 + $0x2060] sm:$0xff]
    %v1690 = vld [vmem:[#allocation8 + $0x2068] sm:$0xff]
    %v1691 = vld [vmem:[#allocation8 + $0x2070] sm:$0xff]
    %v1692 = vld [vmem:[#allocation8 + $0x2078] sm:$0xff]
    %v1693 = vld [vmem:[#allocation8 + $0x2080] sm:$0xff]
    %v1694 = vld [vmem:[#allocation8 + $0x2088] sm:$0xff]
    %v1695 = vld [vmem:[#allocation8 + $0x2090] sm:$0xff]
    %v1696 = vld [vmem:[#allocation8 + $0x2098] sm:$0xff]
    %v1697 = vld [vmem:[#allocation8 + $0x20a0] sm:$0xff]
    %v1698 = vld [vmem:[#allocation8 + $0x20a8] sm:$0xff]
    %v1699 = vld [vmem:[#allocation8 + $0x20b0] sm:$0xff]
    %v1700 = vld [vmem:[#allocation8 + $0x20b8] sm:$0xff]
    %v1701 = vld [vmem:[#allocation8 + $0x20c0] sm:$0xff]
    %v1702 = vld [vmem:[#allocation8 + $0x20c8] sm:$0xff]
    %v1703 = vld [vmem:[#allocation8 + $0x20d0] sm:$0xff]
    %v1704 = vld [vmem:[#allocation8 + $0x20d8] sm:$0xff]
    %v1705 = vld [vmem:[#allocation8 + $0x20e0] sm:$0xff]
    %v1706 = vld [vmem:[#allocation8 + $0x20e8] sm:$0xff]
    %v1707 = vld [vmem:[#allocation8 + $0x20f0] sm:$0xff]
    %v1708 = vld [vmem:[#allocation8 + $0x20f8] sm:$0xff]
    %v1709 = vld [vmem:[#allocation8 + $0x2100] sm:$0xff]
    %v1710 = vld [vmem:[#allocation8 + $0x2108] sm:$0xff]
    %v1711 = vld [vmem:[#allocation8 + $0x2110] sm:$0xff]
    %v1712 = vld [vmem:[#allocation8 + $0x2118] sm:$0xff]
    %v1713 = vld [vmem:[#allocation8 + $0x2120] sm:$0xff]
    %v1714 = vld [vmem:[#allocation8 + $0x2128] sm:$0xff]
    %v1715 = vld [vmem:[#allocation8 + $0x2130] sm:$0xff]
    %v1716 = vld [vmem:[#allocation8 + $0x2138] sm:$0xff]
    %v1717 = vld [vmem:[#allocation8 + $0x2140] sm:$0xff]
    %v1718 = vld [vmem:[#allocation8 + $0x2148] sm:$0xff]
    %v1719 = vld [vmem:[#allocation8 + $0x2150] sm:$0xff]
    %v1720 = vld [vmem:[#allocation8 + $0x2158] sm:$0xff]
    %v1721 = vld [vmem:[#allocation8 + $0x2160] sm:$0xff]
    %v1722 = vld [vmem:[#allocation8 + $0x2168] sm:$0xff]
    %v1723 = vld [vmem:[#allocation8 + $0x2170] sm:$0xff]
    %v1724 = vld [vmem:[#allocation8 + $0x2178] sm:$0xff]
    %v1725 = vld [vmem:[#allocation8 + $0x2180] sm:$0xff]
    %v1726 = vld [vmem:[#allocation8 + $0x2188] sm:$0xff]
    %v1727 = vld [vmem:[#allocation8 + $0x2190] sm:$0xff]
    %v1728 = vld [vmem:[#allocation8 + $0x2198] sm:$0xff]
    %v1729 = vld [vmem:[#allocation8 + $0x21a0] sm:$0xff]
    %v1730 = vld [vmem:[#allocation8 + $0x21a8] sm:$0xff]
    %v1731 = vld [vmem:[#allocation8 + $0x21b0] sm:$0xff]
    %v1732 = vld [vmem:[#allocation8 + $0x21b8] sm:$0xff]
    %v1733 = vld [vmem:[#allocation8 + $0x21c0] sm:$0xff]
    %v1734 = vld [vmem:[#allocation8 + $0x21c8] sm:$0xff]
    %v1735 = vld [vmem:[#allocation8 + $0x21d0] sm:$0xff]
    %v1736 = vld [vmem:[#allocation8 + $0x21d8] sm:$0xff]
    %v1737 = vld [vmem:[#allocation8 + $0x21e0] sm:$0xff]
    %v1738 = vld [vmem:[#allocation8 + $0x21e8] sm:$0xff]
    %v1739 = vld [vmem:[#allocation8 + $0x21f0] sm:$0xff]
    %v1740 = vld [vmem:[#allocation8 + $0x21f8] sm:$0xff]
    %v1741 = vld [vmem:[#allocation8 + $0x2200] sm:$0xff]
    %v1742 = vld [vmem:[#allocation8 + $0x2208] sm:$0xff]
    %v1743 = vld [vmem:[#allocation8 + $0x2210] sm:$0xff]
    %v1744 = vld [vmem:[#allocation8 + $0x2218] sm:$0xff]
    %v1745 = vld [vmem:[#allocation8 + $0x2220] sm:$0xff]
    %v1746 = vld [vmem:[#allocation8 + $0x2228] sm:$0xff]
    %v1747 = vld [vmem:[#allocation8 + $0x2230] sm:$0xff]
    %v1748 = vld [vmem:[#allocation8 + $0x2238] sm:$0xff]
    %v1749 = vld [vmem:[#allocation8 + $0x2240] sm:$0xff]
    %v1750 = vld [vmem:[#allocation8 + $0x2248] sm:$0xff]
    %v1751 = vld [vmem:[#allocation8 + $0x2250] sm:$0xff]
    %v1752 = vld [vmem:[#allocation8 + $0x2258] sm:$0xff]
    %v1753 = vld [vmem:[#allocation8 + $0x2260] sm:$0xff]
    %v1754 = vld [vmem:[#allocation8 + $0x2268] sm:$0xff]
    %v1755 = vld [vmem:[#allocation8 + $0x2270] sm:$0xff]
    %v1756 = vld [vmem:[#allocation8 + $0x2278] sm:$0xff]
    %v1757 = vld [vmem:[#allocation8 + $0x2280] sm:$0xff]
    %v1758 = vld [vmem:[#allocation8 + $0x2288] sm:$0xff]
    %v1759 = vld [vmem:[#allocation8 + $0x2290] sm:$0xff]
    %v1760 = vld [vmem:[#allocation8 + $0x2298] sm:$0xff]
    %v1761 = vld [vmem:[#allocation8 + $0x22a0] sm:$0xff]
    %v1762 = vld [vmem:[#allocation8 + $0x22a8] sm:$0xff]
    %v1763 = vld [vmem:[#allocation8 + $0x22b0] sm:$0xff]
    %v1764 = vld [vmem:[#allocation8 + $0x22b8] sm:$0xff]
    %v1765 = vld [vmem:[#allocation8 + $0x22c0] sm:$0xff]
    %v1766 = vld [vmem:[#allocation8 + $0x22c8] sm:$0xff]
    %v1767 = vld [vmem:[#allocation8 + $0x22d0] sm:$0xff]
    %v1768 = vld [vmem:[#allocation8 + $0x22d8] sm:$0xff]
    %v1769 = vld [vmem:[#allocation8 + $0x22e0] sm:$0xff]
    %v1770 = vld [vmem:[#allocation8 + $0x22e8] sm:$0xff]
    %v1771 = vld [vmem:[#allocation8 + $0x22f0] sm:$0xff]
    %v1772 = vld [vmem:[#allocation8 + $0x22f8] sm:$0xff]
    %v1773 = vld [vmem:[#allocation8 + $0x2300] sm:$0xff]
    %v1774 = vld [vmem:[#allocation8 + $0x2308] sm:$0xff]
    %v1775 = vld [vmem:[#allocation8 + $0x2310] sm:$0xff]
    %v1776 = vld [vmem:[#allocation8 + $0x2318] sm:$0xff]
    %v1777 = vld [vmem:[#allocation8 + $0x2320] sm:$0xff]
    %v1778 = vld [vmem:[#allocation8 + $0x2328] sm:$0xff]
    %v1779 = vld [vmem:[#allocation8 + $0x2330] sm:$0xff]
    %v1780 = vld [vmem:[#allocation8 + $0x2338] sm:$0xff]
    %v1781 = vld [vmem:[#allocation8 + $0x2340] sm:$0xff]
    %v1782 = vld [vmem:[#allocation8 + $0x2348] sm:$0xff]
    %v1783 = vld [vmem:[#allocation8 + $0x2350] sm:$0xff]
    %v1784 = vld [vmem:[#allocation8 + $0x2358] sm:$0xff]
    %v1785 = vld [vmem:[#allocation8 + $0x2360] sm:$0xff]
    %v1786 = vld [vmem:[#allocation8 + $0x2368] sm:$0xff]
    %v1787 = vld [vmem:[#allocation8 + $0x2370] sm:$0xff]
    %v1788 = vld [vmem:[#allocation8 + $0x2378] sm:$0xff]
    %v1789 = vld [vmem:[#allocation8 + $0x2380] sm:$0xff]
    %v1790 = vld [vmem:[#allocation8 + $0x2388] sm:$0xff]
    %v1791 = vld [vmem:[#allocation8 + $0x2390] sm:$0xff]
    %v1792 = vld [vmem:[#allocation8 + $0x2398] sm:$0xff]
    %v1793 = vld [vmem:[#allocation8 + $0x23a0] sm:$0xff]
    %v1794 = vld [vmem:[#allocation8 + $0x23a8] sm:$0xff]
    %v1795 = vld [vmem:[#allocation8 + $0x23b0] sm:$0xff]
    %v1796 = vld [vmem:[#allocation8 + $0x23b8] sm:$0xff]
    %v1797 = vld [vmem:[#allocation8 + $0x23c0] sm:$0xff]
    %v1798 = vld [vmem:[#allocation8 + $0x23c8] sm:$0xff]
    %v1799 = vld [vmem:[#allocation8 + $0x23d0] sm:$0xff]
    %v1800 = vld [vmem:[#allocation8 + $0x23d8] sm:$0xff]
    %v1801 = vld [vmem:[#allocation8 + $0x23e0] sm:$0xff]
    %v1802 = vld [vmem:[#allocation8 + $0x23e8] sm:$0xff]
    %v1803 = vld [vmem:[#allocation8 + $0x23f0] sm:$0xff]
    %v1804 = vld [vmem:[#allocation8 + $0x23f8] sm:$0xff]
    %v1805 = vld [vmem:[#allocation8 + $0x2400] sm:$0xff]
    %v1806 = vld [vmem:[#allocation8 + $0x2408] sm:$0xff]
    %v1807 = vld [vmem:[#allocation8 + $0x2410] sm:$0xff]
    %v1808 = vld [vmem:[#allocation8 + $0x2418] sm:$0xff]
    %v1809 = vld [vmem:[#allocation8 + $0x2420] sm:$0xff]
    %v1810 = vld [vmem:[#allocation8 + $0x2428] sm:$0xff]
    %v1811 = vld [vmem:[#allocation8 + $0x2430] sm:$0xff]
    %v1812 = vld [vmem:[#allocation8 + $0x2438] sm:$0xff]
    %v1813 = vld [vmem:[#allocation8 + $0x2440] sm:$0xff]
    %v1814 = vld [vmem:[#allocation8 + $0x2448] sm:$0xff]
    %v1815 = vld [vmem:[#allocation8 + $0x2450] sm:$0xff]
    %v1816 = vld [vmem:[#allocation8 + $0x2458] sm:$0xff]
    %v1817 = vld [vmem:[#allocation8 + $0x2460] sm:$0xff]
    %v1818 = vld [vmem:[#allocation8 + $0x2468] sm:$0xff]
    %v1819 = vld [vmem:[#allocation8 + $0x2470] sm:$0xff]
    %v1820 = vld [vmem:[#allocation8 + $0x2478] sm:$0xff]
    %v1821 = vld [vmem:[#allocation8 + $0x2480] sm:$0xff]
    %v1822 = vld [vmem:[#allocation8 + $0x2488] sm:$0xff]
    %v1823 = vld [vmem:[#allocation8 + $0x2490] sm:$0xff]
    %v1824 = vld [vmem:[#allocation8 + $0x2498] sm:$0xff]
    %v1825 = vld [vmem:[#allocation8 + $0x24a0] sm:$0xff]
    %v1826 = vld [vmem:[#allocation8 + $0x24a8] sm:$0xff]
    %v1827 = vld [vmem:[#allocation8 + $0x24b0] sm:$0xff]
    %v1828 = vld [vmem:[#allocation8 + $0x24b8] sm:$0xff]
    %v1829 = vld [vmem:[#allocation8 + $0x24c0] sm:$0xff]
    %v1830 = vld [vmem:[#allocation8 + $0x24c8] sm:$0xff]
    %v1831 = vld [vmem:[#allocation8 + $0x24d0] sm:$0xff]
    %v1832 = vld [vmem:[#allocation8 + $0x24d8] sm:$0xff]
    %v1833 = vld [vmem:[#allocation8 + $0x24e0] sm:$0xff]
    %v1834 = vld [vmem:[#allocation8 + $0x24e8] sm:$0xff]
    %v1835 = vld [vmem:[#allocation8 + $0x24f0] sm:$0xff]
    %v1836 = vld [vmem:[#allocation8 + $0x24f8] sm:$0xff]
    %v1837 = vld [vmem:[#allocation8 + $0x2500] sm:$0xff]
    %v1838 = vld [vmem:[#allocation8 + $0x2508] sm:$0xff]
    %v1839 = vld [vmem:[#allocation8 + $0x2510] sm:$0xff]
    %v1840 = vld [vmem:[#allocation8 + $0x2518] sm:$0xff]
    %v1841 = vld [vmem:[#allocation8 + $0x2520] sm:$0xff]
    %v1842 = vld [vmem:[#allocation8 + $0x2528] sm:$0xff]
    %v1843 = vld [vmem:[#allocation8 + $0x2530] sm:$0xff]
    %v1844 = vld [vmem:[#allocation8 + $0x2538] sm:$0xff]
    %v1845 = vld [vmem:[#allocation8 + $0x2540] sm:$0xff]
    %v1846 = vld [vmem:[#allocation8 + $0x2548] sm:$0xff]
    %v1847 = vld [vmem:[#allocation8 + $0x2550] sm:$0xff]
    %v1848 = vld [vmem:[#allocation8 + $0x2558] sm:$0xff]
    %v1849 = vld [vmem:[#allocation8 + $0x2560] sm:$0xff]
    %v1850 = vld [vmem:[#allocation8 + $0x2568] sm:$0xff]
    %v1851 = vld [vmem:[#allocation8 + $0x2570] sm:$0xff]
    %v1852 = vld [vmem:[#allocation8 + $0x2578] sm:$0xff]
    %v1853 = vld [vmem:[#allocation10] sm:$0xff]
    %v1854 = vld [vmem:[#allocation10 + $0x8] sm:$0xff]
    %v1857 = vlaneseq
    %v1858 = vshrl.u32 %v1857, 7
    %v1859 = vsub.s32 0, %v1858
    %v1860 = vrot.slane %v1853, %v1859
    %v1861 = vlaneseq
    %v1862 = vshrl.u32 %v1861, 7
    %v1863 = vsub.s32 1, %v1862
    %v1864 = vrot.slane %v1853, %v1863
    %v1865 = vlaneseq
    %v1866 = vshrl.u32 %v1865, 7
    %v1867 = vsub.s32 2, %v1866
    %v1868 = vrot.slane %v1853, %v1867
    %v1869 = vlaneseq
    %v1870 = vshrl.u32 %v1869, 7
    %v1871 = vsub.s32 3, %v1870
    %v1872 = vrot.slane %v1853, %v1871
    %v1873 = vlaneseq
    %v1874 = vshrl.u32 %v1873, 7
    %v1875 = vsub.s32 4, %v1874
    %v1876 = vrot.slane %v1853, %v1875
    %v1877 = vlaneseq
    %v1878 = vshrl.u32 %v1877, 7
    %v1879 = vsub.s32 5, %v1878
    %v1880 = vrot.slane %v1853, %v1879
    %v1881 = vlaneseq
    %v1882 = vshrl.u32 %v1881, 7
    %v1883 = vsub.s32 6, %v1882
    %v1884 = vrot.slane %v1853, %v1883
    %v1885 = vlaneseq
    %v1886 = vshrl.u32 %v1885, 7
    %v1887 = vsub.s32 7, %v1886
    %v1888 = vrot.slane %v1853, %v1887
    %v1889 = vlaneseq
    %v1890 = vshrl.u32 %v1889, 7
    %v1891 = vsub.s32 0, %v1890
    %v1892 = vrot.slane %v1854, %v1891
    %v1893 = vlaneseq
    %v1894 = vshrl.u32 %v1893, 7
    %v1895 = vsub.s32 1, %v1894
    %v1896 = vrot.slane %v1854, %v1895
    %v1897 = vlaneseq
    %v1898 = vshrl.u32 %v1897, 7
    %v1899 = vsub.s32 2, %v1898
    %v1900 = vrot.slane %v1854, %v1899
    %v1901 = vlaneseq
    %v1902 = vshrl.u32 %v1901, 7
    %v1903 = vsub.s32 3, %v1902
    %v1904 = vrot.slane %v1854, %v1903
    %v1905 = vlaneseq
    %v1906 = vshrl.u32 %v1905, 7
    %v1907 = vsub.s32 4, %v1906
    %v1908 = vrot.slane %v1854, %v1907
    %v1909 = vlaneseq
    %v1910 = vshrl.u32 %v1909, 7
    %v1911 = vsub.s32 5, %v1910
    %v1912 = vrot.slane %v1854, %v1911
    %v1913 = vlaneseq
    %v1914 = vshrl.u32 %v1913, 7
    %v1915 = vsub.s32 6, %v1914
    %v1916 = vrot.slane %v1854, %v1915
    %1932 = vmatprep.subr.mxu0 %v879
    %1933 = vmatpush1.msra.mxu0 %v878
    %1934 = vmatprep.subr.mxu0 %v864
    %1935 = vmatpush1.msra.mxu0 %v863
    %1936 = vmatprep.subr.mxu0 %v849
    %1937 = vmatpush1.msra.mxu0 %v848
    %1938 = vmatprep.subr.mxu0 %v834
    %1939 = vmatpush1.msra.mxu0 %v833
    %1940 = vmatprep.subr.mxu0 %v819
    %1941 = vmatpush1.msra.mxu0 %v818
    %1942 = vmatprep.subr.mxu0 %v804
    %1943 = vmatpush1.msra.mxu0 %v803
    %1944 = vmatprep.subr.mxu0 %v789
    %1945 = vmatpush1.msra.mxu0 %v788
    %1946 = vmatprep.subr.mxu0 %v774
    %1947 = vmatpush1.msra.mxu0 %v773
    %1948 = vmatprep.subr.mxu0 %v759
    %1949 = vmatpush1.msra.mxu0 %v758
    %1950 = vmatprep.subr.mxu0 %v744
    %1951 = vmatpush1.msra.mxu0 %v743
    %1952 = vmatprep.subr.mxu0 %v729
    %1953 = vmatpush1.msra.mxu0 %v728
    %1954 = vmatprep.subr.mxu0 %v714
    %1955 = vmatpush1.msra.mxu0 %v713
    %1956 = vmatprep.subr.mxu0 %v699
    %1957 = vmatpush1.msra.mxu0 %v698
    %1958 = vmatprep.subr.mxu0 %v684
    %1959 = vmatpush1.msra.mxu0 %v683
    %1960 = vmatprep.subr.mxu0 %v669
    %1961 = vmatpush1.msra.mxu0 %v668
    %1962 = vmatprep.subr.mxu0 %v654
    %1963 = vmatpush1.msra.mxu0 %v653
    %1964 = vmatprep.subr.mxu0 %v1119
    %1965 = vmatpush2.msra.mxu0 %v1118
    %1966 = vmatprep.subr.mxu0 %v1104
    %1967 = vmatpush2.msra.mxu0 %v1103
    %1968 = vmatprep.subr.mxu0 %v1089
    %1969 = vmatpush2.msra.mxu0 %v1088
    %1970 = vmatprep.subr.mxu0 %v1074
    %1971 = vmatpush2.msra.mxu0 %v1073
    %1972 = vmatprep.subr.mxu0 %v1059
    %1973 = vmatpush2.msra.mxu0 %v1058
    %1974 = vmatprep.subr.mxu0 %v1044
    %1975 = vmatpush2.msra.mxu0 %v1043
    %1976 = vmatprep.subr.mxu0 %v1029
    %1977 = vmatpush2.msra.mxu0 %v1028
    %1978 = vmatprep.subr.mxu0 %v1014
    %1979 = vmatpush2.msra.mxu0 %v1013
    %1980 = vmatprep.subr.mxu0 %v999
    %1981 = vmatpush2.msra.mxu0 %v998
    %1982 = vmatprep.subr.mxu0 %v984
    %1983 = vmatpush2.msra.mxu0 %v983
    %1984 = vmatprep.subr.mxu0 %v969
    %1985 = vmatpush2.msra.mxu0 %v968
    %1986 = vmatprep.subr.mxu0 %v954
    %1987 = vmatpush2.msra.mxu0 %v953
    %1988 = vmatprep.subr.mxu0 %v939
    %1989 = vmatpush2.msra.mxu0 %v938
    %1990 = vmatprep.subr.mxu0 %v924
    %1991 = vmatpush2.msra.mxu0 %v923
    %1992 = vmatprep.subr.mxu0 %v909
    %1993 = vmatpush2.msra.mxu0 %v908
    %1994 = vmatprep.subr.mxu0 %v894
    %1995 = vmatpush2.msra.mxu0 %v893
    %1996 = vmatprep.mubr.f32.mxu0 %v593
    %1997 = vmatmul.mubr.f32.gmra.mxu0 %v592
    %v1998 = vpop.f32.mrf.mxu0
    %v1999 = vadd.f32 %v1860, %v1998
    %v2000 = vpop.f32.mrf.mxu0
    %v2001 = vadd.f32 %v1864, %v2000
    %2002 = vdwg.mxu0
    %2003 = vmatprep.subr.mxu0 %v1359
    %2004 = vmatpush1.msra.mxu0 %v1358
    %2005 = vmatprep.subr.mxu0 %v1344
    %2006 = vmatpush1.msra.mxu0 %v1343
    %2007 = vmatprep.subr.mxu0 %v1329
    %2008 = vmatpush1.msra.mxu0 %v1328
    %2009 = vmatprep.subr.mxu0 %v1314
    %2010 = vmatpush1.msra.mxu0 %v1313
    %2011 = vmatprep.subr.mxu0 %v1299
    %2012 = vmatpush1.msra.mxu0 %v1298
    %2013 = vmatprep.subr.mxu0 %v1284
    %2014 = vmatpush1.msra.mxu0 %v1283
    %2015 = vmatprep.subr.mxu0 %v1269
    %2016 = vmatpush1.msra.mxu0 %v1268
    %2017 = vmatprep.subr.mxu0 %v1254
    %2018 = vmatpush1.msra.mxu0 %v1253
    %2019 = vmatprep.subr.mxu0 %v1239
    %2020 = vmatpush1.msra.mxu0 %v1238
    %2021 = vmatprep.subr.mxu0 %v1224
    %2022 = vmatpush1.msra.mxu0 %v1223
    %2023 = vmatprep.subr.mxu0 %v1209
    %2024 = vmatpush1.msra.mxu0 %v1208
    %2025 = vmatprep.subr.mxu0 %v1194
    %2026 = vmatpush1.msra.mxu0 %v1193
    %2027 = vmatprep.subr.mxu0 %v1179
    %2028 = vmatpush1.msra.mxu0 %v1178
    %2029 = vmatprep.subr.mxu0 %v1164
    %2030 = vmatpush1.msra.mxu0 %v1163
    %2031 = vmatprep.subr.mxu0 %v1149
    %2032 = vmatpush1.msra.mxu0 %v1148
    %2033 = vmatprep.subr.mxu0 %v1134
    %2034 = vmatpush1.msra.mxu0 %v1133
    %2035 = vmatprep.subr.mxu0 %v1599
    %2036 = vmatpush2.msra.mxu0 %v1598
    %2037 = vmatprep.subr.mxu0 %v1584
    %2038 = vmatpush2.msra.mxu0 %v1583
    %2039 = vmatprep.subr.mxu0 %v1569
    %2040 = vmatpush2.msra.mxu0 %v1568
    %2041 = vmatprep.subr.mxu0 %v1554
    %2042 = vmatpush2.msra.mxu0 %v1553
    %2043 = vmatprep.subr.mxu0 %v1539
    %2044 = vmatpush2.msra.mxu0 %v1538
    %2045 = vmatprep.subr.mxu0 %v1524
    %2046 = vmatpush2.msra.mxu0 %v1523
    %2047 = vmatprep.subr.mxu0 %v1509
    %2048 = vmatpush2.msra.mxu0 %v1508
    %2049 = vmatprep.subr.mxu0 %v1494
    %2050 = vmatpush2.msra.mxu0 %v1493
    %2051 = vmatprep.subr.mxu0 %v1479
    %2052 = vmatpush2.msra.mxu0 %v1478
    %2053 = vmatprep.subr.mxu0 %v1464
    %2054 = vmatpush2.msra.mxu0 %v1463
    %2055 = vmatprep.subr.mxu0 %v1449
    %2056 = vmatpush2.msra.mxu0 %v1448
    %2057 = vmatprep.subr.mxu0 %v1434
    %2058 = vmatpush2.msra.mxu0 %v1433
    %2059 = vmatprep.subr.mxu0 %v1419
    %2060 = vmatpush2.msra.mxu0 %v1418
    %2061 = vmatprep.subr.mxu0 %v1404
    %2062 = vmatpush2.msra.mxu0 %v1403
    %2063 = vmatprep.subr.mxu0 %v1389
    %2064 = vmatpush2.msra.mxu0 %v1388
    %2065 = vmatprep.subr.mxu0 %v1374
    %2066 = vmatpush2.msra.mxu0 %v1373
    %2067 = vmatprep.mubr.f32.mxu0 %v595
    %2068 = vmatmul.mubr.f32.gmra.mxu0 %v594
    %v2069 = vpop.f32.mrf.mxu0
    %v2070 = vadd.f32 %v1999, %v2069
    %v2071 = vpop.f32.mrf.mxu0
    %v2072 = vadd.f32 %v2001, %v2071
    %2073 = vdwg.mxu0
    %2074 = vmatprep.subr.mxu0 %v1839
    %2075 = vmatpush1.msra.mxu0 %v1838
    %2076 = vmatprep.subr.mxu0 %v1824
    %2077 = vmatpush1.msra.mxu0 %v1823
    %2078 = vmatprep.subr.mxu0 %v1809
    %2079 = vmatpush1.msra.mxu0 %v1808
    %2080 = vmatprep.subr.mxu0 %v1794
    %2081 = vmatpush1.msra.mxu0 %v1793
    %2082 = vmatprep.subr.mxu0 %v1779
    %2083 = vmatpush1.msra.mxu0 %v1778
    %2084 = vmatprep.subr.mxu0 %v1764
    %2085 = vmatpush1.msra.mxu0 %v1763
    %2086 = vmatprep.subr.mxu0 %v1749
    %2087 = vmatpush1.msra.mxu0 %v1748
    %2088 = vmatprep.subr.mxu0 %v1734
    %2089 = vmatpush1.msra.mxu0 %v1733
    %2090 = vmatprep.subr.mxu0 %v1719
    %2091 = vmatpush1.msra.mxu0 %v1718
    %2092 = vmatprep.subr.mxu0 %v1704
    %2093 = vmatpush1.msra.mxu0 %v1703
    %2094 = vmatprep.subr.mxu0 %v1689
    %2095 = vmatpush1.msra.mxu0 %v1688
    %2096 = vmatprep.subr.mxu0 %v1674
    %2097 = vmatpush1.msra.mxu0 %v1673
    %2098 = vmatprep.subr.mxu0 %v1659
    %2099 = vmatpush1.msra.mxu0 %v1658
    %2100 = vmatprep.subr.mxu0 %v1644
    %2101 = vmatpush1.msra.mxu0 %v1643
    %2102 = vmatprep.subr.mxu0 %v1629
    %2103 = vmatpush1.msra.mxu0 %v1628
    %2104 = vmatprep.subr.mxu0 %v1614
    %2105 = vmatpush1.msra.mxu0 %v1613
    %2106 = vmatprep.subr.mxu0 0.0
    %2107 = vmatpush2.msra.mxu0 0.0
    %2108 = vmatprep.subr.mxu0 0.0
    %2109 = vmatpush2.msra.mxu0 0.0
    %2110 = vmatprep.subr.mxu0 0.0
    %2111 = vmatpush2.msra.mxu0 0.0
    %2112 = vmatprep.subr.mxu0 0.0
    %2113 = vmatpush2.msra.mxu0 0.0
    %2114 = vmatprep.subr.mxu0 0.0
    %2115 = vmatpush2.msra.mxu0 0.0
    %2116 = vmatprep.subr.mxu0 0.0
    %2117 = vmatpush2.msra.mxu0 0.0
    %2118 = vmatprep.subr.mxu0 0.0
    %2119 = vmatpush2.msra.mxu0 0.0
    %2120 = vmatprep.subr.mxu0 0.0
    %2121 = vmatpush2.msra.mxu0 0.0
    %2122 = vmatprep.subr.mxu0 0.0
    %2123 = vmatpush2.msra.mxu0 0.0
    %2124 = vmatprep.subr.mxu0 0.0
    %2125 = vmatpush2.msra.mxu0 0.0
    %2126 = vmatprep.subr.mxu0 0.0
    %2127 = vmatpush2.msra.mxu0 0.0
    %2128 = vmatprep.subr.mxu0 0.0
    %2129 = vmatpush2.msra.mxu0 0.0
    %2130 = vmatprep.subr.mxu0 0.0
    %2131 = vmatpush2.msra.mxu0 0.0
    %2132 = vmatprep.subr.mxu0 0.0
    %2133 = vmatpush2.msra.mxu0 0.0
    %2134 = vmatprep.subr.mxu0 0.0
    %2135 = vmatpush2.msra.mxu0 0.0
    %2136 = vmatprep.subr.mxu0 0.0
    %2137 = vmatpush2.msra.mxu0 0.0
    %2138 = vmatprep.mubr.f32.mxu0 0.0
    %2139 = vmatmul.mubr.f32.gmra.mxu0 %v596
    %v2140 = vpop.f32.mrf.mxu0
    %v2141 = vadd.f32 %v2070, %v2140
    %v2142 = vpop.f32.mrf.mxu0
    %v2143 = vadd.f32 %v2072, %v2142
    %2144 = vdwg.mxu0
    %2145 = vmatprep.subr.mxu0 %v881
    %2146 = vmatpush1.msra.mxu0 %v880
    %2147 = vmatprep.subr.mxu0 %v866
    %2148 = vmatpush1.msra.mxu0 %v865
    %2149 = vmatprep.subr.mxu0 %v851
    %2150 = vmatpush1.msra.mxu0 %v850
    %2151 = vmatprep.subr.mxu0 %v836
    %2152 = vmatpush1.msra.mxu0 %v835
    %2153 = vmatprep.subr.mxu0 %v821
    %2154 = vmatpush1.msra.mxu0 %v820
    %2155 = vmatprep.subr.mxu0 %v806
    %2156 = vmatpush1.msra.mxu0 %v805
    %2157 = vmatprep.subr.mxu0 %v791
    %2158 = vmatpush1.msra.mxu0 %v790
    %2159 = vmatprep.subr.mxu0 %v776
    %2160 = vmatpush1.msra.mxu0 %v775
    %2161 = vmatprep.subr.mxu0 %v761
    %2162 = vmatpush1.msra.mxu0 %v760
    %2163 = vmatprep.subr.mxu0 %v746
    %2164 = vmatpush1.msra.mxu0 %v745
    %2165 = vmatprep.subr.mxu0 %v731
    %2166 = vmatpush1.msra.mxu0 %v730
    %2167 = vmatprep.subr.mxu0 %v716
    %2168 = vmatpush1.msra.mxu0 %v715
    %2169 = vmatprep.subr.mxu0 %v701
    %2170 = vmatpush1.msra.mxu0 %v700
    %2171 = vmatprep.subr.mxu0 %v686
    %2172 = vmatpush1.msra.mxu0 %v685
    %2173 = vmatprep.subr.mxu0 %v671
    %2174 = vmatpush1.msra.mxu0 %v670
    %2175 = vmatprep.subr.mxu0 %v656
    %2176 = vmatpush1.msra.mxu0 %v655
    %2177 = vmatprep.subr.mxu0 %v1121
    %2178 = vmatpush2.msra.mxu0 %v1120
    %2179 = vmatprep.subr.mxu0 %v1106
    %2180 = vmatpush2.msra.mxu0 %v1105
    %2181 = vmatprep.subr.mxu0 %v1091
    %2182 = vmatpush2.msra.mxu0 %v1090
    %2183 = vmatprep.subr.mxu0 %v1076
    %2184 = vmatpush2.msra.mxu0 %v1075
    %2185 = vmatprep.subr.mxu0 %v1061
    %2186 = vmatpush2.msra.mxu0 %v1060
    %2187 = vmatprep.subr.mxu0 %v1046
    %2188 = vmatpush2.msra.mxu0 %v1045
    %2189 = vmatprep.subr.mxu0 %v1031
    %2190 = vmatpush2.msra.mxu0 %v1030
    %2191 = vmatprep.subr.mxu0 %v1016
    %2192 = vmatpush2.msra.mxu0 %v1015
    %2193 = vmatprep.subr.mxu0 %v1001
    %2194 = vmatpush2.msra.mxu0 %v1000
    %2195 = vmatprep.subr.mxu0 %v986
    %2196 = vmatpush2.msra.mxu0 %v985
    %2197 = vmatprep.subr.mxu0 %v971
    %2198 = vmatpush2.msra.mxu0 %v970
    %2199 = vmatprep.subr.mxu0 %v956
    %2200 = vmatpush2.msra.mxu0 %v955
    %2201 = vmatprep.subr.mxu0 %v941
    %2202 = vmatpush2.msra.mxu0 %v940
    %2203 = vmatprep.subr.mxu0 %v926
    %2204 = vmatpush2.msra.mxu0 %v925
    %2205 = vmatprep.subr.mxu0 %v911
    %2206 = vmatpush2.msra.mxu0 %v910
    %2207 = vmatprep.subr.mxu0 %v896
    %2208 = vmatpush2.msra.mxu0 %v895
    %2209 = vmatprep.mubr.f32.mxu0 %v593
    %2210 = vmatmul.mubr.f32.gmra.mxu0 %v592
    %v2211 = vpop.f32.mrf.mxu0
    %v2212 = vadd.f32 %v1868, %v2211
    %v2213 = vpop.f32.mrf.mxu0
    %v2214 = vadd.f32 %v1872, %v2213
    %2215 = vdwg.mxu0
    %2216 = vmatprep.subr.mxu0 %v1361
    %2217 = vmatpush1.msra.mxu0 %v1360
    %2218 = vmatprep.subr.mxu0 %v1346
    %2219 = vmatpush1.msra.mxu0 %v1345
    %2220 = vmatprep.subr.mxu0 %v1331
    %2221 = vmatpush1.msra.mxu0 %v1330
    %2222 = vmatprep.subr.mxu0 %v1316
    %2223 = vmatpush1.msra.mxu0 %v1315
    %2224 = vmatprep.subr.mxu0 %v1301
    %2225 = vmatpush1.msra.mxu0 %v1300
    %2226 = vmatprep.subr.mxu0 %v1286
    %2227 = vmatpush1.msra.mxu0 %v1285
    %2228 = vmatprep.subr.mxu0 %v1271
    %2229 = vmatpush1.msra.mxu0 %v1270
    %2230 = vmatprep.subr.mxu0 %v1256
    %2231 = vmatpush1.msra.mxu0 %v1255
    %2232 = vmatprep.subr.mxu0 %v1241
    %2233 = vmatpush1.msra.mxu0 %v1240
    %2234 = vmatprep.subr.mxu0 %v1226
    %2235 = vmatpush1.msra.mxu0 %v1225
    %2236 = vmatprep.subr.mxu0 %v1211
    %2237 = vmatpush1.msra.mxu0 %v1210
    %2238 = vmatprep.subr.mxu0 %v1196
    %2239 = vmatpush1.msra.mxu0 %v1195
    %2240 = vmatprep.subr.mxu0 %v1181
    %2241 = vmatpush1.msra.mxu0 %v1180
    %2242 = vmatprep.subr.mxu0 %v1166
    %2243 = vmatpush1.msra.mxu0 %v1165
    %2244 = vmatprep.subr.mxu0 %v1151
    %2245 = vmatpush1.msra.mxu0 %v1150
    %2246 = vmatprep.subr.mxu0 %v1136
    %2247 = vmatpush1.msra.mxu0 %v1135
    %2248 = vmatprep.subr.mxu0 %v1601
    %2249 = vmatpush2.msra.mxu0 %v1600
    %2250 = vmatprep.subr.mxu0 %v1586
    %2251 = vmatpush2.msra.mxu0 %v1585
    %2252 = vmatprep.subr.mxu0 %v1571
    %2253 = vmatpush2.msra.mxu0 %v1570
    %2254 = vmatprep.subr.mxu0 %v1556
    %2255 = vmatpush2.msra.mxu0 %v1555
    %2256 = vmatprep.subr.mxu0 %v1541
    %2257 = vmatpush2.msra.mxu0 %v1540
    %2258 = vmatprep.subr.mxu0 %v1526
    %2259 = vmatpush2.msra.mxu0 %v1525
    %2260 = vmatprep.subr.mxu0 %v1511
    %2261 = vmatpush2.msra.mxu0 %v1510
    %2262 = vmatprep.subr.mxu0 %v1496
    %2263 = vmatpush2.msra.mxu0 %v1495
    %2264 = vmatprep.subr.mxu0 %v1481
    %2265 = vmatpush2.msra.mxu0 %v1480
    %2266 = vmatprep.subr.mxu0 %v1466
    %2267 = vmatpush2.msra.mxu0 %v1465
    %2268 = vmatprep.subr.mxu0 %v1451
    %2269 = vmatpush2.msra.mxu0 %v1450
    %2270 = vmatprep.subr.mxu0 %v1436
    %2271 = vmatpush2.msra.mxu0 %v1435
    %2272 = vmatprep.subr.mxu0 %v1421
    %2273 = vmatpush2.msra.mxu0 %v1420
    %2274 = vmatprep.subr.mxu0 %v1406
    %2275 = vmatpush2.msra.mxu0 %v1405
    %2276 = vmatprep.subr.mxu0 %v1391
    %2277 = vmatpush2.msra.mxu0 %v1390
    %2278 = vmatprep.subr.mxu0 %v1376
    %2279 = vmatpush2.msra.mxu0 %v1375
    %2280 = vmatprep.mubr.f32.mxu0 %v595
    %2281 = vmatmul.mubr.f32.gmra.mxu0 %v594
    %v2282 = vpop.f32.mrf.mxu0
    %v2283 = vadd.f32 %v2212, %v2282
    %v2284 = vpop.f32.mrf.mxu0
    %v2285 = vadd.f32 %v2214, %v2284
    %2286 = vdwg.mxu0
    %2287 = vmatprep.subr.mxu0 %v1841
    %2288 = vmatpush1.msra.mxu0 %v1840
    %2289 = vmatprep.subr.mxu0 %v1826
    %2290 = vmatpush1.msra.mxu0 %v1825
    %2291 = vmatprep.subr.mxu0 %v1811
    %2292 = vmatpush1.msra.mxu0 %v1810
    %2293 = vmatprep.subr.mxu0 %v1796
    %2294 = vmatpush1.msra.mxu0 %v1795
    %2295 = vmatprep.subr.mxu0 %v1781
    %2296 = vmatpush1.msra.mxu0 %v1780
    %2297 = vmatprep.subr.mxu0 %v1766
    %2298 = vmatpush1.msra.mxu0 %v1765
    %2299 = vmatprep.subr.mxu0 %v1751
    %2300 = vmatpush1.msra.mxu0 %v1750
    %2301 = vmatprep.subr.mxu0 %v1736
    %2302 = vmatpush1.msra.mxu0 %v1735
    %2303 = vmatprep.subr.mxu0 %v1721
    %2304 = vmatpush1.msra.mxu0 %v1720
    %2305 = vmatprep.subr.mxu0 %v1706
    %2306 = vmatpush1.msra.mxu0 %v1705
    %2307 = vmatprep.subr.mxu0 %v1691
    %2308 = vmatpush1.msra.mxu0 %v1690
    %2309 = vmatprep.subr.mxu0 %v1676
    %2310 = vmatpush1.msra.mxu0 %v1675
    %2311 = vmatprep.subr.mxu0 %v1661
    %2312 = vmatpush1.msra.mxu0 %v1660
    %2313 = vmatprep.subr.mxu0 %v1646
    %2314 = vmatpush1.msra.mxu0 %v1645
    %2315 = vmatprep.subr.mxu0 %v1631
    %2316 = vmatpush1.msra.mxu0 %v1630
    %2317 = vmatprep.subr.mxu0 %v1616
    %2318 = vmatpush1.msra.mxu0 %v1615
    %2319 = vmatprep.subr.mxu0 0.0
    %2320 = vmatpush2.msra.mxu0 0.0
    %2321 = vmatprep.subr.mxu0 0.0
    %2322 = vmatpush2.msra.mxu0 0.0
    %2323 = vmatprep.subr.mxu0 0.0
    %2324 = vmatpush2.msra.mxu0 0.0
    %2325 = vmatprep.subr.mxu0 0.0
    %2326 = vmatpush2.msra.mxu0 0.0
    %2327 = vmatprep.subr.mxu0 0.0
    %2328 = vmatpush2.msra.mxu0 0.0
    %2329 = vmatprep.subr.mxu0 0.0
    %2330 = vmatpush2.msra.mxu0 0.0
    %2331 = vmatprep.subr.mxu0 0.0
    %2332 = vmatpush2.msra.mxu0 0.0
    %2333 = vmatprep.subr.mxu0 0.0
    %2334 = vmatpush2.msra.mxu0 0.0
    %2335 = vmatprep.subr.mxu0 0.0
    %2336 = vmatpush2.msra.mxu0 0.0
    %2337 = vmatprep.subr.mxu0 0.0
    %2338 = vmatpush2.msra.mxu0 0.0
    %2339 = vmatprep.subr.mxu0 0.0
    %2340 = vmatpush2.msra.mxu0 0.0
    %2341 = vmatprep.subr.mxu0 0.0
    %2342 = vmatpush2.msra.mxu0 0.0
    %2343 = vmatprep.subr.mxu0 0.0
    %2344 = vmatpush2.msra.mxu0 0.0
    %2345 = vmatprep.subr.mxu0 0.0
    %2346 = vmatpush2.msra.mxu0 0.0
    %2347 = vmatprep.subr.mxu0 0.0
    %2348 = vmatpush2.msra.mxu0 0.0
    %2349 = vmatprep.subr.mxu0 0.0
    %2350 = vmatpush2.msra.mxu0 0.0
    %2351 = vmatprep.mubr.f32.mxu0 0.0
    %2352 = vmatmul.mubr.f32.gmra.mxu0 %v596
    %v2353 = vpop.f32.mrf.mxu0
    %v2354 = vadd.f32 %v2283, %v2353
    %v2355 = vpop.f32.mrf.mxu0
    %v2356 = vadd.f32 %v2285, %v2355
    %2357 = vdwg.mxu0
    %2358 = vmatprep.subr.mxu0 %v883
    %2359 = vmatpush1.msra.mxu0 %v882
    %2360 = vmatprep.subr.mxu0 %v868
    %2361 = vmatpush1.msra.mxu0 %v867
    %2362 = vmatprep.subr.mxu0 %v853
    %2363 = vmatpush1.msra.mxu0 %v852
    %2364 = vmatprep.subr.mxu0 %v838
    %2365 = vmatpush1.msra.mxu0 %v837
    %2366 = vmatprep.subr.mxu0 %v823
    %2367 = vmatpush1.msra.mxu0 %v822
    %2368 = vmatprep.subr.mxu0 %v808
    %2369 = vmatpush1.msra.mxu0 %v807
    %2370 = vmatprep.subr.mxu0 %v793
    %2371 = vmatpush1.msra.mxu0 %v792
    %2372 = vmatprep.subr.mxu0 %v778
    %2373 = vmatpush1.msra.mxu0 %v777
    %2374 = vmatprep.subr.mxu0 %v763
    %2375 = vmatpush1.msra.mxu0 %v762
    %2376 = vmatprep.subr.mxu0 %v748
    %2377 = vmatpush1.msra.mxu0 %v747
    %2378 = vmatprep.subr.mxu0 %v733
    %2379 = vmatpush1.msra.mxu0 %v732
    %2380 = vmatprep.subr.mxu0 %v718
    %2381 = vmatpush1.msra.mxu0 %v717
    %2382 = vmatprep.subr.mxu0 %v703
    %2383 = vmatpush1.msra.mxu0 %v702
    %2384 = vmatprep.subr.mxu0 %v688
    %2385 = vmatpush1.msra.mxu0 %v687
    %2386 = vmatprep.subr.mxu0 %v673
    %2387 = vmatpush1.msra.mxu0 %v672
    %2388 = vmatprep.subr.mxu0 %v658
    %2389 = vmatpush1.msra.mxu0 %v657
    %2390 = vmatprep.subr.mxu0 %v1123
    %2391 = vmatpush2.msra.mxu0 %v1122
    %2392 = vmatprep.subr.mxu0 %v1108
    %2393 = vmatpush2.msra.mxu0 %v1107
    %2394 = vmatprep.subr.mxu0 %v1093
    %2395 = vmatpush2.msra.mxu0 %v1092
    %2396 = vmatprep.subr.mxu0 %v1078
    %2397 = vmatpush2.msra.mxu0 %v1077
    %2398 = vmatprep.subr.mxu0 %v1063
    %2399 = vmatpush2.msra.mxu0 %v1062
    %2400 = vmatprep.subr.mxu0 %v1048
    %2401 = vmatpush2.msra.mxu0 %v1047
    %2402 = vmatprep.subr.mxu0 %v1033
    %2403 = vmatpush2.msra.mxu0 %v1032
    %2404 = vmatprep.subr.mxu0 %v1018
    %2405 = vmatpush2.msra.mxu0 %v1017
    %2406 = vmatprep.subr.mxu0 %v1003
    %2407 = vmatpush2.msra.mxu0 %v1002
    %2408 = vmatprep.subr.mxu0 %v988
    %2409 = vmatpush2.msra.mxu0 %v987
    %2410 = vmatprep.subr.mxu0 %v973
    %2411 = vmatpush2.msra.mxu0 %v972
    %2412 = vmatprep.subr.mxu0 %v958
    %2413 = vmatpush2.msra.mxu0 %v957
    %2414 = vmatprep.subr.mxu0 %v943
    %2415 = vmatpush2.msra.mxu0 %v942
    %2416 = vmatprep.subr.mxu0 %v928
    %2417 = vmatpush2.msra.mxu0 %v927
    %2418 = vmatprep.subr.mxu0 %v913
    %2419 = vmatpush2.msra.mxu0 %v912
    %2420 = vmatprep.subr.mxu0 %v898
    %2421 = vmatpush2.msra.mxu0 %v897
    %2422 = vmatprep.mubr.f32.mxu0 %v593
    %2423 = vmatmul.mubr.f32.gmra.mxu0 %v592
    %v2424 = vpop.f32.mrf.mxu0
    %v2425 = vadd.f32 %v1876, %v2424
    %v2426 = vpop.f32.mrf.mxu0
    %v2427 = vadd.f32 %v1880, %v2426
    %2428 = vdwg.mxu0
    %2429 = vmatprep.subr.mxu0 %v1363
    %2430 = vmatpush1.msra.mxu0 %v1362
    %2431 = vmatprep.subr.mxu0 %v1348
    %2432 = vmatpush1.msra.mxu0 %v1347
    %2433 = vmatprep.subr.mxu0 %v1333
    %2434 = vmatpush1.msra.mxu0 %v1332
    %2435 = vmatprep.subr.mxu0 %v1318
    %2436 = vmatpush1.msra.mxu0 %v1317
    %2437 = vmatprep.subr.mxu0 %v1303
    %2438 = vmatpush1.msra.mxu0 %v1302
    %2439 = vmatprep.subr.mxu0 %v1288
    %2440 = vmatpush1.msra.mxu0 %v1287
    %2441 = vmatprep.subr.mxu0 %v1273
    %2442 = vmatpush1.msra.mxu0 %v1272
    %2443 = vmatprep.subr.mxu0 %v1258
    %2444 = vmatpush1.msra.mxu0 %v1257
    %2445 = vmatprep.subr.mxu0 %v1243
    %2446 = vmatpush1.msra.mxu0 %v1242
    %2447 = vmatprep.subr.mxu0 %v1228
    %2448 = vmatpush1.msra.mxu0 %v1227
    %2449 = vmatprep.subr.mxu0 %v1213
    %2450 = vmatpush1.msra.mxu0 %v1212
    %2451 = vmatprep.subr.mxu0 %v1198
    %2452 = vmatpush1.msra.mxu0 %v1197
    %2453 = vmatprep.subr.mxu0 %v1183
    %2454 = vmatpush1.msra.mxu0 %v1182
    %2455 = vmatprep.subr.mxu0 %v1168
    %2456 = vmatpush1.msra.mxu0 %v1167
    %2457 = vmatprep.subr.mxu0 %v1153
    %2458 = vmatpush1.msra.mxu0 %v1152
    %2459 = vmatprep.subr.mxu0 %v1138
    %2460 = vmatpush1.msra.mxu0 %v1137
    %2461 = vmatprep.subr.mxu0 %v1603
    %2462 = vmatpush2.msra.mxu0 %v1602
    %2463 = vmatprep.subr.mxu0 %v1588
    %2464 = vmatpush2.msra.mxu0 %v1587
    %2465 = vmatprep.subr.mxu0 %v1573
    %2466 = vmatpush2.msra.mxu0 %v1572
    %2467 = vmatprep.subr.mxu0 %v1558
    %2468 = vmatpush2.msra.mxu0 %v1557
    %2469 = vmatprep.subr.mxu0 %v1543
    %2470 = vmatpush2.msra.mxu0 %v1542
    %2471 = vmatprep.subr.mxu0 %v1528
    %2472 = vmatpush2.msra.mxu0 %v1527
    %2473 = vmatprep.subr.mxu0 %v1513
    %2474 = vmatpush2.msra.mxu0 %v1512
    %2475 = vmatprep.subr.mxu0 %v1498
    %2476 = vmatpush2.msra.mxu0 %v1497
    %2477 = vmatprep.subr.mxu0 %v1483
    %2478 = vmatpush2.msra.mxu0 %v1482
    %2479 = vmatprep.subr.mxu0 %v1468
    %2480 = vmatpush2.msra.mxu0 %v1467
    %2481 = vmatprep.subr.mxu0 %v1453
    %2482 = vmatpush2.msra.mxu0 %v1452
    %2483 = vmatprep.subr.mxu0 %v1438
    %2484 = vmatpush2.msra.mxu0 %v1437
    %2485 = vmatprep.subr.mxu0 %v1423
    %2486 = vmatpush2.msra.mxu0 %v1422
    %2487 = vmatprep.subr.mxu0 %v1408
    %2488 = vmatpush2.msra.mxu0 %v1407
    %2489 = vmatprep.subr.mxu0 %v1393
    %2490 = vmatpush2.msra.mxu0 %v1392
    %2491 = vmatprep.subr.mxu0 %v1378
    %2492 = vmatpush2.msra.mxu0 %v1377
    %2493 = vmatprep.mubr.f32.mxu0 %v595
    %2494 = vmatmul.mubr.f32.gmra.mxu0 %v594
    %v2495 = vpop.f32.mrf.mxu0
    %v2496 = vadd.f32 %v2425, %v2495
    %v2497 = vpop.f32.mrf.mxu0
    %v2498 = vadd.f32 %v2427, %v2497
    %2499 = vdwg.mxu0
    %2500 = vmatprep.subr.mxu0 %v1843
    %2501 = vmatpush1.msra.mxu0 %v1842
    %2502 = vmatprep.subr.mxu0 %v1828
    %2503 = vmatpush1.msra.mxu0 %v1827
    %2504 = vmatprep.subr.mxu0 %v1813
    %2505 = vmatpush1.msra.mxu0 %v1812
    %2506 = vmatprep.subr.mxu0 %v1798
    %2507 = vmatpush1.msra.mxu0 %v1797
    %2508 = vmatprep.subr.mxu0 %v1783
    %2509 = vmatpush1.msra.mxu0 %v1782
    %2510 = vmatprep.subr.mxu0 %v1768
    %2511 = vmatpush1.msra.mxu0 %v1767
    %2512 = vmatprep.subr.mxu0 %v1753
    %2513 = vmatpush1.msra.mxu0 %v1752
    %2514 = vmatprep.subr.mxu0 %v1738
    %2515 = vmatpush1.msra.mxu0 %v1737
    %2516 = vmatprep.subr.mxu0 %v1723
    %2517 = vmatpush1.msra.mxu0 %v1722
    %2518 = vmatprep.subr.mxu0 %v1708
    %2519 = vmatpush1.msra.mxu0 %v1707
    %2520 = vmatprep.subr.mxu0 %v1693
    %2521 = vmatpush1.msra.mxu0 %v1692
    %2522 = vmatprep.subr.mxu0 %v1678
    %2523 = vmatpush1.msra.mxu0 %v1677
    %2524 = vmatprep.subr.mxu0 %v1663
    %2525 = vmatpush1.msra.mxu0 %v1662
    %2526 = vmatprep.subr.mxu0 %v1648
    %2527 = vmatpush1.msra.mxu0 %v1647
    %2528 = vmatprep.subr.mxu0 %v1633
    %2529 = vmatpush1.msra.mxu0 %v1632
    %2530 = vmatprep.subr.mxu0 %v1618
    %2531 = vmatpush1.msra.mxu0 %v1617
    %2532 = vmatprep.subr.mxu0 0.0
    %2533 = vmatpush2.msra.mxu0 0.0
    %2534 = vmatprep.subr.mxu0 0.0
    %2535 = vmatpush2.msra.mxu0 0.0
    %2536 = vmatprep.subr.mxu0 0.0
    %2537 = vmatpush2.msra.mxu0 0.0
    %2538 = vmatprep.subr.mxu0 0.0
    %2539 = vmatpush2.msra.mxu0 0.0
    %2540 = vmatprep.subr.mxu0 0.0
    %2541 = vmatpush2.msra.mxu0 0.0
    %2542 = vmatprep.subr.mxu0 0.0
    %2543 = vmatpush2.msra.mxu0 0.0
    %2544 = vmatprep.subr.mxu0 0.0
    %2545 = vmatpush2.msra.mxu0 0.0
    %2546 = vmatprep.subr.mxu0 0.0
    %2547 = vmatpush2.msra.mxu0 0.0
    %2548 = vmatprep.subr.mxu0 0.0
    %2549 = vmatpush2.msra.mxu0 0.0
    %2550 = vmatprep.subr.mxu0 0.0
    %2551 = vmatpush2.msra.mxu0 0.0
    %2552 = vmatprep.subr.mxu0 0.0
    %2553 = vmatpush2.msra.mxu0 0.0
    %2554 = vmatprep.subr.mxu0 0.0
    %2555 = vmatpush2.msra.mxu0 0.0
    %2556 = vmatprep.subr.mxu0 0.0
    %2557 = vmatpush2.msra.mxu0 0.0
    %2558 = vmatprep.subr.mxu0 0.0
    %2559 = vmatpush2.msra.mxu0 0.0
    %2560 = vmatprep.subr.mxu0 0.0
    %2561 = vmatpush2.msra.mxu0 0.0
    %2562 = vmatprep.subr.mxu0 0.0
    %2563 = vmatpush2.msra.mxu0 0.0
    %2564 = vmatprep.mubr.f32.mxu0 0.0
    %2565 = vmatmul.mubr.f32.gmra.mxu0 %v596
    %v2566 = vpop.f32.mrf.mxu0
    %v2567 = vadd.f32 %v2496, %v2566
    %v2568 = vpop.f32.mrf.mxu0
    %v2569 = vadd.f32 %v2498, %v2568
    %2570 = vdwg.mxu0
    %2571 = vmatprep.subr.mxu0 %v885
    %2572 = vmatpush1.msra.mxu0 %v884
    %2573 = vmatprep.subr.mxu0 %v870
    %2574 = vmatpush1.msra.mxu0 %v869
    %2575 = vmatprep.subr.mxu0 %v855
    %2576 = vmatpush1.msra.mxu0 %v854
    %2577 = vmatprep.subr.mxu0 %v840
    %2578 = vmatpush1.msra.mxu0 %v839
    %2579 = vmatprep.subr.mxu0 %v825
    %2580 = vmatpush1.msra.mxu0 %v824
    %2581 = vmatprep.subr.mxu0 %v810
    %2582 = vmatpush1.msra.mxu0 %v809
    %2583 = vmatprep.subr.mxu0 %v795
    %2584 = vmatpush1.msra.mxu0 %v794
    %2585 = vmatprep.subr.mxu0 %v780
    %2586 = vmatpush1.msra.mxu0 %v779
    %2587 = vmatprep.subr.mxu0 %v765
    %2588 = vmatpush1.msra.mxu0 %v764
    %2589 = vmatprep.subr.mxu0 %v750
    %2590 = vmatpush1.msra.mxu0 %v749
    %2591 = vmatprep.subr.mxu0 %v735
    %2592 = vmatpush1.msra.mxu0 %v734
    %2593 = vmatprep.subr.mxu0 %v720
    %2594 = vmatpush1.msra.mxu0 %v719
    %2595 = vmatprep.subr.mxu0 %v705
    %2596 = vmatpush1.msra.mxu0 %v704
    %2597 = vmatprep.subr.mxu0 %v690
    %2598 = vmatpush1.msra.mxu0 %v689
    %2599 = vmatprep.subr.mxu0 %v675
    %2600 = vmatpush1.msra.mxu0 %v674
    %2601 = vmatprep.subr.mxu0 %v660
    %2602 = vmatpush1.msra.mxu0 %v659
    %2603 = vmatprep.subr.mxu0 %v1125
    %2604 = vmatpush2.msra.mxu0 %v1124
    %2605 = vmatprep.subr.mxu0 %v1110
    %2606 = vmatpush2.msra.mxu0 %v1109
    %2607 = vmatprep.subr.mxu0 %v1095
    %2608 = vmatpush2.msra.mxu0 %v1094
    %2609 = vmatprep.subr.mxu0 %v1080
    %2610 = vmatpush2.msra.mxu0 %v1079
    %2611 = vmatprep.subr.mxu0 %v1065
    %2612 = vmatpush2.msra.mxu0 %v1064
    %2613 = vmatprep.subr.mxu0 %v1050
    %2614 = vmatpush2.msra.mxu0 %v1049
    %2615 = vmatprep.subr.mxu0 %v1035
    %2616 = vmatpush2.msra.mxu0 %v1034
    %2617 = vmatprep.subr.mxu0 %v1020
    %2618 = vmatpush2.msra.mxu0 %v1019
    %2619 = vmatprep.subr.mxu0 %v1005
    %2620 = vmatpush2.msra.mxu0 %v1004
    %2621 = vmatprep.subr.mxu0 %v990
    %2622 = vmatpush2.msra.mxu0 %v989
    %2623 = vmatprep.subr.mxu0 %v975
    %2624 = vmatpush2.msra.mxu0 %v974
    %2625 = vmatprep.subr.mxu0 %v960
    %2626 = vmatpush2.msra.mxu0 %v959
    %2627 = vmatprep.subr.mxu0 %v945
    %2628 = vmatpush2.msra.mxu0 %v944
    %2629 = vmatprep.subr.mxu0 %v930
    %2630 = vmatpush2.msra.mxu0 %v929
    %2631 = vmatprep.subr.mxu0 %v915
    %2632 = vmatpush2.msra.mxu0 %v914
    %2633 = vmatprep.subr.mxu0 %v900
    %2634 = vmatpush2.msra.mxu0 %v899
    %2635 = vmatprep.mubr.f32.mxu0 %v593
    %2636 = vmatmul.mubr.f32.gmra.mxu0 %v592
    %v2637 = vpop.f32.mrf.mxu0
    %v2638 = vadd.f32 %v1884, %v2637
    %v2639 = vpop.f32.mrf.mxu0
    %v2640 = vadd.f32 %v1888, %v2639
    %2641 = vdwg.mxu0
    %2642 = vmatprep.subr.mxu0 %v1365
    %2643 = vmatpush1.msra.mxu0 %v1364
    %2644 = vmatprep.subr.mxu0 %v1350
    %2645 = vmatpush1.msra.mxu0 %v1349
    %2646 = vmatprep.subr.mxu0 %v1335
    %2647 = vmatpush1.msra.mxu0 %v1334
    %2648 = vmatprep.subr.mxu0 %v1320
    %2649 = vmatpush1.msra.mxu0 %v1319
    %2650 = vmatprep.subr.mxu0 %v1305
    %2651 = vmatpush1.msra.mxu0 %v1304
    %2652 = vmatprep.subr.mxu0 %v1290
    %2653 = vmatpush1.msra.mxu0 %v1289
    %2654 = vmatprep.subr.mxu0 %v1275
    %2655 = vmatpush1.msra.mxu0 %v1274
    %2656 = vmatprep.subr.mxu0 %v1260
    %2657 = vmatpush1.msra.mxu0 %v1259
    %2658 = vmatprep.subr.mxu0 %v1245
    %2659 = vmatpush1.msra.mxu0 %v1244
    %2660 = vmatprep.subr.mxu0 %v1230
    %2661 = vmatpush1.msra.mxu0 %v1229
    %2662 = vmatprep.subr.mxu0 %v1215
    %2663 = vmatpush1.msra.mxu0 %v1214
    %2664 = vmatprep.subr.mxu0 %v1200
    %2665 = vmatpush1.msra.mxu0 %v1199
    %2666 = vmatprep.subr.mxu0 %v1185
    %2667 = vmatpush1.msra.mxu0 %v1184
    %2668 = vmatprep.subr.mxu0 %v1170
    %2669 = vmatpush1.msra.mxu0 %v1169
    %2670 = vmatprep.subr.mxu0 %v1155
    %2671 = vmatpush1.msra.mxu0 %v1154
    %2672 = vmatprep.subr.mxu0 %v1140
    %2673 = vmatpush1.msra.mxu0 %v1139
    %2674 = vmatprep.subr.mxu0 %v1605
    %2675 = vmatpush2.msra.mxu0 %v1604
    %2676 = vmatprep.subr.mxu0 %v1590
    %2677 = vmatpush2.msra.mxu0 %v1589
    %2678 = vmatprep.subr.mxu0 %v1575
    %2679 = vmatpush2.msra.mxu0 %v1574
    %2680 = vmatprep.subr.mxu0 %v1560
    %2681 = vmatpush2.msra.mxu0 %v1559
    %2682 = vmatprep.subr.mxu0 %v1545
    %2683 = vmatpush2.msra.mxu0 %v1544
    %2684 = vmatprep.subr.mxu0 %v1530
    %2685 = vmatpush2.msra.mxu0 %v1529
    %2686 = vmatprep.subr.mxu0 %v1515
    %2687 = vmatpush2.msra.mxu0 %v1514
    %2688 = vmatprep.subr.mxu0 %v1500
    %2689 = vmatpush2.msra.mxu0 %v1499
    %2690 = vmatprep.subr.mxu0 %v1485
    %2691 = vmatpush2.msra.mxu0 %v1484
    %2692 = vmatprep.subr.mxu0 %v1470
    %2693 = vmatpush2.msra.mxu0 %v1469
    %2694 = vmatprep.subr.mxu0 %v1455
    %2695 = vmatpush2.msra.mxu0 %v1454
    %2696 = vmatprep.subr.mxu0 %v1440
    %2697 = vmatpush2.msra.mxu0 %v1439
    %2698 = vmatprep.subr.mxu0 %v1425
    %2699 = vmatpush2.msra.mxu0 %v1424
    %2700 = vmatprep.subr.mxu0 %v1410
    %2701 = vmatpush2.msra.mxu0 %v1409
    %2702 = vmatprep.subr.mxu0 %v1395
    %2703 = vmatpush2.msra.mxu0 %v1394
    %2704 = vmatprep.subr.mxu0 %v1380
    %2705 = vmatpush2.msra.mxu0 %v1379
    %2706 = vmatprep.mubr.f32.mxu0 %v595
    %2707 = vmatmul.mubr.f32.gmra.mxu0 %v594
    %v2708 = vpop.f32.mrf.mxu0
    %v2709 = vadd.f32 %v2638, %v2708
    %v2710 = vpop.f32.mrf.mxu0
    %v2711 = vadd.f32 %v2640, %v2710
    %2712 = vdwg.mxu0
    %2713 = vmatprep.subr.mxu0 %v1845
    %2714 = vmatpush1.msra.mxu0 %v1844
    %2715 = vmatprep.subr.mxu0 %v1830
    %2716 = vmatpush1.msra.mxu0 %v1829
    %2717 = vmatprep.subr.mxu0 %v1815
    %2718 = vmatpush1.msra.mxu0 %v1814
    %2719 = vmatprep.subr.mxu0 %v1800
    %2720 = vmatpush1.msra.mxu0 %v1799
    %2721 = vmatprep.subr.mxu0 %v1785
    %2722 = vmatpush1.msra.mxu0 %v1784
    %2723 = vmatprep.subr.mxu0 %v1770
    %2724 = vmatpush1.msra.mxu0 %v1769
    %2725 = vmatprep.subr.mxu0 %v1755
    %2726 = vmatpush1.msra.mxu0 %v1754
    %2727 = vmatprep.subr.mxu0 %v1740
    %2728 = vmatpush1.msra.mxu0 %v1739
    %2729 = vmatprep.subr.mxu0 %v1725
    %2730 = vmatpush1.msra.mxu0 %v1724
    %2731 = vmatprep.subr.mxu0 %v1710
    %2732 = vmatpush1.msra.mxu0 %v1709
    %2733 = vmatprep.subr.mxu0 %v1695
    %2734 = vmatpush1.msra.mxu0 %v1694
    %2735 = vmatprep.subr.mxu0 %v1680
    %2736 = vmatpush1.msra.mxu0 %v1679
    %2737 = vmatprep.subr.mxu0 %v1665
    %2738 = vmatpush1.msra.mxu0 %v1664
    %2739 = vmatprep.subr.mxu0 %v1650
    %2740 = vmatpush1.msra.mxu0 %v1649
    %2741 = vmatprep.subr.mxu0 %v1635
    %2742 = vmatpush1.msra.mxu0 %v1634
    %2743 = vmatprep.subr.mxu0 %v1620
    %2744 = vmatpush1.msra.mxu0 %v1619
    %2745 = vmatprep.subr.mxu0 0.0
    %2746 = vmatpush2.msra.mxu0 0.0
    %2747 = vmatprep.subr.mxu0 0.0
    %2748 = vmatpush2.msra.mxu0 0.0
    %2749 = vmatprep.subr.mxu0 0.0
    %2750 = vmatpush2.msra.mxu0 0.0
    %2751 = vmatprep.subr.mxu0 0.0
    %2752 = vmatpush2.msra.mxu0 0.0
    %2753 = vmatprep.subr.mxu0 0.0
    %2754 = vmatpush2.msra.mxu0 0.0
    %2755 = vmatprep.subr.mxu0 0.0
    %2756 = vmatpush2.msra.mxu0 0.0
    %2757 = vmatprep.subr.mxu0 0.0
    %2758 = vmatpush2.msra.mxu0 0.0
    %2759 = vmatprep.subr.mxu0 0.0
    %2760 = vmatpush2.msra.mxu0 0.0
    %2761 = vmatprep.subr.mxu0 0.0
    %2762 = vmatpush2.msra.mxu0 0.0
    %2763 = vmatprep.subr.mxu0 0.0
    %2764 = vmatpush2.msra.mxu0 0.0
    %2765 = vmatprep.subr.mxu0 0.0
    %2766 = vmatpush2.msra.mxu0 0.0
    %2767 = vmatprep.subr.mxu0 0.0
    %2768 = vmatpush2.msra.mxu0 0.0
    %2769 = vmatprep.subr.mxu0 0.0
    %2770 = vmatpush2.msra.mxu0 0.0
    %2771 = vmatprep.subr.mxu0 0.0
    %2772 = vmatpush2.msra.mxu0 0.0
    %2773 = vmatprep.subr.mxu0 0.0
    %2774 = vmatpush2.msra.mxu0 0.0
    %2775 = vmatprep.subr.mxu0 0.0
    %2776 = vmatpush2.msra.mxu0 0.0
    %2777 = vmatprep.mubr.f32.mxu0 0.0
    %2778 = vmatmul.mubr.f32.gmra.mxu0 %v596
    %v2779 = vpop.f32.mrf.mxu0
    %v2780 = vadd.f32 %v2709, %v2779
    %v2781 = vpop.f32.mrf.mxu0
    %v2782 = vadd.f32 %v2711, %v2781
    %2783 = vdwg.mxu0
    %2784 = vmatprep.subr.mxu0 %v887
    %2785 = vmatpush1.msra.mxu0 %v886
    %2786 = vmatprep.subr.mxu0 %v872
    %2787 = vmatpush1.msra.mxu0 %v871
    %2788 = vmatprep.subr.mxu0 %v857
    %2789 = vmatpush1.msra.mxu0 %v856
    %2790 = vmatprep.subr.mxu0 %v842
    %2791 = vmatpush1.msra.mxu0 %v841
    %2792 = vmatprep.subr.mxu0 %v827
    %2793 = vmatpush1.msra.mxu0 %v826
    %2794 = vmatprep.subr.mxu0 %v812
    %2795 = vmatpush1.msra.mxu0 %v811
    %2796 = vmatprep.subr.mxu0 %v797
    %2797 = vmatpush1.msra.mxu0 %v796
    %2798 = vmatprep.subr.mxu0 %v782
    %2799 = vmatpush1.msra.mxu0 %v781
    %2800 = vmatprep.subr.mxu0 %v767
    %2801 = vmatpush1.msra.mxu0 %v766
    %2802 = vmatprep.subr.mxu0 %v752
    %2803 = vmatpush1.msra.mxu0 %v751
    %2804 = vmatprep.subr.mxu0 %v737
    %2805 = vmatpush1.msra.mxu0 %v736
    %2806 = vmatprep.subr.mxu0 %v722
    %2807 = vmatpush1.msra.mxu0 %v721
    %2808 = vmatprep.subr.mxu0 %v707
    %2809 = vmatpush1.msra.mxu0 %v706
    %2810 = vmatprep.subr.mxu0 %v692
    %2811 = vmatpush1.msra.mxu0 %v691
    %2812 = vmatprep.subr.mxu0 %v677
    %2813 = vmatpush1.msra.mxu0 %v676
    %2814 = vmatprep.subr.mxu0 %v662
    %2815 = vmatpush1.msra.mxu0 %v661
    %2816 = vmatprep.subr.mxu0 %v1127
    %2817 = vmatpush2.msra.mxu0 %v1126
    %2818 = vmatprep.subr.mxu0 %v1112
    %2819 = vmatpush2.msra.mxu0 %v1111
    %2820 = vmatprep.subr.mxu0 %v1097
    %2821 = vmatpush2.msra.mxu0 %v1096
    %2822 = vmatprep.subr.mxu0 %v1082
    %2823 = vmatpush2.msra.mxu0 %v1081
    %2824 = vmatprep.subr.mxu0 %v1067
    %2825 = vmatpush2.msra.mxu0 %v1066
    %2826 = vmatprep.subr.mxu0 %v1052
    %2827 = vmatpush2.msra.mxu0 %v1051
    %2828 = vmatprep.subr.mxu0 %v1037
    %2829 = vmatpush2.msra.mxu0 %v1036
    %2830 = vmatprep.subr.mxu0 %v1022
    %2831 = vmatpush2.msra.mxu0 %v1021
    %2832 = vmatprep.subr.mxu0 %v1007
    %2833 = vmatpush2.msra.mxu0 %v1006
    %2834 = vmatprep.subr.mxu0 %v992
    %2835 = vmatpush2.msra.mxu0 %v991
    %2836 = vmatprep.subr.mxu0 %v977
    %2837 = vmatpush2.msra.mxu0 %v976
    %2838 = vmatprep.subr.mxu0 %v962
    %2839 = vmatpush2.msra.mxu0 %v961
    %2840 = vmatprep.subr.mxu0 %v947
    %2841 = vmatpush2.msra.mxu0 %v946
    %2842 = vmatprep.subr.mxu0 %v932
    %2843 = vmatpush2.msra.mxu0 %v931
    %2844 = vmatprep.subr.mxu0 %v917
    %2845 = vmatpush2.msra.mxu0 %v916
    %2846 = vmatprep.subr.mxu0 %v902
    %2847 = vmatpush2.msra.mxu0 %v901
    %2848 = vmatprep.mubr.f32.mxu0 %v593
    %2849 = vmatmul.mubr.f32.gmra.mxu0 %v592
    %v2850 = vpop.f32.mrf.mxu0
    %v2851 = vadd.f32 %v1892, %v2850
    %v2852 = vpop.f32.mrf.mxu0
    %v2853 = vadd.f32 %v1896, %v2852
    %2854 = vdwg.mxu0
    %2855 = vmatprep.subr.mxu0 %v1367
    %2856 = vmatpush1.msra.mxu0 %v1366
    %2857 = vmatprep.subr.mxu0 %v1352
    %2858 = vmatpush1.msra.mxu0 %v1351
    %2859 = vmatprep.subr.mxu0 %v1337
    %2860 = vmatpush1.msra.mxu0 %v1336
    %2861 = vmatprep.subr.mxu0 %v1322
    %2862 = vmatpush1.msra.mxu0 %v1321
    %2863 = vmatprep.subr.mxu0 %v1307
    %2864 = vmatpush1.msra.mxu0 %v1306
    %2865 = vmatprep.subr.mxu0 %v1292
    %2866 = vmatpush1.msra.mxu0 %v1291
    %2867 = vmatprep.subr.mxu0 %v1277
    %2868 = vmatpush1.msra.mxu0 %v1276
    %2869 = vmatprep.subr.mxu0 %v1262
    %2870 = vmatpush1.msra.mxu0 %v1261
    %2871 = vmatprep.subr.mxu0 %v1247
    %2872 = vmatpush1.msra.mxu0 %v1246
    %2873 = vmatprep.subr.mxu0 %v1232
    %2874 = vmatpush1.msra.mxu0 %v1231
    %2875 = vmatprep.subr.mxu0 %v1217
    %2876 = vmatpush1.msra.mxu0 %v1216
    %2877 = vmatprep.subr.mxu0 %v1202
    %2878 = vmatpush1.msra.mxu0 %v1201
    %2879 = vmatprep.subr.mxu0 %v1187
    %2880 = vmatpush1.msra.mxu0 %v1186
    %2881 = vmatprep.subr.mxu0 %v1172
    %2882 = vmatpush1.msra.mxu0 %v1171
    %2883 = vmatprep.subr.mxu0 %v1157
    %2884 = vmatpush1.msra.mxu0 %v1156
    %2885 = vmatprep.subr.mxu0 %v1142
    %2886 = vmatpush1.msra.mxu0 %v1141
    %2887 = vmatprep.subr.mxu0 %v1607
    %2888 = vmatpush2.msra.mxu0 %v1606
    %2889 = vmatprep.subr.mxu0 %v1592
    %2890 = vmatpush2.msra.mxu0 %v1591
    %2891 = vmatprep.subr.mxu0 %v1577
    %2892 = vmatpush2.msra.mxu0 %v1576
    %2893 = vmatprep.subr.mxu0 %v1562
    %2894 = vmatpush2.msra.mxu0 %v1561
    %2895 = vmatprep.subr.mxu0 %v1547
    %2896 = vmatpush2.msra.mxu0 %v1546
    %2897 = vmatprep.subr.mxu0 %v1532
    %2898 = vmatpush2.msra.mxu0 %v1531
    %2899 = vmatprep.subr.mxu0 %v1517
    %2900 = vmatpush2.msra.mxu0 %v1516
    %2901 = vmatprep.subr.mxu0 %v1502
    %2902 = vmatpush2.msra.mxu0 %v1501
    %2903 = vmatprep.subr.mxu0 %v1487
    %2904 = vmatpush2.msra.mxu0 %v1486
    %2905 = vmatprep.subr.mxu0 %v1472
    %2906 = vmatpush2.msra.mxu0 %v1471
    %2907 = vmatprep.subr.mxu0 %v1457
    %2908 = vmatpush2.msra.mxu0 %v1456
    %2909 = vmatprep.subr.mxu0 %v1442
    %2910 = vmatpush2.msra.mxu0 %v1441
    %2911 = vmatprep.subr.mxu0 %v1427
    %2912 = vmatpush2.msra.mxu0 %v1426
    %2913 = vmatprep.subr.mxu0 %v1412
    %2914 = vmatpush2.msra.mxu0 %v1411
    %2915 = vmatprep.subr.mxu0 %v1397
    %2916 = vmatpush2.msra.mxu0 %v1396
    %2917 = vmatprep.subr.mxu0 %v1382
    %2918 = vmatpush2.msra.mxu0 %v1381
    %2919 = vmatprep.mubr.f32.mxu0 %v595
    %2920 = vmatmul.mubr.f32.gmra.mxu0 %v594
    %v2921 = vpop.f32.mrf.mxu0
    %v2922 = vadd.f32 %v2851, %v2921
    %v2923 = vpop.f32.mrf.mxu0
    %v2924 = vadd.f32 %v2853, %v2923
    %2925 = vdwg.mxu0
    %2926 = vmatprep.subr.mxu0 %v1847
    %2927 = vmatpush1.msra.mxu0 %v1846
    %2928 = vmatprep.subr.mxu0 %v1832
    %2929 = vmatpush1.msra.mxu0 %v1831
    %2930 = vmatprep.subr.mxu0 %v1817
    %2931 = vmatpush1.msra.mxu0 %v1816
    %2932 = vmatprep.subr.mxu0 %v1802
    %2933 = vmatpush1.msra.mxu0 %v1801
    %2934 = vmatprep.subr.mxu0 %v1787
    %2935 = vmatpush1.msra.mxu0 %v1786
    %2936 = vmatprep.subr.mxu0 %v1772
    %2937 = vmatpush1.msra.mxu0 %v1771
    %2938 = vmatprep.subr.mxu0 %v1757
    %2939 = vmatpush1.msra.mxu0 %v1756
    %2940 = vmatprep.subr.mxu0 %v1742
    %2941 = vmatpush1.msra.mxu0 %v1741
    %2942 = vmatprep.subr.mxu0 %v1727
    %2943 = vmatpush1.msra.mxu0 %v1726
    %2944 = vmatprep.subr.mxu0 %v1712
    %2945 = vmatpush1.msra.mxu0 %v1711
    %2946 = vmatprep.subr.mxu0 %v1697
    %2947 = vmatpush1.msra.mxu0 %v1696
    %2948 = vmatprep.subr.mxu0 %v1682
    %2949 = vmatpush1.msra.mxu0 %v1681
    %2950 = vmatprep.subr.mxu0 %v1667
    %2951 = vmatpush1.msra.mxu0 %v1666
    %2952 = vmatprep.subr.mxu0 %v1652
    %2953 = vmatpush1.msra.mxu0 %v1651
    %2954 = vmatprep.subr.mxu0 %v1637
    %2955 = vmatpush1.msra.mxu0 %v1636
    %2956 = vmatprep.subr.mxu0 %v1622
    %2957 = vmatpush1.msra.mxu0 %v1621
    %2958 = vmatprep.subr.mxu0 0.0
    %2959 = vmatpush2.msra.mxu0 0.0
    %2960 = vmatprep.subr.mxu0 0.0
    %2961 = vmatpush2.msra.mxu0 0.0
    %2962 = vmatprep.subr.mxu0 0.0
    %2963 = vmatpush2.msra.mxu0 0.0
    %2964 = vmatprep.subr.mxu0 0.0
    %2965 = vmatpush2.msra.mxu0 0.0
    %2966 = vmatprep.subr.mxu0 0.0
    %2967 = vmatpush2.msra.mxu0 0.0
    %2968 = vmatprep.subr.mxu0 0.0
    %2969 = vmatpush2.msra.mxu0 0.0
    %2970 = vmatprep.subr.mxu0 0.0
    %2971 = vmatpush2.msra.mxu0 0.0
    %2972 = vmatprep.subr.mxu0 0.0
    %2973 = vmatpush2.msra.mxu0 0.0
    %2974 = vmatprep.subr.mxu0 0.0
    %2975 = vmatpush2.msra.mxu0 0.0
    %2976 = vmatprep.subr.mxu0 0.0
    %2977 = vmatpush2.msra.mxu0 0.0
    %2978 = vmatprep.subr.mxu0 0.0
    %2979 = vmatpush2.msra.mxu0 0.0
    %2980 = vmatprep.subr.mxu0 0.0
    %2981 = vmatpush2.msra.mxu0 0.0
    %2982 = vmatprep.subr.mxu0 0.0
    %2983 = vmatpush2.msra.mxu0 0.0
    %2984 = vmatprep.subr.mxu0 0.0
    %2985 = vmatpush2.msra.mxu0 0.0
    %2986 = vmatprep.subr.mxu0 0.0
    %2987 = vmatpush2.msra.mxu0 0.0
    %2988 = vmatprep.subr.mxu0 0.0
    %2989 = vmatpush2.msra.mxu0 0.0
    %2990 = vmatprep.mubr.f32.mxu0 0.0
    %2991 = vmatmul.mubr.f32.gmra.mxu0 %v596
    %v2992 = vpop.f32.mrf.mxu0
    %v2993 = vadd.f32 %v2922, %v2992
    %v2994 = vpop.f32.mrf.mxu0
    %v2995 = vadd.f32 %v2924, %v2994
    %2996 = vdwg.mxu0
    %2997 = vmatprep.subr.mxu0 %v889
    %2998 = vmatpush1.msra.mxu0 %v888
    %2999 = vmatprep.subr.mxu0 %v874
    %3000 = vmatpush1.msra.mxu0 %v873
    %3001 = vmatprep.subr.mxu0 %v859
    %3002 = vmatpush1.msra.mxu0 %v858
    %3003 = vmatprep.subr.mxu0 %v844
    %3004 = vmatpush1.msra.mxu0 %v843
    %3005 = vmatprep.subr.mxu0 %v829
    %3006 = vmatpush1.msra.mxu0 %v828
    %3007 = vmatprep.subr.mxu0 %v814
    %3008 = vmatpush1.msra.mxu0 %v813
    %3009 = vmatprep.subr.mxu0 %v799
    %3010 = vmatpush1.msra.mxu0 %v798
    %3011 = vmatprep.subr.mxu0 %v784
    %3012 = vmatpush1.msra.mxu0 %v783
    %3013 = vmatprep.subr.mxu0 %v769
    %3014 = vmatpush1.msra.mxu0 %v768
    %3015 = vmatprep.subr.mxu0 %v754
    %3016 = vmatpush1.msra.mxu0 %v753
    %3017 = vmatprep.subr.mxu0 %v739
    %3018 = vmatpush1.msra.mxu0 %v738
    %3019 = vmatprep.subr.mxu0 %v724
    %3020 = vmatpush1.msra.mxu0 %v723
    %3021 = vmatprep.subr.mxu0 %v709
    %3022 = vmatpush1.msra.mxu0 %v708
    %3023 = vmatprep.subr.mxu0 %v694
    %3024 = vmatpush1.msra.mxu0 %v693
    %3025 = vmatprep.subr.mxu0 %v679
    %3026 = vmatpush1.msra.mxu0 %v678
    %3027 = vmatprep.subr.mxu0 %v664
    %3028 = vmatpush1.msra.mxu0 %v663
    %3029 = vmatprep.subr.mxu0 %v1129
    %3030 = vmatpush2.msra.mxu0 %v1128
    %3031 = vmatprep.subr.mxu0 %v1114
    %3032 = vmatpush2.msra.mxu0 %v1113
    %3033 = vmatprep.subr.mxu0 %v1099
    %3034 = vmatpush2.msra.mxu0 %v1098
    %3035 = vmatprep.subr.mxu0 %v1084
    %3036 = vmatpush2.msra.mxu0 %v1083
    %3037 = vmatprep.subr.mxu0 %v1069
    %3038 = vmatpush2.msra.mxu0 %v1068
    %3039 = vmatprep.subr.mxu0 %v1054
    %3040 = vmatpush2.msra.mxu0 %v1053
    %3041 = vmatprep.subr.mxu0 %v1039
    %3042 = vmatpush2.msra.mxu0 %v1038
    %3043 = vmatprep.subr.mxu0 %v1024
    %3044 = vmatpush2.msra.mxu0 %v1023
    %3045 = vmatprep.subr.mxu0 %v1009
    %3046 = vmatpush2.msra.mxu0 %v1008
    %3047 = vmatprep.subr.mxu0 %v994
    %3048 = vmatpush2.msra.mxu0 %v993
    %3049 = vmatprep.subr.mxu0 %v979
    %3050 = vmatpush2.msra.mxu0 %v978
    %3051 = vmatprep.subr.mxu0 %v964
    %3052 = vmatpush2.msra.mxu0 %v963
    %3053 = vmatprep.subr.mxu0 %v949
    %3054 = vmatpush2.msra.mxu0 %v948
    %3055 = vmatprep.subr.mxu0 %v934
    %3056 = vmatpush2.msra.mxu0 %v933
    %3057 = vmatprep.subr.mxu0 %v919
    %3058 = vmatpush2.msra.mxu0 %v918
    %3059 = vmatprep.subr.mxu0 %v904
    %3060 = vmatpush2.msra.mxu0 %v903
    %3061 = vmatprep.mubr.f32.mxu0 %v593
    %3062 = vmatmul.mubr.f32.gmra.mxu0 %v592
    %v3063 = vpop.f32.mrf.mxu0
    %v3064 = vadd.f32 %v1900, %v3063
    %v3065 = vpop.f32.mrf.mxu0
    %v3066 = vadd.f32 %v1904, %v3065
    %3067 = vdwg.mxu0
    %3068 = vmatprep.subr.mxu0 %v1369
    %3069 = vmatpush1.msra.mxu0 %v1368
    %3070 = vmatprep.subr.mxu0 %v1354
    %3071 = vmatpush1.msra.mxu0 %v1353
    %3072 = vmatprep.subr.mxu0 %v1339
    %3073 = vmatpush1.msra.mxu0 %v1338
    %3074 = vmatprep.subr.mxu0 %v1324
    %3075 = vmatpush1.msra.mxu0 %v1323
    %3076 = vmatprep.subr.mxu0 %v1309
    %3077 = vmatpush1.msra.mxu0 %v1308
    %3078 = vmatprep.subr.mxu0 %v1294
    %3079 = vmatpush1.msra.mxu0 %v1293
    %3080 = vmatprep.subr.mxu0 %v1279
    %3081 = vmatpush1.msra.mxu0 %v1278
    %3082 = vmatprep.subr.mxu0 %v1264
    %3083 = vmatpush1.msra.mxu0 %v1263
    %3084 = vmatprep.subr.mxu0 %v1249
    %3085 = vmatpush1.msra.mxu0 %v1248
    %3086 = vmatprep.subr.mxu0 %v1234
    %3087 = vmatpush1.msra.mxu0 %v1233
    %3088 = vmatprep.subr.mxu0 %v1219
    %3089 = vmatpush1.msra.mxu0 %v1218
    %3090 = vmatprep.subr.mxu0 %v1204
    %3091 = vmatpush1.msra.mxu0 %v1203
    %3092 = vmatprep.subr.mxu0 %v1189
    %3093 = vmatpush1.msra.mxu0 %v1188
    %3094 = vmatprep.subr.mxu0 %v1174
    %3095 = vmatpush1.msra.mxu0 %v1173
    %3096 = vmatprep.subr.mxu0 %v1159
    %3097 = vmatpush1.msra.mxu0 %v1158
    %3098 = vmatprep.subr.mxu0 %v1144
    %3099 = vmatpush1.msra.mxu0 %v1143
    %3100 = vmatprep.subr.mxu0 %v1609
    %3101 = vmatpush2.msra.mxu0 %v1608
    %3102 = vmatprep.subr.mxu0 %v1594
    %3103 = vmatpush2.msra.mxu0 %v1593
    %3104 = vmatprep.subr.mxu0 %v1579
    %3105 = vmatpush2.msra.mxu0 %v1578
    %3106 = vmatprep.subr.mxu0 %v1564
    %3107 = vmatpush2.msra.mxu0 %v1563
    %3108 = vmatprep.subr.mxu0 %v1549
    %3109 = vmatpush2.msra.mxu0 %v1548
    %3110 = vmatprep.subr.mxu0 %v1534
    %3111 = vmatpush2.msra.mxu0 %v1533
    %3112 = vmatprep.subr.mxu0 %v1519
    %3113 = vmatpush2.msra.mxu0 %v1518
    %3114 = vmatprep.subr.mxu0 %v1504
    %3115 = vmatpush2.msra.mxu0 %v1503
    %3116 = vmatprep.subr.mxu0 %v1489
    %3117 = vmatpush2.msra.mxu0 %v1488
    %3118 = vmatprep.subr.mxu0 %v1474
    %3119 = vmatpush2.msra.mxu0 %v1473
    %3120 = vmatprep.subr.mxu0 %v1459
    %3121 = vmatpush2.msra.mxu0 %v1458
    %3122 = vmatprep.subr.mxu0 %v1444
    %3123 = vmatpush2.msra.mxu0 %v1443
    %3124 = vmatprep.subr.mxu0 %v1429
    %3125 = vmatpush2.msra.mxu0 %v1428
    %3126 = vmatprep.subr.mxu0 %v1414
    %3127 = vmatpush2.msra.mxu0 %v1413
    %3128 = vmatprep.subr.mxu0 %v1399
    %3129 = vmatpush2.msra.mxu0 %v1398
    %3130 = vmatprep.subr.mxu0 %v1384
    %3131 = vmatpush2.msra.mxu0 %v1383
    %3132 = vmatprep.mubr.f32.mxu0 %v595
    %3133 = vmatmul.mubr.f32.gmra.mxu0 %v594
    %v3134 = vpop.f32.mrf.mxu0
    %v3135 = vadd.f32 %v3064, %v3134
    %v3136 = vpop.f32.mrf.mxu0
    %v3137 = vadd.f32 %v3066, %v3136
    %3138 = vdwg.mxu0
    %3139 = vmatprep.subr.mxu0 %v1849
    %3140 = vmatpush1.msra.mxu0 %v1848
    %3141 = vmatprep.subr.mxu0 %v1834
    %3142 = vmatpush1.msra.mxu0 %v1833
    %3143 = vmatprep.subr.mxu0 %v1819
    %3144 = vmatpush1.msra.mxu0 %v1818
    %3145 = vmatprep.subr.mxu0 %v1804
    %3146 = vmatpush1.msra.mxu0 %v1803
    %3147 = vmatprep.subr.mxu0 %v1789
    %3148 = vmatpush1.msra.mxu0 %v1788
    %3149 = vmatprep.subr.mxu0 %v1774
    %3150 = vmatpush1.msra.mxu0 %v1773
    %3151 = vmatprep.subr.mxu0 %v1759
    %3152 = vmatpush1.msra.mxu0 %v1758
    %3153 = vmatprep.subr.mxu0 %v1744
    %3154 = vmatpush1.msra.mxu0 %v1743
    %3155 = vmatprep.subr.mxu0 %v1729
    %3156 = vmatpush1.msra.mxu0 %v1728
    %3157 = vmatprep.subr.mxu0 %v1714
    %3158 = vmatpush1.msra.mxu0 %v1713
    %3159 = vmatprep.subr.mxu0 %v1699
    %3160 = vmatpush1.msra.mxu0 %v1698
    %3161 = vmatprep.subr.mxu0 %v1684
    %3162 = vmatpush1.msra.mxu0 %v1683
    %3163 = vmatprep.subr.mxu0 %v1669
    %3164 = vmatpush1.msra.mxu0 %v1668
    %3165 = vmatprep.subr.mxu0 %v1654
    %3166 = vmatpush1.msra.mxu0 %v1653
    %3167 = vmatprep.subr.mxu0 %v1639
    %3168 = vmatpush1.msra.mxu0 %v1638
    %3169 = vmatprep.subr.mxu0 %v1624
    %3170 = vmatpush1.msra.mxu0 %v1623
    %3171 = vmatprep.subr.mxu0 0.0
    %3172 = vmatpush2.msra.mxu0 0.0
    %3173 = vmatprep.subr.mxu0 0.0
    %3174 = vmatpush2.msra.mxu0 0.0
    %3175 = vmatprep.subr.mxu0 0.0
    %3176 = vmatpush2.msra.mxu0 0.0
    %3177 = vmatprep.subr.mxu0 0.0
    %3178 = vmatpush2.msra.mxu0 0.0
    %3179 = vmatprep.subr.mxu0 0.0
    %3180 = vmatpush2.msra.mxu0 0.0
    %3181 = vmatprep.subr.mxu0 0.0
    %3182 = vmatpush2.msra.mxu0 0.0
    %3183 = vmatprep.subr.mxu0 0.0
    %3184 = vmatpush2.msra.mxu0 0.0
    %3185 = vmatprep.subr.mxu0 0.0
    %3186 = vmatpush2.msra.mxu0 0.0
    %3187 = vmatprep.subr.mxu0 0.0
    %3188 = vmatpush2.msra.mxu0 0.0
    %3189 = vmatprep.subr.mxu0 0.0
    %3190 = vmatpush2.msra.mxu0 0.0
    %3191 = vmatprep.subr.mxu0 0.0
    %3192 = vmatpush2.msra.mxu0 0.0
    %3193 = vmatprep.subr.mxu0 0.0
    %3194 = vmatpush2.msra.mxu0 0.0
    %3195 = vmatprep.subr.mxu0 0.0
    %3196 = vmatpush2.msra.mxu0 0.0
    %3197 = vmatprep.subr.mxu0 0.0
    %3198 = vmatpush2.msra.mxu0 0.0
    %3199 = vmatprep.subr.mxu0 0.0
    %3200 = vmatpush2.msra.mxu0 0.0
    %3201 = vmatprep.subr.mxu0 0.0
    %3202 = vmatpush2.msra.mxu0 0.0
    %3203 = vmatprep.mubr.f32.mxu0 0.0
    %3204 = vmatmul.mubr.f32.gmra.mxu0 %v596
    %v3205 = vpop.f32.mrf.mxu0
    %v3206 = vadd.f32 %v3135, %v3205
    %v3207 = vpop.f32.mrf.mxu0
    %v3208 = vadd.f32 %v3137, %v3207
    %3209 = vdwg.mxu0
    %3210 = vmatprep.subr.mxu0 %v891
    %3211 = vmatpush1.msra.mxu0 %v890
    %3212 = vmatprep.subr.mxu0 %v876
    %3213 = vmatpush1.msra.mxu0 %v875
    %3214 = vmatprep.subr.mxu0 %v861
    %3215 = vmatpush1.msra.mxu0 %v860
    %3216 = vmatprep.subr.mxu0 %v846
    %3217 = vmatpush1.msra.mxu0 %v845
    %3218 = vmatprep.subr.mxu0 %v831
    %3219 = vmatpush1.msra.mxu0 %v830
    %3220 = vmatprep.subr.mxu0 %v816
    %3221 = vmatpush1.msra.mxu0 %v815
    %3222 = vmatprep.subr.mxu0 %v801
    %3223 = vmatpush1.msra.mxu0 %v800
    %3224 = vmatprep.subr.mxu0 %v786
    %3225 = vmatpush1.msra.mxu0 %v785
    %3226 = vmatprep.subr.mxu0 %v771
    %3227 = vmatpush1.msra.mxu0 %v770
    %3228 = vmatprep.subr.mxu0 %v756
    %3229 = vmatpush1.msra.mxu0 %v755
    %3230 = vmatprep.subr.mxu0 %v741
    %3231 = vmatpush1.msra.mxu0 %v740
    %3232 = vmatprep.subr.mxu0 %v726
    %3233 = vmatpush1.msra.mxu0 %v725
    %3234 = vmatprep.subr.mxu0 %v711
    %3235 = vmatpush1.msra.mxu0 %v710
    %3236 = vmatprep.subr.mxu0 %v696
    %3237 = vmatpush1.msra.mxu0 %v695
    %3238 = vmatprep.subr.mxu0 %v681
    %3239 = vmatpush1.msra.mxu0 %v680
    %3240 = vmatprep.subr.mxu0 %v666
    %3241 = vmatpush1.msra.mxu0 %v665
    %3242 = vmatprep.subr.mxu0 %v1131
    %3243 = vmatpush2.msra.mxu0 %v1130
    %3244 = vmatprep.subr.mxu0 %v1116
    %3245 = vmatpush2.msra.mxu0 %v1115
    %3246 = vmatprep.subr.mxu0 %v1101
    %3247 = vmatpush2.msra.mxu0 %v1100
    %3248 = vmatprep.subr.mxu0 %v1086
    %3249 = vmatpush2.msra.mxu0 %v1085
    %3250 = vmatprep.subr.mxu0 %v1071
    %3251 = vmatpush2.msra.mxu0 %v1070
    %3252 = vmatprep.subr.mxu0 %v1056
    %3253 = vmatpush2.msra.mxu0 %v1055
    %3254 = vmatprep.subr.mxu0 %v1041
    %3255 = vmatpush2.msra.mxu0 %v1040
    %3256 = vmatprep.subr.mxu0 %v1026
    %3257 = vmatpush2.msra.mxu0 %v1025
    %3258 = vmatprep.subr.mxu0 %v1011
    %3259 = vmatpush2.msra.mxu0 %v1010
    %3260 = vmatprep.subr.mxu0 %v996
    %3261 = vmatpush2.msra.mxu0 %v995
    %3262 = vmatprep.subr.mxu0 %v981
    %3263 = vmatpush2.msra.mxu0 %v980
    %3264 = vmatprep.subr.mxu0 %v966
    %3265 = vmatpush2.msra.mxu0 %v965
    %3266 = vmatprep.subr.mxu0 %v951
    %3267 = vmatpush2.msra.mxu0 %v950
    %3268 = vmatprep.subr.mxu0 %v936
    %3269 = vmatpush2.msra.mxu0 %v935
    %3270 = vmatprep.subr.mxu0 %v921
    %3271 = vmatpush2.msra.mxu0 %v920
    %3272 = vmatprep.subr.mxu0 %v906
    %3273 = vmatpush2.msra.mxu0 %v905
    %3274 = vmatprep.mubr.f32.mxu0 %v593
    %3275 = vmatmul.mubr.f32.gmra.mxu0 %v592
    %v3276 = vpop.f32.mrf.mxu0
    %v3277 = vadd.f32 %v1908, %v3276
    %v3278 = vpop.f32.mrf.mxu0
    %v3279 = vadd.f32 %v1912, %v3278
    %3280 = vdwg.mxu0
    %3281 = vmatprep.subr.mxu0 %v1371
    %3282 = vmatpush1.msra.mxu0 %v1370
    %3283 = vmatprep.subr.mxu0 %v1356
    %3284 = vmatpush1.msra.mxu0 %v1355
    %3285 = vmatprep.subr.mxu0 %v1341
    %3286 = vmatpush1.msra.mxu0 %v1340
    %3287 = vmatprep.subr.mxu0 %v1326
    %3288 = vmatpush1.msra.mxu0 %v1325
    %3289 = vmatprep.subr.mxu0 %v1311
    %3290 = vmatpush1.msra.mxu0 %v1310
    %3291 = vmatprep.subr.mxu0 %v1296
    %3292 = vmatpush1.msra.mxu0 %v1295
    %3293 = vmatprep.subr.mxu0 %v1281
    %3294 = vmatpush1.msra.mxu0 %v1280
    %3295 = vmatprep.subr.mxu0 %v1266
    %3296 = vmatpush1.msra.mxu0 %v1265
    %3297 = vmatprep.subr.mxu0 %v1251
    %3298 = vmatpush1.msra.mxu0 %v1250
    %3299 = vmatprep.subr.mxu0 %v1236
    %3300 = vmatpush1.msra.mxu0 %v1235
    %3301 = vmatprep.subr.mxu0 %v1221
    %3302 = vmatpush1.msra.mxu0 %v1220
    %3303 = vmatprep.subr.mxu0 %v1206
    %3304 = vmatpush1.msra.mxu0 %v1205
    %3305 = vmatprep.subr.mxu0 %v1191
    %3306 = vmatpush1.msra.mxu0 %v1190
    %3307 = vmatprep.subr.mxu0 %v1176
    %3308 = vmatpush1.msra.mxu0 %v1175
    %3309 = vmatprep.subr.mxu0 %v1161
    %3310 = vmatpush1.msra.mxu0 %v1160
    %3311 = vmatprep.subr.mxu0 %v1146
    %3312 = vmatpush1.msra.mxu0 %v1145
    %3313 = vmatprep.subr.mxu0 %v1611
    %3314 = vmatpush2.msra.mxu0 %v1610
    %3315 = vmatprep.subr.mxu0 %v1596
    %3316 = vmatpush2.msra.mxu0 %v1595
    %3317 = vmatprep.subr.mxu0 %v1581
    %3318 = vmatpush2.msra.mxu0 %v1580
    %3319 = vmatprep.subr.mxu0 %v1566
    %3320 = vmatpush2.msra.mxu0 %v1565
    %3321 = vmatprep.subr.mxu0 %v1551
    %3322 = vmatpush2.msra.mxu0 %v1550
    %3323 = vmatprep.subr.mxu0 %v1536
    %3324 = vmatpush2.msra.mxu0 %v1535
    %3325 = vmatprep.subr.mxu0 %v1521
    %3326 = vmatpush2.msra.mxu0 %v1520
    %3327 = vmatprep.subr.mxu0 %v1506
    %3328 = vmatpush2.msra.mxu0 %v1505
    %3329 = vmatprep.subr.mxu0 %v1491
    %3330 = vmatpush2.msra.mxu0 %v1490
    %3331 = vmatprep.subr.mxu0 %v1476
    %3332 = vmatpush2.msra.mxu0 %v1475
    %3333 = vmatprep.subr.mxu0 %v1461
    %3334 = vmatpush2.msra.mxu0 %v1460
    %3335 = vmatprep.subr.mxu0 %v1446
    %3336 = vmatpush2.msra.mxu0 %v1445
    %3337 = vmatprep.subr.mxu0 %v1431
    %3338 = vmatpush2.msra.mxu0 %v1430
    %3339 = vmatprep.subr.mxu0 %v1416
    %3340 = vmatpush2.msra.mxu0 %v1415
    %3341 = vmatprep.subr.mxu0 %v1401
    %3342 = vmatpush2.msra.mxu0 %v1400
    %3343 = vmatprep.subr.mxu0 %v1386
    %3344 = vmatpush2.msra.mxu0 %v1385
    %3345 = vmatprep.mubr.f32.mxu0 %v595
    %3346 = vmatmul.mubr.f32.gmra.mxu0 %v594
    %v3347 = vpop.f32.mrf.mxu0
    %v3348 = vadd.f32 %v3277, %v3347
    %v3349 = vpop.f32.mrf.mxu0
    %v3350 = vadd.f32 %v3279, %v3349
    %3351 = vdwg.mxu0
    %3352 = vmatprep.subr.mxu0 %v1851
    %3353 = vmatpush1.msra.mxu0 %v1850
    %3354 = vmatprep.subr.mxu0 %v1836
    %3355 = vmatpush1.msra.mxu0 %v1835
    %3356 = vmatprep.subr.mxu0 %v1821
    %3357 = vmatpush1.msra.mxu0 %v1820
    %3358 = vmatprep.subr.mxu0 %v1806
    %3359 = vmatpush1.msra.mxu0 %v1805
    %3360 = vmatprep.subr.mxu0 %v1791
    %3361 = vmatpush1.msra.mxu0 %v1790
    %3362 = vmatprep.subr.mxu0 %v1776
    %3363 = vmatpush1.msra.mxu0 %v1775
    %3364 = vmatprep.subr.mxu0 %v1761
    %3365 = vmatpush1.msra.mxu0 %v1760
    %3366 = vmatprep.subr.mxu0 %v1746
    %3367 = vmatpush1.msra.mxu0 %v1745
    %3368 = vmatprep.subr.mxu0 %v1731
    %3369 = vmatpush1.msra.mxu0 %v1730
    %3370 = vmatprep.subr.mxu0 %v1716
    %3371 = vmatpush1.msra.mxu0 %v1715
    %3372 = vmatprep.subr.mxu0 %v1701
    %3373 = vmatpush1.msra.mxu0 %v1700
    %3374 = vmatprep.subr.mxu0 %v1686
    %3375 = vmatpush1.msra.mxu0 %v1685
    %3376 = vmatprep.subr.mxu0 %v1671
    %3377 = vmatpush1.msra.mxu0 %v1670
    %3378 = vmatprep.subr.mxu0 %v1656
    %3379 = vmatpush1.msra.mxu0 %v1655
    %3380 = vmatprep.subr.mxu0 %v1641
    %3381 = vmatpush1.msra.mxu0 %v1640
    %3382 = vmatprep.subr.mxu0 %v1626
    %3383 = vmatpush1.msra.mxu0 %v1625
    %3384 = vmatprep.subr.mxu0 0.0
    %3385 = vmatpush2.msra.mxu0 0.0
    %3386 = vmatprep.subr.mxu0 0.0
    %3387 = vmatpush2.msra.mxu0 0.0
    %3388 = vmatprep.subr.mxu0 0.0
    %3389 = vmatpush2.msra.mxu0 0.0
    %3390 = vmatprep.subr.mxu0 0.0
    %3391 = vmatpush2.msra.mxu0 0.0
    %3392 = vmatprep.subr.mxu0 0.0
    %3393 = vmatpush2.msra.mxu0 0.0
    %3394 = vmatprep.subr.mxu0 0.0
    %3395 = vmatpush2.msra.mxu0 0.0
    %3396 = vmatprep.subr.mxu0 0.0
    %3397 = vmatpush2.msra.mxu0 0.0
    %3398 = vmatprep.subr.mxu0 0.0
    %3399 = vmatpush2.msra.mxu0 0.0
    %3400 = vmatprep.subr.mxu0 0.0
    %3401 = vmatpush2.msra.mxu0 0.0
    %3402 = vmatprep.subr.mxu0 0.0
    %3403 = vmatpush2.msra.mxu0 0.0
    %3404 = vmatprep.subr.mxu0 0.0
    %3405 = vmatpush2.msra.mxu0 0.0
    %3406 = vmatprep.subr.mxu0 0.0
    %3407 = vmatpush2.msra.mxu0 0.0
    %3408 = vmatprep.subr.mxu0 0.0
    %3409 = vmatpush2.msra.mxu0 0.0
    %3410 = vmatprep.subr.mxu0 0.0
    %3411 = vmatpush2.msra.mxu0 0.0
    %3412 = vmatprep.subr.mxu0 0.0
    %3413 = vmatpush2.msra.mxu0 0.0
    %3414 = vmatprep.subr.mxu0 0.0
    %3415 = vmatpush2.msra.mxu0 0.0
    %3416 = vmatprep.mubr.f32.mxu0 0.0
    %3417 = vmatmul.mubr.f32.gmra.mxu0 %v596
    %v3418 = vpop.f32.mrf.mxu0
    %v3419 = vadd.f32 %v3348, %v3418
    %v3420 = vpop.f32.mrf.mxu0
    %v3421 = vadd.f32 %v3350, %v3420
    %3422 = vdwg.mxu0
    %3423 = vmatprep.subr.mxu0 0.0
    %3424 = vmatpush1.msra.mxu0 %v892
    %3425 = vmatprep.subr.mxu0 0.0
    %3426 = vmatpush1.msra.mxu0 %v877
    %3427 = vmatprep.subr.mxu0 0.0
    %3428 = vmatpush1.msra.mxu0 %v862
    %3429 = vmatprep.subr.mxu0 0.0
    %3430 = vmatpush1.msra.mxu0 %v847
    %3431 = vmatprep.subr.mxu0 0.0
    %3432 = vmatpush1.msra.mxu0 %v832
    %3433 = vmatprep.subr.mxu0 0.0
    %3434 = vmatpush1.msra.mxu0 %v817
    %3435 = vmatprep.subr.mxu0 0.0
    %3436 = vmatpush1.msra.mxu0 %v802
    %3437 = vmatprep.subr.mxu0 0.0
    %3438 = vmatpush1.msra.mxu0 %v787
    %3439 = vmatprep.subr.mxu0 0.0
    %3440 = vmatpush1.msra.mxu0 %v772
    %3441 = vmatprep.subr.mxu0 0.0
    %3442 = vmatpush1.msra.mxu0 %v757
    %3443 = vmatprep.subr.mxu0 0.0
    %3444 = vmatpush1.msra.mxu0 %v742
    %3445 = vmatprep.subr.mxu0 0.0
    %3446 = vmatpush1.msra.mxu0 %v727
    %3447 = vmatprep.subr.mxu0 0.0
    %3448 = vmatpush1.msra.mxu0 %v712
    %3449 = vmatprep.subr.mxu0 0.0
    %3450 = vmatpush1.msra.mxu0 %v697
    %3451 = vmatprep.subr.mxu0 0.0
    %3452 = vmatpush1.msra.mxu0 %v682
    %3453 = vmatprep.subr.mxu0 0.0
    %3454 = vmatpush1.msra.mxu0 %v667
    %3455 = vmatprep.subr.mxu0 0.0
    %3456 = vmatpush2.msra.mxu0 %v1132
    %3457 = vmatprep.subr.mxu0 0.0
    %3458 = vmatpush2.msra.mxu0 %v1117
    %3459 = vmatprep.subr.mxu0 0.0
    %3460 = vmatpush2.msra.mxu0 %v1102
    %3461 = vmatprep.subr.mxu0 0.0
    %3462 = vmatpush2.msra.mxu0 %v1087
    %3463 = vmatprep.subr.mxu0 0.0
    %3464 = vmatpush2.msra.mxu0 %v1072
    %3465 = vmatprep.subr.mxu0 0.0
    %3466 = vmatpush2.msra.mxu0 %v1057
    %3467 = vmatprep.subr.mxu0 0.0
    %3468 = vmatpush2.msra.mxu0 %v1042
    %3469 = vmatprep.subr.mxu0 0.0
    %3470 = vmatpush2.msra.mxu0 %v1027
    %3471 = vmatprep.subr.mxu0 0.0
    %3472 = vmatpush2.msra.mxu0 %v1012
    %3473 = vmatprep.subr.mxu0 0.0
    %3474 = vmatpush2.msra.mxu0 %v997
    %3475 = vmatprep.subr.mxu0 0.0
    %3476 = vmatpush2.msra.mxu0 %v982
    %3477 = vmatprep.subr.mxu0 0.0
    %3478 = vmatpush2.msra.mxu0 %v967
    %3479 = vmatprep.subr.mxu0 0.0
    %3480 = vmatpush2.msra.mxu0 %v952
    %3481 = vmatprep.subr.mxu0 0.0
    %3482 = vmatpush2.msra.mxu0 %v937
    %3483 = vmatprep.subr.mxu0 0.0
    %3484 = vmatpush2.msra.mxu0 %v922
    %3485 = vmatprep.subr.mxu0 0.0
    %3486 = vmatpush2.msra.mxu0 %v907
    %3487 = vmatprep.mubr.f32.mxu0 %v593
    %3488 = vmatmul.mubr.f32.gmra.mxu0 %v592
    %v3489 = vpop.f32.mrf.mxu0
    %v3490 = vadd.f32 %v1916, %v3489
    %v3491 = vpop.f32.mrf.mxu0
    %3492 = vdwg.mxu0
    %3493 = vmatprep.subr.mxu0 0.0
    %3494 = vmatpush1.msra.mxu0 %v1372
    %3495 = vmatprep.subr.mxu0 0.0
    %3496 = vmatpush1.msra.mxu0 %v1357
    %3497 = vmatprep.subr.mxu0 0.0
    %3498 = vmatpush1.msra.mxu0 %v1342
    %3499 = vmatprep.subr.mxu0 0.0
    %3500 = vmatpush1.msra.mxu0 %v1327
    %3501 = vmatprep.subr.mxu0 0.0
    %3502 = vmatpush1.msra.mxu0 %v1312
    %3503 = vmatprep.subr.mxu0 0.0
    %3504 = vmatpush1.msra.mxu0 %v1297
    %3505 = vmatprep.subr.mxu0 0.0
    %3506 = vmatpush1.msra.mxu0 %v1282
    %3507 = vmatprep.subr.mxu0 0.0
    %3508 = vmatpush1.msra.mxu0 %v1267
    %3509 = vmatprep.subr.mxu0 0.0
    %3510 = vmatpush1.msra.mxu0 %v1252
    %3511 = vmatprep.subr.mxu0 0.0
    %3512 = vmatpush1.msra.mxu0 %v1237
    %3513 = vmatprep.subr.mxu0 0.0
    %3514 = vmatpush1.msra.mxu0 %v1222
    %3515 = vmatprep.subr.mxu0 0.0
    %3516 = vmatpush1.msra.mxu0 %v1207
    %3517 = vmatprep.subr.mxu0 0.0
    %3518 = vmatpush1.msra.mxu0 %v1192
    %3519 = vmatprep.subr.mxu0 0.0
    %3520 = vmatpush1.msra.mxu0 %v1177
    %3521 = vmatprep.subr.mxu0 0.0
    %3522 = vmatpush1.msra.mxu0 %v1162
    %3523 = vmatprep.subr.mxu0 0.0
    %3524 = vmatpush1.msra.mxu0 %v1147
    %3525 = vmatprep.subr.mxu0 0.0
    %3526 = vmatpush2.msra.mxu0 %v1612
    %3527 = vmatprep.subr.mxu0 0.0
    %3528 = vmatpush2.msra.mxu0 %v1597
    %3529 = vmatprep.subr.mxu0 0.0
    %3530 = vmatpush2.msra.mxu0 %v1582
    %3531 = vmatprep.subr.mxu0 0.0
    %3532 = vmatpush2.msra.mxu0 %v1567
    %3533 = vmatprep.subr.mxu0 0.0
    %3534 = vmatpush2.msra.mxu0 %v1552
    %3535 = vmatprep.subr.mxu0 0.0
    %3536 = vmatpush2.msra.mxu0 %v1537
    %3537 = vmatprep.subr.mxu0 0.0
    %3538 = vmatpush2.msra.mxu0 %v1522
    %3539 = vmatprep.subr.mxu0 0.0
    %3540 = vmatpush2.msra.mxu0 %v1507
    %3541 = vmatprep.subr.mxu0 0.0
    %3542 = vmatpush2.msra.mxu0 %v1492
    %3543 = vmatprep.subr.mxu0 0.0
    %3544 = vmatpush2.msra.mxu0 %v1477
    %3545 = vmatprep.subr.mxu0 0.0
    %3546 = vmatpush2.msra.mxu0 %v1462
    %3547 = vmatprep.subr.mxu0 0.0
    %3548 = vmatpush2.msra.mxu0 %v1447
    %3549 = vmatprep.subr.mxu0 0.0
    %3550 = vmatpush2.msra.mxu0 %v1432
    %3551 = vmatprep.subr.mxu0 0.0
    %3552 = vmatpush2.msra.mxu0 %v1417
    %3553 = vmatprep.subr.mxu0 0.0
    %3554 = vmatpush2.msra.mxu0 %v1402
    %3555 = vmatprep.subr.mxu0 0.0
    %3556 = vmatpush2.msra.mxu0 %v1387
    %3557 = vmatprep.mubr.f32.mxu0 %v595
    %3558 = vmatmul.mubr.f32.gmra.mxu0 %v594
    %v3559 = vpop.f32.mrf.mxu0
    %v3560 = vadd.f32 %v3490, %v3559
    %v3561 = vpop.f32.mrf.mxu0
    %3562 = vdwg.mxu0
    %3563 = vmatprep.subr.mxu0 0.0
    %3564 = vmatpush1.msra.mxu0 %v1852
    %3565 = vmatprep.subr.mxu0 0.0
    %3566 = vmatpush1.msra.mxu0 %v1837
    %3567 = vmatprep.subr.mxu0 0.0
    %3568 = vmatpush1.msra.mxu0 %v1822
    %3569 = vmatprep.subr.mxu0 0.0
    %3570 = vmatpush1.msra.mxu0 %v1807
    %3571 = vmatprep.subr.mxu0 0.0
    %3572 = vmatpush1.msra.mxu0 %v1792
    %3573 = vmatprep.subr.mxu0 0.0
    %3574 = vmatpush1.msra.mxu0 %v1777
    %3575 = vmatprep.subr.mxu0 0.0
    %3576 = vmatpush1.msra.mxu0 %v1762
    %3577 = vmatprep.subr.mxu0 0.0
    %3578 = vmatpush1.msra.mxu0 %v1747
    %3579 = vmatprep.subr.mxu0 0.0
    %3580 = vmatpush1.msra.mxu0 %v1732
    %3581 = vmatprep.subr.mxu0 0.0
    %3582 = vmatpush1.msra.mxu0 %v1717
    %3583 = vmatprep.subr.mxu0 0.0
    %3584 = vmatpush1.msra.mxu0 %v1702
    %3585 = vmatprep.subr.mxu0 0.0
    %3586 = vmatpush1.msra.mxu0 %v1687
    %3587 = vmatprep.subr.mxu0 0.0
    %3588 = vmatpush1.msra.mxu0 %v1672
    %3589 = vmatprep.subr.mxu0 0.0
    %3590 = vmatpush1.msra.mxu0 %v1657
    %3591 = vmatprep.subr.mxu0 0.0
    %3592 = vmatpush1.msra.mxu0 %v1642
    %3593 = vmatprep.subr.mxu0 0.0
    %3594 = vmatpush1.msra.mxu0 %v1627
    %3595 = vmatprep.subr.mxu0 0.0
    %3596 = vmatpush2.msra.mxu0 0.0
    %3597 = vmatprep.subr.mxu0 0.0
    %3598 = vmatpush2.msra.mxu0 0.0
    %3599 = vmatprep.subr.mxu0 0.0
    %3600 = vmatpush2.msra.mxu0 0.0
    %3601 = vmatprep.subr.mxu0 0.0
    %3602 = vmatpush2.msra.mxu0 0.0
    %3603 = vmatprep.subr.mxu0 0.0
    %3604 = vmatpush2.msra.mxu0 0.0
    %3605 = vmatprep.subr.mxu0 0.0
    %3606 = vmatpush2.msra.mxu0 0.0
    %3607 = vmatprep.subr.mxu0 0.0
    %3608 = vmatpush2.msra.mxu0 0.0
    %3609 = vmatprep.subr.mxu0 0.0
    %3610 = vmatpush2.msra.mxu0 0.0
    %3611 = vmatprep.subr.mxu0 0.0
    %3612 = vmatpush2.msra.mxu0 0.0
    %3613 = vmatprep.subr.mxu0 0.0
    %3614 = vmatpush2.msra.mxu0 0.0
    %3615 = vmatprep.subr.mxu0 0.0
    %3616 = vmatpush2.msra.mxu0 0.0
    %3617 = vmatprep.subr.mxu0 0.0
    %3618 = vmatpush2.msra.mxu0 0.0
    %3619 = vmatprep.subr.mxu0 0.0
    %3620 = vmatpush2.msra.mxu0 0.0
    %3621 = vmatprep.subr.mxu0 0.0
    %3622 = vmatpush2.msra.mxu0 0.0
    %3623 = vmatprep.subr.mxu0 0.0
    %3624 = vmatpush2.msra.mxu0 0.0
    %3625 = vmatprep.subr.mxu0 0.0
    %3626 = vmatpush2.msra.mxu0 0.0
    %3627 = vmatprep.mubr.f32.mxu0 0.0
    %3628 = vmatmul.mubr.f32.gmra.mxu0 %v596
    %v3629 = vpop.f32.mrf.mxu0
    %v3630 = vadd.f32 %v3560, %v3629
    %v3631 = vpop.f32.mrf.mxu0
    %3632 = vdwg.mxu0
    %v3633 = vmul.f32 %v2141, %v2143
    %v3634 = vmul.f32 %v2356, %v2143
    %v3635 = vmul.f32 %v2780, %v2143
    %v3636 = vmul.f32 %v2995, %v2143
    %v3637 = vmul.f32 %v3419, %v2143
    %v3638 = vld [vmem:[#allocation11] sm:$0xff]
    %v3639 = vld [vmem:[#allocation11 + $0x8] sm:$0xff]
    %v3640 = vld [vmem:[#allocation11 + $0x10] sm:$0xff]
    %v3641 = vld [vmem:[#allocation11 + $0x18] sm:$0xff]
    %v3642 = vld [vmem:[#allocation11 + $0x20] sm:$0xff]
    %v3643 = vld [vmem:[#allocation11 + $0x28] sm:$0xff]
    %v3644 = vld [vmem:[#allocation11 + $0x30] sm:$0xff]
    %v3645 = vld [vmem:[#allocation11 + $0x38] sm:$0xff]
    %v3646 = vld [vmem:[#allocation11 + $0x40] sm:$0xff]
    %v3647 = vld [vmem:[#allocation11 + $0x48] sm:$0xff]
    %v3648 = vld [vmem:[#allocation11 + $0x50] sm:$0xff]
    %v3649 = vld [vmem:[#allocation11 + $0x58] sm:$0xff]
    %v3650 = vld [vmem:[#allocation11 + $0x60] sm:$0xff]
    %v3651 = vld [vmem:[#allocation11 + $0x68] sm:$0xff]
    %v3652 = vld [vmem:[#allocation11 + $0x70] sm:$0xff]
    %v3653 = vld [vmem:[#allocation11 + $0x78] sm:$0xff]
    %v3654 = vld [vmem:[#allocation11 + $0x80] sm:$0xff]
    %v3655 = vld [vmem:[#allocation11 + $0x88] sm:$0xff]
    %v3656 = vld [vmem:[#allocation11 + $0x90] sm:$0xff]
    %v3657 = vld [vmem:[#allocation11 + $0x98] sm:$0xff]
    %v3658 = vld [vmem:[#allocation11 + $0xa0] sm:$0xff]
    %v3659 = vld [vmem:[#allocation11 + $0xa8] sm:$0xff]
    %v3660 = vld [vmem:[#allocation11 + $0xb0] sm:$0xff]
    %v3661 = vld [vmem:[#allocation11 + $0xb8] sm:$0xff]
    %v3662 = vld [vmem:[#allocation11 + $0xc0] sm:$0xff]
    %v3663 = vld [vmem:[#allocation11 + $0xc8] sm:$0xff]
    %v3664 = vld [vmem:[#allocation11 + $0xd0] sm:$0xff]
    %v3665 = vld [vmem:[#allocation11 + $0xd8] sm:$0xff]
    %v3666 = vld [vmem:[#allocation11 + $0xe0] sm:$0xff]
    %v3667 = vld [vmem:[#allocation11 + $0xe8] sm:$0xff]
    %v3668 = vld [vmem:[#allocation11 + $0xf0] sm:$0xff]
    %v3669 = vld [vmem:[#allocation11 + $0xf8] sm:$0xff]
    %v3670 = vld [vmem:[#allocation11 + $0x100] sm:$0xff]
    %v3671 = vld [vmem:[#allocation11 + $0x108] sm:$0xff]
    %v3672 = vld [vmem:[#allocation11 + $0x110] sm:$0xff]
    %v3673 = vld [vmem:[#allocation11 + $0x118] sm:$0xff]
    %v3674 = vld [vmem:[#allocation11 + $0x120] sm:$0xff]
    %v3675 = vld [vmem:[#allocation11 + $0x128] sm:$0xff]
    %v3676 = vld [vmem:[#allocation11 + $0x130] sm:$0xff]
    %v3677 = vld [vmem:[#allocation11 + $0x138] sm:$0xff]
    %v3678 = vld [vmem:[#allocation11 + $0x140] sm:$0xff]
    %v3679 = vld [vmem:[#allocation11 + $0x148] sm:$0xff]
    %v3680 = vld [vmem:[#allocation11 + $0x150] sm:$0xff]
    %v3681 = vld [vmem:[#allocation11 + $0x158] sm:$0xff]
    %v3682 = vld [vmem:[#allocation11 + $0x160] sm:$0xff]
    %v3683 = vld [vmem:[#allocation11 + $0x168] sm:$0xff]
    %v3684 = vld [vmem:[#allocation11 + $0x170] sm:$0xff]
    %v3685 = vld [vmem:[#allocation11 + $0x178] sm:$0xff]
    %v3686 = vld [vmem:[#allocation11 + $0x180] sm:$0xff]
    %v3687 = vld [vmem:[#allocation11 + $0x188] sm:$0xff]
    %v3688 = vld [vmem:[#allocation11 + $0x190] sm:$0xff]
    %v3689 = vld [vmem:[#allocation11 + $0x198] sm:$0xff]
    %v3690 = vld [vmem:[#allocation11 + $0x1a0] sm:$0xff]
    %v3691 = vld [vmem:[#allocation11 + $0x1a8] sm:$0xff]
    %v3692 = vld [vmem:[#allocation11 + $0x1b0] sm:$0xff]
    %v3693 = vld [vmem:[#allocation11 + $0x1b8] sm:$0xff]
    %v3694 = vld [vmem:[#allocation11 + $0x1c0] sm:$0xff]
    %v3695 = vld [vmem:[#allocation11 + $0x1c8] sm:$0xff]
    %v3696 = vld [vmem:[#allocation11 + $0x1d0] sm:$0xff]
    %v3697 = vld [vmem:[#allocation11 + $0x1d8] sm:$0xff]
    %v3698 = vld [vmem:[#allocation11 + $0x1e0] sm:$0xff]
    %v3699 = vld [vmem:[#allocation11 + $0x1e8] sm:$0xff]
    %v3700 = vld [vmem:[#allocation11 + $0x1f0] sm:$0xff]
    %v3701 = vld [vmem:[#allocation11 + $0x1f8] sm:$0xff]
    %v3702 = vld [vmem:[#allocation11 + $0x200] sm:$0xff]
    %v3703 = vld [vmem:[#allocation11 + $0x208] sm:$0xff]
    %v3704 = vld [vmem:[#allocation11 + $0x210] sm:$0xff]
    %v3705 = vld [vmem:[#allocation11 + $0x218] sm:$0xff]
    %v3706 = vld [vmem:[#allocation11 + $0x220] sm:$0xff]
    %v3707 = vld [vmem:[#allocation11 + $0x228] sm:$0xff]
    %v3708 = vld [vmem:[#allocation11 + $0x230] sm:$0xff]
    %v3709 = vld [vmem:[#allocation11 + $0x238] sm:$0xff]
    %v3710 = vld [vmem:[#allocation11 + $0x240] sm:$0xff]
    %v3711 = vld [vmem:[#allocation11 + $0x248] sm:$0xff]
    %v3712 = vld [vmem:[#allocation11 + $0x250] sm:$0xff]
    %v3713 = vld [vmem:[#allocation11 + $0x258] sm:$0xff]
    %v3714 = vld [vmem:[#allocation11 + $0x260] sm:$0xff]
    %v3715 = vld [vmem:[#allocation11 + $0x268] sm:$0xff]
    %v3716 = vld [vmem:[#allocation11 + $0x270] sm:$0xff]
    %v3717 = vld [vmem:[#allocation11 + $0x278] sm:$0xff]
    %3718 = vmatprep.subr.mxu0 0.0
    %3719 = vmatpush1.msra.mxu0 %v3653
    %3720 = vmatprep.subr.mxu0 0.0
    %3721 = vmatpush1.msra.mxu0 %v3652
    %3722 = vmatprep.subr.mxu0 0.0
    %3723 = vmatpush1.msra.mxu0 %v3651
    %3724 = vmatprep.subr.mxu0 0.0
    %3725 = vmatpush1.msra.mxu0 %v3650
    %3726 = vmatprep.subr.mxu0 0.0
    %3727 = vmatpush1.msra.mxu0 %v3649
    %3728 = vmatprep.subr.mxu0 0.0
    %3729 = vmatpush1.msra.mxu0 %v3648
    %3730 = vmatprep.subr.mxu0 0.0
    %3731 = vmatpush1.msra.mxu0 %v3647
    %3732 = vmatprep.subr.mxu0 0.0
    %3733 = vmatpush1.msra.mxu0 %v3646
    %3734 = vmatprep.subr.mxu0 0.0
    %3735 = vmatpush1.msra.mxu0 %v3645
    %3736 = vmatprep.subr.mxu0 0.0
    %3737 = vmatpush1.msra.mxu0 %v3644
    %3738 = vmatprep.subr.mxu0 0.0
    %3739 = vmatpush1.msra.mxu0 %v3643
    %3740 = vmatprep.subr.mxu0 0.0
    %3741 = vmatpush1.msra.mxu0 %v3642
    %3742 = vmatprep.subr.mxu0 0.0
    %3743 = vmatpush1.msra.mxu0 %v3641
    %3744 = vmatprep.subr.mxu0 0.0
    %3745 = vmatpush1.msra.mxu0 %v3640
    %3746 = vmatprep.subr.mxu0 0.0
    %3747 = vmatpush1.msra.mxu0 %v3639
    %3748 = vmatprep.subr.mxu0 0.0
    %3749 = vmatpush1.msra.mxu0 %v3638
    %3750 = vmatprep.subr.mxu0 0.0
    %3751 = vmatpush2.msra.mxu0 %v3669
    %3752 = vmatprep.subr.mxu0 0.0
    %3753 = vmatpush2.msra.mxu0 %v3668
    %3754 = vmatprep.subr.mxu0 0.0
    %3755 = vmatpush2.msra.mxu0 %v3667
    %3756 = vmatprep.subr.mxu0 0.0
    %3757 = vmatpush2.msra.mxu0 %v3666
    %3758 = vmatprep.subr.mxu0 0.0
    %3759 = vmatpush2.msra.mxu0 %v3665
    %3760 = vmatprep.subr.mxu0 0.0
    %3761 = vmatpush2.msra.mxu0 %v3664
    %3762 = vmatprep.subr.mxu0 0.0
    %3763 = vmatpush2.msra.mxu0 %v3663
    %3764 = vmatprep.subr.mxu0 0.0
    %3765 = vmatpush2.msra.mxu0 %v3662
    %3766 = vmatprep.subr.mxu0 0.0
    %3767 = vmatpush2.msra.mxu0 %v3661
    %3768 = vmatprep.subr.mxu0 0.0
    %3769 = vmatpush2.msra.mxu0 %v3660
    %3770 = vmatprep.subr.mxu0 0.0
    %3771 = vmatpush2.msra.mxu0 %v3659
    %3772 = vmatprep.subr.mxu0 0.0
    %3773 = vmatpush2.msra.mxu0 %v3658
    %3774 = vmatprep.subr.mxu0 0.0
    %3775 = vmatpush2.msra.mxu0 %v3657
    %3776 = vmatprep.subr.mxu0 0.0
    %3777 = vmatpush2.msra.mxu0 %v3656
    %3778 = vmatprep.subr.mxu0 0.0
    %3779 = vmatpush2.msra.mxu0 %v3655
    %3780 = vmatprep.subr.mxu0 0.0
    %3781 = vmatpush2.msra.mxu0 %v3654
    %3782 = vmatprep.mubr.f32.mxu0 %v3634
    %3783 = vmatmul.mubr.f32.gmra.mxu0 %v3633
    %v3784 = vpop.f32.mrf.mxu0
    %v3785 = vadd.f32 0.0, %v3784
    %v3786 = vpop.f32.mrf.mxu0
    %3787 = vdwg.mxu0
    %3788 = vmatprep.subr.mxu0 0.0
    %3789 = vmatpush1.msra.mxu0 %v3685
    %3790 = vmatprep.subr.mxu0 0.0
    %3791 = vmatpush1.msra.mxu0 %v3684
    %3792 = vmatprep.subr.mxu0 0.0
    %3793 = vmatpush1.msra.mxu0 %v3683
    %3794 = vmatprep.subr.mxu0 0.0
    %3795 = vmatpush1.msra.mxu0 %v3682
    %3796 = vmatprep.subr.mxu0 0.0
    %3797 = vmatpush1.msra.mxu0 %v3681
    %3798 = vmatprep.subr.mxu0 0.0
    %3799 = vmatpush1.msra.mxu0 %v3680
    %3800 = vmatprep.subr.mxu0 0.0
    %3801 = vmatpush1.msra.mxu0 %v3679
    %3802 = vmatprep.subr.mxu0 0.0
    %3803 = vmatpush1.msra.mxu0 %v3678
    %3804 = vmatprep.subr.mxu0 0.0
    %3805 = vmatpush1.msra.mxu0 %v3677
    %3806 = vmatprep.subr.mxu0 0.0
    %3807 = vmatpush1.msra.mxu0 %v3676
    %3808 = vmatprep.subr.mxu0 0.0
    %3809 = vmatpush1.msra.mxu0 %v3675
    %3810 = vmatprep.subr.mxu0 0.0
    %3811 = vmatpush1.msra.mxu0 %v3674
    %3812 = vmatprep.subr.mxu0 0.0
    %3813 = vmatpush1.msra.mxu0 %v3673
    %3814 = vmatprep.subr.mxu0 0.0
    %3815 = vmatpush1.msra.mxu0 %v3672
    %3816 = vmatprep.subr.mxu0 0.0
    %3817 = vmatpush1.msra.mxu0 %v3671
    %3818 = vmatprep.subr.mxu0 0.0
    %3819 = vmatpush1.msra.mxu0 %v3670
    %3820 = vmatprep.subr.mxu0 0.0
    %3821 = vmatpush2.msra.mxu0 %v3701
    %3822 = vmatprep.subr.mxu0 0.0
    %3823 = vmatpush2.msra.mxu0 %v3700
    %3824 = vmatprep.subr.mxu0 0.0
    %3825 = vmatpush2.msra.mxu0 %v3699
    %3826 = vmatprep.subr.mxu0 0.0
    %3827 = vmatpush2.msra.mxu0 %v3698
    %3828 = vmatprep.subr.mxu0 0.0
    %3829 = vmatpush2.msra.mxu0 %v3697
    %3830 = vmatprep.subr.mxu0 0.0
    %3831 = vmatpush2.msra.mxu0 %v3696
    %3832 = vmatprep.subr.mxu0 0.0
    %3833 = vmatpush2.msra.mxu0 %v3695
    %3834 = vmatprep.subr.mxu0 0.0
    %3835 = vmatpush2.msra.mxu0 %v3694
    %3836 = vmatprep.subr.mxu0 0.0
    %3837 = vmatpush2.msra.mxu0 %v3693
    %3838 = vmatprep.subr.mxu0 0.0
    %3839 = vmatpush2.msra.mxu0 %v3692
    %3840 = vmatprep.subr.mxu0 0.0
    %3841 = vmatpush2.msra.mxu0 %v3691
    %3842 = vmatprep.subr.mxu0 0.0
    %3843 = vmatpush2.msra.mxu0 %v3690
    %3844 = vmatprep.subr.mxu0 0.0
    %3845 = vmatpush2.msra.mxu0 %v3689
    %3846 = vmatprep.subr.mxu0 0.0
    %3847 = vmatpush2.msra.mxu0 %v3688
    %3848 = vmatprep.subr.mxu0 0.0
    %3849 = vmatpush2.msra.mxu0 %v3687
    %3850 = vmatprep.subr.mxu0 0.0
    %3851 = vmatpush2.msra.mxu0 %v3686
    %3852 = vmatprep.mubr.f32.mxu0 %v3636
    %3853 = vmatmul.mubr.f32.gmra.mxu0 %v3635
    %v3854 = vpop.f32.mrf.mxu0
    %v3855 = vadd.f32 %v3785, %v3854
    %v3856 = vpop.f32.mrf.mxu0
    %3857 = vdwg.mxu0
    %3858 = vmatprep.subr.mxu0 0.0
    %3859 = vmatpush1.msra.mxu0 %v3717
    %3860 = vmatprep.subr.mxu0 0.0
    %3861 = vmatpush1.msra.mxu0 %v3716
    %3862 = vmatprep.subr.mxu0 0.0
    %3863 = vmatpush1.msra.mxu0 %v3715
    %3864 = vmatprep.subr.mxu0 0.0
    %3865 = vmatpush1.msra.mxu0 %v3714
    %3866 = vmatprep.subr.mxu0 0.0
    %3867 = vmatpush1.msra.mxu0 %v3713
    %3868 = vmatprep.subr.mxu0 0.0
    %3869 = vmatpush1.msra.mxu0 %v3712
    %3870 = vmatprep.subr.mxu0 0.0
    %3871 = vmatpush1.msra.mxu0 %v3711
    %3872 = vmatprep.subr.mxu0 0.0
    %3873 = vmatpush1.msra.mxu0 %v3710
    %3874 = vmatprep.subr.mxu0 0.0
    %3875 = vmatpush1.msra.mxu0 %v3709
    %3876 = vmatprep.subr.mxu0 0.0
    %3877 = vmatpush1.msra.mxu0 %v3708
    %3878 = vmatprep.subr.mxu0 0.0
    %3879 = vmatpush1.msra.mxu0 %v3707
    %3880 = vmatprep.subr.mxu0 0.0
    %3881 = vmatpush1.msra.mxu0 %v3706
    %3882 = vmatprep.subr.mxu0 0.0
    %3883 = vmatpush1.msra.mxu0 %v3705
    %3884 = vmatprep.subr.mxu0 0.0
    %3885 = vmatpush1.msra.mxu0 %v3704
    %3886 = vmatprep.subr.mxu0 0.0
    %3887 = vmatpush1.msra.mxu0 %v3703
    %3888 = vmatprep.subr.mxu0 0.0
    %3889 = vmatpush1.msra.mxu0 %v3702
    %3890 = vmatprep.subr.mxu0 0.0
    %3891 = vmatpush2.msra.mxu0 0.0
    %3892 = vmatprep.subr.mxu0 0.0
    %3893 = vmatpush2.msra.mxu0 0.0
    %3894 = vmatprep.subr.mxu0 0.0
    %3895 = vmatpush2.msra.mxu0 0.0
    %3896 = vmatprep.subr.mxu0 0.0
    %3897 = vmatpush2.msra.mxu0 0.0
    %3898 = vmatprep.subr.mxu0 0.0
    %3899 = vmatpush2.msra.mxu0 0.0
    %3900 = vmatprep.subr.mxu0 0.0
    %3901 = vmatpush2.msra.mxu0 0.0
    %3902 = vmatprep.subr.mxu0 0.0
    %3903 = vmatpush2.msra.mxu0 0.0
    %3904 = vmatprep.subr.mxu0 0.0
    %3905 = vmatpush2.msra.mxu0 0.0
    %3906 = vmatprep.subr.mxu0 0.0
    %3907 = vmatpush2.msra.mxu0 0.0
    %3908 = vmatprep.subr.mxu0 0.0
    %3909 = vmatpush2.msra.mxu0 0.0
    %3910 = vmatprep.subr.mxu0 0.0
    %3911 = vmatpush2.msra.mxu0 0.0
    %3912 = vmatprep.subr.mxu0 0.0
    %3913 = vmatpush2.msra.mxu0 0.0
    %3914 = vmatprep.subr.mxu0 0.0
    %3915 = vmatpush2.msra.mxu0 0.0
    %3916 = vmatprep.subr.mxu0 0.0
    %3917 = vmatpush2.msra.mxu0 0.0
    %3918 = vmatprep.subr.mxu0 0.0
    %3919 = vmatpush2.msra.mxu0 0.0
    %3920 = vmatprep.subr.mxu0 0.0
    %3921 = vmatpush2.msra.mxu0 0.0
    %3922 = vmatprep.mubr.f32.mxu0 0.0
    %3923 = vmatmul.mubr.f32.gmra.mxu0 %v3637
    %v3924 = vpop.f32.mrf.mxu0
    %v3925 = vadd.f32 %v3855, %v3924
    %v3926 = vpop.f32.mrf.mxu0
    %3927 = vdwg.mxu0
    %v3928 = vmul.f32 %v2141, %v2567
    %v3929 = vmul.f32 %v2356, %v2567
    %v3930 = vmul.f32 %v2780, %v2567
    %v3931 = vmul.f32 %v2995, %v2567
    %v3932 = vmul.f32 %v3419, %v2567
    %3933 = vmatprep.subr.mxu0 0.0
    %3934 = vmatpush1.msra.mxu0 %v3653
    %3935 = vmatprep.subr.mxu0 0.0
    %3936 = vmatpush1.msra.mxu0 %v3652
    %3937 = vmatprep.subr.mxu0 0.0
    %3938 = vmatpush1.msra.mxu0 %v3651
    %3939 = vmatprep.subr.mxu0 0.0
    %3940 = vmatpush1.msra.mxu0 %v3650
    %3941 = vmatprep.subr.mxu0 0.0
    %3942 = vmatpush1.msra.mxu0 %v3649
    %3943 = vmatprep.subr.mxu0 0.0
    %3944 = vmatpush1.msra.mxu0 %v3648
    %3945 = vmatprep.subr.mxu0 0.0
    %3946 = vmatpush1.msra.mxu0 %v3647
    %3947 = vmatprep.subr.mxu0 0.0
    %3948 = vmatpush1.msra.mxu0 %v3646
    %3949 = vmatprep.subr.mxu0 0.0
    %3950 = vmatpush1.msra.mxu0 %v3645
    %3951 = vmatprep.subr.mxu0 0.0
    %3952 = vmatpush1.msra.mxu0 %v3644
    %3953 = vmatprep.subr.mxu0 0.0
    %3954 = vmatpush1.msra.mxu0 %v3643
    %3955 = vmatprep.subr.mxu0 0.0
    %3956 = vmatpush1.msra.mxu0 %v3642
    %3957 = vmatprep.subr.mxu0 0.0
    %3958 = vmatpush1.msra.mxu0 %v3641
    %3959 = vmatprep.subr.mxu0 0.0
    %3960 = vmatpush1.msra.mxu0 %v3640
    %3961 = vmatprep.subr.mxu0 0.0
    %3962 = vmatpush1.msra.mxu0 %v3639
    %3963 = vmatprep.subr.mxu0 0.0
    %3964 = vmatpush1.msra.mxu0 %v3638
    %3965 = vmatprep.subr.mxu0 0.0
    %3966 = vmatpush2.msra.mxu0 %v3669
    %3967 = vmatprep.subr.mxu0 0.0
    %3968 = vmatpush2.msra.mxu0 %v3668
    %3969 = vmatprep.subr.mxu0 0.0
    %3970 = vmatpush2.msra.mxu0 %v3667
    %3971 = vmatprep.subr.mxu0 0.0
    %3972 = vmatpush2.msra.mxu0 %v3666
    %3973 = vmatprep.subr.mxu0 0.0
    %3974 = vmatpush2.msra.mxu0 %v3665
    %3975 = vmatprep.subr.mxu0 0.0
    %3976 = vmatpush2.msra.mxu0 %v3664
    %3977 = vmatprep.subr.mxu0 0.0
    %3978 = vmatpush2.msra.mxu0 %v3663
    %3979 = vmatprep.subr.mxu0 0.0
    %3980 = vmatpush2.msra.mxu0 %v3662
    %3981 = vmatprep.subr.mxu0 0.0
    %3982 = vmatpush2.msra.mxu0 %v3661
    %3983 = vmatprep.subr.mxu0 0.0
    %3984 = vmatpush2.msra.mxu0 %v3660
    %3985 = vmatprep.subr.mxu0 0.0
    %3986 = vmatpush2.msra.mxu0 %v3659
    %3987 = vmatprep.subr.mxu0 0.0
    %3988 = vmatpush2.msra.mxu0 %v3658
    %3989 = vmatprep.subr.mxu0 0.0
    %3990 = vmatpush2.msra.mxu0 %v3657
    %3991 = vmatprep.subr.mxu0 0.0
    %3992 = vmatpush2.msra.mxu0 %v3656
    %3993 = vmatprep.subr.mxu0 0.0
    %3994 = vmatpush2.msra.mxu0 %v3655
    %3995 = vmatprep.subr.mxu0 0.0
    %3996 = vmatpush2.msra.mxu0 %v3654
    %3997 = vmatprep.mubr.f32.mxu0 %v3929
    %3998 = vmatmul.mubr.f32.gmra.mxu0 %v3928
    %v3999 = vpop.f32.mrf.mxu0
    %v4000 = vadd.f32 0.0, %v3999
    %v4001 = vpop.f32.mrf.mxu0
    %4002 = vdwg.mxu0
    %4003 = vmatprep.subr.mxu0 0.0
    %4004 = vmatpush1.msra.mxu0 %v3685
    %4005 = vmatprep.subr.mxu0 0.0
    %4006 = vmatpush1.msra.mxu0 %v3684
    %4007 = vmatprep.subr.mxu0 0.0
    %4008 = vmatpush1.msra.mxu0 %v3683
    %4009 = vmatprep.subr.mxu0 0.0
    %4010 = vmatpush1.msra.mxu0 %v3682
    %4011 = vmatprep.subr.mxu0 0.0
    %4012 = vmatpush1.msra.mxu0 %v3681
    %4013 = vmatprep.subr.mxu0 0.0
    %4014 = vmatpush1.msra.mxu0 %v3680
    %4015 = vmatprep.subr.mxu0 0.0
    %4016 = vmatpush1.msra.mxu0 %v3679
    %4017 = vmatprep.subr.mxu0 0.0
    %4018 = vmatpush1.msra.mxu0 %v3678
    %4019 = vmatprep.subr.mxu0 0.0
    %4020 = vmatpush1.msra.mxu0 %v3677
    %4021 = vmatprep.subr.mxu0 0.0
    %4022 = vmatpush1.msra.mxu0 %v3676
    %4023 = vmatprep.subr.mxu0 0.0
    %4024 = vmatpush1.msra.mxu0 %v3675
    %4025 = vmatprep.subr.mxu0 0.0
    %4026 = vmatpush1.msra.mxu0 %v3674
    %4027 = vmatprep.subr.mxu0 0.0
    %4028 = vmatpush1.msra.mxu0 %v3673
    %4029 = vmatprep.subr.mxu0 0.0
    %4030 = vmatpush1.msra.mxu0 %v3672
    %4031 = vmatprep.subr.mxu0 0.0
    %4032 = vmatpush1.msra.mxu0 %v3671
    %4033 = vmatprep.subr.mxu0 0.0
    %4034 = vmatpush1.msra.mxu0 %v3670
    %4035 = vmatprep.subr.mxu0 0.0
    %4036 = vmatpush2.msra.mxu0 %v3701
    %4037 = vmatprep.subr.mxu0 0.0
    %4038 = vmatpush2.msra.mxu0 %v3700
    %4039 = vmatprep.subr.mxu0 0.0
    %4040 = vmatpush2.msra.mxu0 %v3699
    %4041 = vmatprep.subr.mxu0 0.0
    %4042 = vmatpush2.msra.mxu0 %v3698
    %4043 = vmatprep.subr.mxu0 0.0
    %4044 = vmatpush2.msra.mxu0 %v3697
    %4045 = vmatprep.subr.mxu0 0.0
    %4046 = vmatpush2.msra.mxu0 %v3696
    %4047 = vmatprep.subr.mxu0 0.0
    %4048 = vmatpush2.msra.mxu0 %v3695
    %4049 = vmatprep.subr.mxu0 0.0
    %4050 = vmatpush2.msra.mxu0 %v3694
    %4051 = vmatprep.subr.mxu0 0.0
    %4052 = vmatpush2.msra.mxu0 %v3693
    %4053 = vmatprep.subr.mxu0 0.0
    %4054 = vmatpush2.msra.mxu0 %v3692
    %4055 = vmatprep.subr.mxu0 0.0
    %4056 = vmatpush2.msra.mxu0 %v3691
    %4057 = vmatprep.subr.mxu0 0.0
    %4058 = vmatpush2.msra.mxu0 %v3690
    %4059 = vmatprep.subr.mxu0 0.0
    %4060 = vmatpush2.msra.mxu0 %v3689
    %4061 = vmatprep.subr.mxu0 0.0
    %4062 = vmatpush2.msra.mxu0 %v3688
    %4063 = vmatprep.subr.mxu0 0.0
    %4064 = vmatpush2.msra.mxu0 %v3687
    %4065 = vmatprep.subr.mxu0 0.0
    %4066 = vmatpush2.msra.mxu0 %v3686
    %4067 = vmatprep.mubr.f32.mxu0 %v3931
    %4068 = vmatmul.mubr.f32.gmra.mxu0 %v3930
    %v4069 = vpop.f32.mrf.mxu0
    %v4070 = vadd.f32 %v4000, %v4069
    %v4071 = vpop.f32.mrf.mxu0
    %4072 = vdwg.mxu0
    %4073 = vmatprep.subr.mxu0 0.0
    %4074 = vmatpush1.msra.mxu0 %v3717
    %4075 = vmatprep.subr.mxu0 0.0
    %4076 = vmatpush1.msra.mxu0 %v3716
    %4077 = vmatprep.subr.mxu0 0.0
    %4078 = vmatpush1.msra.mxu0 %v3715
    %4079 = vmatprep.subr.mxu0 0.0
    %4080 = vmatpush1.msra.mxu0 %v3714
    %4081 = vmatprep.subr.mxu0 0.0
    %4082 = vmatpush1.msra.mxu0 %v3713
    %4083 = vmatprep.subr.mxu0 0.0
    %4084 = vmatpush1.msra.mxu0 %v3712
    %4085 = vmatprep.subr.mxu0 0.0
    %4086 = vmatpush1.msra.mxu0 %v3711
    %4087 = vmatprep.subr.mxu0 0.0
    %4088 = vmatpush1.msra.mxu0 %v3710
    %4089 = vmatprep.subr.mxu0 0.0
    %4090 = vmatpush1.msra.mxu0 %v3709
    %4091 = vmatprep.subr.mxu0 0.0
    %4092 = vmatpush1.msra.mxu0 %v3708
    %4093 = vmatprep.subr.mxu0 0.0
    %4094 = vmatpush1.msra.mxu0 %v3707
    %4095 = vmatprep.subr.mxu0 0.0
    %4096 = vmatpush1.msra.mxu0 %v3706
    %4097 = vmatprep.subr.mxu0 0.0
    %4098 = vmatpush1.msra.mxu0 %v3705
    %4099 = vmatprep.subr.mxu0 0.0
    %4100 = vmatpush1.msra.mxu0 %v3704
    %4101 = vmatprep.subr.mxu0 0.0
    %4102 = vmatpush1.msra.mxu0 %v3703
    %4103 = vmatprep.subr.mxu0 0.0
    %4104 = vmatpush1.msra.mxu0 %v3702
    %4105 = vmatprep.subr.mxu0 0.0
    %4106 = vmatpush2.msra.mxu0 0.0
    %4107 = vmatprep.subr.mxu0 0.0
    %4108 = vmatpush2.msra.mxu0 0.0
    %4109 = vmatprep.subr.mxu0 0.0
    %4110 = vmatpush2.msra.mxu0 0.0
    %4111 = vmatprep.subr.mxu0 0.0
    %4112 = vmatpush2.msra.mxu0 0.0
    %4113 = vmatprep.subr.mxu0 0.0
    %4114 = vmatpush2.msra.mxu0 0.0
    %4115 = vmatprep.subr.mxu0 0.0
    %4116 = vmatpush2.msra.mxu0 0.0
    %4117 = vmatprep.subr.mxu0 0.0
    %4118 = vmatpush2.msra.mxu0 0.0
    %4119 = vmatprep.subr.mxu0 0.0
    %4120 = vmatpush2.msra.mxu0 0.0
    %4121 = vmatprep.subr.mxu0 0.0
    %4122 = vmatpush2.msra.mxu0 0.0
    %4123 = vmatprep.subr.mxu0 0.0
    %4124 = vmatpush2.msra.mxu0 0.0
    %4125 = vmatprep.subr.mxu0 0.0
    %4126 = vmatpush2.msra.mxu0 0.0
    %4127 = vmatprep.subr.mxu0 0.0
    %4128 = vmatpush2.msra.mxu0 0.0
    %4129 = vmatprep.subr.mxu0 0.0
    %4130 = vmatpush2.msra.mxu0 0.0
    %4131 = vmatprep.subr.mxu0 0.0
    %4132 = vmatpush2.msra.mxu0 0.0
    %4133 = vmatprep.subr.mxu0 0.0
    %4134 = vmatpush2.msra.mxu0 0.0
    %4135 = vmatprep.subr.mxu0 0.0
    %4136 = vmatpush2.msra.mxu0 0.0
    %4137 = vmatprep.mubr.f32.mxu0 0.0
    %4138 = vmatmul.mubr.f32.gmra.mxu0 %v3932
    %v4139 = vpop.f32.mrf.mxu0
    %v4140 = vadd.f32 %v4070, %v4139
    %v4141 = vpop.f32.mrf.mxu0
    %4142 = vdwg.mxu0
    %v4143 = vmul.f32 %v2141, %v2782
    %v4144 = vmul.f32 %v2356, %v2782
    %v4145 = vmul.f32 %v2780, %v2782
    %v4146 = vmul.f32 %v2995, %v2782
    %v4147 = vmul.f32 %v3419, %v2782
    %4148 = vmatprep.subr.mxu0 0.0
    %4149 = vmatpush1.msra.mxu0 %v3653
    %4150 = vmatprep.subr.mxu0 0.0
    %4151 = vmatpush1.msra.mxu0 %v3652
    %4152 = vmatprep.subr.mxu0 0.0
    %4153 = vmatpush1.msra.mxu0 %v3651
    %4154 = vmatprep.subr.mxu0 0.0
    %4155 = vmatpush1.msra.mxu0 %v3650
    %4156 = vmatprep.subr.mxu0 0.0
    %4157 = vmatpush1.msra.mxu0 %v3649
    %4158 = vmatprep.subr.mxu0 0.0
    %4159 = vmatpush1.msra.mxu0 %v3648
    %4160 = vmatprep.subr.mxu0 0.0
    %4161 = vmatpush1.msra.mxu0 %v3647
    %4162 = vmatprep.subr.mxu0 0.0
    %4163 = vmatpush1.msra.mxu0 %v3646
    %4164 = vmatprep.subr.mxu0 0.0
    %4165 = vmatpush1.msra.mxu0 %v3645
    %4166 = vmatprep.subr.mxu0 0.0
    %4167 = vmatpush1.msra.mxu0 %v3644
    %4168 = vmatprep.subr.mxu0 0.0
    %4169 = vmatpush1.msra.mxu0 %v3643
    %4170 = vmatprep.subr.mxu0 0.0
    %4171 = vmatpush1.msra.mxu0 %v3642
    %4172 = vmatprep.subr.mxu0 0.0
    %4173 = vmatpush1.msra.mxu0 %v3641
    %4174 = vmatprep.subr.mxu0 0.0
    %4175 = vmatpush1.msra.mxu0 %v3640
    %4176 = vmatprep.subr.mxu0 0.0
    %4177 = vmatpush1.msra.mxu0 %v3639
    %4178 = vmatprep.subr.mxu0 0.0
    %4179 = vmatpush1.msra.mxu0 %v3638
    %4180 = vmatprep.subr.mxu0 0.0
    %4181 = vmatpush2.msra.mxu0 %v3669
    %4182 = vmatprep.subr.mxu0 0.0
    %4183 = vmatpush2.msra.mxu0 %v3668
    %4184 = vmatprep.subr.mxu0 0.0
    %4185 = vmatpush2.msra.mxu0 %v3667
    %4186 = vmatprep.subr.mxu0 0.0
    %4187 = vmatpush2.msra.mxu0 %v3666
    %4188 = vmatprep.subr.mxu0 0.0
    %4189 = vmatpush2.msra.mxu0 %v3665
    %4190 = vmatprep.subr.mxu0 0.0
    %4191 = vmatpush2.msra.mxu0 %v3664
    %4192 = vmatprep.subr.mxu0 0.0
    %4193 = vmatpush2.msra.mxu0 %v3663
    %4194 = vmatprep.subr.mxu0 0.0
    %4195 = vmatpush2.msra.mxu0 %v3662
    %4196 = vmatprep.subr.mxu0 0.0
    %4197 = vmatpush2.msra.mxu0 %v3661
    %4198 = vmatprep.subr.mxu0 0.0
    %4199 = vmatpush2.msra.mxu0 %v3660
    %4200 = vmatprep.subr.mxu0 0.0
    %4201 = vmatpush2.msra.mxu0 %v3659
    %4202 = vmatprep.subr.mxu0 0.0
    %4203 = vmatpush2.msra.mxu0 %v3658
    %4204 = vmatprep.subr.mxu0 0.0
    %4205 = vmatpush2.msra.mxu0 %v3657
    %4206 = vmatprep.subr.mxu0 0.0
    %4207 = vmatpush2.msra.mxu0 %v3656
    %4208 = vmatprep.subr.mxu0 0.0
    %4209 = vmatpush2.msra.mxu0 %v3655
    %4210 = vmatprep.subr.mxu0 0.0
    %4211 = vmatpush2.msra.mxu0 %v3654
    %4212 = vmatprep.mubr.f32.mxu0 %v4144
    %4213 = vmatmul.mubr.f32.gmra.mxu0 %v4143
    %v4214 = vpop.f32.mrf.mxu0
    %v4215 = vadd.f32 0.0, %v4214
    %v4216 = vpop.f32.mrf.mxu0
    %4217 = vdwg.mxu0
    %4218 = vmatprep.subr.mxu0 0.0
    %4219 = vmatpush1.msra.mxu0 %v3685
    %4220 = vmatprep.subr.mxu0 0.0
    %4221 = vmatpush1.msra.mxu0 %v3684
    %4222 = vmatprep.subr.mxu0 0.0
    %4223 = vmatpush1.msra.mxu0 %v3683
    %4224 = vmatprep.subr.mxu0 0.0
    %4225 = vmatpush1.msra.mxu0 %v3682
    %4226 = vmatprep.subr.mxu0 0.0
    %4227 = vmatpush1.msra.mxu0 %v3681
    %4228 = vmatprep.subr.mxu0 0.0
    %4229 = vmatpush1.msra.mxu0 %v3680
    %4230 = vmatprep.subr.mxu0 0.0
    %4231 = vmatpush1.msra.mxu0 %v3679
    %4232 = vmatprep.subr.mxu0 0.0
    %4233 = vmatpush1.msra.mxu0 %v3678
    %4234 = vmatprep.subr.mxu0 0.0
    %4235 = vmatpush1.msra.mxu0 %v3677
    %4236 = vmatprep.subr.mxu0 0.0
    %4237 = vmatpush1.msra.mxu0 %v3676
    %4238 = vmatprep.subr.mxu0 0.0
    %4239 = vmatpush1.msra.mxu0 %v3675
    %4240 = vmatprep.subr.mxu0 0.0
    %4241 = vmatpush1.msra.mxu0 %v3674
    %4242 = vmatprep.subr.mxu0 0.0
    %4243 = vmatpush1.msra.mxu0 %v3673
    %4244 = vmatprep.subr.mxu0 0.0
    %4245 = vmatpush1.msra.mxu0 %v3672
    %4246 = vmatprep.subr.mxu0 0.0
    %4247 = vmatpush1.msra.mxu0 %v3671
    %4248 = vmatprep.subr.mxu0 0.0
    %4249 = vmatpush1.msra.mxu0 %v3670
    %4250 = vmatprep.subr.mxu0 0.0
    %4251 = vmatpush2.msra.mxu0 %v3701
    %4252 = vmatprep.subr.mxu0 0.0
    %4253 = vmatpush2.msra.mxu0 %v3700
    %4254 = vmatprep.subr.mxu0 0.0
    %4255 = vmatpush2.msra.mxu0 %v3699
    %4256 = vmatprep.subr.mxu0 0.0
    %4257 = vmatpush2.msra.mxu0 %v3698
    %4258 = vmatprep.subr.mxu0 0.0
    %4259 = vmatpush2.msra.mxu0 %v3697
    %4260 = vmatprep.subr.mxu0 0.0
    %4261 = vmatpush2.msra.mxu0 %v3696
    %4262 = vmatprep.subr.mxu0 0.0
    %4263 = vmatpush2.msra.mxu0 %v3695
    %4264 = vmatprep.subr.mxu0 0.0
    %4265 = vmatpush2.msra.mxu0 %v3694
    %4266 = vmatprep.subr.mxu0 0.0
    %4267 = vmatpush2.msra.mxu0 %v3693
    %4268 = vmatprep.subr.mxu0 0.0
    %4269 = vmatpush2.msra.mxu0 %v3692
    %4270 = vmatprep.subr.mxu0 0.0
    %4271 = vmatpush2.msra.mxu0 %v3691
    %4272 = vmatprep.subr.mxu0 0.0
    %4273 = vmatpush2.msra.mxu0 %v3690
    %4274 = vmatprep.subr.mxu0 0.0
    %4275 = vmatpush2.msra.mxu0 %v3689
    %4276 = vmatprep.subr.mxu0 0.0
    %4277 = vmatpush2.msra.mxu0 %v3688
    %4278 = vmatprep.subr.mxu0 0.0
    %4279 = vmatpush2.msra.mxu0 %v3687
    %4280 = vmatprep.subr.mxu0 0.0
    %4281 = vmatpush2.msra.mxu0 %v3686
    %4282 = vmatprep.mubr.f32.mxu0 %v4146
    %4283 = vmatmul.mubr.f32.gmra.mxu0 %v4145
    %v4284 = vpop.f32.mrf.mxu0
    %v4285 = vadd.f32 %v4215, %v4284
    %v4286 = vpop.f32.mrf.mxu0
    %4287 = vdwg.mxu0
    %4288 = vmatprep.subr.mxu0 0.0
    %4289 = vmatpush1.msra.mxu0 %v3717
    %4290 = vmatprep.subr.mxu0 0.0
    %4291 = vmatpush1.msra.mxu0 %v3716
    %4292 = vmatprep.subr.mxu0 0.0
    %4293 = vmatpush1.msra.mxu0 %v3715
    %4294 = vmatprep.subr.mxu0 0.0
    %4295 = vmatpush1.msra.mxu0 %v3714
    %4296 = vmatprep.subr.mxu0 0.0
    %4297 = vmatpush1.msra.mxu0 %v3713
    %4298 = vmatprep.subr.mxu0 0.0
    %4299 = vmatpush1.msra.mxu0 %v3712
    %4300 = vmatprep.subr.mxu0 0.0
    %4301 = vmatpush1.msra.mxu0 %v3711
    %4302 = vmatprep.subr.mxu0 0.0
    %4303 = vmatpush1.msra.mxu0 %v3710
    %4304 = vmatprep.subr.mxu0 0.0
    %4305 = vmatpush1.msra.mxu0 %v3709
    %4306 = vmatprep.subr.mxu0 0.0
    %4307 = vmatpush1.msra.mxu0 %v3708
    %4308 = vmatprep.subr.mxu0 0.0
    %4309 = vmatpush1.msra.mxu0 %v3707
    %4310 = vmatprep.subr.mxu0 0.0
    %4311 = vmatpush1.msra.mxu0 %v3706
    %4312 = vmatprep.subr.mxu0 0.0
    %4313 = vmatpush1.msra.mxu0 %v3705
    %4314 = vmatprep.subr.mxu0 0.0
    %4315 = vmatpush1.msra.mxu0 %v3704
    %4316 = vmatprep.subr.mxu0 0.0
    %4317 = vmatpush1.msra.mxu0 %v3703
    %4318 = vmatprep.subr.mxu0 0.0
    %4319 = vmatpush1.msra.mxu0 %v3702
    %4320 = vmatprep.subr.mxu0 0.0
    %4321 = vmatpush2.msra.mxu0 0.0
    %4322 = vmatprep.subr.mxu0 0.0
    %4323 = vmatpush2.msra.mxu0 0.0
    %4324 = vmatprep.subr.mxu0 0.0
    %4325 = vmatpush2.msra.mxu0 0.0
    %4326 = vmatprep.subr.mxu0 0.0
    %4327 = vmatpush2.msra.mxu0 0.0
    %4328 = vmatprep.subr.mxu0 0.0
    %4329 = vmatpush2.msra.mxu0 0.0
    %4330 = vmatprep.subr.mxu0 0.0
    %4331 = vmatpush2.msra.mxu0 0.0
    %4332 = vmatprep.subr.mxu0 0.0
    %4333 = vmatpush2.msra.mxu0 0.0
    %4334 = vmatprep.subr.mxu0 0.0
    %4335 = vmatpush2.msra.mxu0 0.0
    %4336 = vmatprep.subr.mxu0 0.0
    %4337 = vmatpush2.msra.mxu0 0.0
    %4338 = vmatprep.subr.mxu0 0.0
    %4339 = vmatpush2.msra.mxu0 0.0
    %4340 = vmatprep.subr.mxu0 0.0
    %4341 = vmatpush2.msra.mxu0 0.0
    %4342 = vmatprep.subr.mxu0 0.0
    %4343 = vmatpush2.msra.mxu0 0.0
    %4344 = vmatprep.subr.mxu0 0.0
    %4345 = vmatpush2.msra.mxu0 0.0
    %4346 = vmatprep.subr.mxu0 0.0
    %4347 = vmatpush2.msra.mxu0 0.0
    %4348 = vmatprep.subr.mxu0 0.0
    %4349 = vmatpush2.msra.mxu0 0.0
    %4350 = vmatprep.subr.mxu0 0.0
    %4351 = vmatpush2.msra.mxu0 0.0
    %4352 = vmatprep.mubr.f32.mxu0 0.0
    %4353 = vmatmul.mubr.f32.gmra.mxu0 %v4147
    %v4354 = vpop.f32.mrf.mxu0
    %v4355 = vadd.f32 %v4285, %v4354
    %v4356 = vpop.f32.mrf.mxu0
    %4357 = vdwg.mxu0
    %v4358 = vmul.f32 %v2141, %v3206
    %v4359 = vmul.f32 %v2356, %v3206
    %v4360 = vmul.f32 %v2780, %v3206
    %v4361 = vmul.f32 %v2995, %v3206
    %v4362 = vmul.f32 %v3419, %v3206
    %4363 = vmatprep.subr.mxu0 0.0
    %4364 = vmatpush1.msra.mxu0 %v3653
    %4365 = vmatprep.subr.mxu0 0.0
    %4366 = vmatpush1.msra.mxu0 %v3652
    %4367 = vmatprep.subr.mxu0 0.0
    %4368 = vmatpush1.msra.mxu0 %v3651
    %4369 = vmatprep.subr.mxu0 0.0
    %4370 = vmatpush1.msra.mxu0 %v3650
    %4371 = vmatprep.subr.mxu0 0.0
    %4372 = vmatpush1.msra.mxu0 %v3649
    %4373 = vmatprep.subr.mxu0 0.0
    %4374 = vmatpush1.msra.mxu0 %v3648
    %4375 = vmatprep.subr.mxu0 0.0
    %4376 = vmatpush1.msra.mxu0 %v3647
    %4377 = vmatprep.subr.mxu0 0.0
    %4378 = vmatpush1.msra.mxu0 %v3646
    %4379 = vmatprep.subr.mxu0 0.0
    %4380 = vmatpush1.msra.mxu0 %v3645
    %4381 = vmatprep.subr.mxu0 0.0
    %4382 = vmatpush1.msra.mxu0 %v3644
    %4383 = vmatprep.subr.mxu0 0.0
    %4384 = vmatpush1.msra.mxu0 %v3643
    %4385 = vmatprep.subr.mxu0 0.0
    %4386 = vmatpush1.msra.mxu0 %v3642
    %4387 = vmatprep.subr.mxu0 0.0
    %4388 = vmatpush1.msra.mxu0 %v3641
    %4389 = vmatprep.subr.mxu0 0.0
    %4390 = vmatpush1.msra.mxu0 %v3640
    %4391 = vmatprep.subr.mxu0 0.0
    %4392 = vmatpush1.msra.mxu0 %v3639
    %4393 = vmatprep.subr.mxu0 0.0
    %4394 = vmatpush1.msra.mxu0 %v3638
    %4395 = vmatprep.subr.mxu0 0.0
    %4396 = vmatpush2.msra.mxu0 %v3669
    %4397 = vmatprep.subr.mxu0 0.0
    %4398 = vmatpush2.msra.mxu0 %v3668
    %4399 = vmatprep.subr.mxu0 0.0
    %4400 = vmatpush2.msra.mxu0 %v3667
    %4401 = vmatprep.subr.mxu0 0.0
    %4402 = vmatpush2.msra.mxu0 %v3666
    %4403 = vmatprep.subr.mxu0 0.0
    %4404 = vmatpush2.msra.mxu0 %v3665
    %4405 = vmatprep.subr.mxu0 0.0
    %4406 = vmatpush2.msra.mxu0 %v3664
    %4407 = vmatprep.subr.mxu0 0.0
    %4408 = vmatpush2.msra.mxu0 %v3663
    %4409 = vmatprep.subr.mxu0 0.0
    %4410 = vmatpush2.msra.mxu0 %v3662
    %4411 = vmatprep.subr.mxu0 0.0
    %4412 = vmatpush2.msra.mxu0 %v3661
    %4413 = vmatprep.subr.mxu0 0.0
    %4414 = vmatpush2.msra.mxu0 %v3660
    %4415 = vmatprep.subr.mxu0 0.0
    %4416 = vmatpush2.msra.mxu0 %v3659
    %4417 = vmatprep.subr.mxu0 0.0
    %4418 = vmatpush2.msra.mxu0 %v3658
    %4419 = vmatprep.subr.mxu0 0.0
    %4420 = vmatpush2.msra.mxu0 %v3657
    %4421 = vmatprep.subr.mxu0 0.0
    %4422 = vmatpush2.msra.mxu0 %v3656
    %4423 = vmatprep.subr.mxu0 0.0
    %4424 = vmatpush2.msra.mxu0 %v3655
    %4425 = vmatprep.subr.mxu0 0.0
    %4426 = vmatpush2.msra.mxu0 %v3654
    %4427 = vmatprep.mubr.f32.mxu0 %v4359
    %4428 = vmatmul.mubr.f32.gmra.mxu0 %v4358
    %v4429 = vpop.f32.mrf.mxu0
    %v4430 = vadd.f32 0.0, %v4429
    %v4431 = vpop.f32.mrf.mxu0
    %4432 = vdwg.mxu0
    %4433 = vmatprep.subr.mxu0 0.0
    %4434 = vmatpush1.msra.mxu0 %v3685
    %4435 = vmatprep.subr.mxu0 0.0
    %4436 = vmatpush1.msra.mxu0 %v3684
    %4437 = vmatprep.subr.mxu0 0.0
    %4438 = vmatpush1.msra.mxu0 %v3683
    %4439 = vmatprep.subr.mxu0 0.0
    %4440 = vmatpush1.msra.mxu0 %v3682
    %4441 = vmatprep.subr.mxu0 0.0
    %4442 = vmatpush1.msra.mxu0 %v3681
    %4443 = vmatprep.subr.mxu0 0.0
    %4444 = vmatpush1.msra.mxu0 %v3680
    %4445 = vmatprep.subr.mxu0 0.0
    %4446 = vmatpush1.msra.mxu0 %v3679
    %4447 = vmatprep.subr.mxu0 0.0
    %4448 = vmatpush1.msra.mxu0 %v3678
    %4449 = vmatprep.subr.mxu0 0.0
    %4450 = vmatpush1.msra.mxu0 %v3677
    %4451 = vmatprep.subr.mxu0 0.0
    %4452 = vmatpush1.msra.mxu0 %v3676
    %4453 = vmatprep.subr.mxu0 0.0
    %4454 = vmatpush1.msra.mxu0 %v3675
    %4455 = vmatprep.subr.mxu0 0.0
    %4456 = vmatpush1.msra.mxu0 %v3674
    %4457 = vmatprep.subr.mxu0 0.0
    %4458 = vmatpush1.msra.mxu0 %v3673
    %4459 = vmatprep.subr.mxu0 0.0
    %4460 = vmatpush1.msra.mxu0 %v3672
    %4461 = vmatprep.subr.mxu0 0.0
    %4462 = vmatpush1.msra.mxu0 %v3671
    %4463 = vmatprep.subr.mxu0 0.0
    %4464 = vmatpush1.msra.mxu0 %v3670
    %4465 = vmatprep.subr.mxu0 0.0
    %4466 = vmatpush2.msra.mxu0 %v3701
    %4467 = vmatprep.subr.mxu0 0.0
    %4468 = vmatpush2.msra.mxu0 %v3700
    %4469 = vmatprep.subr.mxu0 0.0
    %4470 = vmatpush2.msra.mxu0 %v3699
    %4471 = vmatprep.subr.mxu0 0.0
    %4472 = vmatpush2.msra.mxu0 %v3698
    %4473 = vmatprep.subr.mxu0 0.0
    %4474 = vmatpush2.msra.mxu0 %v3697
    %4475 = vmatprep.subr.mxu0 0.0
    %4476 = vmatpush2.msra.mxu0 %v3696
    %4477 = vmatprep.subr.mxu0 0.0
    %4478 = vmatpush2.msra.mxu0 %v3695
    %4479 = vmatprep.subr.mxu0 0.0
    %4480 = vmatpush2.msra.mxu0 %v3694
    %4481 = vmatprep.subr.mxu0 0.0
    %4482 = vmatpush2.msra.mxu0 %v3693
    %4483 = vmatprep.subr.mxu0 0.0
    %4484 = vmatpush2.msra.mxu0 %v3692
    %4485 = vmatprep.subr.mxu0 0.0
    %4486 = vmatpush2.msra.mxu0 %v3691
    %4487 = vmatprep.subr.mxu0 0.0
    %4488 = vmatpush2.msra.mxu0 %v3690
    %4489 = vmatprep.subr.mxu0 0.0
    %4490 = vmatpush2.msra.mxu0 %v3689
    %4491 = vmatprep.subr.mxu0 0.0
    %4492 = vmatpush2.msra.mxu0 %v3688
    %4493 = vmatprep.subr.mxu0 0.0
    %4494 = vmatpush2.msra.mxu0 %v3687
    %4495 = vmatprep.subr.mxu0 0.0
    %4496 = vmatpush2.msra.mxu0 %v3686
    %4497 = vmatprep.mubr.f32.mxu0 %v4361
    %4498 = vmatmul.mubr.f32.gmra.mxu0 %v4360
    %v4499 = vpop.f32.mrf.mxu0
    %v4500 = vadd.f32 %v4430, %v4499
    %v4501 = vpop.f32.mrf.mxu0
    %4502 = vdwg.mxu0
    %4503 = vmatprep.subr.mxu0 0.0
    %4504 = vmatpush1.msra.mxu0 %v3717
    %4505 = vmatprep.subr.mxu0 0.0
    %4506 = vmatpush1.msra.mxu0 %v3716
    %4507 = vmatprep.subr.mxu0 0.0
    %4508 = vmatpush1.msra.mxu0 %v3715
    %4509 = vmatprep.subr.mxu0 0.0
    %4510 = vmatpush1.msra.mxu0 %v3714
    %4511 = vmatprep.subr.mxu0 0.0
    %4512 = vmatpush1.msra.mxu0 %v3713
    %4513 = vmatprep.subr.mxu0 0.0
    %4514 = vmatpush1.msra.mxu0 %v3712
    %4515 = vmatprep.subr.mxu0 0.0
    %4516 = vmatpush1.msra.mxu0 %v3711
    %4517 = vmatprep.subr.mxu0 0.0
    %4518 = vmatpush1.msra.mxu0 %v3710
    %4519 = vmatprep.subr.mxu0 0.0
    %4520 = vmatpush1.msra.mxu0 %v3709
    %4521 = vmatprep.subr.mxu0 0.0
    %4522 = vmatpush1.msra.mxu0 %v3708
    %4523 = vmatprep.subr.mxu0 0.0
    %4524 = vmatpush1.msra.mxu0 %v3707
    %4525 = vmatprep.subr.mxu0 0.0
    %4526 = vmatpush1.msra.mxu0 %v3706
    %4527 = vmatprep.subr.mxu0 0.0
    %4528 = vmatpush1.msra.mxu0 %v3705
    %4529 = vmatprep.subr.mxu0 0.0
    %4530 = vmatpush1.msra.mxu0 %v3704
    %4531 = vmatprep.subr.mxu0 0.0
    %4532 = vmatpush1.msra.mxu0 %v3703
    %4533 = vmatprep.subr.mxu0 0.0
    %4534 = vmatpush1.msra.mxu0 %v3702
    %4535 = vmatprep.subr.mxu0 0.0
    %4536 = vmatpush2.msra.mxu0 0.0
    %4537 = vmatprep.subr.mxu0 0.0
    %4538 = vmatpush2.msra.mxu0 0.0
    %4539 = vmatprep.subr.mxu0 0.0
    %4540 = vmatpush2.msra.mxu0 0.0
    %4541 = vmatprep.subr.mxu0 0.0
    %4542 = vmatpush2.msra.mxu0 0.0
    %4543 = vmatprep.subr.mxu0 0.0
    %4544 = vmatpush2.msra.mxu0 0.0
    %4545 = vmatprep.subr.mxu0 0.0
    %4546 = vmatpush2.msra.mxu0 0.0
    %4547 = vmatprep.subr.mxu0 0.0
    %4548 = vmatpush2.msra.mxu0 0.0
    %4549 = vmatprep.subr.mxu0 0.0
    %4550 = vmatpush2.msra.mxu0 0.0
    %4551 = vmatprep.subr.mxu0 0.0
    %4552 = vmatpush2.msra.mxu0 0.0
    %4553 = vmatprep.subr.mxu0 0.0
    %4554 = vmatpush2.msra.mxu0 0.0
    %4555 = vmatprep.subr.mxu0 0.0
    %4556 = vmatpush2.msra.mxu0 0.0
    %4557 = vmatprep.subr.mxu0 0.0
    %4558 = vmatpush2.msra.mxu0 0.0
    %4559 = vmatprep.subr.mxu0 0.0
    %4560 = vmatpush2.msra.mxu0 0.0
    %4561 = vmatprep.subr.mxu0 0.0
    %4562 = vmatpush2.msra.mxu0 0.0
    %4563 = vmatprep.subr.mxu0 0.0
    %4564 = vmatpush2.msra.mxu0 0.0
    %4565 = vmatprep.subr.mxu0 0.0
    %4566 = vmatpush2.msra.mxu0 0.0
    %4567 = vmatprep.mubr.f32.mxu0 0.0
    %4568 = vmatmul.mubr.f32.gmra.mxu0 %v4362
    %v4569 = vpop.f32.mrf.mxu0
    %v4570 = vadd.f32 %v4500, %v4569
    %v4571 = vpop.f32.mrf.mxu0
    %4572 = vdwg.mxu0
    %v4573 = vmul.f32 %v2141, %v3421
    %v4574 = vmul.f32 %v2356, %v3421
    %v4575 = vmul.f32 %v2780, %v3421
    %v4576 = vmul.f32 %v2995, %v3421
    %v4577 = vmul.f32 %v3419, %v3421
    %4578 = vmatprep.subr.mxu0 0.0
    %4579 = vmatpush1.msra.mxu0 %v3653
    %4580 = vmatprep.subr.mxu0 0.0
    %4581 = vmatpush1.msra.mxu0 %v3652
    %4582 = vmatprep.subr.mxu0 0.0
    %4583 = vmatpush1.msra.mxu0 %v3651
    %4584 = vmatprep.subr.mxu0 0.0
    %4585 = vmatpush1.msra.mxu0 %v3650
    %4586 = vmatprep.subr.mxu0 0.0
    %4587 = vmatpush1.msra.mxu0 %v3649
    %4588 = vmatprep.subr.mxu0 0.0
    %4589 = vmatpush1.msra.mxu0 %v3648
    %4590 = vmatprep.subr.mxu0 0.0
    %4591 = vmatpush1.msra.mxu0 %v3647
    %4592 = vmatprep.subr.mxu0 0.0
    %4593 = vmatpush1.msra.mxu0 %v3646
    %4594 = vmatprep.subr.mxu0 0.0
    %4595 = vmatpush1.msra.mxu0 %v3645
    %4596 = vmatprep.subr.mxu0 0.0
    %4597 = vmatpush1.msra.mxu0 %v3644
    %4598 = vmatprep.subr.mxu0 0.0
    %4599 = vmatpush1.msra.mxu0 %v3643
    %4600 = vmatprep.subr.mxu0 0.0
    %4601 = vmatpush1.msra.mxu0 %v3642
    %4602 = vmatprep.subr.mxu0 0.0
    %4603 = vmatpush1.msra.mxu0 %v3641
    %4604 = vmatprep.subr.mxu0 0.0
    %4605 = vmatpush1.msra.mxu0 %v3640
    %4606 = vmatprep.subr.mxu0 0.0
    %4607 = vmatpush1.msra.mxu0 %v3639
    %4608 = vmatprep.subr.mxu0 0.0
    %4609 = vmatpush1.msra.mxu0 %v3638
    %4610 = vmatprep.subr.mxu0 0.0
    %4611 = vmatpush2.msra.mxu0 %v3669
    %4612 = vmatprep.subr.mxu0 0.0
    %4613 = vmatpush2.msra.mxu0 %v3668
    %4614 = vmatprep.subr.mxu0 0.0
    %4615 = vmatpush2.msra.mxu0 %v3667
    %4616 = vmatprep.subr.mxu0 0.0
    %4617 = vmatpush2.msra.mxu0 %v3666
    %4618 = vmatprep.subr.mxu0 0.0
    %4619 = vmatpush2.msra.mxu0 %v3665
    %4620 = vmatprep.subr.mxu0 0.0
    %4621 = vmatpush2.msra.mxu0 %v3664
    %4622 = vmatprep.subr.mxu0 0.0
    %4623 = vmatpush2.msra.mxu0 %v3663
    %4624 = vmatprep.subr.mxu0 0.0
    %4625 = vmatpush2.msra.mxu0 %v3662
    %4626 = vmatprep.subr.mxu0 0.0
    %4627 = vmatpush2.msra.mxu0 %v3661
    %4628 = vmatprep.subr.mxu0 0.0
    %4629 = vmatpush2.msra.mxu0 %v3660
    %4630 = vmatprep.subr.mxu0 0.0
    %4631 = vmatpush2.msra.mxu0 %v3659
    %4632 = vmatprep.subr.mxu0 0.0
    %4633 = vmatpush2.msra.mxu0 %v3658
    %4634 = vmatprep.subr.mxu0 0.0
    %4635 = vmatpush2.msra.mxu0 %v3657
    %4636 = vmatprep.subr.mxu0 0.0
    %4637 = vmatpush2.msra.mxu0 %v3656
    %4638 = vmatprep.subr.mxu0 0.0
    %4639 = vmatpush2.msra.mxu0 %v3655
    %4640 = vmatprep.subr.mxu0 0.0
    %4641 = vmatpush2.msra.mxu0 %v3654
    %4642 = vmatprep.mubr.f32.mxu0 %v4574
    %4643 = vmatmul.mubr.f32.gmra.mxu0 %v4573
    %v4644 = vpop.f32.mrf.mxu0
    %v4645 = vadd.f32 0.0, %v4644
    %v4646 = vpop.f32.mrf.mxu0
    %4647 = vdwg.mxu0
    %4648 = vmatprep.subr.mxu0 0.0
    %4649 = vmatpush1.msra.mxu0 %v3685
    %4650 = vmatprep.subr.mxu0 0.0
    %4651 = vmatpush1.msra.mxu0 %v3684
    %4652 = vmatprep.subr.mxu0 0.0
    %4653 = vmatpush1.msra.mxu0 %v3683
    %4654 = vmatprep.subr.mxu0 0.0
    %4655 = vmatpush1.msra.mxu0 %v3682
    %4656 = vmatprep.subr.mxu0 0.0
    %4657 = vmatpush1.msra.mxu0 %v3681
    %4658 = vmatprep.subr.mxu0 0.0
    %4659 = vmatpush1.msra.mxu0 %v3680
    %4660 = vmatprep.subr.mxu0 0.0
    %4661 = vmatpush1.msra.mxu0 %v3679
    %4662 = vmatprep.subr.mxu0 0.0
    %4663 = vmatpush1.msra.mxu0 %v3678
    %4664 = vmatprep.subr.mxu0 0.0
    %4665 = vmatpush1.msra.mxu0 %v3677
    %4666 = vmatprep.subr.mxu0 0.0
    %4667 = vmatpush1.msra.mxu0 %v3676
    %4668 = vmatprep.subr.mxu0 0.0
    %4669 = vmatpush1.msra.mxu0 %v3675
    %4670 = vmatprep.subr.mxu0 0.0
    %4671 = vmatpush1.msra.mxu0 %v3674
    %4672 = vmatprep.subr.mxu0 0.0
    %4673 = vmatpush1.msra.mxu0 %v3673
    %4674 = vmatprep.subr.mxu0 0.0
    %4675 = vmatpush1.msra.mxu0 %v3672
    %4676 = vmatprep.subr.mxu0 0.0
    %4677 = vmatpush1.msra.mxu0 %v3671
    %4678 = vmatprep.subr.mxu0 0.0
    %4679 = vmatpush1.msra.mxu0 %v3670
    %4680 = vmatprep.subr.mxu0 0.0
    %4681 = vmatpush2.msra.mxu0 %v3701
    %4682 = vmatprep.subr.mxu0 0.0
    %4683 = vmatpush2.msra.mxu0 %v3700
    %4684 = vmatprep.subr.mxu0 0.0
    %4685 = vmatpush2.msra.mxu0 %v3699
    %4686 = vmatprep.subr.mxu0 0.0
    %4687 = vmatpush2.msra.mxu0 %v3698
    %4688 = vmatprep.subr.mxu0 0.0
    %4689 = vmatpush2.msra.mxu0 %v3697
    %4690 = vmatprep.subr.mxu0 0.0
    %4691 = vmatpush2.msra.mxu0 %v3696
    %4692 = vmatprep.subr.mxu0 0.0
    %4693 = vmatpush2.msra.mxu0 %v3695
    %4694 = vmatprep.subr.mxu0 0.0
    %4695 = vmatpush2.msra.mxu0 %v3694
    %4696 = vmatprep.subr.mxu0 0.0
    %4697 = vmatpush2.msra.mxu0 %v3693
    %4698 = vmatprep.subr.mxu0 0.0
    %4699 = vmatpush2.msra.mxu0 %v3692
    %4700 = vmatprep.subr.mxu0 0.0
    %4701 = vmatpush2.msra.mxu0 %v3691
    %4702 = vmatprep.subr.mxu0 0.0
    %4703 = vmatpush2.msra.mxu0 %v3690
    %4704 = vmatprep.subr.mxu0 0.0
    %4705 = vmatpush2.msra.mxu0 %v3689
    %4706 = vmatprep.subr.mxu0 0.0
    %4707 = vmatpush2.msra.mxu0 %v3688
    %4708 = vmatprep.subr.mxu0 0.0
    %4709 = vmatpush2.msra.mxu0 %v3687
    %4710 = vmatprep.subr.mxu0 0.0
    %4711 = vmatpush2.msra.mxu0 %v3686
    %4712 = vmatprep.mubr.f32.mxu0 %v4576
    %4713 = vmatmul.mubr.f32.gmra.mxu0 %v4575
    %v4714 = vpop.f32.mrf.mxu0
    %v4715 = vadd.f32 %v4645, %v4714
    %v4716 = vpop.f32.mrf.mxu0
    %4717 = vdwg.mxu0
    %4718 = vmatprep.subr.mxu0 0.0
    %4719 = vmatpush1.msra.mxu0 %v3717
    %4720 = vmatprep.subr.mxu0 0.0
    %4721 = vmatpush1.msra.mxu0 %v3716
    %4722 = vmatprep.subr.mxu0 0.0
    %4723 = vmatpush1.msra.mxu0 %v3715
    %4724 = vmatprep.subr.mxu0 0.0
    %4725 = vmatpush1.msra.mxu0 %v3714
    %4726 = vmatprep.subr.mxu0 0.0
    %4727 = vmatpush1.msra.mxu0 %v3713
    %4728 = vmatprep.subr.mxu0 0.0
    %4729 = vmatpush1.msra.mxu0 %v3712
    %4730 = vmatprep.subr.mxu0 0.0
    %4731 = vmatpush1.msra.mxu0 %v3711
    %4732 = vmatprep.subr.mxu0 0.0
    %4733 = vmatpush1.msra.mxu0 %v3710
    %4734 = vmatprep.subr.mxu0 0.0
    %4735 = vmatpush1.msra.mxu0 %v3709
    %4736 = vmatprep.subr.mxu0 0.0
    %4737 = vmatpush1.msra.mxu0 %v3708
    %4738 = vmatprep.subr.mxu0 0.0
    %4739 = vmatpush1.msra.mxu0 %v3707
    %4740 = vmatprep.subr.mxu0 0.0
    %4741 = vmatpush1.msra.mxu0 %v3706
    %4742 = vmatprep.subr.mxu0 0.0
    %4743 = vmatpush1.msra.mxu0 %v3705
    %4744 = vmatprep.subr.mxu0 0.0
    %4745 = vmatpush1.msra.mxu0 %v3704
    %4746 = vmatprep.subr.mxu0 0.0
    %4747 = vmatpush1.msra.mxu0 %v3703
    %4748 = vmatprep.subr.mxu0 0.0
    %4749 = vmatpush1.msra.mxu0 %v3702
    %4750 = vmatprep.subr.mxu0 0.0
    %4751 = vmatpush2.msra.mxu0 0.0
    %4752 = vmatprep.subr.mxu0 0.0
    %4753 = vmatpush2.msra.mxu0 0.0
    %4754 = vmatprep.subr.mxu0 0.0
    %4755 = vmatpush2.msra.mxu0 0.0
    %4756 = vmatprep.subr.mxu0 0.0
    %4757 = vmatpush2.msra.mxu0 0.0
    %4758 = vmatprep.subr.mxu0 0.0
    %4759 = vmatpush2.msra.mxu0 0.0
    %4760 = vmatprep.subr.mxu0 0.0
    %4761 = vmatpush2.msra.mxu0 0.0
    %4762 = vmatprep.subr.mxu0 0.0
    %4763 = vmatpush2.msra.mxu0 0.0
    %4764 = vmatprep.subr.mxu0 0.0
    %4765 = vmatpush2.msra.mxu0 0.0
    %4766 = vmatprep.subr.mxu0 0.0
    %4767 = vmatpush2.msra.mxu0 0.0
    %4768 = vmatprep.subr.mxu0 0.0
    %4769 = vmatpush2.msra.mxu0 0.0
    %4770 = vmatprep.subr.mxu0 0.0
    %4771 = vmatpush2.msra.mxu0 0.0
    %4772 = vmatprep.subr.mxu0 0.0
    %4773 = vmatpush2.msra.mxu0 0.0
    %4774 = vmatprep.subr.mxu0 0.0
    %4775 = vmatpush2.msra.mxu0 0.0
    %4776 = vmatprep.subr.mxu0 0.0
    %4777 = vmatpush2.msra.mxu0 0.0
    %4778 = vmatprep.subr.mxu0 0.0
    %4779 = vmatpush2.msra.mxu0 0.0
    %4780 = vmatprep.subr.mxu0 0.0
    %4781 = vmatpush2.msra.mxu0 0.0
    %4782 = vmatprep.mubr.f32.mxu0 0.0
    %4783 = vmatmul.mubr.f32.gmra.mxu0 %v4577
    %v4784 = vpop.f32.mrf.mxu0
    %v4785 = vadd.f32 %v4715, %v4784
    %v4786 = vpop.f32.mrf.mxu0
    %4787 = vdwg.mxu0
    %v4788 = vmax.f32 %v3925, %v4140
    %v4789 = vmax.f32 %v4788, %v4355
    %v4790 = vmax.f32 %v4789, %v4570
    %v4791 = vmax.f32 %v4790, %v4785
    %v4792 = vsub.f32 %v3925, %v4791
    %v4793 = vmul.f32 %v4792, 1.442695
    %v4794 = vpow.pop %v4793
    %v4795 = vsub.f32 %v4140, %v4791
    %v4796 = vmul.f32 %v4795, 1.442695
    %v4797 = vpow.pop %v4796
    %v4798 = vsub.f32 %v4355, %v4791
    %v4799 = vmul.f32 %v4798, 1.442695
    %v4800 = vpow.pop %v4799
    %v4801 = vsub.f32 %v4570, %v4791
    %v4802 = vmul.f32 %v4801, 1.442695
    %v4803 = vpow.pop %v4802
    %v4804 = vsub.f32 %v4785, %v4791
    %v4805 = vmul.f32 %v4804, 1.442695
    %v4806 = vpow.pop %v4805
    %v4807 = vadd.f32 %v4794, %v4797
    %v4808 = vadd.f32 %v4807, %v4800
    %v4809 = vadd.f32 %v4808, %v4803
    %v4810 = vadd.f32 %v4809, %v4806
    %v4811 = vrcp.pop %v4810
    %v4812 = vmul.f32 %v4794, %v4811
    %v4813 = vld [vmem:[#allocation13] sm:$0xff]
    %v4814 = vld [vmem:[#allocation13 + $0x8] sm:$0xff]
    %v4815 = vld [vmem:[#allocation13 + $0x10] sm:$0xff]
    %v4816 = vld [vmem:[#allocation13 + $0x18] sm:$0xff]
    %v4817 = vld [vmem:[#allocation13 + $0x20] sm:$0xff]
    %v4818 = vld [vmem:[#allocation13 + $0x28] sm:$0xff]
    %v4819 = vld [vmem:[#allocation13 + $0x30] sm:$0xff]
    %v4820 = vld [vmem:[#allocation13 + $0x38] sm:$0xff]
    %v4821 = vld [vmem:[#allocation13 + $0x40] sm:$0xff]
    %v4822 = vld [vmem:[#allocation13 + $0x48] sm:$0xff]
    %v4823 = vld [vmem:[#allocation13 + $0x50] sm:$0xff]
    %v4824 = vld [vmem:[#allocation13 + $0x58] sm:$0xff]
    %v4825 = vld [vmem:[#allocation13 + $0x60] sm:$0xff]
    %v4826 = vld [vmem:[#allocation13 + $0x68] sm:$0xff]
    %v4827 = vld [vmem:[#allocation13 + $0x70] sm:$0xff]
    %v4828 = vld [vmem:[#allocation13 + $0x78] sm:$0xff]
    %v4829 = vld [vmem:[#allocation13 + $0x80] sm:$0xff]
    %v4830 = vld [vmem:[#allocation13 + $0x88] sm:$0xff]
    %v4831 = vld [vmem:[#allocation13 + $0x90] sm:$0xff]
    %v4832 = vld [vmem:[#allocation13 + $0x98] sm:$0xff]
    %v4833 = vld [vmem:[#allocation13 + $0xa0] sm:$0xff]
    %v4834 = vld [vmem:[#allocation13 + $0xa8] sm:$0xff]
    %v4835 = vld [vmem:[#allocation13 + $0xb0] sm:$0xff]
    %v4836 = vld [vmem:[#allocation13 + $0xb8] sm:$0xff]
    %v4837 = vld [vmem:[#allocation13 + $0xc0] sm:$0xff]
    %v4838 = vld [vmem:[#allocation13 + $0xc8] sm:$0xff]
    %v4839 = vld [vmem:[#allocation13 + $0xd0] sm:$0xff]
    %v4840 = vld [vmem:[#allocation13 + $0xd8] sm:$0xff]
    %v4841 = vld [vmem:[#allocation13 + $0xe0] sm:$0xff]
    %v4842 = vld [vmem:[#allocation13 + $0xe8] sm:$0xff]
    %v4843 = vld [vmem:[#allocation13 + $0xf0] sm:$0xff]
    %v4844 = vld [vmem:[#allocation13 + $0xf8] sm:$0xff]
    %v4845 = vld [vmem:[#allocation13 + $0x100] sm:$0xff]
    %v4846 = vld [vmem:[#allocation13 + $0x108] sm:$0xff]
    %v4847 = vld [vmem:[#allocation13 + $0x110] sm:$0xff]
    %v4848 = vld [vmem:[#allocation13 + $0x118] sm:$0xff]
    %v4849 = vld [vmem:[#allocation13 + $0x120] sm:$0xff]
    %v4850 = vld [vmem:[#allocation13 + $0x128] sm:$0xff]
    %v4851 = vld [vmem:[#allocation13 + $0x130] sm:$0xff]
    %v4852 = vld [vmem:[#allocation13 + $0x138] sm:$0xff]
    %v4853 = vld [vmem:[#allocation13 + $0x140] sm:$0xff]
    %v4854 = vld [vmem:[#allocation13 + $0x148] sm:$0xff]
    %v4855 = vld [vmem:[#allocation13 + $0x150] sm:$0xff]
    %v4856 = vld [vmem:[#allocation13 + $0x158] sm:$0xff]
    %v4857 = vld [vmem:[#allocation13 + $0x160] sm:$0xff]
    %v4858 = vld [vmem:[#allocation13 + $0x168] sm:$0xff]
    %v4859 = vld [vmem:[#allocation13 + $0x170] sm:$0xff]
    %v4860 = vld [vmem:[#allocation13 + $0x178] sm:$0xff]
    %v4861 = vld [vmem:[#allocation13 + $0x180] sm:$0xff]
    %v4862 = vld [vmem:[#allocation13 + $0x188] sm:$0xff]
    %v4863 = vld [vmem:[#allocation13 + $0x190] sm:$0xff]
    %v4864 = vld [vmem:[#allocation13 + $0x198] sm:$0xff]
    %v4865 = vld [vmem:[#allocation13 + $0x1a0] sm:$0xff]
    %v4866 = vld [vmem:[#allocation13 + $0x1a8] sm:$0xff]
    %v4867 = vld [vmem:[#allocation13 + $0x1b0] sm:$0xff]
    %v4868 = vld [vmem:[#allocation13 + $0x1b8] sm:$0xff]
    %v4869 = vld [vmem:[#allocation13 + $0x1c0] sm:$0xff]
    %v4870 = vld [vmem:[#allocation13 + $0x1c8] sm:$0xff]
    %v4871 = vld [vmem:[#allocation13 + $0x1d0] sm:$0xff]
    %v4872 = vld [vmem:[#allocation13 + $0x1d8] sm:$0xff]
    %v4873 = vld [vmem:[#allocation13 + $0x1e0] sm:$0xff]
    %v4874 = vld [vmem:[#allocation13 + $0x1e8] sm:$0xff]
    %v4875 = vld [vmem:[#allocation13 + $0x1f0] sm:$0xff]
    %v4876 = vld [vmem:[#allocation13 + $0x1f8] sm:$0xff]
    %v4877 = vld [vmem:[#allocation13 + $0x200] sm:$0xff]
    %v4878 = vld [vmem:[#allocation13 + $0x208] sm:$0xff]
    %v4879 = vld [vmem:[#allocation13 + $0x210] sm:$0xff]
    %v4880 = vld [vmem:[#allocation13 + $0x218] sm:$0xff]
    %v4881 = vld [vmem:[#allocation13 + $0x220] sm:$0xff]
    %v4882 = vld [vmem:[#allocation13 + $0x228] sm:$0xff]
    %v4883 = vld [vmem:[#allocation13 + $0x230] sm:$0xff]
    %v4884 = vld [vmem:[#allocation13 + $0x238] sm:$0xff]
    %v4885 = vld [vmem:[#allocation13 + $0x240] sm:$0xff]
    %v4886 = vld [vmem:[#allocation13 + $0x248] sm:$0xff]
    %v4887 = vld [vmem:[#allocation13 + $0x250] sm:$0xff]
    %v4888 = vld [vmem:[#allocation13 + $0x258] sm:$0xff]
    %v4889 = vld [vmem:[#allocation13 + $0x260] sm:$0xff]
    %v4890 = vld [vmem:[#allocation13 + $0x268] sm:$0xff]
    %v4891 = vld [vmem:[#allocation13 + $0x270] sm:$0xff]
    %v4892 = vld [vmem:[#allocation13 + $0x278] sm:$0xff]
    %4893 = vmatprep.subr.mxu0 %v4889
    %4894 = vmatpush1.msra.mxu0 %v4888
    %4895 = vmatprep.subr.mxu0 %v4884
    %4896 = vmatpush1.msra.mxu0 %v4883
    %4897 = vmatprep.subr.mxu0 %v4879
    %4898 = vmatpush1.msra.mxu0 %v4878
    %4899 = vmatprep.subr.mxu0 %v4874
    %4900 = vmatpush1.msra.mxu0 %v4873
    %4901 = vmatprep.subr.mxu0 %v4869
    %4902 = vmatpush1.msra.mxu0 %v4868
    %4903 = vmatprep.subr.mxu0 %v4864
    %4904 = vmatpush1.msra.mxu0 %v4863
    %4905 = vmatprep.subr.mxu0 %v4859
    %4906 = vmatpush1.msra.mxu0 %v4858
    %4907 = vmatprep.subr.mxu0 %v4854
    %4908 = vmatpush1.msra.mxu0 %v4853
    %4909 = vmatprep.subr.mxu0 %v4849
    %4910 = vmatpush1.msra.mxu0 %v4848
    %4911 = vmatprep.subr.mxu0 %v4844
    %4912 = vmatpush1.msra.mxu0 %v4843
    %4913 = vmatprep.subr.mxu0 %v4839
    %4914 = vmatpush1.msra.mxu0 %v4838
    %4915 = vmatprep.subr.mxu0 %v4834
    %4916 = vmatpush1.msra.mxu0 %v4833
    %4917 = vmatprep.subr.mxu0 %v4829
    %4918 = vmatpush1.msra.mxu0 %v4828
    %4919 = vmatprep.subr.mxu0 %v4824
    %4920 = vmatpush1.msra.mxu0 %v4823
    %4921 = vmatprep.subr.mxu0 %v4819
    %4922 = vmatpush1.msra.mxu0 %v4818
    %4923 = vmatprep.subr.mxu0 %v4814
    %4924 = vmatpush1.msra.mxu0 %v4813
    %4925 = vmatprep.subr.mxu0 0.0
    %4926 = vmatpush2.msra.mxu0 0.0
    %4927 = vmatprep.subr.mxu0 0.0
    %4928 = vmatpush2.msra.mxu0 0.0
    %4929 = vmatprep.subr.mxu0 0.0
    %4930 = vmatpush2.msra.mxu0 0.0
    %4931 = vmatprep.subr.mxu0 0.0
    %4932 = vmatpush2.msra.mxu0 0.0
    %4933 = vmatprep.subr.mxu0 0.0
    %4934 = vmatpush2.msra.mxu0 0.0
    %4935 = vmatprep.subr.mxu0 0.0
    %4936 = vmatpush2.msra.mxu0 0.0
    %4937 = vmatprep.subr.mxu0 0.0
    %4938 = vmatpush2.msra.mxu0 0.0
    %4939 = vmatprep.subr.mxu0 0.0
    %4940 = vmatpush2.msra.mxu0 0.0
    %4941 = vmatprep.subr.mxu0 0.0
    %4942 = vmatpush2.msra.mxu0 0.0
    %4943 = vmatprep.subr.mxu0 0.0
    %4944 = vmatpush2.msra.mxu0 0.0
    %4945 = vmatprep.subr.mxu0 0.0
    %4946 = vmatpush2.msra.mxu0 0.0
    %4947 = vmatprep.subr.mxu0 0.0
    %4948 = vmatpush2.msra.mxu0 0.0
    %4949 = vmatprep.subr.mxu0 0.0
    %4950 = vmatpush2.msra.mxu0 0.0
    %4951 = vmatprep.subr.mxu0 0.0
    %4952 = vmatpush2.msra.mxu0 0.0
    %4953 = vmatprep.subr.mxu0 0.0
    %4954 = vmatpush2.msra.mxu0 0.0
    %4955 = vmatprep.subr.mxu0 0.0
    %4956 = vmatpush2.msra.mxu0 0.0
    %4957 = vmatprep.mubr.f32.mxu0 0.0
    %4958 = vmatmul.mubr.f32.gmra.mxu0 %v4812
    %v4959 = vpop.f32.mrf.mxu0
    %v4960 = vadd.f32 0.0, %v4959
    %v4961 = vpop.f32.mrf.mxu0
    %v4962 = vadd.f32 0.0, %v4961
    %4963 = vdwg.mxu0
    %4964 = vmatprep.subr.mxu0 %v4891
    %4965 = vmatpush1.msra.mxu0 %v4890
    %4966 = vmatprep.subr.mxu0 %v4886
    %4967 = vmatpush1.msra.mxu0 %v4885
    %4968 = vmatprep.subr.mxu0 %v4881
    %4969 = vmatpush1.msra.mxu0 %v4880
    %4970 = vmatprep.subr.mxu0 %v4876
    %4971 = vmatpush1.msra.mxu0 %v4875
    %4972 = vmatprep.subr.mxu0 %v4871
    %4973 = vmatpush1.msra.mxu0 %v4870
    %4974 = vmatprep.subr.mxu0 %v4866
    %4975 = vmatpush1.msra.mxu0 %v4865
    %4976 = vmatprep.subr.mxu0 %v4861
    %4977 = vmatpush1.msra.mxu0 %v4860
    %4978 = vmatprep.subr.mxu0 %v4856
    %4979 = vmatpush1.msra.mxu0 %v4855
    %4980 = vmatprep.subr.mxu0 %v4851
    %4981 = vmatpush1.msra.mxu0 %v4850
    %4982 = vmatprep.subr.mxu0 %v4846
    %4983 = vmatpush1.msra.mxu0 %v4845
    %4984 = vmatprep.subr.mxu0 %v4841
    %4985 = vmatpush1.msra.mxu0 %v4840
    %4986 = vmatprep.subr.mxu0 %v4836
    %4987 = vmatpush1.msra.mxu0 %v4835
    %4988 = vmatprep.subr.mxu0 %v4831
    %4989 = vmatpush1.msra.mxu0 %v4830
    %4990 = vmatprep.subr.mxu0 %v4826
    %4991 = vmatpush1.msra.mxu0 %v4825
    %4992 = vmatprep.subr.mxu0 %v4821
    %4993 = vmatpush1.msra.mxu0 %v4820
    %4994 = vmatprep.subr.mxu0 %v4816
    %4995 = vmatpush1.msra.mxu0 %v4815
    %4996 = vmatprep.subr.mxu0 0.0
    %4997 = vmatpush2.msra.mxu0 0.0
    %4998 = vmatprep.subr.mxu0 0.0
    %4999 = vmatpush2.msra.mxu0 0.0
    %5000 = vmatprep.subr.mxu0 0.0
    %5001 = vmatpush2.msra.mxu0 0.0
    %5002 = vmatprep.subr.mxu0 0.0
    %5003 = vmatpush2.msra.mxu0 0.0
    %5004 = vmatprep.subr.mxu0 0.0
    %5005 = vmatpush2.msra.mxu0 0.0
    %5006 = vmatprep.subr.mxu0 0.0
    %5007 = vmatpush2.msra.mxu0 0.0
    %5008 = vmatprep.subr.mxu0 0.0
    %5009 = vmatpush2.msra.mxu0 0.0
    %5010 = vmatprep.subr.mxu0 0.0
    %5011 = vmatpush2.msra.mxu0 0.0
    %5012 = vmatprep.subr.mxu0 0.0
    %5013 = vmatpush2.msra.mxu0 0.0
    %5014 = vmatprep.subr.mxu0 0.0
    %5015 = vmatpush2.msra.mxu0 0.0
    %5016 = vmatprep.subr.mxu0 0.0
    %5017 = vmatpush2.msra.mxu0 0.0
    %5018 = vmatprep.subr.mxu0 0.0
    %5019 = vmatpush2.msra.mxu0 0.0
    %5020 = vmatprep.subr.mxu0 0.0
    %5021 = vmatpush2.msra.mxu0 0.0
    %5022 = vmatprep.subr.mxu0 0.0
    %5023 = vmatpush2.msra.mxu0 0.0
    %5024 = vmatprep.subr.mxu0 0.0
    %5025 = vmatpush2.msra.mxu0 0.0
    %5026 = vmatprep.subr.mxu0 0.0
    %5027 = vmatpush2.msra.mxu0 0.0
    %5028 = vmatprep.mubr.f32.mxu0 0.0
    %5029 = vmatmul.mubr.f32.gmra.mxu0 %v4812
    %v5030 = vpop.f32.mrf.mxu0
    %v5031 = vadd.f32 0.0, %v5030
    %v5032 = vpop.f32.mrf.mxu0
    %v5033 = vadd.f32 0.0, %v5032
    %5034 = vdwg.mxu0
    %5035 = vmatprep.subr.mxu0 0.0
    %5036 = vmatpush1.msra.mxu0 %v4892
    %5037 = vmatprep.subr.mxu0 0.0
    %5038 = vmatpush1.msra.mxu0 %v4887
    %5039 = vmatprep.subr.mxu0 0.0
    %5040 = vmatpush1.msra.mxu0 %v4882
    %5041 = vmatprep.subr.mxu0 0.0
    %5042 = vmatpush1.msra.mxu0 %v4877
    %5043 = vmatprep.subr.mxu0 0.0
    %5044 = vmatpush1.msra.mxu0 %v4872
    %5045 = vmatprep.subr.mxu0 0.0
    %5046 = vmatpush1.msra.mxu0 %v4867
    %5047 = vmatprep.subr.mxu0 0.0
    %5048 = vmatpush1.msra.mxu0 %v4862
    %5049 = vmatprep.subr.mxu0 0.0
    %5050 = vmatpush1.msra.mxu0 %v4857
    %5051 = vmatprep.subr.mxu0 0.0
    %5052 = vmatpush1.msra.mxu0 %v4852
    %5053 = vmatprep.subr.mxu0 0.0
    %5054 = vmatpush1.msra.mxu0 %v4847
    %5055 = vmatprep.subr.mxu0 0.0
    %5056 = vmatpush1.msra.mxu0 %v4842
    %5057 = vmatprep.subr.mxu0 0.0
    %5058 = vmatpush1.msra.mxu0 %v4837
    %5059 = vmatprep.subr.mxu0 0.0
    %5060 = vmatpush1.msra.mxu0 %v4832
    %5061 = vmatprep.subr.mxu0 0.0
    %5062 = vmatpush1.msra.mxu0 %v4827
    %5063 = vmatprep.subr.mxu0 0.0
    %5064 = vmatpush1.msra.mxu0 %v4822
    %5065 = vmatprep.subr.mxu0 0.0
    %5066 = vmatpush1.msra.mxu0 %v4817
    %5067 = vmatprep.subr.mxu0 0.0
    %5068 = vmatpush2.msra.mxu0 0.0
    %5069 = vmatprep.subr.mxu0 0.0
    %5070 = vmatpush2.msra.mxu0 0.0
    %5071 = vmatprep.subr.mxu0 0.0
    %5072 = vmatpush2.msra.mxu0 0.0
    %5073 = vmatprep.subr.mxu0 0.0
    %5074 = vmatpush2.msra.mxu0 0.0
    %5075 = vmatprep.subr.mxu0 0.0
    %5076 = vmatpush2.msra.mxu0 0.0
    %5077 = vmatprep.subr.mxu0 0.0
    %5078 = vmatpush2.msra.mxu0 0.0
    %5079 = vmatprep.subr.mxu0 0.0
    %5080 = vmatpush2.msra.mxu0 0.0
    %5081 = vmatprep.subr.mxu0 0.0
    %5082 = vmatpush2.msra.mxu0 0.0
    %5083 = vmatprep.subr.mxu0 0.0
    %5084 = vmatpush2.msra.mxu0 0.0
    %5085 = vmatprep.subr.mxu0 0.0
    %5086 = vmatpush2.msra.mxu0 0.0
    %5087 = vmatprep.subr.mxu0 0.0
    %5088 = vmatpush2.msra.mxu0 0.0
    %5089 = vmatprep.subr.mxu0 0.0
    %5090 = vmatpush2.msra.mxu0 0.0
    %5091 = vmatprep.subr.mxu0 0.0
    %5092 = vmatpush2.msra.mxu0 0.0
    %5093 = vmatprep.subr.mxu0 0.0
    %5094 = vmatpush2.msra.mxu0 0.0
    %5095 = vmatprep.subr.mxu0 0.0
    %5096 = vmatpush2.msra.mxu0 0.0
    %5097 = vmatprep.subr.mxu0 0.0
    %5098 = vmatpush2.msra.mxu0 0.0
    %5099 = vmatprep.mubr.f32.mxu0 0.0
    %5100 = vmatmul.mubr.f32.gmra.mxu0 %v4812
    %v5101 = vpop.f32.mrf.mxu0
    %v5102 = vadd.f32 0.0, %v5101
    %v5103 = vpop.f32.mrf.mxu0
    %5104 = vdwg.mxu0
    %v5105 = vmul.f32 %v4960, %v2354
    %v5106 = vmul.f32 %v4962, %v2354
    %v5107 = vmul.f32 %v5031, %v2354
    %v5108 = vmul.f32 %v5033, %v2354
    %v5109 = vmul.f32 %v5102, %v2354
    %v5110 = vmul.f32 %v4797, %v4811
    %5111 = vmatprep.subr.mxu0 %v4889
    %5112 = vmatpush1.msra.mxu0 %v4888
    %5113 = vmatprep.subr.mxu0 %v4884
    %5114 = vmatpush1.msra.mxu0 %v4883
    %5115 = vmatprep.subr.mxu0 %v4879
    %5116 = vmatpush1.msra.mxu0 %v4878
    %5117 = vmatprep.subr.mxu0 %v4874
    %5118 = vmatpush1.msra.mxu0 %v4873
    %5119 = vmatprep.subr.mxu0 %v4869
    %5120 = vmatpush1.msra.mxu0 %v4868
    %5121 = vmatprep.subr.mxu0 %v4864
    %5122 = vmatpush1.msra.mxu0 %v4863
    %5123 = vmatprep.subr.mxu0 %v4859
    %5124 = vmatpush1.msra.mxu0 %v4858
    %5125 = vmatprep.subr.mxu0 %v4854
    %5126 = vmatpush1.msra.mxu0 %v4853
    %5127 = vmatprep.subr.mxu0 %v4849
    %5128 = vmatpush1.msra.mxu0 %v4848
    %5129 = vmatprep.subr.mxu0 %v4844
    %5130 = vmatpush1.msra.mxu0 %v4843
    %5131 = vmatprep.subr.mxu0 %v4839
    %5132 = vmatpush1.msra.mxu0 %v4838
    %5133 = vmatprep.subr.mxu0 %v4834
    %5134 = vmatpush1.msra.mxu0 %v4833
    %5135 = vmatprep.subr.mxu0 %v4829
    %5136 = vmatpush1.msra.mxu0 %v4828
    %5137 = vmatprep.subr.mxu0 %v4824
    %5138 = vmatpush1.msra.mxu0 %v4823
    %5139 = vmatprep.subr.mxu0 %v4819
    %5140 = vmatpush1.msra.mxu0 %v4818
    %5141 = vmatprep.subr.mxu0 %v4814
    %5142 = vmatpush1.msra.mxu0 %v4813
    %5143 = vmatprep.subr.mxu0 0.0
    %5144 = vmatpush2.msra.mxu0 0.0
    %5145 = vmatprep.subr.mxu0 0.0
    %5146 = vmatpush2.msra.mxu0 0.0
    %5147 = vmatprep.subr.mxu0 0.0
    %5148 = vmatpush2.msra.mxu0 0.0
    %5149 = vmatprep.subr.mxu0 0.0
    %5150 = vmatpush2.msra.mxu0 0.0
    %5151 = vmatprep.subr.mxu0 0.0
    %5152 = vmatpush2.msra.mxu0 0.0
    %5153 = vmatprep.subr.mxu0 0.0
    %5154 = vmatpush2.msra.mxu0 0.0
    %5155 = vmatprep.subr.mxu0 0.0
    %5156 = vmatpush2.msra.mxu0 0.0
    %5157 = vmatprep.subr.mxu0 0.0
    %5158 = vmatpush2.msra.mxu0 0.0
    %5159 = vmatprep.subr.mxu0 0.0
    %5160 = vmatpush2.msra.mxu0 0.0
    %5161 = vmatprep.subr.mxu0 0.0
    %5162 = vmatpush2.msra.mxu0 0.0
    %5163 = vmatprep.subr.mxu0 0.0
    %5164 = vmatpush2.msra.mxu0 0.0
    %5165 = vmatprep.subr.mxu0 0.0
    %5166 = vmatpush2.msra.mxu0 0.0
    %5167 = vmatprep.subr.mxu0 0.0
    %5168 = vmatpush2.msra.mxu0 0.0
    %5169 = vmatprep.subr.mxu0 0.0
    %5170 = vmatpush2.msra.mxu0 0.0
    %5171 = vmatprep.subr.mxu0 0.0
    %5172 = vmatpush2.msra.mxu0 0.0
    %5173 = vmatprep.subr.mxu0 0.0
    %5174 = vmatpush2.msra.mxu0 0.0
    %5175 = vmatprep.mubr.f32.mxu0 0.0
    %5176 = vmatmul.mubr.f32.gmra.mxu0 %v5110
    %v5177 = vpop.f32.mrf.mxu0
    %v5178 = vadd.f32 0.0, %v5177
    %v5179 = vpop.f32.mrf.mxu0
    %v5180 = vadd.f32 0.0, %v5179
    %5181 = vdwg.mxu0
    %5182 = vmatprep.subr.mxu0 %v4891
    %5183 = vmatpush1.msra.mxu0 %v4890
    %5184 = vmatprep.subr.mxu0 %v4886
    %5185 = vmatpush1.msra.mxu0 %v4885
    %5186 = vmatprep.subr.mxu0 %v4881
    %5187 = vmatpush1.msra.mxu0 %v4880
    %5188 = vmatprep.subr.mxu0 %v4876
    %5189 = vmatpush1.msra.mxu0 %v4875
    %5190 = vmatprep.subr.mxu0 %v4871
    %5191 = vmatpush1.msra.mxu0 %v4870
    %5192 = vmatprep.subr.mxu0 %v4866
    %5193 = vmatpush1.msra.mxu0 %v4865
    %5194 = vmatprep.subr.mxu0 %v4861
    %5195 = vmatpush1.msra.mxu0 %v4860
    %5196 = vmatprep.subr.mxu0 %v4856
    %5197 = vmatpush1.msra.mxu0 %v4855
    %5198 = vmatprep.subr.mxu0 %v4851
    %5199 = vmatpush1.msra.mxu0 %v4850
    %5200 = vmatprep.subr.mxu0 %v4846
    %5201 = vmatpush1.msra.mxu0 %v4845
    %5202 = vmatprep.subr.mxu0 %v4841
    %5203 = vmatpush1.msra.mxu0 %v4840
    %5204 = vmatprep.subr.mxu0 %v4836
    %5205 = vmatpush1.msra.mxu0 %v4835
    %5206 = vmatprep.subr.mxu0 %v4831
    %5207 = vmatpush1.msra.mxu0 %v4830
    %5208 = vmatprep.subr.mxu0 %v4826
    %5209 = vmatpush1.msra.mxu0 %v4825
    %5210 = vmatprep.subr.mxu0 %v4821
    %5211 = vmatpush1.msra.mxu0 %v4820
    %5212 = vmatprep.subr.mxu0 %v4816
    %5213 = vmatpush1.msra.mxu0 %v4815
    %5214 = vmatprep.subr.mxu0 0.0
    %5215 = vmatpush2.msra.mxu0 0.0
    %5216 = vmatprep.subr.mxu0 0.0
    %5217 = vmatpush2.msra.mxu0 0.0
    %5218 = vmatprep.subr.mxu0 0.0
    %5219 = vmatpush2.msra.mxu0 0.0
    %5220 = vmatprep.subr.mxu0 0.0
    %5221 = vmatpush2.msra.mxu0 0.0
    %5222 = vmatprep.subr.mxu0 0.0
    %5223 = vmatpush2.msra.mxu0 0.0
    %5224 = vmatprep.subr.mxu0 0.0
    %5225 = vmatpush2.msra.mxu0 0.0
    %5226 = vmatprep.subr.mxu0 0.0
    %5227 = vmatpush2.msra.mxu0 0.0
    %5228 = vmatprep.subr.mxu0 0.0
    %5229 = vmatpush2.msra.mxu0 0.0
    %5230 = vmatprep.subr.mxu0 0.0
    %5231 = vmatpush2.msra.mxu0 0.0
    %5232 = vmatprep.subr.mxu0 0.0
    %5233 = vmatpush2.msra.mxu0 0.0
    %5234 = vmatprep.subr.mxu0 0.0
    %5235 = vmatpush2.msra.mxu0 0.0
    %5236 = vmatprep.subr.mxu0 0.0
    %5237 = vmatpush2.msra.mxu0 0.0
    %5238 = vmatprep.subr.mxu0 0.0
    %5239 = vmatpush2.msra.mxu0 0.0
    %5240 = vmatprep.subr.mxu0 0.0
    %5241 = vmatpush2.msra.mxu0 0.0
    %5242 = vmatprep.subr.mxu0 0.0
    %5243 = vmatpush2.msra.mxu0 0.0
    %5244 = vmatprep.subr.mxu0 0.0
    %5245 = vmatpush2.msra.mxu0 0.0
    %5246 = vmatprep.mubr.f32.mxu0 0.0
    %5247 = vmatmul.mubr.f32.gmra.mxu0 %v5110
    %v5248 = vpop.f32.mrf.mxu0
    %v5249 = vadd.f32 0.0, %v5248
    %v5250 = vpop.f32.mrf.mxu0
    %v5251 = vadd.f32 0.0, %v5250
    %5252 = vdwg.mxu0
    %5253 = vmatprep.subr.mxu0 0.0
    %5254 = vmatpush1.msra.mxu0 %v4892
    %5255 = vmatprep.subr.mxu0 0.0
    %5256 = vmatpush1.msra.mxu0 %v4887
    %5257 = vmatprep.subr.mxu0 0.0
    %5258 = vmatpush1.msra.mxu0 %v4882
    %5259 = vmatprep.subr.mxu0 0.0
    %5260 = vmatpush1.msra.mxu0 %v4877
    %5261 = vmatprep.subr.mxu0 0.0
    %5262 = vmatpush1.msra.mxu0 %v4872
    %5263 = vmatprep.subr.mxu0 0.0
    %5264 = vmatpush1.msra.mxu0 %v4867
    %5265 = vmatprep.subr.mxu0 0.0
    %5266 = vmatpush1.msra.mxu0 %v4862
    %5267 = vmatprep.subr.mxu0 0.0
    %5268 = vmatpush1.msra.mxu0 %v4857
    %5269 = vmatprep.subr.mxu0 0.0
    %5270 = vmatpush1.msra.mxu0 %v4852
    %5271 = vmatprep.subr.mxu0 0.0
    %5272 = vmatpush1.msra.mxu0 %v4847
    %5273 = vmatprep.subr.mxu0 0.0
    %5274 = vmatpush1.msra.mxu0 %v4842
    %5275 = vmatprep.subr.mxu0 0.0
    %5276 = vmatpush1.msra.mxu0 %v4837
    %5277 = vmatprep.subr.mxu0 0.0
    %5278 = vmatpush1.msra.mxu0 %v4832
    %5279 = vmatprep.subr.mxu0 0.0
    %5280 = vmatpush1.msra.mxu0 %v4827
    %5281 = vmatprep.subr.mxu0 0.0
    %5282 = vmatpush1.msra.mxu0 %v4822
    %5283 = vmatprep.subr.mxu0 0.0
    %5284 = vmatpush1.msra.mxu0 %v4817
    %5285 = vmatprep.subr.mxu0 0.0
    %5286 = vmatpush2.msra.mxu0 0.0
    %5287 = vmatprep.subr.mxu0 0.0
    %5288 = vmatpush2.msra.mxu0 0.0
    %5289 = vmatprep.subr.mxu0 0.0
    %5290 = vmatpush2.msra.mxu0 0.0
    %5291 = vmatprep.subr.mxu0 0.0
    %5292 = vmatpush2.msra.mxu0 0.0
    %5293 = vmatprep.subr.mxu0 0.0
    %5294 = vmatpush2.msra.mxu0 0.0
    %5295 = vmatprep.subr.mxu0 0.0
    %5296 = vmatpush2.msra.mxu0 0.0
    %5297 = vmatprep.subr.mxu0 0.0
    %5298 = vmatpush2.msra.mxu0 0.0
    %5299 = vmatprep.subr.mxu0 0.0
    %5300 = vmatpush2.msra.mxu0 0.0
    %5301 = vmatprep.subr.mxu0 0.0
    %5302 = vmatpush2.msra.mxu0 0.0
    %5303 = vmatprep.subr.mxu0 0.0
    %5304 = vmatpush2.msra.mxu0 0.0
    %5305 = vmatprep.subr.mxu0 0.0
    %5306 = vmatpush2.msra.mxu0 0.0
    %5307 = vmatprep.subr.mxu0 0.0
    %5308 = vmatpush2.msra.mxu0 0.0
    %5309 = vmatprep.subr.mxu0 0.0
    %5310 = vmatpush2.msra.mxu0 0.0
    %5311 = vmatprep.subr.mxu0 0.0
    %5312 = vmatpush2.msra.mxu0 0.0
    %5313 = vmatprep.subr.mxu0 0.0
    %5314 = vmatpush2.msra.mxu0 0.0
    %5315 = vmatprep.subr.mxu0 0.0
    %5316 = vmatpush2.msra.mxu0 0.0
    %5317 = vmatprep.mubr.f32.mxu0 0.0
    %5318 = vmatmul.mubr.f32.gmra.mxu0 %v5110
    %v5319 = vpop.f32.mrf.mxu0
    %v5320 = vadd.f32 0.0, %v5319
    %v5321 = vpop.f32.mrf.mxu0
    %5322 = vdwg.mxu0
    %v5323 = vmul.f32 %v5178, %v2569
    %v5324 = vmul.f32 %v5180, %v2569
    %v5325 = vmul.f32 %v5249, %v2569
    %v5326 = vmul.f32 %v5251, %v2569
    %v5327 = vmul.f32 %v5320, %v2569
    %v5328 = vadd.f32 %v5105, %v5323
    %v5329 = vadd.f32 %v5106, %v5324
    %v5330 = vadd.f32 %v5107, %v5325
    %v5331 = vadd.f32 %v5108, %v5326
    %v5332 = vadd.f32 %v5109, %v5327
    %v5333 = vmul.f32 %v4800, %v4811
    %5334 = vmatprep.subr.mxu0 %v4889
    %5335 = vmatpush1.msra.mxu0 %v4888
    %5336 = vmatprep.subr.mxu0 %v4884
    %5337 = vmatpush1.msra.mxu0 %v4883
    %5338 = vmatprep.subr.mxu0 %v4879
    %5339 = vmatpush1.msra.mxu0 %v4878
    %5340 = vmatprep.subr.mxu0 %v4874
    %5341 = vmatpush1.msra.mxu0 %v4873
    %5342 = vmatprep.subr.mxu0 %v4869
    %5343 = vmatpush1.msra.mxu0 %v4868
    %5344 = vmatprep.subr.mxu0 %v4864
    %5345 = vmatpush1.msra.mxu0 %v4863
    %5346 = vmatprep.subr.mxu0 %v4859
    %5347 = vmatpush1.msra.mxu0 %v4858
    %5348 = vmatprep.subr.mxu0 %v4854
    %5349 = vmatpush1.msra.mxu0 %v4853
    %5350 = vmatprep.subr.mxu0 %v4849
    %5351 = vmatpush1.msra.mxu0 %v4848
    %5352 = vmatprep.subr.mxu0 %v4844
    %5353 = vmatpush1.msra.mxu0 %v4843
    %5354 = vmatprep.subr.mxu0 %v4839
    %5355 = vmatpush1.msra.mxu0 %v4838
    %5356 = vmatprep.subr.mxu0 %v4834
    %5357 = vmatpush1.msra.mxu0 %v4833
    %5358 = vmatprep.subr.mxu0 %v4829
    %5359 = vmatpush1.msra.mxu0 %v4828
    %5360 = vmatprep.subr.mxu0 %v4824
    %5361 = vmatpush1.msra.mxu0 %v4823
    %5362 = vmatprep.subr.mxu0 %v4819
    %5363 = vmatpush1.msra.mxu0 %v4818
    %5364 = vmatprep.subr.mxu0 %v4814
    %5365 = vmatpush1.msra.mxu0 %v4813
    %5366 = vmatprep.subr.mxu0 0.0
    %5367 = vmatpush2.msra.mxu0 0.0
    %5368 = vmatprep.subr.mxu0 0.0
    %5369 = vmatpush2.msra.mxu0 0.0
    %5370 = vmatprep.subr.mxu0 0.0
    %5371 = vmatpush2.msra.mxu0 0.0
    %5372 = vmatprep.subr.mxu0 0.0
    %5373 = vmatpush2.msra.mxu0 0.0
    %5374 = vmatprep.subr.mxu0 0.0
    %5375 = vmatpush2.msra.mxu0 0.0
    %5376 = vmatprep.subr.mxu0 0.0
    %5377 = vmatpush2.msra.mxu0 0.0
    %5378 = vmatprep.subr.mxu0 0.0
    %5379 = vmatpush2.msra.mxu0 0.0
    %5380 = vmatprep.subr.mxu0 0.0
    %5381 = vmatpush2.msra.mxu0 0.0
    %5382 = vmatprep.subr.mxu0 0.0
    %5383 = vmatpush2.msra.mxu0 0.0
    %5384 = vmatprep.subr.mxu0 0.0
    %5385 = vmatpush2.msra.mxu0 0.0
    %5386 = vmatprep.subr.mxu0 0.0
    %5387 = vmatpush2.msra.mxu0 0.0
    %5388 = vmatprep.subr.mxu0 0.0
    %5389 = vmatpush2.msra.mxu0 0.0
    %5390 = vmatprep.subr.mxu0 0.0
    %5391 = vmatpush2.msra.mxu0 0.0
    %5392 = vmatprep.subr.mxu0 0.0
    %5393 = vmatpush2.msra.mxu0 0.0
    %5394 = vmatprep.subr.mxu0 0.0
    %5395 = vmatpush2.msra.mxu0 0.0
    %5396 = vmatprep.subr.mxu0 0.0
    %5397 = vmatpush2.msra.mxu0 0.0
    %5398 = vmatprep.mubr.f32.mxu0 0.0
    %5399 = vmatmul.mubr.f32.gmra.mxu0 %v5333
    %v5400 = vpop.f32.mrf.mxu0
    %v5401 = vadd.f32 0.0, %v5400
    %v5402 = vpop.f32.mrf.mxu0
    %v5403 = vadd.f32 0.0, %v5402
    %5404 = vdwg.mxu0
    %5405 = vmatprep.subr.mxu0 %v4891
    %5406 = vmatpush1.msra.mxu0 %v4890
    %5407 = vmatprep.subr.mxu0 %v4886
    %5408 = vmatpush1.msra.mxu0 %v4885
    %5409 = vmatprep.subr.mxu0 %v4881
    %5410 = vmatpush1.msra.mxu0 %v4880
    %5411 = vmatprep.subr.mxu0 %v4876
    %5412 = vmatpush1.msra.mxu0 %v4875
    %5413 = vmatprep.subr.mxu0 %v4871
    %5414 = vmatpush1.msra.mxu0 %v4870
    %5415 = vmatprep.subr.mxu0 %v4866
    %5416 = vmatpush1.msra.mxu0 %v4865
    %5417 = vmatprep.subr.mxu0 %v4861
    %5418 = vmatpush1.msra.mxu0 %v4860
    %5419 = vmatprep.subr.mxu0 %v4856
    %5420 = vmatpush1.msra.mxu0 %v4855
    %5421 = vmatprep.subr.mxu0 %v4851
    %5422 = vmatpush1.msra.mxu0 %v4850
    %5423 = vmatprep.subr.mxu0 %v4846
    %5424 = vmatpush1.msra.mxu0 %v4845
    %5425 = vmatprep.subr.mxu0 %v4841
    %5426 = vmatpush1.msra.mxu0 %v4840
    %5427 = vmatprep.subr.mxu0 %v4836
    %5428 = vmatpush1.msra.mxu0 %v4835
    %5429 = vmatprep.subr.mxu0 %v4831
    %5430 = vmatpush1.msra.mxu0 %v4830
    %5431 = vmatprep.subr.mxu0 %v4826
    %5432 = vmatpush1.msra.mxu0 %v4825
    %5433 = vmatprep.subr.mxu0 %v4821
    %5434 = vmatpush1.msra.mxu0 %v4820
    %5435 = vmatprep.subr.mxu0 %v4816
    %5436 = vmatpush1.msra.mxu0 %v4815
    %5437 = vmatprep.subr.mxu0 0.0
    %5438 = vmatpush2.msra.mxu0 0.0
    %5439 = vmatprep.subr.mxu0 0.0
    %5440 = vmatpush2.msra.mxu0 0.0
    %5441 = vmatprep.subr.mxu0 0.0
    %5442 = vmatpush2.msra.mxu0 0.0
    %5443 = vmatprep.subr.mxu0 0.0
    %5444 = vmatpush2.msra.mxu0 0.0
    %5445 = vmatprep.subr.mxu0 0.0
    %5446 = vmatpush2.msra.mxu0 0.0
    %5447 = vmatprep.subr.mxu0 0.0
    %5448 = vmatpush2.msra.mxu0 0.0
    %5449 = vmatprep.subr.mxu0 0.0
    %5450 = vmatpush2.msra.mxu0 0.0
    %5451 = vmatprep.subr.mxu0 0.0
    %5452 = vmatpush2.msra.mxu0 0.0
    %5453 = vmatprep.subr.mxu0 0.0
    %5454 = vmatpush2.msra.mxu0 0.0
    %5455 = vmatprep.subr.mxu0 0.0
    %5456 = vmatpush2.msra.mxu0 0.0
    %5457 = vmatprep.subr.mxu0 0.0
    %5458 = vmatpush2.msra.mxu0 0.0
    %5459 = vmatprep.subr.mxu0 0.0
    %5460 = vmatpush2.msra.mxu0 0.0
    %5461 = vmatprep.subr.mxu0 0.0
    %5462 = vmatpush2.msra.mxu0 0.0
    %5463 = vmatprep.subr.mxu0 0.0
    %5464 = vmatpush2.msra.mxu0 0.0
    %5465 = vmatprep.subr.mxu0 0.0
    %5466 = vmatpush2.msra.mxu0 0.0
    %5467 = vmatprep.subr.mxu0 0.0
    %5468 = vmatpush2.msra.mxu0 0.0
    %5469 = vmatprep.mubr.f32.mxu0 0.0
    %5470 = vmatmul.mubr.f32.gmra.mxu0 %v5333
    %v5471 = vpop.f32.mrf.mxu0
    %v5472 = vadd.f32 0.0, %v5471
    %v5473 = vpop.f32.mrf.mxu0
    %v5474 = vadd.f32 0.0, %v5473
    %5475 = vdwg.mxu0
    %5476 = vmatprep.subr.mxu0 0.0
    %5477 = vmatpush1.msra.mxu0 %v4892
    %5478 = vmatprep.subr.mxu0 0.0
    %5479 = vmatpush1.msra.mxu0 %v4887
    %5480 = vmatprep.subr.mxu0 0.0
    %5481 = vmatpush1.msra.mxu0 %v4882
    %5482 = vmatprep.subr.mxu0 0.0
    %5483 = vmatpush1.msra.mxu0 %v4877
    %5484 = vmatprep.subr.mxu0 0.0
    %5485 = vmatpush1.msra.mxu0 %v4872
    %5486 = vmatprep.subr.mxu0 0.0
    %5487 = vmatpush1.msra.mxu0 %v4867
    %5488 = vmatprep.subr.mxu0 0.0
    %5489 = vmatpush1.msra.mxu0 %v4862
    %5490 = vmatprep.subr.mxu0 0.0
    %5491 = vmatpush1.msra.mxu0 %v4857
    %5492 = vmatprep.subr.mxu0 0.0
    %5493 = vmatpush1.msra.mxu0 %v4852
    %5494 = vmatprep.subr.mxu0 0.0
    %5495 = vmatpush1.msra.mxu0 %v4847
    %5496 = vmatprep.subr.mxu0 0.0
    %5497 = vmatpush1.msra.mxu0 %v4842
    %5498 = vmatprep.subr.mxu0 0.0
    %5499 = vmatpush1.msra.mxu0 %v4837
    %5500 = vmatprep.subr.mxu0 0.0
    %5501 = vmatpush1.msra.mxu0 %v4832
    %5502 = vmatprep.subr.mxu0 0.0
    %5503 = vmatpush1.msra.mxu0 %v4827
    %5504 = vmatprep.subr.mxu0 0.0
    %5505 = vmatpush1.msra.mxu0 %v4822
    %5506 = vmatprep.subr.mxu0 0.0
    %5507 = vmatpush1.msra.mxu0 %v4817
    %5508 = vmatprep.subr.mxu0 0.0
    %5509 = vmatpush2.msra.mxu0 0.0
    %5510 = vmatprep.subr.mxu0 0.0
    %5511 = vmatpush2.msra.mxu0 0.0
    %5512 = vmatprep.subr.mxu0 0.0
    %5513 = vmatpush2.msra.mxu0 0.0
    %5514 = vmatprep.subr.mxu0 0.0
    %5515 = vmatpush2.msra.mxu0 0.0
    %5516 = vmatprep.subr.mxu0 0.0
    %5517 = vmatpush2.msra.mxu0 0.0
    %5518 = vmatprep.subr.mxu0 0.0
    %5519 = vmatpush2.msra.mxu0 0.0
    %5520 = vmatprep.subr.mxu0 0.0
    %5521 = vmatpush2.msra.mxu0 0.0
    %5522 = vmatprep.subr.mxu0 0.0
    %5523 = vmatpush2.msra.mxu0 0.0
    %5524 = vmatprep.subr.mxu0 0.0
    %5525 = vmatpush2.msra.mxu0 0.0
    %5526 = vmatprep.subr.mxu0 0.0
    %5527 = vmatpush2.msra.mxu0 0.0
    %5528 = vmatprep.subr.mxu0 0.0
    %5529 = vmatpush2.msra.mxu0 0.0
    %5530 = vmatprep.subr.mxu0 0.0
    %5531 = vmatpush2.msra.mxu0 0.0
    %5532 = vmatprep.subr.mxu0 0.0
    %5533 = vmatpush2.msra.mxu0 0.0
    %5534 = vmatprep.subr.mxu0 0.0
    %5535 = vmatpush2.msra.mxu0 0.0
    %5536 = vmatprep.subr.mxu0 0.0
    %5537 = vmatpush2.msra.mxu0 0.0
    %5538 = vmatprep.subr.mxu0 0.0
    %5539 = vmatpush2.msra.mxu0 0.0
    %5540 = vmatprep.mubr.f32.mxu0 0.0
    %5541 = vmatmul.mubr.f32.gmra.mxu0 %v5333
    %v5542 = vpop.f32.mrf.mxu0
    %v5543 = vadd.f32 0.0, %v5542
    %v5544 = vpop.f32.mrf.mxu0
    %5545 = vdwg.mxu0
    %v5546 = vmul.f32 %v5401, %v2993
    %v5547 = vmul.f32 %v5403, %v2993
    %v5548 = vmul.f32 %v5472, %v2993
    %v5549 = vmul.f32 %v5474, %v2993
    %v5550 = vmul.f32 %v5543, %v2993
    %v5551 = vadd.f32 %v5328, %v5546
    %v5552 = vadd.f32 %v5329, %v5547
    %v5553 = vadd.f32 %v5330, %v5548
    %v5554 = vadd.f32 %v5331, %v5549
    %v5555 = vadd.f32 %v5332, %v5550
    %v5556 = vmul.f32 %v4803, %v4811
    %5557 = vmatprep.subr.mxu0 %v4889
    %5558 = vmatpush1.msra.mxu0 %v4888
    %5559 = vmatprep.subr.mxu0 %v4884
    %5560 = vmatpush1.msra.mxu0 %v4883
    %5561 = vmatprep.subr.mxu0 %v4879
    %5562 = vmatpush1.msra.mxu0 %v4878
    %5563 = vmatprep.subr.mxu0 %v4874
    %5564 = vmatpush1.msra.mxu0 %v4873
    %5565 = vmatprep.subr.mxu0 %v4869
    %5566 = vmatpush1.msra.mxu0 %v4868
    %5567 = vmatprep.subr.mxu0 %v4864
    %5568 = vmatpush1.msra.mxu0 %v4863
    %5569 = vmatprep.subr.mxu0 %v4859
    %5570 = vmatpush1.msra.mxu0 %v4858
    %5571 = vmatprep.subr.mxu0 %v4854
    %5572 = vmatpush1.msra.mxu0 %v4853
    %5573 = vmatprep.subr.mxu0 %v4849
    %5574 = vmatpush1.msra.mxu0 %v4848
    %5575 = vmatprep.subr.mxu0 %v4844
    %5576 = vmatpush1.msra.mxu0 %v4843
    %5577 = vmatprep.subr.mxu0 %v4839
    %5578 = vmatpush1.msra.mxu0 %v4838
    %5579 = vmatprep.subr.mxu0 %v4834
    %5580 = vmatpush1.msra.mxu0 %v4833
    %5581 = vmatprep.subr.mxu0 %v4829
    %5582 = vmatpush1.msra.mxu0 %v4828
    %5583 = vmatprep.subr.mxu0 %v4824
    %5584 = vmatpush1.msra.mxu0 %v4823
    %5585 = vmatprep.subr.mxu0 %v4819
    %5586 = vmatpush1.msra.mxu0 %v4818
    %5587 = vmatprep.subr.mxu0 %v4814
    %5588 = vmatpush1.msra.mxu0 %v4813
    %5589 = vmatprep.subr.mxu0 0.0
    %5590 = vmatpush2.msra.mxu0 0.0
    %5591 = vmatprep.subr.mxu0 0.0
    %5592 = vmatpush2.msra.mxu0 0.0
    %5593 = vmatprep.subr.mxu0 0.0
    %5594 = vmatpush2.msra.mxu0 0.0
    %5595 = vmatprep.subr.mxu0 0.0
    %5596 = vmatpush2.msra.mxu0 0.0
    %5597 = vmatprep.subr.mxu0 0.0
    %5598 = vmatpush2.msra.mxu0 0.0
    %5599 = vmatprep.subr.mxu0 0.0
    %5600 = vmatpush2.msra.mxu0 0.0
    %5601 = vmatprep.subr.mxu0 0.0
    %5602 = vmatpush2.msra.mxu0 0.0
    %5603 = vmatprep.subr.mxu0 0.0
    %5604 = vmatpush2.msra.mxu0 0.0
    %5605 = vmatprep.subr.mxu0 0.0
    %5606 = vmatpush2.msra.mxu0 0.0
    %5607 = vmatprep.subr.mxu0 0.0
    %5608 = vmatpush2.msra.mxu0 0.0
    %5609 = vmatprep.subr.mxu0 0.0
    %5610 = vmatpush2.msra.mxu0 0.0
    %5611 = vmatprep.subr.mxu0 0.0
    %5612 = vmatpush2.msra.mxu0 0.0
    %5613 = vmatprep.subr.mxu0 0.0
    %5614 = vmatpush2.msra.mxu0 0.0
    %5615 = vmatprep.subr.mxu0 0.0
    %5616 = vmatpush2.msra.mxu0 0.0
    %5617 = vmatprep.subr.mxu0 0.0
    %5618 = vmatpush2.msra.mxu0 0.0
    %5619 = vmatprep.subr.mxu0 0.0
    %5620 = vmatpush2.msra.mxu0 0.0
    %5621 = vmatprep.mubr.f32.mxu0 0.0
    %5622 = vmatmul.mubr.f32.gmra.mxu0 %v5556
    %v5623 = vpop.f32.mrf.mxu0
    %v5624 = vadd.f32 0.0, %v5623
    %v5625 = vpop.f32.mrf.mxu0
    %v5626 = vadd.f32 0.0, %v5625
    %5627 = vdwg.mxu0
    %5628 = vmatprep.subr.mxu0 %v4891
    %5629 = vmatpush1.msra.mxu0 %v4890
    %5630 = vmatprep.subr.mxu0 %v4886
    %5631 = vmatpush1.msra.mxu0 %v4885
    %5632 = vmatprep.subr.mxu0 %v4881
    %5633 = vmatpush1.msra.mxu0 %v4880
    %5634 = vmatprep.subr.mxu0 %v4876
    %5635 = vmatpush1.msra.mxu0 %v4875
    %5636 = vmatprep.subr.mxu0 %v4871
    %5637 = vmatpush1.msra.mxu0 %v4870
    %5638 = vmatprep.subr.mxu0 %v4866
    %5639 = vmatpush1.msra.mxu0 %v4865
    %5640 = vmatprep.subr.mxu0 %v4861
    %5641 = vmatpush1.msra.mxu0 %v4860
    %5642 = vmatprep.subr.mxu0 %v4856
    %5643 = vmatpush1.msra.mxu0 %v4855
    %5644 = vmatprep.subr.mxu0 %v4851
    %5645 = vmatpush1.msra.mxu0 %v4850
    %5646 = vmatprep.subr.mxu0 %v4846
    %5647 = vmatpush1.msra.mxu0 %v4845
    %5648 = vmatprep.subr.mxu0 %v4841
    %5649 = vmatpush1.msra.mxu0 %v4840
    %5650 = vmatprep.subr.mxu0 %v4836
    %5651 = vmatpush1.msra.mxu0 %v4835
    %5652 = vmatprep.subr.mxu0 %v4831
    %5653 = vmatpush1.msra.mxu0 %v4830
    %5654 = vmatprep.subr.mxu0 %v4826
    %5655 = vmatpush1.msra.mxu0 %v4825
    %5656 = vmatprep.subr.mxu0 %v4821
    %5657 = vmatpush1.msra.mxu0 %v4820
    %5658 = vmatprep.subr.mxu0 %v4816
    %5659 = vmatpush1.msra.mxu0 %v4815
    %5660 = vmatprep.subr.mxu0 0.0
    %5661 = vmatpush2.msra.mxu0 0.0
    %5662 = vmatprep.subr.mxu0 0.0
    %5663 = vmatpush2.msra.mxu0 0.0
    %5664 = vmatprep.subr.mxu0 0.0
    %5665 = vmatpush2.msra.mxu0 0.0
    %5666 = vmatprep.subr.mxu0 0.0
    %5667 = vmatpush2.msra.mxu0 0.0
    %5668 = vmatprep.subr.mxu0 0.0
    %5669 = vmatpush2.msra.mxu0 0.0
    %5670 = vmatprep.subr.mxu0 0.0
    %5671 = vmatpush2.msra.mxu0 0.0
    %5672 = vmatprep.subr.mxu0 0.0
    %5673 = vmatpush2.msra.mxu0 0.0
    %5674 = vmatprep.subr.mxu0 0.0
    %5675 = vmatpush2.msra.mxu0 0.0
    %5676 = vmatprep.subr.mxu0 0.0
    %5677 = vmatpush2.msra.mxu0 0.0
    %5678 = vmatprep.subr.mxu0 0.0
    %5679 = vmatpush2.msra.mxu0 0.0
    %5680 = vmatprep.subr.mxu0 0.0
    %5681 = vmatpush2.msra.mxu0 0.0
    %5682 = vmatprep.subr.mxu0 0.0
    %5683 = vmatpush2.msra.mxu0 0.0
    %5684 = vmatprep.subr.mxu0 0.0
    %5685 = vmatpush2.msra.mxu0 0.0
    %5686 = vmatprep.subr.mxu0 0.0
    %5687 = vmatpush2.msra.mxu0 0.0
    %5688 = vmatprep.subr.mxu0 0.0
    %5689 = vmatpush2.msra.mxu0 0.0
    %5690 = vmatprep.subr.mxu0 0.0
    %5691 = vmatpush2.msra.mxu0 0.0
    %5692 = vmatprep.mubr.f32.mxu0 0.0
    %5693 = vmatmul.mubr.f32.gmra.mxu0 %v5556
    %v5694 = vpop.f32.mrf.mxu0
    %v5695 = vadd.f32 0.0, %v5694
    %v5696 = vpop.f32.mrf.mxu0
    %v5697 = vadd.f32 0.0, %v5696
    %5698 = vdwg.mxu0
    %5699 = vmatprep.subr.mxu0 0.0
    %5700 = vmatpush1.msra.mxu0 %v4892
    %5701 = vmatprep.subr.mxu0 0.0
    %5702 = vmatpush1.msra.mxu0 %v4887
    %5703 = vmatprep.subr.mxu0 0.0
    %5704 = vmatpush1.msra.mxu0 %v4882
    %5705 = vmatprep.subr.mxu0 0.0
    %5706 = vmatpush1.msra.mxu0 %v4877
    %5707 = vmatprep.subr.mxu0 0.0
    %5708 = vmatpush1.msra.mxu0 %v4872
    %5709 = vmatprep.subr.mxu0 0.0
    %5710 = vmatpush1.msra.mxu0 %v4867
    %5711 = vmatprep.subr.mxu0 0.0
    %5712 = vmatpush1.msra.mxu0 %v4862
    %5713 = vmatprep.subr.mxu0 0.0
    %5714 = vmatpush1.msra.mxu0 %v4857
    %5715 = vmatprep.subr.mxu0 0.0
    %5716 = vmatpush1.msra.mxu0 %v4852
    %5717 = vmatprep.subr.mxu0 0.0
    %5718 = vmatpush1.msra.mxu0 %v4847
    %5719 = vmatprep.subr.mxu0 0.0
    %5720 = vmatpush1.msra.mxu0 %v4842
    %5721 = vmatprep.subr.mxu0 0.0
    %5722 = vmatpush1.msra.mxu0 %v4837
    %5723 = vmatprep.subr.mxu0 0.0
    %5724 = vmatpush1.msra.mxu0 %v4832
    %5725 = vmatprep.subr.mxu0 0.0
    %5726 = vmatpush1.msra.mxu0 %v4827
    %5727 = vmatprep.subr.mxu0 0.0
    %5728 = vmatpush1.msra.mxu0 %v4822
    %5729 = vmatprep.subr.mxu0 0.0
    %5730 = vmatpush1.msra.mxu0 %v4817
    %5731 = vmatprep.subr.mxu0 0.0
    %5732 = vmatpush2.msra.mxu0 0.0
    %5733 = vmatprep.subr.mxu0 0.0
    %5734 = vmatpush2.msra.mxu0 0.0
    %5735 = vmatprep.subr.mxu0 0.0
    %5736 = vmatpush2.msra.mxu0 0.0
    %5737 = vmatprep.subr.mxu0 0.0
    %5738 = vmatpush2.msra.mxu0 0.0
    %5739 = vmatprep.subr.mxu0 0.0
    %5740 = vmatpush2.msra.mxu0 0.0
    %5741 = vmatprep.subr.mxu0 0.0
    %5742 = vmatpush2.msra.mxu0 0.0
    %5743 = vmatprep.subr.mxu0 0.0
    %5744 = vmatpush2.msra.mxu0 0.0
    %5745 = vmatprep.subr.mxu0 0.0
    %5746 = vmatpush2.msra.mxu0 0.0
    %5747 = vmatprep.subr.mxu0 0.0
    %5748 = vmatpush2.msra.mxu0 0.0
    %5749 = vmatprep.subr.mxu0 0.0
    %5750 = vmatpush2.msra.mxu0 0.0
    %5751 = vmatprep.subr.mxu0 0.0
    %5752 = vmatpush2.msra.mxu0 0.0
    %5753 = vmatprep.subr.mxu0 0.0
    %5754 = vmatpush2.msra.mxu0 0.0
    %5755 = vmatprep.subr.mxu0 0.0
    %5756 = vmatpush2.msra.mxu0 0.0
    %5757 = vmatprep.subr.mxu0 0.0
    %5758 = vmatpush2.msra.mxu0 0.0
    %5759 = vmatprep.subr.mxu0 0.0
    %5760 = vmatpush2.msra.mxu0 0.0
    %5761 = vmatprep.subr.mxu0 0.0
    %5762 = vmatpush2.msra.mxu0 0.0
    %5763 = vmatprep.mubr.f32.mxu0 0.0
    %5764 = vmatmul.mubr.f32.gmra.mxu0 %v5556
    %v5765 = vpop.f32.mrf.mxu0
    %v5766 = vadd.f32 0.0, %v5765
    %v5767 = vpop.f32.mrf.mxu0
    %5768 = vdwg.mxu0
    %v5769 = vmul.f32 %v5624, %v3208
    %v5770 = vmul.f32 %v5626, %v3208
    %v5771 = vmul.f32 %v5695, %v3208
    %v5772 = vmul.f32 %v5697, %v3208
    %v5773 = vmul.f32 %v5766, %v3208
    %v5774 = vadd.f32 %v5551, %v5769
    %v5775 = vadd.f32 %v5552, %v5770
    %v5776 = vadd.f32 %v5553, %v5771
    %v5777 = vadd.f32 %v5554, %v5772
    %v5778 = vadd.f32 %v5555, %v5773
    %v5779 = vmul.f32 %v4806, %v4811
    %5780 = vmatprep.subr.mxu0 %v4889
    %5781 = vmatpush1.msra.mxu0 %v4888
    %5782 = vmatprep.subr.mxu0 %v4884
    %5783 = vmatpush1.msra.mxu0 %v4883
    %5784 = vmatprep.subr.mxu0 %v4879
    %5785 = vmatpush1.msra.mxu0 %v4878
    %5786 = vmatprep.subr.mxu0 %v4874
    %5787 = vmatpush1.msra.mxu0 %v4873
    %5788 = vmatprep.subr.mxu0 %v4869
    %5789 = vmatpush1.msra.mxu0 %v4868
    %5790 = vmatprep.subr.mxu0 %v4864
    %5791 = vmatpush1.msra.mxu0 %v4863
    %5792 = vmatprep.subr.mxu0 %v4859
    %5793 = vmatpush1.msra.mxu0 %v4858
    %5794 = vmatprep.subr.mxu0 %v4854
    %5795 = vmatpush1.msra.mxu0 %v4853
    %5796 = vmatprep.subr.mxu0 %v4849
    %5797 = vmatpush1.msra.mxu0 %v4848
    %5798 = vmatprep.subr.mxu0 %v4844
    %5799 = vmatpush1.msra.mxu0 %v4843
    %5800 = vmatprep.subr.mxu0 %v4839
    %5801 = vmatpush1.msra.mxu0 %v4838
    %5802 = vmatprep.subr.mxu0 %v4834
    %5803 = vmatpush1.msra.mxu0 %v4833
    %5804 = vmatprep.subr.mxu0 %v4829
    %5805 = vmatpush1.msra.mxu0 %v4828
    %5806 = vmatprep.subr.mxu0 %v4824
    %5807 = vmatpush1.msra.mxu0 %v4823
    %5808 = vmatprep.subr.mxu0 %v4819
    %5809 = vmatpush1.msra.mxu0 %v4818
    %5810 = vmatprep.subr.mxu0 %v4814
    %5811 = vmatpush1.msra.mxu0 %v4813
    %5812 = vmatprep.subr.mxu0 0.0
    %5813 = vmatpush2.msra.mxu0 0.0
    %5814 = vmatprep.subr.mxu0 0.0
    %5815 = vmatpush2.msra.mxu0 0.0
    %5816 = vmatprep.subr.mxu0 0.0
    %5817 = vmatpush2.msra.mxu0 0.0
    %5818 = vmatprep.subr.mxu0 0.0
    %5819 = vmatpush2.msra.mxu0 0.0
    %5820 = vmatprep.subr.mxu0 0.0
    %5821 = vmatpush2.msra.mxu0 0.0
    %5822 = vmatprep.subr.mxu0 0.0
    %5823 = vmatpush2.msra.mxu0 0.0
    %5824 = vmatprep.subr.mxu0 0.0
    %5825 = vmatpush2.msra.mxu0 0.0
    %5826 = vmatprep.subr.mxu0 0.0
    %5827 = vmatpush2.msra.mxu0 0.0
    %5828 = vmatprep.subr.mxu0 0.0
    %5829 = vmatpush2.msra.mxu0 0.0
    %5830 = vmatprep.subr.mxu0 0.0
    %5831 = vmatpush2.msra.mxu0 0.0
    %5832 = vmatprep.subr.mxu0 0.0
    %5833 = vmatpush2.msra.mxu0 0.0
    %5834 = vmatprep.subr.mxu0 0.0
    %5835 = vmatpush2.msra.mxu0 0.0
    %5836 = vmatprep.subr.mxu0 0.0
    %5837 = vmatpush2.msra.mxu0 0.0
    %5838 = vmatprep.subr.mxu0 0.0
    %5839 = vmatpush2.msra.mxu0 0.0
    %5840 = vmatprep.subr.mxu0 0.0
    %5841 = vmatpush2.msra.mxu0 0.0
    %5842 = vmatprep.subr.mxu0 0.0
    %5843 = vmatpush2.msra.mxu0 0.0
    %5844 = vmatprep.mubr.f32.mxu0 0.0
    %5845 = vmatmul.mubr.f32.gmra.mxu0 %v5779
    %v5846 = vpop.f32.mrf.mxu0
    %v5847 = vadd.f32 0.0, %v5846
    %v5848 = vpop.f32.mrf.mxu0
    %v5849 = vadd.f32 0.0, %v5848
    %5850 = vdwg.mxu0
    %5851 = vmatprep.subr.mxu0 %v4891
    %5852 = vmatpush1.msra.mxu0 %v4890
    %5853 = vmatprep.subr.mxu0 %v4886
    %5854 = vmatpush1.msra.mxu0 %v4885
    %5855 = vmatprep.subr.mxu0 %v4881
    %5856 = vmatpush1.msra.mxu0 %v4880
    %5857 = vmatprep.subr.mxu0 %v4876
    %5858 = vmatpush1.msra.mxu0 %v4875
    %5859 = vmatprep.subr.mxu0 %v4871
    %5860 = vmatpush1.msra.mxu0 %v4870
    %5861 = vmatprep.subr.mxu0 %v4866
    %5862 = vmatpush1.msra.mxu0 %v4865
    %5863 = vmatprep.subr.mxu0 %v4861
    %5864 = vmatpush1.msra.mxu0 %v4860
    %5865 = vmatprep.subr.mxu0 %v4856
    %5866 = vmatpush1.msra.mxu0 %v4855
    %5867 = vmatprep.subr.mxu0 %v4851
    %5868 = vmatpush1.msra.mxu0 %v4850
    %5869 = vmatprep.subr.mxu0 %v4846
    %5870 = vmatpush1.msra.mxu0 %v4845
    %5871 = vmatprep.subr.mxu0 %v4841
    %5872 = vmatpush1.msra.mxu0 %v4840
    %5873 = vmatprep.subr.mxu0 %v4836
    %5874 = vmatpush1.msra.mxu0 %v4835
    %5875 = vmatprep.subr.mxu0 %v4831
    %5876 = vmatpush1.msra.mxu0 %v4830
    %5877 = vmatprep.subr.mxu0 %v4826
    %5878 = vmatpush1.msra.mxu0 %v4825
    %5879 = vmatprep.subr.mxu0 %v4821
    %5880 = vmatpush1.msra.mxu0 %v4820
    %5881 = vmatprep.subr.mxu0 %v4816
    %5882 = vmatpush1.msra.mxu0 %v4815
    %5883 = vmatprep.subr.mxu0 0.0
    %5884 = vmatpush2.msra.mxu0 0.0
    %5885 = vmatprep.subr.mxu0 0.0
    %5886 = vmatpush2.msra.mxu0 0.0
    %5887 = vmatprep.subr.mxu0 0.0
    %5888 = vmatpush2.msra.mxu0 0.0
    %5889 = vmatprep.subr.mxu0 0.0
    %5890 = vmatpush2.msra.mxu0 0.0
    %5891 = vmatprep.subr.mxu0 0.0
    %5892 = vmatpush2.msra.mxu0 0.0
    %5893 = vmatprep.subr.mxu0 0.0
    %5894 = vmatpush2.msra.mxu0 0.0
    %5895 = vmatprep.subr.mxu0 0.0
    %5896 = vmatpush2.msra.mxu0 0.0
    %5897 = vmatprep.subr.mxu0 0.0
    %5898 = vmatpush2.msra.mxu0 0.0
    %5899 = vmatprep.subr.mxu0 0.0
    %5900 = vmatpush2.msra.mxu0 0.0
    %5901 = vmatprep.subr.mxu0 0.0
    %5902 = vmatpush2.msra.mxu0 0.0
    %5903 = vmatprep.subr.mxu0 0.0
    %5904 = vmatpush2.msra.mxu0 0.0
    %5905 = vmatprep.subr.mxu0 0.0
    %5906 = vmatpush2.msra.mxu0 0.0
    %5907 = vmatprep.subr.mxu0 0.0
    %5908 = vmatpush2.msra.mxu0 0.0
    %5909 = vmatprep.subr.mxu0 0.0
    %5910 = vmatpush2.msra.mxu0 0.0
    %5911 = vmatprep.subr.mxu0 0.0
    %5912 = vmatpush2.msra.mxu0 0.0
    %5913 = vmatprep.subr.mxu0 0.0
    %5914 = vmatpush2.msra.mxu0 0.0
    %5915 = vmatprep.mubr.f32.mxu0 0.0
    %5916 = vmatmul.mubr.f32.gmra.mxu0 %v5779
    %v5917 = vpop.f32.mrf.mxu0
    %v5918 = vadd.f32 0.0, %v5917
    %v5919 = vpop.f32.mrf.mxu0
    %v5920 = vadd.f32 0.0, %v5919
    %5921 = vdwg.mxu0
    %5922 = vmatprep.subr.mxu0 0.0
    %5923 = vmatpush1.msra.mxu0 %v4892
    %5924 = vmatprep.subr.mxu0 0.0
    %5925 = vmatpush1.msra.mxu0 %v4887
    %5926 = vmatprep.subr.mxu0 0.0
    %5927 = vmatpush1.msra.mxu0 %v4882
    %5928 = vmatprep.subr.mxu0 0.0
    %5929 = vmatpush1.msra.mxu0 %v4877
    %5930 = vmatprep.subr.mxu0 0.0
    %5931 = vmatpush1.msra.mxu0 %v4872
    %5932 = vmatprep.subr.mxu0 0.0
    %5933 = vmatpush1.msra.mxu0 %v4867
    %5934 = vmatprep.subr.mxu0 0.0
    %5935 = vmatpush1.msra.mxu0 %v4862
    %5936 = vmatprep.subr.mxu0 0.0
    %5937 = vmatpush1.msra.mxu0 %v4857
    %5938 = vmatprep.subr.mxu0 0.0
    %5939 = vmatpush1.msra.mxu0 %v4852
    %5940 = vmatprep.subr.mxu0 0.0
    %5941 = vmatpush1.msra.mxu0 %v4847
    %5942 = vmatprep.subr.mxu0 0.0
    %5943 = vmatpush1.msra.mxu0 %v4842
    %5944 = vmatprep.subr.mxu0 0.0
    %5945 = vmatpush1.msra.mxu0 %v4837
    %5946 = vmatprep.subr.mxu0 0.0
    %5947 = vmatpush1.msra.mxu0 %v4832
    %5948 = vmatprep.subr.mxu0 0.0
    %5949 = vmatpush1.msra.mxu0 %v4827
    %5950 = vmatprep.subr.mxu0 0.0
    %5951 = vmatpush1.msra.mxu0 %v4822
    %5952 = vmatprep.subr.mxu0 0.0
    %5953 = vmatpush1.msra.mxu0 %v4817
    %5954 = vmatprep.subr.mxu0 0.0
    %5955 = vmatpush2.msra.mxu0 0.0
    %5956 = vmatprep.subr.mxu0 0.0
    %5957 = vmatpush2.msra.mxu0 0.0
    %5958 = vmatprep.subr.mxu0 0.0
    %5959 = vmatpush2.msra.mxu0 0.0
    %5960 = vmatprep.subr.mxu0 0.0
    %5961 = vmatpush2.msra.mxu0 0.0
    %5962 = vmatprep.subr.mxu0 0.0
    %5963 = vmatpush2.msra.mxu0 0.0
    %5964 = vmatprep.subr.mxu0 0.0
    %5965 = vmatpush2.msra.mxu0 0.0
    %5966 = vmatprep.subr.mxu0 0.0
    %5967 = vmatpush2.msra.mxu0 0.0
    %5968 = vmatprep.subr.mxu0 0.0
    %5969 = vmatpush2.msra.mxu0 0.0
    %5970 = vmatprep.subr.mxu0 0.0
    %5971 = vmatpush2.msra.mxu0 0.0
    %5972 = vmatprep.subr.mxu0 0.0
    %5973 = vmatpush2.msra.mxu0 0.0
    %5974 = vmatprep.subr.mxu0 0.0
    %5975 = vmatpush2.msra.mxu0 0.0
    %5976 = vmatprep.subr.mxu0 0.0
    %5977 = vmatpush2.msra.mxu0 0.0
    %5978 = vmatprep.subr.mxu0 0.0
    %5979 = vmatpush2.msra.mxu0 0.0
    %5980 = vmatprep.subr.mxu0 0.0
    %5981 = vmatpush2.msra.mxu0 0.0
    %5982 = vmatprep.subr.mxu0 0.0
    %5983 = vmatpush2.msra.mxu0 0.0
    %5984 = vmatprep.subr.mxu0 0.0
    %5985 = vmatpush2.msra.mxu0 0.0
    %5986 = vmatprep.mubr.f32.mxu0 0.0
    %5987 = vmatmul.mubr.f32.gmra.mxu0 %v5779
    %v5988 = vpop.f32.mrf.mxu0
    %v5989 = vadd.f32 0.0, %v5988
    %v5990 = vpop.f32.mrf.mxu0
    %5991 = vdwg.mxu0
    %v5992 = vmul.f32 %v5847, %v3630
    %v5993 = vmul.f32 %v5849, %v3630
    %v5994 = vmul.f32 %v5918, %v3630
    %v5995 = vmul.f32 %v5920, %v3630
    %v5996 = vmul.f32 %v5989, %v3630
    %v5997 = vadd.f32 %v5774, %v5992
    %v5998 = vadd.f32 %v5775, %v5993
    %v5999 = vadd.f32 %v5776, %v5994
    %v6000 = vadd.f32 %v5777, %v5995
    %v6001 = vadd.f32 %v5778, %v5996
    %v6002 = vsel %vm597, %v5997, 0.0
    %v6003 = vrot.slane %v5998, 7
    %v6004 = vsel %vm600, %v6003, %v6002
    %v6005 = vrot.slane %v5999, 6
    %v6006 = vsel %vm603, %v6005, %v6004
    %v6007 = vrot.slane %v6000, 5
    %v6008 = vsel %vm606, %v6007, %v6006
    %v6009 = vrot.slane %v6001, 4
    %v6010 = vsel %vm609, %v6009, %v6008
    %v6011 = vrot.slane %v5997, 4
    %v6012 = vsel %vm612, %v6011, %v6010
    %v6013 = vrot.slane %v5998, 3
    %v6014 = vsel %vm615, %v6013, %v6012
    %v6015 = vrot.slane %v5999, 2
    %v6016 = vsel %vm618, %v6015, %v6014
    %v6017 = vrot.slane %v6000, 1
    %v6018 = vsel %vm597, %v6017, 0.0
    %v6019 = vsel %vm600, %v6001, %v6018
    %v6020 = vsel %vm603, %v5997, %v6019
    %v6021 = vsel %vm606, %v6003, %v6020
    %v6022 = vsel %vm609, %v6005, %v6021
    %v6023 = vsel %vm612, %v6007, %v6022
    %v6024 = vsel %vm615, %v6009, %v6023
    %v6025 = vsel %vm618, %v6011, %v6024
    %v6026 = vsel %vm597, %v6013, 0.0
    %v6027 = vsel %vm600, %v6015, %v6026
    %v6028 = vsel %vm603, %v6017, %v6027
    %v6029 = vsel %vm606, %v6001, %v6028
    %v6030 = vsel %vm609, %v5997, %v6029
    %v6031 = vsel %vm612, %v6003, %v6030
    %v6032 = vsel %vm615, %v6005, %v6031
    %v6033 = vsel %vm618, %v6007, %v6032
    %v6034 = vsel %vm597, %v6009, 0.0
    %v6035 = vsel %vm600, %v6011, %v6034
    %v6036 = vsel %vm603, %v6013, %v6035
    %v6037 = vsel %vm606, %v6015, %v6036
    %v6038 = vsel %vm609, %v6017, %v6037
    %v6039 = vsel %vm612, %v6001, %v6038
    %v6040 = vsel %vm615, %v5997, %v6039
    %v6041 = vsel %vm618, %v6003, %v6040
    %v6042 = vsel %vm597, %v6005, 0.0
    %v6043 = vsel %vm600, %v6007, %v6042
    %v6044 = vsel %vm603, %v6009, %v6043
    %v6045 = vsel %vm606, %v6011, %v6044
    %v6046 = vsel %vm609, %v6013, %v6045
    %v6047 = vsel %vm612, %v6015, %v6046
    %v6048 = vsel %vm615, %v6017, %v6047
    %v6049 = vsel %vm618, %v6001, %v6048
    %v6050 = vld [vmem:[#allocation14] sm:$0xff]
    %v6051 = vld [vmem:[#allocation14 + $0x8] sm:$0xff]
    %v6052 = vld [vmem:[#allocation14 + $0x10] sm:$0xff]
    %v6053 = vld [vmem:[#allocation14 + $0x18] sm:$0xff]
    %v6054 = vld [vmem:[#allocation14 + $0x20] sm:$0xff]
    %v6055 = vld [vmem:[#allocation14 + $0x28] sm:$0xff]
    %v6056 = vld [vmem:[#allocation14 + $0x30] sm:$0xff]
    %v6057 = vld [vmem:[#allocation14 + $0x38] sm:$0xff]
    %v6058 = vld [vmem:[#allocation14 + $0x40] sm:$0xff]
    %v6059 = vld [vmem:[#allocation14 + $0x48] sm:$0xff]
    %v6060 = vld [vmem:[#allocation14 + $0x50] sm:$0xff]
    %v6061 = vld [vmem:[#allocation14 + $0x58] sm:$0xff]
    %v6062 = vld [vmem:[#allocation14 + $0x60] sm:$0xff]
    %v6063 = vld [vmem:[#allocation14 + $0x68] sm:$0xff]
    %v6064 = vld [vmem:[#allocation14 + $0x70] sm:$0xff]
    %v6065 = vld [vmem:[#allocation14 + $0x78] sm:$0xff]
    %v6066 = vld [vmem:[#allocation16] sm:$0x1]
    %v6068 = vlaneseq
    %v6069 = vshrl.u32 %v6068, 7
    %v6070 = vsub.s32 0, %v6069
    %v6071 = vrot.slane %v6066, %v6070
    %6073 = vmatprep.subr.mxu0 0.0
    %6074 = vmatpush1.msra.mxu0 %v6065
    %6075 = vmatprep.subr.mxu0 0.0
    %6076 = vmatpush1.msra.mxu0 %v6064
    %6077 = vmatprep.subr.mxu0 0.0
    %6078 = vmatpush1.msra.mxu0 %v6063
    %6079 = vmatprep.subr.mxu0 0.0
    %6080 = vmatpush1.msra.mxu0 %v6062
    %6081 = vmatprep.subr.mxu0 0.0
    %6082 = vmatpush1.msra.mxu0 %v6061
    %6083 = vmatprep.subr.mxu0 0.0
    %6084 = vmatpush1.msra.mxu0 %v6060
    %6085 = vmatprep.subr.mxu0 0.0
    %6086 = vmatpush1.msra.mxu0 %v6059
    %6087 = vmatprep.subr.mxu0 0.0
    %6088 = vmatpush1.msra.mxu0 %v6058
    %6089 = vmatprep.subr.mxu0 0.0
    %6090 = vmatpush1.msra.mxu0 %v6057
    %6091 = vmatprep.subr.mxu0 0.0
    %6092 = vmatpush1.msra.mxu0 %v6056
    %6093 = vmatprep.subr.mxu0 0.0
    %6094 = vmatpush1.msra.mxu0 %v6055
    %6095 = vmatprep.subr.mxu0 0.0
    %6096 = vmatpush1.msra.mxu0 %v6054
    %6097 = vmatprep.subr.mxu0 0.0
    %6098 = vmatpush1.msra.mxu0 %v6053
    %6099 = vmatprep.subr.mxu0 0.0
    %6100 = vmatpush1.msra.mxu0 %v6052
    %6101 = vmatprep.subr.mxu0 0.0
    %6102 = vmatpush1.msra.mxu0 %v6051
    %6103 = vmatprep.subr.mxu0 0.0
    %6104 = vmatpush1.msra.mxu0 %v6050
    %6105 = vmatprep.subr.mxu0 0.0
    %6106 = vmatpush2.msra.mxu0 0.0
    %6107 = vmatprep.subr.mxu0 0.0
    %6108 = vmatpush2.msra.mxu0 0.0
    %6109 = vmatprep.subr.mxu0 0.0
    %6110 = vmatpush2.msra.mxu0 0.0
    %6111 = vmatprep.subr.mxu0 0.0
    %6112 = vmatpush2.msra.mxu0 0.0
    %6113 = vmatprep.subr.mxu0 0.0
    %6114 = vmatpush2.msra.mxu0 0.0
    %6115 = vmatprep.subr.mxu0 0.0
    %6116 = vmatpush2.msra.mxu0 0.0
    %6117 = vmatprep.subr.mxu0 0.0
    %6118 = vmatpush2.msra.mxu0 0.0
    %6119 = vmatprep.subr.mxu0 0.0
    %6120 = vmatpush2.msra.mxu0 0.0
    %6121 = vmatprep.subr.mxu0 0.0
    %6122 = vmatpush2.msra.mxu0 0.0
    %6123 = vmatprep.subr.mxu0 0.0
    %6124 = vmatpush2.msra.mxu0 0.0
    %6125 = vmatprep.subr.mxu0 0.0
    %6126 = vmatpush2.msra.mxu0 0.0
    %6127 = vmatprep.subr.mxu0 0.0
    %6128 = vmatpush2.msra.mxu0 0.0
    %6129 = vmatprep.subr.mxu0 0.0
    %6130 = vmatpush2.msra.mxu0 0.0
    %6131 = vmatprep.subr.mxu0 0.0
    %6132 = vmatpush2.msra.mxu0 0.0
    %6133 = vmatprep.subr.mxu0 0.0
    %6134 = vmatpush2.msra.mxu0 0.0
    %6135 = vmatprep.subr.mxu0 0.0
    %6136 = vmatpush2.msra.mxu0 0.0
    %6137 = vmatprep.mubr.f32.mxu0 0.0
    %6138 = vmatmul.mubr.f32.gmra.mxu0 %v6016
    %v6139 = vpop.f32.mrf.mxu0
    %v6140 = vadd.f32 %v6071, %v6139
    %v6141 = vpop.f32.mrf.mxu0
    %6142 = vmatprep.mubr.f32.mxu0 0.0
    %6143 = vmatmul.mubr.f32.gmra.mxu0 %v6025
    %v6144 = vpop.f32.mrf.mxu0
    %v6145 = vadd.f32 %v6071, %v6144
    %v6146 = vpop.f32.mrf.mxu0
    %6147 = vmatprep.mubr.f32.mxu0 0.0
    %6148 = vmatmul.mubr.f32.gmra.mxu0 %v6033
    %v6149 = vpop.f32.mrf.mxu0
    %v6150 = vadd.f32 %v6071, %v6149
    %v6151 = vpop.f32.mrf.mxu0
    %6152 = vmatprep.mubr.f32.mxu0 0.0
    %6153 = vmatmul.mubr.f32.gmra.mxu0 %v6041
    %v6154 = vpop.f32.mrf.mxu0
    %v6155 = vadd.f32 %v6071, %v6154
    %v6156 = vpop.f32.mrf.mxu0
    %6157 = vmatprep.mubr.f32.mxu0 0.0
    %6158 = vmatmul.mubr.f32.gmra.mxu0 %v6049
    %v6159 = vpop.f32.mrf.mxu0
    %v6160 = vadd.f32 %v6071, %v6159
    %v6161 = vpop.f32.mrf.mxu0
    %6162 = vdwg.mxu0
    %v6163 = vadd.f32 %v619, %v6140
    %v6164 = vadd.f32 %v628, %v6145
    %v6165 = vadd.f32 %v636, %v6150
    %v6166 = vadd.f32 %v644, %v6155
    %v6167 = vadd.f32 %v652, %v6160
    %v6168 = vld [vmem:[#allocation17] sm:$0x1]
    %v6169 = vld [vmem:[#allocation19] sm:$0x1]
    %6170 = vadd.xlane.f32.xlu0 %v6163
    %v6171 = vpop.xlane.xlu0 %6170
    %6172 = vadd.xlane.f32.xlu0 %v6164
    %v6173 = vpop.xlane.xlu0 %6172
    %6174 = vadd.xlane.f32.xlu0 %v6165
    %v6175 = vpop.xlane.xlu0 %6174
    %6176 = vadd.xlane.f32.xlu0 %v6166
    %v6177 = vpop.xlane.xlu0 %6176
    %6178 = vadd.xlane.f32.xlu0 %v6167
    %v6179 = vpop.xlane.xlu0 %6178
    %v6180 = vrcp.pop 128.0
    %v6181 = vmul.f32 %v6171, %v6180
    %v6182 = vmul.f32 %v6173, %v6180
    %v6183 = vmul.f32 %v6175, %v6180
    %v6184 = vmul.f32 %v6177, %v6180
    %v6185 = vmul.f32 %v6179, %v6180
    %v6186 = vsub.f32 %v6163, %v6181
    %v6187 = vsub.f32 %v6164, %v6182
    %v6188 = vsub.f32 %v6165, %v6183
    %v6189 = vsub.f32 %v6166, %v6184
    %v6190 = vsub.f32 %v6167, %v6185
    %v6191 = vmul.f32 %v6186, %v6186
    %v6192 = vmul.f32 %v6187, %v6187
    %v6193 = vmul.f32 %v6188, %v6188
    %v6194 = vmul.f32 %v6189, %v6189
    %v6195 = vmul.f32 %v6190, %v6190
    %6196 = vadd.xlane.f32.xlu0 %v6191
    %v6197 = vpop.xlane.xlu0 %6196
    %6198 = vadd.xlane.f32.xlu0 %v6192
    %v6199 = vpop.xlane.xlu0 %6198
    %6200 = vadd.xlane.f32.xlu0 %v6193
    %v6201 = vpop.xlane.xlu0 %6200
    %6202 = vadd.xlane.f32.xlu0 %v6194
    %v6203 = vpop.xlane.xlu0 %6202
    %6204 = vadd.xlane.f32.xlu0 %v6195
    %v6205 = vpop.xlane.xlu0 %6204
    %v6206 = vmul.f32 %v6197, %v6180
    %v6207 = vmul.f32 %v6199, %v6180
    %v6208 = vmul.f32 %v6201, %v6180
    %v6209 = vmul.f32 %v6203, %v6180
    %v6210 = vmul.f32 %v6205, %v6180
    %v6211 = vadd.f32 %v6206, 1e-05
    %v6212 = vadd.f32 %v6207, 1e-05
    %v6213 = vadd.f32 %v6208, 1e-05
    %v6214 = vadd.f32 %v6209, 1e-05
    %v6215 = vadd.f32 %v6210, 1e-05
    %v6216 = vrsqrt.pop %v6211
    %v6217 = vrsqrt.pop %v6212
    %v6218 = vrsqrt.pop %v6213
    %v6219 = vrsqrt.pop %v6214
    %v6220 = vrsqrt.pop %v6215
    %v6221 = vmul.f32 %v6186, %v6216
    %v6222 = vmul.f32 %v6187, %v6217
    %v6223 = vmul.f32 %v6188, %v6218
    %v6224 = vmul.f32 %v6189, %v6219
    %v6225 = vmul.f32 %v6190, %v6220
    %v6227 = vlaneseq
    %v6228 = vshrl.u32 %v6227, 7
    %v6229 = vsub.s32 0, %v6228
    %v6230 = vrot.slane %v6168, %v6229
    %v6232 = vmul.f32 %v6221, %v6230
    %v6233 = vmul.f32 %v6222, %v6230
    %v6234 = vmul.f32 %v6223, %v6230
    %v6235 = vmul.f32 %v6224, %v6230
    %v6236 = vmul.f32 %v6225, %v6230
    %v6238 = vlaneseq
    %v6239 = vshrl.u32 %v6238, 7
    %v6240 = vsub.s32 0, %v6239
    %v6241 = vrot.slane %v6169, %v6240
    %v6243 = vadd.f32 %v6232, %v6241
    %v6244 = vadd.f32 %v6233, %v6241
    %v6245 = vadd.f32 %v6234, %v6241
    %v6246 = vadd.f32 %v6235, %v6241
    %v6247 = vadd.f32 %v6236, %v6241
    %v6248 = vld [vmem:[#allocation20] sm:$0xff]
    %v6249 = vld [vmem:[#allocation20 + $0x8] sm:$0xff]
    %v6250 = vld [vmem:[#allocation20 + $0x10] sm:$0xff]
    %v6251 = vld [vmem:[#allocation20 + $0x18] sm:$0xff]
    %v6252 = vld [vmem:[#allocation20 + $0x20] sm:$0xff]
    %v6253 = vld [vmem:[#allocation20 + $0x28] sm:$0xff]
    %v6254 = vld [vmem:[#allocation20 + $0x30] sm:$0xff]
    %v6255 = vld [vmem:[#allocation20 + $0x38] sm:$0xff]
    %v6256 = vld [vmem:[#allocation20 + $0x40] sm:$0xff]
    %v6257 = vld [vmem:[#allocation20 + $0x48] sm:$0xff]
    %v6258 = vld [vmem:[#allocation20 + $0x50] sm:$0xff]
    %v6259 = vld [vmem:[#allocation20 + $0x58] sm:$0xff]
    %v6260 = vld [vmem:[#allocation20 + $0x60] sm:$0xff]
    %v6261 = vld [vmem:[#allocation20 + $0x68] sm:$0xff]
    %v6262 = vld [vmem:[#allocation20 + $0x70] sm:$0xff]
    %v6263 = vld [vmem:[#allocation20 + $0x78] sm:$0xff]
    %v6264 = vld [vmem:[#allocation20 + $0x80] sm:$0xff]
    %v6265 = vld [vmem:[#allocation20 + $0x88] sm:$0xff]
    %v6266 = vld [vmem:[#allocation20 + $0x90] sm:$0xff]
    %v6267 = vld [vmem:[#allocation20 + $0x98] sm:$0xff]
    %v6268 = vld [vmem:[#allocation20 + $0xa0] sm:$0xff]
    %v6269 = vld [vmem:[#allocation20 + $0xa8] sm:$0xff]
    %v6270 = vld [vmem:[#allocation20 + $0xb0] sm:$0xff]
    %v6271 = vld [vmem:[#allocation20 + $0xb8] sm:$0xff]
    %v6272 = vld [vmem:[#allocation20 + $0xc0] sm:$0xff]
    %v6273 = vld [vmem:[#allocation20 + $0xc8] sm:$0xff]
    %v6274 = vld [vmem:[#allocation20 + $0xd0] sm:$0xff]
    %v6275 = vld [vmem:[#allocation20 + $0xd8] sm:$0xff]
    %v6276 = vld [vmem:[#allocation20 + $0xe0] sm:$0xff]
    %v6277 = vld [vmem:[#allocation20 + $0xe8] sm:$0xff]
    %v6278 = vld [vmem:[#allocation20 + $0xf0] sm:$0xff]
    %v6279 = vld [vmem:[#allocation20 + $0xf8] sm:$0xff]
    %v6280 = vld [vmem:[#allocation20 + $0x100] sm:$0xff]
    %v6281 = vld [vmem:[#allocation20 + $0x108] sm:$0xff]
    %v6282 = vld [vmem:[#allocation20 + $0x110] sm:$0xff]
    %v6283 = vld [vmem:[#allocation20 + $0x118] sm:$0xff]
    %v6284 = vld [vmem:[#allocation20 + $0x120] sm:$0xff]
    %v6285 = vld [vmem:[#allocation20 + $0x128] sm:$0xff]
    %v6286 = vld [vmem:[#allocation20 + $0x130] sm:$0xff]
    %v6287 = vld [vmem:[#allocation20 + $0x138] sm:$0xff]
    %v6288 = vld [vmem:[#allocation20 + $0x140] sm:$0xff]
    %v6289 = vld [vmem:[#allocation20 + $0x148] sm:$0xff]
    %v6290 = vld [vmem:[#allocation20 + $0x150] sm:$0xff]
    %v6291 = vld [vmem:[#allocation20 + $0x158] sm:$0xff]
    %v6292 = vld [vmem:[#allocation20 + $0x160] sm:$0xff]
    %v6293 = vld [vmem:[#allocation20 + $0x168] sm:$0xff]
    %v6294 = vld [vmem:[#allocation20 + $0x170] sm:$0xff]
    %v6295 = vld [vmem:[#allocation20 + $0x178] sm:$0xff]
    %v6296 = vld [vmem:[#allocation20 + $0x180] sm:$0xff]
    %v6297 = vld [vmem:[#allocation20 + $0x188] sm:$0xff]
    %v6298 = vld [vmem:[#allocation20 + $0x190] sm:$0xff]
    %v6299 = vld [vmem:[#allocation20 + $0x198] sm:$0xff]
    %v6300 = vld [vmem:[#allocation20 + $0x1a0] sm:$0xff]
    %v6301 = vld [vmem:[#allocation20 + $0x1a8] sm:$0xff]
    %v6302 = vld [vmem:[#allocation20 + $0x1b0] sm:$0xff]
    %v6303 = vld [vmem:[#allocation20 + $0x1b8] sm:$0xff]
    %v6304 = vld [vmem:[#allocation20 + $0x1c0] sm:$0xff]
    %v6305 = vld [vmem:[#allocation20 + $0x1c8] sm:$0xff]
    %v6306 = vld [vmem:[#allocation20 + $0x1d0] sm:$0xff]
    %v6307 = vld [vmem:[#allocation20 + $0x1d8] sm:$0xff]
    %v6308 = vld [vmem:[#allocation20 + $0x1e0] sm:$0xff]
    %v6309 = vld [vmem:[#allocation20 + $0x1e8] sm:$0xff]
    %v6310 = vld [vmem:[#allocation20 + $0x1f0] sm:$0xff]
    %v6311 = vld [vmem:[#allocation20 + $0x1f8] sm:$0xff]
    %v6312 = vld [vmem:[#allocation20 + $0x200] sm:$0xff]
    %v6313 = vld [vmem:[#allocation20 + $0x208] sm:$0xff]
    %v6314 = vld [vmem:[#allocation20 + $0x210] sm:$0xff]
    %v6315 = vld [vmem:[#allocation20 + $0x218] sm:$0xff]
    %v6316 = vld [vmem:[#allocation20 + $0x220] sm:$0xff]
    %v6317 = vld [vmem:[#allocation20 + $0x228] sm:$0xff]
    %v6318 = vld [vmem:[#allocation20 + $0x230] sm:$0xff]
    %v6319 = vld [vmem:[#allocation20 + $0x238] sm:$0xff]
    %v6320 = vld [vmem:[#allocation20 + $0x240] sm:$0xff]
    %v6321 = vld [vmem:[#allocation20 + $0x248] sm:$0xff]
    %v6322 = vld [vmem:[#allocation20 + $0x250] sm:$0xff]
    %v6323 = vld [vmem:[#allocation20 + $0x258] sm:$0xff]
    %v6324 = vld [vmem:[#allocation20 + $0x260] sm:$0xff]
    %v6325 = vld [vmem:[#allocation20 + $0x268] sm:$0xff]
    %v6326 = vld [vmem:[#allocation20 + $0x270] sm:$0xff]
    %v6327 = vld [vmem:[#allocation20 + $0x278] sm:$0xff]
    %v6328 = vld [vmem:[#allocation20 + $0x280] sm:$0xff]
    %v6329 = vld [vmem:[#allocation20 + $0x288] sm:$0xff]
    %v6330 = vld [vmem:[#allocation20 + $0x290] sm:$0xff]
    %v6331 = vld [vmem:[#allocation20 + $0x298] sm:$0xff]
    %v6332 = vld [vmem:[#allocation20 + $0x2a0] sm:$0xff]
    %v6333 = vld [vmem:[#allocation20 + $0x2a8] sm:$0xff]
    %v6334 = vld [vmem:[#allocation20 + $0x2b0] sm:$0xff]
    %v6335 = vld [vmem:[#allocation20 + $0x2b8] sm:$0xff]
    %v6336 = vld [vmem:[#allocation20 + $0x2c0] sm:$0xff]
    %v6337 = vld [vmem:[#allocation20 + $0x2c8] sm:$0xff]
    %v6338 = vld [vmem:[#allocation20 + $0x2d0] sm:$0xff]
    %v6339 = vld [vmem:[#allocation20 + $0x2d8] sm:$0xff]
    %v6340 = vld [vmem:[#allocation20 + $0x2e0] sm:$0xff]
    %v6341 = vld [vmem:[#allocation20 + $0x2e8] sm:$0xff]
    %v6342 = vld [vmem:[#allocation20 + $0x2f0] sm:$0xff]
    %v6343 = vld [vmem:[#allocation20 + $0x2f8] sm:$0xff]
    %v6344 = vld [vmem:[#allocation20 + $0x300] sm:$0xff]
    %v6345 = vld [vmem:[#allocation20 + $0x308] sm:$0xff]
    %v6346 = vld [vmem:[#allocation20 + $0x310] sm:$0xff]
    %v6347 = vld [vmem:[#allocation20 + $0x318] sm:$0xff]
    %v6348 = vld [vmem:[#allocation20 + $0x320] sm:$0xff]
    %v6349 = vld [vmem:[#allocation20 + $0x328] sm:$0xff]
    %v6350 = vld [vmem:[#allocation20 + $0x330] sm:$0xff]
    %v6351 = vld [vmem:[#allocation20 + $0x338] sm:$0xff]
    %v6352 = vld [vmem:[#allocation20 + $0x340] sm:$0xff]
    %v6353 = vld [vmem:[#allocation20 + $0x348] sm:$0xff]
    %v6354 = vld [vmem:[#allocation20 + $0x350] sm:$0xff]
    %v6355 = vld [vmem:[#allocation20 + $0x358] sm:$0xff]
    %v6356 = vld [vmem:[#allocation20 + $0x360] sm:$0xff]
    %v6357 = vld [vmem:[#allocation20 + $0x368] sm:$0xff]
    %v6358 = vld [vmem:[#allocation20 + $0x370] sm:$0xff]
    %v6359 = vld [vmem:[#allocation20 + $0x378] sm:$0xff]
    %v6360 = vld [vmem:[#allocation20 + $0x380] sm:$0xff]
    %v6361 = vld [vmem:[#allocation20 + $0x388] sm:$0xff]
    %v6362 = vld [vmem:[#allocation20 + $0x390] sm:$0xff]
    %v6363 = vld [vmem:[#allocation20 + $0x398] sm:$0xff]
    %v6364 = vld [vmem:[#allocation20 + $0x3a0] sm:$0xff]
    %v6365 = vld [vmem:[#allocation20 + $0x3a8] sm:$0xff]
    %v6366 = vld [vmem:[#allocation20 + $0x3b0] sm:$0xff]
    %v6367 = vld [vmem:[#allocation20 + $0x3b8] sm:$0xff]
    %v6368 = vld [vmem:[#allocation20 + $0x3c0] sm:$0xff]
    %v6369 = vld [vmem:[#allocation20 + $0x3c8] sm:$0xff]
    %v6370 = vld [vmem:[#allocation20 + $0x3d0] sm:$0xff]
    %v6371 = vld [vmem:[#allocation20 + $0x3d8] sm:$0xff]
    %v6372 = vld [vmem:[#allocation20 + $0x3e0] sm:$0xff]
    %v6373 = vld [vmem:[#allocation20 + $0x3e8] sm:$0xff]
    %v6374 = vld [vmem:[#allocation20 + $0x3f0] sm:$0xff]
    %v6375 = vld [vmem:[#allocation20 + $0x3f8] sm:$0xff]
    %v6376 = vld [vmem:[#allocation20 + $0x400] sm:$0xff]
    %v6377 = vld [vmem:[#allocation20 + $0x408] sm:$0xff]
    %v6378 = vld [vmem:[#allocation20 + $0x410] sm:$0xff]
    %v6379 = vld [vmem:[#allocation20 + $0x418] sm:$0xff]
    %v6380 = vld [vmem:[#allocation20 + $0x420] sm:$0xff]
    %v6381 = vld [vmem:[#allocation20 + $0x428] sm:$0xff]
    %v6382 = vld [vmem:[#allocation20 + $0x430] sm:$0xff]
    %v6383 = vld [vmem:[#allocation20 + $0x438] sm:$0xff]
    %v6384 = vld [vmem:[#allocation20 + $0x440] sm:$0xff]
    %v6385 = vld [vmem:[#allocation20 + $0x448] sm:$0xff]
    %v6386 = vld [vmem:[#allocation20 + $0x450] sm:$0xff]
    %v6387 = vld [vmem:[#allocation20 + $0x458] sm:$0xff]
    %v6388 = vld [vmem:[#allocation20 + $0x460] sm:$0xff]
    %v6389 = vld [vmem:[#allocation20 + $0x468] sm:$0xff]
    %v6390 = vld [vmem:[#allocation20 + $0x470] sm:$0xff]
    %v6391 = vld [vmem:[#allocation20 + $0x478] sm:$0xff]
    %v6392 = vld [vmem:[#allocation20 + $0x480] sm:$0xff]
    %v6393 = vld [vmem:[#allocation20 + $0x488] sm:$0xff]
    %v6394 = vld [vmem:[#allocation20 + $0x490] sm:$0xff]
    %v6395 = vld [vmem:[#allocation20 + $0x498] sm:$0xff]
    %v6396 = vld [vmem:[#allocation20 + $0x4a0] sm:$0xff]
    %v6397 = vld [vmem:[#allocation20 + $0x4a8] sm:$0xff]
    %v6398 = vld [vmem:[#allocation20 + $0x4b0] sm:$0xff]
    %v6399 = vld [vmem:[#allocation20 + $0x4b8] sm:$0xff]
    %v6400 = vld [vmem:[#allocation20 + $0x4c0] sm:$0xff]
    %v6401 = vld [vmem:[#allocation20 + $0x4c8] sm:$0xff]
    %v6402 = vld [vmem:[#allocation20 + $0x4d0] sm:$0xff]
    %v6403 = vld [vmem:[#allocation20 + $0x4d8] sm:$0xff]
    %v6404 = vld [vmem:[#allocation20 + $0x4e0] sm:$0xff]
    %v6405 = vld [vmem:[#allocation20 + $0x4e8] sm:$0xff]
    %v6406 = vld [vmem:[#allocation20 + $0x4f0] sm:$0xff]
    %v6407 = vld [vmem:[#allocation20 + $0x4f8] sm:$0xff]
    %v6408 = vld [vmem:[#allocation20 + $0x500] sm:$0xff]
    %v6409 = vld [vmem:[#allocation20 + $0x508] sm:$0xff]
    %v6410 = vld [vmem:[#allocation20 + $0x510] sm:$0xff]
    %v6411 = vld [vmem:[#allocation20 + $0x518] sm:$0xff]
    %v6412 = vld [vmem:[#allocation20 + $0x520] sm:$0xff]
    %v6413 = vld [vmem:[#allocation20 + $0x528] sm:$0xff]
    %v6414 = vld [vmem:[#allocation20 + $0x530] sm:$0xff]
    %v6415 = vld [vmem:[#allocation20 + $0x538] sm:$0xff]
    %v6416 = vld [vmem:[#allocation20 + $0x540] sm:$0xff]
    %v6417 = vld [vmem:[#allocation20 + $0x548] sm:$0xff]
    %v6418 = vld [vmem:[#allocation20 + $0x550] sm:$0xff]
    %v6419 = vld [vmem:[#allocation20 + $0x558] sm:$0xff]
    %v6420 = vld [vmem:[#allocation20 + $0x560] sm:$0xff]
    %v6421 = vld [vmem:[#allocation20 + $0x568] sm:$0xff]
    %v6422 = vld [vmem:[#allocation20 + $0x570] sm:$0xff]
    %v6423 = vld [vmem:[#allocation20 + $0x578] sm:$0xff]
    %v6424 = vld [vmem:[#allocation20 + $0x580] sm:$0xff]
    %v6425 = vld [vmem:[#allocation20 + $0x588] sm:$0xff]
    %v6426 = vld [vmem:[#allocation20 + $0x590] sm:$0xff]
    %v6427 = vld [vmem:[#allocation20 + $0x598] sm:$0xff]
    %v6428 = vld [vmem:[#allocation20 + $0x5a0] sm:$0xff]
    %v6429 = vld [vmem:[#allocation20 + $0x5a8] sm:$0xff]
    %v6430 = vld [vmem:[#allocation20 + $0x5b0] sm:$0xff]
    %v6431 = vld [vmem:[#allocation20 + $0x5b8] sm:$0xff]
    %v6432 = vld [vmem:[#allocation20 + $0x5c0] sm:$0xff]
    %v6433 = vld [vmem:[#allocation20 + $0x5c8] sm:$0xff]
    %v6434 = vld [vmem:[#allocation20 + $0x5d0] sm:$0xff]
    %v6435 = vld [vmem:[#allocation20 + $0x5d8] sm:$0xff]
    %v6436 = vld [vmem:[#allocation20 + $0x5e0] sm:$0xff]
    %v6437 = vld [vmem:[#allocation20 + $0x5e8] sm:$0xff]
    %v6438 = vld [vmem:[#allocation20 + $0x5f0] sm:$0xff]
    %v6439 = vld [vmem:[#allocation20 + $0x5f8] sm:$0xff]
    %v6440 = vld [vmem:[#allocation20 + $0x600] sm:$0xff]
    %v6441 = vld [vmem:[#allocation20 + $0x608] sm:$0xff]
    %v6442 = vld [vmem:[#allocation20 + $0x610] sm:$0xff]
    %v6443 = vld [vmem:[#allocation20 + $0x618] sm:$0xff]
    %v6444 = vld [vmem:[#allocation20 + $0x620] sm:$0xff]
    %v6445 = vld [vmem:[#allocation20 + $0x628] sm:$0xff]
    %v6446 = vld [vmem:[#allocation20 + $0x630] sm:$0xff]
    %v6447 = vld [vmem:[#allocation20 + $0x638] sm:$0xff]
    %v6448 = vld [vmem:[#allocation20 + $0x640] sm:$0xff]
    %v6449 = vld [vmem:[#allocation20 + $0x648] sm:$0xff]
    %v6450 = vld [vmem:[#allocation20 + $0x650] sm:$0xff]
    %v6451 = vld [vmem:[#allocation20 + $0x658] sm:$0xff]
    %v6452 = vld [vmem:[#allocation20 + $0x660] sm:$0xff]
    %v6453 = vld [vmem:[#allocation20 + $0x668] sm:$0xff]
    %v6454 = vld [vmem:[#allocation20 + $0x670] sm:$0xff]
    %v6455 = vld [vmem:[#allocation20 + $0x678] sm:$0xff]
    %v6456 = vld [vmem:[#allocation20 + $0x680] sm:$0xff]
    %v6457 = vld [vmem:[#allocation20 + $0x688] sm:$0xff]
    %v6458 = vld [vmem:[#allocation20 + $0x690] sm:$0xff]
    %v6459 = vld [vmem:[#allocation20 + $0x698] sm:$0xff]
    %v6460 = vld [vmem:[#allocation20 + $0x6a0] sm:$0xff]
    %v6461 = vld [vmem:[#allocation20 + $0x6a8] sm:$0xff]
    %v6462 = vld [vmem:[#allocation20 + $0x6b0] sm:$0xff]
    %v6463 = vld [vmem:[#allocation20 + $0x6b8] sm:$0xff]
    %v6464 = vld [vmem:[#allocation20 + $0x6c0] sm:$0xff]
    %v6465 = vld [vmem:[#allocation20 + $0x6c8] sm:$0xff]
    %v6466 = vld [vmem:[#allocation20 + $0x6d0] sm:$0xff]
    %v6467 = vld [vmem:[#allocation20 + $0x6d8] sm:$0xff]
    %v6468 = vld [vmem:[#allocation20 + $0x6e0] sm:$0xff]
    %v6469 = vld [vmem:[#allocation20 + $0x6e8] sm:$0xff]
    %v6470 = vld [vmem:[#allocation20 + $0x6f0] sm:$0xff]
    %v6471 = vld [vmem:[#allocation20 + $0x6f8] sm:$0xff]
    %v6472 = vld [vmem:[#allocation20 + $0x700] sm:$0xff]
    %v6473 = vld [vmem:[#allocation20 + $0x708] sm:$0xff]
    %v6474 = vld [vmem:[#allocation20 + $0x710] sm:$0xff]
    %v6475 = vld [vmem:[#allocation20 + $0x718] sm:$0xff]
    %v6476 = vld [vmem:[#allocation20 + $0x720] sm:$0xff]
    %v6477 = vld [vmem:[#allocation20 + $0x728] sm:$0xff]
    %v6478 = vld [vmem:[#allocation20 + $0x730] sm:$0xff]
    %v6479 = vld [vmem:[#allocation20 + $0x738] sm:$0xff]
    %v6480 = vld [vmem:[#allocation20 + $0x740] sm:$0xff]
    %v6481 = vld [vmem:[#allocation20 + $0x748] sm:$0xff]
    %v6482 = vld [vmem:[#allocation20 + $0x750] sm:$0xff]
    %v6483 = vld [vmem:[#allocation20 + $0x758] sm:$0xff]
    %v6484 = vld [vmem:[#allocation20 + $0x760] sm:$0xff]
    %v6485 = vld [vmem:[#allocation20 + $0x768] sm:$0xff]
    %v6486 = vld [vmem:[#allocation20 + $0x770] sm:$0xff]
    %v6487 = vld [vmem:[#allocation20 + $0x778] sm:$0xff]
    %v6488 = vld [vmem:[#allocation20 + $0x780] sm:$0xff]
    %v6489 = vld [vmem:[#allocation20 + $0x788] sm:$0xff]
    %v6490 = vld [vmem:[#allocation20 + $0x790] sm:$0xff]
    %v6491 = vld [vmem:[#allocation20 + $0x798] sm:$0xff]
    %v6492 = vld [vmem:[#allocation20 + $0x7a0] sm:$0xff]
    %v6493 = vld [vmem:[#allocation20 + $0x7a8] sm:$0xff]
    %v6494 = vld [vmem:[#allocation20 + $0x7b0] sm:$0xff]
    %v6495 = vld [vmem:[#allocation20 + $0x7b8] sm:$0xff]
    %v6496 = vld [vmem:[#allocation20 + $0x7c0] sm:$0xff]
    %v6497 = vld [vmem:[#allocation20 + $0x7c8] sm:$0xff]
    %v6498 = vld [vmem:[#allocation20 + $0x7d0] sm:$0xff]
    %v6499 = vld [vmem:[#allocation20 + $0x7d8] sm:$0xff]
    %v6500 = vld [vmem:[#allocation20 + $0x7e0] sm:$0xff]
    %v6501 = vld [vmem:[#allocation20 + $0x7e8] sm:$0xff]
    %v6502 = vld [vmem:[#allocation20 + $0x7f0] sm:$0xff]
    %v6503 = vld [vmem:[#allocation20 + $0x7f8] sm:$0xff]
    %v6504 = vld [vmem:[#allocation22] sm:$0xff]
    %v6505 = vld [vmem:[#allocation22 + $0x8] sm:$0xff]
    %v6508 = vlaneseq
    %v6509 = vshrl.u32 %v6508, 7
    %v6510 = vsub.s32 0, %v6509
    %v6511 = vrot.slane %v6504, %v6510
    %v6512 = vlaneseq
    %v6513 = vshrl.u32 %v6512, 7
    %v6514 = vsub.s32 1, %v6513
    %v6515 = vrot.slane %v6504, %v6514
    %v6516 = vlaneseq
    %v6517 = vshrl.u32 %v6516, 7
    %v6518 = vsub.s32 2, %v6517
    %v6519 = vrot.slane %v6504, %v6518
    %v6520 = vlaneseq
    %v6521 = vshrl.u32 %v6520, 7
    %v6522 = vsub.s32 3, %v6521
    %v6523 = vrot.slane %v6504, %v6522
    %v6524 = vlaneseq
    %v6525 = vshrl.u32 %v6524, 7
    %v6526 = vsub.s32 4, %v6525
    %v6527 = vrot.slane %v6504, %v6526
    %v6528 = vlaneseq
    %v6529 = vshrl.u32 %v6528, 7
    %v6530 = vsub.s32 5, %v6529
    %v6531 = vrot.slane %v6504, %v6530
    %v6532 = vlaneseq
    %v6533 = vshrl.u32 %v6532, 7
    %v6534 = vsub.s32 6, %v6533
    %v6535 = vrot.slane %v6504, %v6534
    %v6536 = vlaneseq
    %v6537 = vshrl.u32 %v6536, 7
    %v6538 = vsub.s32 7, %v6537
    %v6539 = vrot.slane %v6504, %v6538
    %v6540 = vlaneseq
    %v6541 = vshrl.u32 %v6540, 7
    %v6542 = vsub.s32 0, %v6541
    %v6543 = vrot.slane %v6505, %v6542
    %v6544 = vlaneseq
    %v6545 = vshrl.u32 %v6544, 7
    %v6546 = vsub.s32 1, %v6545
    %v6547 = vrot.slane %v6505, %v6546
    %v6548 = vlaneseq
    %v6549 = vshrl.u32 %v6548, 7
    %v6550 = vsub.s32 2, %v6549
    %v6551 = vrot.slane %v6505, %v6550
    %v6552 = vlaneseq
    %v6553 = vshrl.u32 %v6552, 7
    %v6554 = vsub.s32 3, %v6553
    %v6555 = vrot.slane %v6505, %v6554
    %v6556 = vlaneseq
    %v6557 = vshrl.u32 %v6556, 7
    %v6558 = vsub.s32 4, %v6557
    %v6559 = vrot.slane %v6505, %v6558
    %v6560 = vlaneseq
    %v6561 = vshrl.u32 %v6560, 7
    %v6562 = vsub.s32 5, %v6561
    %v6563 = vrot.slane %v6505, %v6562
    %v6564 = vlaneseq
    %v6565 = vshrl.u32 %v6564, 7
    %v6566 = vsub.s32 6, %v6565
    %v6567 = vrot.slane %v6505, %v6566
    %v6568 = vlaneseq
    %v6569 = vshrl.u32 %v6568, 7
    %v6570 = vsub.s32 7, %v6569
    %v6571 = vrot.slane %v6505, %v6570
    %6588 = vmatprep.subr.mxu0 %v6489
    %6589 = vmatpush1.msra.mxu0 %v6488
    %6590 = vmatprep.subr.mxu0 %v6473
    %6591 = vmatpush1.msra.mxu0 %v6472
    %6592 = vmatprep.subr.mxu0 %v6457
    %6593 = vmatpush1.msra.mxu0 %v6456
    %6594 = vmatprep.subr.mxu0 %v6441
    %6595 = vmatpush1.msra.mxu0 %v6440
    %6596 = vmatprep.subr.mxu0 %v6425
    %6597 = vmatpush1.msra.mxu0 %v6424
    %6598 = vmatprep.subr.mxu0 %v6409
    %6599 = vmatpush1.msra.mxu0 %v6408
    %6600 = vmatprep.subr.mxu0 %v6393
    %6601 = vmatpush1.msra.mxu0 %v6392
    %6602 = vmatprep.subr.mxu0 %v6377
    %6603 = vmatpush1.msra.mxu0 %v6376
    %6604 = vmatprep.subr.mxu0 %v6361
    %6605 = vmatpush1.msra.mxu0 %v6360
    %6606 = vmatprep.subr.mxu0 %v6345
    %6607 = vmatpush1.msra.mxu0 %v6344
    %6608 = vmatprep.subr.mxu0 %v6329
    %6609 = vmatpush1.msra.mxu0 %v6328
    %6610 = vmatprep.subr.mxu0 %v6313
    %6611 = vmatpush1.msra.mxu0 %v6312
    %6612 = vmatprep.subr.mxu0 %v6297
    %6613 = vmatpush1.msra.mxu0 %v6296
    %6614 = vmatprep.subr.mxu0 %v6281
    %6615 = vmatpush1.msra.mxu0 %v6280
    %6616 = vmatprep.subr.mxu0 %v6265
    %6617 = vmatpush1.msra.mxu0 %v6264
    %6618 = vmatprep.subr.mxu0 %v6249
    %6619 = vmatpush1.msra.mxu0 %v6248
    %6620 = vmatprep.subr.mxu0 0.0
    %6621 = vmatpush2.msra.mxu0 0.0
    %6622 = vmatprep.subr.mxu0 0.0
    %6623 = vmatpush2.msra.mxu0 0.0
    %6624 = vmatprep.subr.mxu0 0.0
    %6625 = vmatpush2.msra.mxu0 0.0
    %6626 = vmatprep.subr.mxu0 0.0
    %6627 = vmatpush2.msra.mxu0 0.0
    %6628 = vmatprep.subr.mxu0 0.0
    %6629 = vmatpush2.msra.mxu0 0.0
    %6630 = vmatprep.subr.mxu0 0.0
    %6631 = vmatpush2.msra.mxu0 0.0
    %6632 = vmatprep.subr.mxu0 0.0
    %6633 = vmatpush2.msra.mxu0 0.0
    %6634 = vmatprep.subr.mxu0 0.0
    %6635 = vmatpush2.msra.mxu0 0.0
    %6636 = vmatprep.subr.mxu0 0.0
    %6637 = vmatpush2.msra.mxu0 0.0
    %6638 = vmatprep.subr.mxu0 0.0
    %6639 = vmatpush2.msra.mxu0 0.0
    %6640 = vmatprep.subr.mxu0 0.0
    %6641 = vmatpush2.msra.mxu0 0.0
    %6642 = vmatprep.subr.mxu0 0.0
    %6643 = vmatpush2.msra.mxu0 0.0
    %6644 = vmatprep.subr.mxu0 0.0
    %6645 = vmatpush2.msra.mxu0 0.0
    %6646 = vmatprep.subr.mxu0 0.0
    %6647 = vmatpush2.msra.mxu0 0.0
    %6648 = vmatprep.subr.mxu0 0.0
    %6649 = vmatpush2.msra.mxu0 0.0
    %6650 = vmatprep.subr.mxu0 0.0
    %6651 = vmatpush2.msra.mxu0 0.0
    %6652 = vmatprep.mubr.f32.mxu0 0.0
    %6653 = vmatmul.mubr.f32.gmra.mxu0 %v6243
    %v6654 = vpop.f32.mrf.mxu0
    %v6655 = vadd.f32 %v6511, %v6654
    %v6656 = vpop.f32.mrf.mxu0
    %v6657 = vadd.f32 %v6515, %v6656
    %6658 = vmatprep.mubr.f32.mxu0 0.0
    %6659 = vmatmul.mubr.f32.gmra.mxu0 %v6244
    %v6660 = vpop.f32.mrf.mxu0
    %v6661 = vadd.f32 %v6511, %v6660
    %v6662 = vpop.f32.mrf.mxu0
    %v6663 = vadd.f32 %v6515, %v6662
    %6664 = vmatprep.mubr.f32.mxu0 0.0
    %6665 = vmatmul.mubr.f32.gmra.mxu0 %v6245
    %v6666 = vpop.f32.mrf.mxu0
    %v6667 = vadd.f32 %v6511, %v6666
    %v6668 = vpop.f32.mrf.mxu0
    %v6669 = vadd.f32 %v6515, %v6668
    %6670 = vmatprep.mubr.f32.mxu0 0.0
    %6671 = vmatmul.mubr.f32.gmra.mxu0 %v6246
    %v6672 = vpop.f32.mrf.mxu0
    %v6673 = vadd.f32 %v6511, %v6672
    %v6674 = vpop.f32.mrf.mxu0
    %v6675 = vadd.f32 %v6515, %v6674
    %6676 = vmatprep.mubr.f32.mxu0 0.0
    %6677 = vmatmul.mubr.f32.gmra.mxu0 %v6247
    %v6678 = vpop.f32.mrf.mxu0
    %v6679 = vadd.f32 %v6511, %v6678
    %v6680 = vpop.f32.mrf.mxu0
    %v6681 = vadd.f32 %v6515, %v6680
    %6682 = vdwg.mxu0
    %6683 = vmatprep.subr.mxu0 %v6491
    %6684 = vmatpush1.msra.mxu0 %v6490
    %6685 = vmatprep.subr.mxu0 %v6475
    %6686 = vmatpush1.msra.mxu0 %v6474
    %6687 = vmatprep.subr.mxu0 %v6459
    %6688 = vmatpush1.msra.mxu0 %v6458
    %6689 = vmatprep.subr.mxu0 %v6443
    %6690 = vmatpush1.msra.mxu0 %v6442
    %6691 = vmatprep.subr.mxu0 %v6427
    %6692 = vmatpush1.msra.mxu0 %v6426
    %6693 = vmatprep.subr.mxu0 %v6411
    %6694 = vmatpush1.msra.mxu0 %v6410
    %6695 = vmatprep.subr.mxu0 %v6395
    %6696 = vmatpush1.msra.mxu0 %v6394
    %6697 = vmatprep.subr.mxu0 %v6379
    %6698 = vmatpush1.msra.mxu0 %v6378
    %6699 = vmatprep.subr.mxu0 %v6363
    %6700 = vmatpush1.msra.mxu0 %v6362
    %6701 = vmatprep.subr.mxu0 %v6347
    %6702 = vmatpush1.msra.mxu0 %v6346
    %6703 = vmatprep.subr.mxu0 %v6331
    %6704 = vmatpush1.msra.mxu0 %v6330
    %6705 = vmatprep.subr.mxu0 %v6315
    %6706 = vmatpush1.msra.mxu0 %v6314
    %6707 = vmatprep.subr.mxu0 %v6299
    %6708 = vmatpush1.msra.mxu0 %v6298
    %6709 = vmatprep.subr.mxu0 %v6283
    %6710 = vmatpush1.msra.mxu0 %v6282
    %6711 = vmatprep.subr.mxu0 %v6267
    %6712 = vmatpush1.msra.mxu0 %v6266
    %6713 = vmatprep.subr.mxu0 %v6251
    %6714 = vmatpush1.msra.mxu0 %v6250
    %6715 = vmatprep.subr.mxu0 0.0
    %6716 = vmatpush2.msra.mxu0 0.0
    %6717 = vmatprep.subr.mxu0 0.0
    %6718 = vmatpush2.msra.mxu0 0.0
    %6719 = vmatprep.subr.mxu0 0.0
    %6720 = vmatpush2.msra.mxu0 0.0
    %6721 = vmatprep.subr.mxu0 0.0
    %6722 = vmatpush2.msra.mxu0 0.0
    %6723 = vmatprep.subr.mxu0 0.0
    %6724 = vmatpush2.msra.mxu0 0.0
    %6725 = vmatprep.subr.mxu0 0.0
    %6726 = vmatpush2.msra.mxu0 0.0
    %6727 = vmatprep.subr.mxu0 0.0
    %6728 = vmatpush2.msra.mxu0 0.0
    %6729 = vmatprep.subr.mxu0 0.0
    %6730 = vmatpush2.msra.mxu0 0.0
    %6731 = vmatprep.subr.mxu0 0.0
    %6732 = vmatpush2.msra.mxu0 0.0
    %6733 = vmatprep.subr.mxu0 0.0
    %6734 = vmatpush2.msra.mxu0 0.0
    %6735 = vmatprep.subr.mxu0 0.0
    %6736 = vmatpush2.msra.mxu0 0.0
    %6737 = vmatprep.subr.mxu0 0.0
    %6738 = vmatpush2.msra.mxu0 0.0
    %6739 = vmatprep.subr.mxu0 0.0
    %6740 = vmatpush2.msra.mxu0 0.0
    %6741 = vmatprep.subr.mxu0 0.0
    %6742 = vmatpush2.msra.mxu0 0.0
    %6743 = vmatprep.subr.mxu0 0.0
    %6744 = vmatpush2.msra.mxu0 0.0
    %6745 = vmatprep.subr.mxu0 0.0
    %6746 = vmatpush2.msra.mxu0 0.0
    %6747 = vmatprep.mubr.f32.mxu0 0.0
    %6748 = vmatmul.mubr.f32.gmra.mxu0 %v6243
    %v6749 = vpop.f32.mrf.mxu0
    %v6750 = vadd.f32 %v6519, %v6749
    %v6751 = vpop.f32.mrf.mxu0
    %v6752 = vadd.f32 %v6523, %v6751
    %6753 = vmatprep.mubr.f32.mxu0 0.0
    %6754 = vmatmul.mubr.f32.gmra.mxu0 %v6244
    %v6755 = vpop.f32.mrf.mxu0
    %v6756 = vadd.f32 %v6519, %v6755
    %v6757 = vpop.f32.mrf.mxu0
    %v6758 = vadd.f32 %v6523, %v6757
    %6759 = vmatprep.mubr.f32.mxu0 0.0
    %6760 = vmatmul.mubr.f32.gmra.mxu0 %v6245
    %v6761 = vpop.f32.mrf.mxu0
    %v6762 = vadd.f32 %v6519, %v6761
    %v6763 = vpop.f32.mrf.mxu0
    %v6764 = vadd.f32 %v6523, %v6763
    %6765 = vmatprep.mubr.f32.mxu0 0.0
    %6766 = vmatmul.mubr.f32.gmra.mxu0 %v6246
    %v6767 = vpop.f32.mrf.mxu0
    %v6768 = vadd.f32 %v6519, %v6767
    %v6769 = vpop.f32.mrf.mxu0
    %v6770 = vadd.f32 %v6523, %v6769
    %6771 = vmatprep.mubr.f32.mxu0 0.0
    %6772 = vmatmul.mubr.f32.gmra.mxu0 %v6247
    %v6773 = vpop.f32.mrf.mxu0
    %v6774 = vadd.f32 %v6519, %v6773
    %v6775 = vpop.f32.mrf.mxu0
    %v6776 = vadd.f32 %v6523, %v6775
    %6777 = vdwg.mxu0
    %6778 = vmatprep.subr.mxu0 %v6493
    %6779 = vmatpush1.msra.mxu0 %v6492
    %6780 = vmatprep.subr.mxu0 %v6477
    %6781 = vmatpush1.msra.mxu0 %v6476
    %6782 = vmatprep.subr.mxu0 %v6461
    %6783 = vmatpush1.msra.mxu0 %v6460
    %6784 = vmatprep.subr.mxu0 %v6445
    %6785 = vmatpush1.msra.mxu0 %v6444
    %6786 = vmatprep.subr.mxu0 %v6429
    %6787 = vmatpush1.msra.mxu0 %v6428
    %6788 = vmatprep.subr.mxu0 %v6413
    %6789 = vmatpush1.msra.mxu0 %v6412
    %6790 = vmatprep.subr.mxu0 %v6397
    %6791 = vmatpush1.msra.mxu0 %v6396
    %6792 = vmatprep.subr.mxu0 %v6381
    %6793 = vmatpush1.msra.mxu0 %v6380
    %6794 = vmatprep.subr.mxu0 %v6365
    %6795 = vmatpush1.msra.mxu0 %v6364
    %6796 = vmatprep.subr.mxu0 %v6349
    %6797 = vmatpush1.msra.mxu0 %v6348
    %6798 = vmatprep.subr.mxu0 %v6333
    %6799 = vmatpush1.msra.mxu0 %v6332
    %6800 = vmatprep.subr.mxu0 %v6317
    %6801 = vmatpush1.msra.mxu0 %v6316
    %6802 = vmatprep.subr.mxu0 %v6301
    %6803 = vmatpush1.msra.mxu0 %v6300
    %6804 = vmatprep.subr.mxu0 %v6285
    %6805 = vmatpush1.msra.mxu0 %v6284
    %6806 = vmatprep.subr.mxu0 %v6269
    %6807 = vmatpush1.msra.mxu0 %v6268
    %6808 = vmatprep.subr.mxu0 %v6253
    %6809 = vmatpush1.msra.mxu0 %v6252
    %6810 = vmatprep.subr.mxu0 0.0
    %6811 = vmatpush2.msra.mxu0 0.0
    %6812 = vmatprep.subr.mxu0 0.0
    %6813 = vmatpush2.msra.mxu0 0.0
    %6814 = vmatprep.subr.mxu0 0.0
    %6815 = vmatpush2.msra.mxu0 0.0
    %6816 = vmatprep.subr.mxu0 0.0
    %6817 = vmatpush2.msra.mxu0 0.0
    %6818 = vmatprep.subr.mxu0 0.0
    %6819 = vmatpush2.msra.mxu0 0.0
    %6820 = vmatprep.subr.mxu0 0.0
    %6821 = vmatpush2.msra.mxu0 0.0
    %6822 = vmatprep.subr.mxu0 0.0
    %6823 = vmatpush2.msra.mxu0 0.0
    %6824 = vmatprep.subr.mxu0 0.0
    %6825 = vmatpush2.msra.mxu0 0.0
    %6826 = vmatprep.subr.mxu0 0.0
    %6827 = vmatpush2.msra.mxu0 0.0
    %6828 = vmatprep.subr.mxu0 0.0
    %6829 = vmatpush2.msra.mxu0 0.0
    %6830 = vmatprep.subr.mxu0 0.0
    %6831 = vmatpush2.msra.mxu0 0.0
    %6832 = vmatprep.subr.mxu0 0.0
    %6833 = vmatpush2.msra.mxu0 0.0
    %6834 = vmatprep.subr.mxu0 0.0
    %6835 = vmatpush2.msra.mxu0 0.0
    %6836 = vmatprep.subr.mxu0 0.0
    %6837 = vmatpush2.msra.mxu0 0.0
    %6838 = vmatprep.subr.mxu0 0.0
    %6839 = vmatpush2.msra.mxu0 0.0
    %6840 = vmatprep.subr.mxu0 0.0
    %6841 = vmatpush2.msra.mxu0 0.0
    %6842 = vmatprep.mubr.f32.mxu0 0.0
    %6843 = vmatmul.mubr.f32.gmra.mxu0 %v6243
    %v6844 = vpop.f32.mrf.mxu0
    %v6845 = vadd.f32 %v6527, %v6844
    %v6846 = vpop.f32.mrf.mxu0
    %v6847 = vadd.f32 %v6531, %v6846
    %6848 = vmatprep.mubr.f32.mxu0 0.0
    %6849 = vmatmul.mubr.f32.gmra.mxu0 %v6244
    %v6850 = vpop.f32.mrf.mxu0
    %v6851 = vadd.f32 %v6527, %v6850
    %v6852 = vpop.f32.mrf.mxu0
    %v6853 = vadd.f32 %v6531, %v6852
    %6854 = vmatprep.mubr.f32.mxu0 0.0
    %6855 = vmatmul.mubr.f32.gmra.mxu0 %v6245
    %v6856 = vpop.f32.mrf.mxu0
    %v6857 = vadd.f32 %v6527, %v6856
    %v6858 = vpop.f32.mrf.mxu0
    %v6859 = vadd.f32 %v6531, %v6858
    %6860 = vmatprep.mubr.f32.mxu0 0.0
    %6861 = vmatmul.mubr.f32.gmra.mxu0 %v6246
    %v6862 = vpop.f32.mrf.mxu0
    %v6863 = vadd.f32 %v6527, %v6862
    %v6864 = vpop.f32.mrf.mxu0
    %v6865 = vadd.f32 %v6531, %v6864
    %6866 = vmatprep.mubr.f32.mxu0 0.0
    %6867 = vmatmul.mubr.f32.gmra.mxu0 %v6247
    %v6868 = vpop.f32.mrf.mxu0
    %v6869 = vadd.f32 %v6527, %v6868
    %v6870 = vpop.f32.mrf.mxu0
    %v6871 = vadd.f32 %v6531, %v6870
    %6872 = vdwg.mxu0
    %6873 = vmatprep.subr.mxu0 %v6495
    %6874 = vmatpush1.msra.mxu0 %v6494
    %6875 = vmatprep.subr.mxu0 %v6479
    %6876 = vmatpush1.msra.mxu0 %v6478
    %6877 = vmatprep.subr.mxu0 %v6463
    %6878 = vmatpush1.msra.mxu0 %v6462
    %6879 = vmatprep.subr.mxu0 %v6447
    %6880 = vmatpush1.msra.mxu0 %v6446
    %6881 = vmatprep.subr.mxu0 %v6431
    %6882 = vmatpush1.msra.mxu0 %v6430
    %6883 = vmatprep.subr.mxu0 %v6415
    %6884 = vmatpush1.msra.mxu0 %v6414
    %6885 = vmatprep.subr.mxu0 %v6399
    %6886 = vmatpush1.msra.mxu0 %v6398
    %6887 = vmatprep.subr.mxu0 %v6383
    %6888 = vmatpush1.msra.mxu0 %v6382
    %6889 = vmatprep.subr.mxu0 %v6367
    %6890 = vmatpush1.msra.mxu0 %v6366
    %6891 = vmatprep.subr.mxu0 %v6351
    %6892 = vmatpush1.msra.mxu0 %v6350
    %6893 = vmatprep.subr.mxu0 %v6335
    %6894 = vmatpush1.msra.mxu0 %v6334
    %6895 = vmatprep.subr.mxu0 %v6319
    %6896 = vmatpush1.msra.mxu0 %v6318
    %6897 = vmatprep.subr.mxu0 %v6303
    %6898 = vmatpush1.msra.mxu0 %v6302
    %6899 = vmatprep.subr.mxu0 %v6287
    %6900 = vmatpush1.msra.mxu0 %v6286
    %6901 = vmatprep.subr.mxu0 %v6271
    %6902 = vmatpush1.msra.mxu0 %v6270
    %6903 = vmatprep.subr.mxu0 %v6255
    %6904 = vmatpush1.msra.mxu0 %v6254
    %6905 = vmatprep.subr.mxu0 0.0
    %6906 = vmatpush2.msra.mxu0 0.0
    %6907 = vmatprep.subr.mxu0 0.0
    %6908 = vmatpush2.msra.mxu0 0.0
    %6909 = vmatprep.subr.mxu0 0.0
    %6910 = vmatpush2.msra.mxu0 0.0
    %6911 = vmatprep.subr.mxu0 0.0
    %6912 = vmatpush2.msra.mxu0 0.0
    %6913 = vmatprep.subr.mxu0 0.0
    %6914 = vmatpush2.msra.mxu0 0.0
    %6915 = vmatprep.subr.mxu0 0.0
    %6916 = vmatpush2.msra.mxu0 0.0
    %6917 = vmatprep.subr.mxu0 0.0
    %6918 = vmatpush2.msra.mxu0 0.0
    %6919 = vmatprep.subr.mxu0 0.0
    %6920 = vmatpush2.msra.mxu0 0.0
    %6921 = vmatprep.subr.mxu0 0.0
    %6922 = vmatpush2.msra.mxu0 0.0
    %6923 = vmatprep.subr.mxu0 0.0
    %6924 = vmatpush2.msra.mxu0 0.0
    %6925 = vmatprep.subr.mxu0 0.0
    %6926 = vmatpush2.msra.mxu0 0.0
    %6927 = vmatprep.subr.mxu0 0.0
    %6928 = vmatpush2.msra.mxu0 0.0
    %6929 = vmatprep.subr.mxu0 0.0
    %6930 = vmatpush2.msra.mxu0 0.0
    %6931 = vmatprep.subr.mxu0 0.0
    %6932 = vmatpush2.msra.mxu0 0.0
    %6933 = vmatprep.subr.mxu0 0.0
    %6934 = vmatpush2.msra.mxu0 0.0
    %6935 = vmatprep.subr.mxu0 0.0
    %6936 = vmatpush2.msra.mxu0 0.0
    %6937 = vmatprep.mubr.f32.mxu0 0.0
    %6938 = vmatmul.mubr.f32.gmra.mxu0 %v6243
    %v6939 = vpop.f32.mrf.mxu0
    %v6940 = vadd.f32 %v6535, %v6939
    %v6941 = vpop.f32.mrf.mxu0
    %v6942 = vadd.f32 %v6539, %v6941
    %6943 = vmatprep.mubr.f32.mxu0 0.0
    %6944 = vmatmul.mubr.f32.gmra.mxu0 %v6244
    %v6945 = vpop.f32.mrf.mxu0
    %v6946 = vadd.f32 %v6535, %v6945
    %v6947 = vpop.f32.mrf.mxu0
    %v6948 = vadd.f32 %v6539, %v6947
    %6949 = vmatprep.mubr.f32.mxu0 0.0
    %6950 = vmatmul.mubr.f32.gmra.mxu0 %v6245
    %v6951 = vpop.f32.mrf.mxu0
    %v6952 = vadd.f32 %v6535, %v6951
    %v6953 = vpop.f32.mrf.mxu0
    %v6954 = vadd.f32 %v6539, %v6953
    %6955 = vmatprep.mubr.f32.mxu0 0.0
    %6956 = vmatmul.mubr.f32.gmra.mxu0 %v6246
    %v6957 = vpop.f32.mrf.mxu0
    %v6958 = vadd.f32 %v6535, %v6957
    %v6959 = vpop.f32.mrf.mxu0
    %v6960 = vadd.f32 %v6539, %v6959
    %6961 = vmatprep.mubr.f32.mxu0 0.0
    %6962 = vmatmul.mubr.f32.gmra.mxu0 %v6247
    %v6963 = vpop.f32.mrf.mxu0
    %v6964 = vadd.f32 %v6535, %v6963
    %v6965 = vpop.f32.mrf.mxu0
    %v6966 = vadd.f32 %v6539, %v6965
    %6967 = vdwg.mxu0
    %6968 = vmatprep.subr.mxu0 %v6497
    %6969 = vmatpush1.msra.mxu0 %v6496
    %6970 = vmatprep.subr.mxu0 %v6481
    %6971 = vmatpush1.msra.mxu0 %v6480
    %6972 = vmatprep.subr.mxu0 %v6465
    %6973 = vmatpush1.msra.mxu0 %v6464
    %6974 = vmatprep.subr.mxu0 %v6449
    %6975 = vmatpush1.msra.mxu0 %v6448
    %6976 = vmatprep.subr.mxu0 %v6433
    %6977 = vmatpush1.msra.mxu0 %v6432
    %6978 = vmatprep.subr.mxu0 %v6417
    %6979 = vmatpush1.msra.mxu0 %v6416
    %6980 = vmatprep.subr.mxu0 %v6401
    %6981 = vmatpush1.msra.mxu0 %v6400
    %6982 = vmatprep.subr.mxu0 %v6385
    %6983 = vmatpush1.msra.mxu0 %v6384
    %6984 = vmatprep.subr.mxu0 %v6369
    %6985 = vmatpush1.msra.mxu0 %v6368
    %6986 = vmatprep.subr.mxu0 %v6353
    %6987 = vmatpush1.msra.mxu0 %v6352
    %6988 = vmatprep.subr.mxu0 %v6337
    %6989 = vmatpush1.msra.mxu0 %v6336
    %6990 = vmatprep.subr.mxu0 %v6321
    %6991 = vmatpush1.msra.mxu0 %v6320
    %6992 = vmatprep.subr.mxu0 %v6305
    %6993 = vmatpush1.msra.mxu0 %v6304
    %6994 = vmatprep.subr.mxu0 %v6289
    %6995 = vmatpush1.msra.mxu0 %v6288
    %6996 = vmatprep.subr.mxu0 %v6273
    %6997 = vmatpush1.msra.mxu0 %v6272
    %6998 = vmatprep.subr.mxu0 %v6257
    %6999 = vmatpush1.msra.mxu0 %v6256
    %7000 = vmatprep.subr.mxu0 0.0
    %7001 = vmatpush2.msra.mxu0 0.0
    %7002 = vmatprep.subr.mxu0 0.0
    %7003 = vmatpush2.msra.mxu0 0.0
    %7004 = vmatprep.subr.mxu0 0.0
    %7005 = vmatpush2.msra.mxu0 0.0
    %7006 = vmatprep.subr.mxu0 0.0
    %7007 = vmatpush2.msra.mxu0 0.0
    %7008 = vmatprep.subr.mxu0 0.0
    %7009 = vmatpush2.msra.mxu0 0.0
    %7010 = vmatprep.subr.mxu0 0.0
    %7011 = vmatpush2.msra.mxu0 0.0
    %7012 = vmatprep.subr.mxu0 0.0
    %7013 = vmatpush2.msra.mxu0 0.0
    %7014 = vmatprep.subr.mxu0 0.0
    %7015 = vmatpush2.msra.mxu0 0.0
    %7016 = vmatprep.subr.mxu0 0.0
    %7017 = vmatpush2.msra.mxu0 0.0
    %7018 = vmatprep.subr.mxu0 0.0
    %7019 = vmatpush2.msra.mxu0 0.0
    %7020 = vmatprep.subr.mxu0 0.0
    %7021 = vmatpush2.msra.mxu0 0.0
    %7022 = vmatprep.subr.mxu0 0.0
    %7023 = vmatpush2.msra.mxu0 0.0
    %7024 = vmatprep.subr.mxu0 0.0
    %7025 = vmatpush2.msra.mxu0 0.0
    %7026 = vmatprep.subr.mxu0 0.0
    %7027 = vmatpush2.msra.mxu0 0.0
    %7028 = vmatprep.subr.mxu0 0.0
    %7029 = vmatpush2.msra.mxu0 0.0
    %7030 = vmatprep.subr.mxu0 0.0
    %7031 = vmatpush2.msra.mxu0 0.0
    %7032 = vmatprep.mubr.f32.mxu0 0.0
    %7033 = vmatmul.mubr.f32.gmra.mxu0 %v6243
    %v7034 = vpop.f32.mrf.mxu0
    %v7035 = vadd.f32 %v6543, %v7034
    %v7036 = vpop.f32.mrf.mxu0
    %v7037 = vadd.f32 %v6547, %v7036
    %7038 = vmatprep.mubr.f32.mxu0 0.0
    %7039 = vmatmul.mubr.f32.gmra.mxu0 %v6244
    %v7040 = vpop.f32.mrf.mxu0
    %v7041 = vadd.f32 %v6543, %v7040
    %v7042 = vpop.f32.mrf.mxu0
    %v7043 = vadd.f32 %v6547, %v7042
    %7044 = vmatprep.mubr.f32.mxu0 0.0
    %7045 = vmatmul.mubr.f32.gmra.mxu0 %v6245
    %v7046 = vpop.f32.mrf.mxu0
    %v7047 = vadd.f32 %v6543, %v7046
    %v7048 = vpop.f32.mrf.mxu0
    %v7049 = vadd.f32 %v6547, %v7048
    %7050 = vmatprep.mubr.f32.mxu0 0.0
    %7051 = vmatmul.mubr.f32.gmra.mxu0 %v6246
    %v7052 = vpop.f32.mrf.mxu0
    %v7053 = vadd.f32 %v6543, %v7052
    %v7054 = vpop.f32.mrf.mxu0
    %v7055 = vadd.f32 %v6547, %v7054
    %7056 = vmatprep.mubr.f32.mxu0 0.0
    %7057 = vmatmul.mubr.f32.gmra.mxu0 %v6247
    %v7058 = vpop.f32.mrf.mxu0
    %v7059 = vadd.f32 %v6543, %v7058
    %v7060 = vpop.f32.mrf.mxu0
    %v7061 = vadd.f32 %v6547, %v7060
    %7062 = vdwg.mxu0
    %7063 = vmatprep.subr.mxu0 %v6499
    %7064 = vmatpush1.msra.mxu0 %v6498
    %7065 = vmatprep.subr.mxu0 %v6483
    %7066 = vmatpush1.msra.mxu0 %v6482
    %7067 = vmatprep.subr.mxu0 %v6467
    %7068 = vmatpush1.msra.mxu0 %v6466
    %7069 = vmatprep.subr.mxu0 %v6451
    %7070 = vmatpush1.msra.mxu0 %v6450
    %7071 = vmatprep.subr.mxu0 %v6435
    %7072 = vmatpush1.msra.mxu0 %v6434
    %7073 = vmatprep.subr.mxu0 %v6419
    %7074 = vmatpush1.msra.mxu0 %v6418
    %7075 = vmatprep.subr.mxu0 %v6403
    %7076 = vmatpush1.msra.mxu0 %v6402
    %7077 = vmatprep.subr.mxu0 %v6387
    %7078 = vmatpush1.msra.mxu0 %v6386
    %7079 = vmatprep.subr.mxu0 %v6371
    %7080 = vmatpush1.msra.mxu0 %v6370
    %7081 = vmatprep.subr.mxu0 %v6355
    %7082 = vmatpush1.msra.mxu0 %v6354
    %7083 = vmatprep.subr.mxu0 %v6339
    %7084 = vmatpush1.msra.mxu0 %v6338
    %7085 = vmatprep.subr.mxu0 %v6323
    %7086 = vmatpush1.msra.mxu0 %v6322
    %7087 = vmatprep.subr.mxu0 %v6307
    %7088 = vmatpush1.msra.mxu0 %v6306
    %7089 = vmatprep.subr.mxu0 %v6291
    %7090 = vmatpush1.msra.mxu0 %v6290
    %7091 = vmatprep.subr.mxu0 %v6275
    %7092 = vmatpush1.msra.mxu0 %v6274
    %7093 = vmatprep.subr.mxu0 %v6259
    %7094 = vmatpush1.msra.mxu0 %v6258
    %7095 = vmatprep.subr.mxu0 0.0
    %7096 = vmatpush2.msra.mxu0 0.0
    %7097 = vmatprep.subr.mxu0 0.0
    %7098 = vmatpush2.msra.mxu0 0.0
    %7099 = vmatprep.subr.mxu0 0.0
    %7100 = vmatpush2.msra.mxu0 0.0
    %7101 = vmatprep.subr.mxu0 0.0
    %7102 = vmatpush2.msra.mxu0 0.0
    %7103 = vmatprep.subr.mxu0 0.0
    %7104 = vmatpush2.msra.mxu0 0.0
    %7105 = vmatprep.subr.mxu0 0.0
    %7106 = vmatpush2.msra.mxu0 0.0
    %7107 = vmatprep.subr.mxu0 0.0
    %7108 = vmatpush2.msra.mxu0 0.0
    %7109 = vmatprep.subr.mxu0 0.0
    %7110 = vmatpush2.msra.mxu0 0.0
    %7111 = vmatprep.subr.mxu0 0.0
    %7112 = vmatpush2.msra.mxu0 0.0
    %7113 = vmatprep.subr.mxu0 0.0
    %7114 = vmatpush2.msra.mxu0 0.0
    %7115 = vmatprep.subr.mxu0 0.0
    %7116 = vmatpush2.msra.mxu0 0.0
    %7117 = vmatprep.subr.mxu0 0.0
    %7118 = vmatpush2.msra.mxu0 0.0
    %7119 = vmatprep.subr.mxu0 0.0
    %7120 = vmatpush2.msra.mxu0 0.0
    %7121 = vmatprep.subr.mxu0 0.0
    %7122 = vmatpush2.msra.mxu0 0.0
    %7123 = vmatprep.subr.mxu0 0.0
    %7124 = vmatpush2.msra.mxu0 0.0
    %7125 = vmatprep.subr.mxu0 0.0
    %7126 = vmatpush2.msra.mxu0 0.0
    %7127 = vmatprep.mubr.f32.mxu0 0.0
    %7128 = vmatmul.mubr.f32.gmra.mxu0 %v6243
    %v7129 = vpop.f32.mrf.mxu0
    %v7130 = vadd.f32 %v6551, %v7129
    %v7131 = vpop.f32.mrf.mxu0
    %v7132 = vadd.f32 %v6555, %v7131
    %7133 = vmatprep.mubr.f32.mxu0 0.0
    %7134 = vmatmul.mubr.f32.gmra.mxu0 %v6244
    %v7135 = vpop.f32.mrf.mxu0
    %v7136 = vadd.f32 %v6551, %v7135
    %v7137 = vpop.f32.mrf.mxu0
    %v7138 = vadd.f32 %v6555, %v7137
    %7139 = vmatprep.mubr.f32.mxu0 0.0
    %7140 = vmatmul.mubr.f32.gmra.mxu0 %v6245
    %v7141 = vpop.f32.mrf.mxu0
    %v7142 = vadd.f32 %v6551, %v7141
    %v7143 = vpop.f32.mrf.mxu0
    %v7144 = vadd.f32 %v6555, %v7143
    %7145 = vmatprep.mubr.f32.mxu0 0.0
    %7146 = vmatmul.mubr.f32.gmra.mxu0 %v6246
    %v7147 = vpop.f32.mrf.mxu0
    %v7148 = vadd.f32 %v6551, %v7147
    %v7149 = vpop.f32.mrf.mxu0
    %v7150 = vadd.f32 %v6555, %v7149
    %7151 = vmatprep.mubr.f32.mxu0 0.0
    %7152 = vmatmul.mubr.f32.gmra.mxu0 %v6247
    %v7153 = vpop.f32.mrf.mxu0
    %v7154 = vadd.f32 %v6551, %v7153
    %v7155 = vpop.f32.mrf.mxu0
    %v7156 = vadd.f32 %v6555, %v7155
    %7157 = vdwg.mxu0
    %7158 = vmatprep.subr.mxu0 %v6501
    %7159 = vmatpush1.msra.mxu0 %v6500
    %7160 = vmatprep.subr.mxu0 %v6485
    %7161 = vmatpush1.msra.mxu0 %v6484
    %7162 = vmatprep.subr.mxu0 %v6469
    %7163 = vmatpush1.msra.mxu0 %v6468
    %7164 = vmatprep.subr.mxu0 %v6453
    %7165 = vmatpush1.msra.mxu0 %v6452
    %7166 = vmatprep.subr.mxu0 %v6437
    %7167 = vmatpush1.msra.mxu0 %v6436
    %7168 = vmatprep.subr.mxu0 %v6421
    %7169 = vmatpush1.msra.mxu0 %v6420
    %7170 = vmatprep.subr.mxu0 %v6405
    %7171 = vmatpush1.msra.mxu0 %v6404
    %7172 = vmatprep.subr.mxu0 %v6389
    %7173 = vmatpush1.msra.mxu0 %v6388
    %7174 = vmatprep.subr.mxu0 %v6373
    %7175 = vmatpush1.msra.mxu0 %v6372
    %7176 = vmatprep.subr.mxu0 %v6357
    %7177 = vmatpush1.msra.mxu0 %v6356
    %7178 = vmatprep.subr.mxu0 %v6341
    %7179 = vmatpush1.msra.mxu0 %v6340
    %7180 = vmatprep.subr.mxu0 %v6325
    %7181 = vmatpush1.msra.mxu0 %v6324
    %7182 = vmatprep.subr.mxu0 %v6309
    %7183 = vmatpush1.msra.mxu0 %v6308
    %7184 = vmatprep.subr.mxu0 %v6293
    %7185 = vmatpush1.msra.mxu0 %v6292
    %7186 = vmatprep.subr.mxu0 %v6277
    %7187 = vmatpush1.msra.mxu0 %v6276
    %7188 = vmatprep.subr.mxu0 %v6261
    %7189 = vmatpush1.msra.mxu0 %v6260
    %7190 = vmatprep.subr.mxu0 0.0
    %7191 = vmatpush2.msra.mxu0 0.0
    %7192 = vmatprep.subr.mxu0 0.0
    %7193 = vmatpush2.msra.mxu0 0.0
    %7194 = vmatprep.subr.mxu0 0.0
    %7195 = vmatpush2.msra.mxu0 0.0
    %7196 = vmatprep.subr.mxu0 0.0
    %7197 = vmatpush2.msra.mxu0 0.0
    %7198 = vmatprep.subr.mxu0 0.0
    %7199 = vmatpush2.msra.mxu0 0.0
    %7200 = vmatprep.subr.mxu0 0.0
    %7201 = vmatpush2.msra.mxu0 0.0
    %7202 = vmatprep.subr.mxu0 0.0
    %7203 = vmatpush2.msra.mxu0 0.0
    %7204 = vmatprep.subr.mxu0 0.0
    %7205 = vmatpush2.msra.mxu0 0.0
    %7206 = vmatprep.subr.mxu0 0.0
    %7207 = vmatpush2.msra.mxu0 0.0
    %7208 = vmatprep.subr.mxu0 0.0
    %7209 = vmatpush2.msra.mxu0 0.0
    %7210 = vmatprep.subr.mxu0 0.0
    %7211 = vmatpush2.msra.mxu0 0.0
    %7212 = vmatprep.subr.mxu0 0.0
    %7213 = vmatpush2.msra.mxu0 0.0
    %7214 = vmatprep.subr.mxu0 0.0
    %7215 = vmatpush2.msra.mxu0 0.0
    %7216 = vmatprep.subr.mxu0 0.0
    %7217 = vmatpush2.msra.mxu0 0.0
    %7218 = vmatprep.subr.mxu0 0.0
    %7219 = vmatpush2.msra.mxu0 0.0
    %7220 = vmatprep.subr.mxu0 0.0
    %7221 = vmatpush2.msra.mxu0 0.0
    %7222 = vmatprep.mubr.f32.mxu0 0.0
    %7223 = vmatmul.mubr.f32.gmra.mxu0 %v6243
    %v7224 = vpop.f32.mrf.mxu0
    %v7225 = vadd.f32 %v6559, %v7224
    %v7226 = vpop.f32.mrf.mxu0
    %v7227 = vadd.f32 %v6563, %v7226
    %7228 = vmatprep.mubr.f32.mxu0 0.0
    %7229 = vmatmul.mubr.f32.gmra.mxu0 %v6244
    %v7230 = vpop.f32.mrf.mxu0
    %v7231 = vadd.f32 %v6559, %v7230
    %v7232 = vpop.f32.mrf.mxu0
    %v7233 = vadd.f32 %v6563, %v7232
    %7234 = vmatprep.mubr.f32.mxu0 0.0
    %7235 = vmatmul.mubr.f32.gmra.mxu0 %v6245
    %v7236 = vpop.f32.mrf.mxu0
    %v7237 = vadd.f32 %v6559, %v7236
    %v7238 = vpop.f32.mrf.mxu0
    %v7239 = vadd.f32 %v6563, %v7238
    %7240 = vmatprep.mubr.f32.mxu0 0.0
    %7241 = vmatmul.mubr.f32.gmra.mxu0 %v6246
    %v7242 = vpop.f32.mrf.mxu0
    %v7243 = vadd.f32 %v6559, %v7242
    %v7244 = vpop.f32.mrf.mxu0
    %v7245 = vadd.f32 %v6563, %v7244
    %7246 = vmatprep.mubr.f32.mxu0 0.0
    %7247 = vmatmul.mubr.f32.gmra.mxu0 %v6247
    %v7248 = vpop.f32.mrf.mxu0
    %v7249 = vadd.f32 %v6559, %v7248
    %v7250 = vpop.f32.mrf.mxu0
    %v7251 = vadd.f32 %v6563, %v7250
    %7252 = vdwg.mxu0
    %7253 = vmatprep.subr.mxu0 %v6503
    %7254 = vmatpush1.msra.mxu0 %v6502
    %7255 = vmatprep.subr.mxu0 %v6487
    %7256 = vmatpush1.msra.mxu0 %v6486
    %7257 = vmatprep.subr.mxu0 %v6471
    %7258 = vmatpush1.msra.mxu0 %v6470
    %7259 = vmatprep.subr.mxu0 %v6455
    %7260 = vmatpush1.msra.mxu0 %v6454
    %7261 = vmatprep.subr.mxu0 %v6439
    %7262 = vmatpush1.msra.mxu0 %v6438
    %7263 = vmatprep.subr.mxu0 %v6423
    %7264 = vmatpush1.msra.mxu0 %v6422
    %7265 = vmatprep.subr.mxu0 %v6407
    %7266 = vmatpush1.msra.mxu0 %v6406
    %7267 = vmatprep.subr.mxu0 %v6391
    %7268 = vmatpush1.msra.mxu0 %v6390
    %7269 = vmatprep.subr.mxu0 %v6375
    %7270 = vmatpush1.msra.mxu0 %v6374
    %7271 = vmatprep.subr.mxu0 %v6359
    %7272 = vmatpush1.msra.mxu0 %v6358
    %7273 = vmatprep.subr.mxu0 %v6343
    %7274 = vmatpush1.msra.mxu0 %v6342
    %7275 = vmatprep.subr.mxu0 %v6327
    %7276 = vmatpush1.msra.mxu0 %v6326
    %7277 = vmatprep.subr.mxu0 %v6311
    %7278 = vmatpush1.msra.mxu0 %v6310
    %7279 = vmatprep.subr.mxu0 %v6295
    %7280 = vmatpush1.msra.mxu0 %v6294
    %7281 = vmatprep.subr.mxu0 %v6279
    %7282 = vmatpush1.msra.mxu0 %v6278
    %7283 = vmatprep.subr.mxu0 %v6263
    %7284 = vmatpush1.msra.mxu0 %v6262
    %7285 = vmatprep.subr.mxu0 0.0
    %7286 = vmatpush2.msra.mxu0 0.0
    %7287 = vmatprep.subr.mxu0 0.0
    %7288 = vmatpush2.msra.mxu0 0.0
    %7289 = vmatprep.subr.mxu0 0.0
    %7290 = vmatpush2.msra.mxu0 0.0
    %7291 = vmatprep.subr.mxu0 0.0
    %7292 = vmatpush2.msra.mxu0 0.0
    %7293 = vmatprep.subr.mxu0 0.0
    %7294 = vmatpush2.msra.mxu0 0.0
    %7295 = vmatprep.subr.mxu0 0.0
    %7296 = vmatpush2.msra.mxu0 0.0
    %7297 = vmatprep.subr.mxu0 0.0
    %7298 = vmatpush2.msra.mxu0 0.0
    %7299 = vmatprep.subr.mxu0 0.0
    %7300 = vmatpush2.msra.mxu0 0.0
    %7301 = vmatprep.subr.mxu0 0.0
    %7302 = vmatpush2.msra.mxu0 0.0
    %7303 = vmatprep.subr.mxu0 0.0
    %7304 = vmatpush2.msra.mxu0 0.0
    %7305 = vmatprep.subr.mxu0 0.0
    %7306 = vmatpush2.msra.mxu0 0.0
    %7307 = vmatprep.subr.mxu0 0.0
    %7308 = vmatpush2.msra.mxu0 0.0
    %7309 = vmatprep.subr.mxu0 0.0
    %7310 = vmatpush2.msra.mxu0 0.0
    %7311 = vmatprep.subr.mxu0 0.0
    %7312 = vmatpush2.msra.mxu0 0.0
    %7313 = vmatprep.subr.mxu0 0.0
    %7314 = vmatpush2.msra.mxu0 0.0
    %7315 = vmatprep.subr.mxu0 0.0
    %7316 = vmatpush2.msra.mxu0 0.0
    %7317 = vmatprep.mubr.f32.mxu0 0.0
    %7318 = vmatmul.mubr.f32.gmra.mxu0 %v6243
    %v7319 = vpop.f32.mrf.mxu0
    %v7320 = vadd.f32 %v6567, %v7319
    %v7321 = vpop.f32.mrf.mxu0
    %v7322 = vadd.f32 %v6571, %v7321
    %7323 = vmatprep.mubr.f32.mxu0 0.0
    %7324 = vmatmul.mubr.f32.gmra.mxu0 %v6244
    %v7325 = vpop.f32.mrf.mxu0
    %v7326 = vadd.f32 %v6567, %v7325
    %v7327 = vpop.f32.mrf.mxu0
    %v7328 = vadd.f32 %v6571, %v7327
    %7329 = vmatprep.mubr.f32.mxu0 0.0
    %7330 = vmatmul.mubr.f32.gmra.mxu0 %v6245
    %v7331 = vpop.f32.mrf.mxu0
    %v7332 = vadd.f32 %v6567, %v7331
    %v7333 = vpop.f32.mrf.mxu0
    %v7334 = vadd.f32 %v6571, %v7333
    %7335 = vmatprep.mubr.f32.mxu0 0.0
    %7336 = vmatmul.mubr.f32.gmra.mxu0 %v6246
    %v7337 = vpop.f32.mrf.mxu0
    %v7338 = vadd.f32 %v6567, %v7337
    %v7339 = vpop.f32.mrf.mxu0
    %v7340 = vadd.f32 %v6571, %v7339
    %7341 = vmatprep.mubr.f32.mxu0 0.0
    %7342 = vmatmul.mubr.f32.gmra.mxu0 %v6247
    %v7343 = vpop.f32.mrf.mxu0
    %v7344 = vadd.f32 %v6567, %v7343
    %v7345 = vpop.f32.mrf.mxu0
    %v7346 = vadd.f32 %v6571, %v7345
    %7347 = vdwg.mxu0
    %v7348 = vmax.f32 %v6655, 0.0
    %v7349 = vmax.f32 %v6657, 0.0
    %v7350 = vmax.f32 %v6750, 0.0
    %v7351 = vmax.f32 %v6752, 0.0
    %v7352 = vmax.f32 %v6845, 0.0
    %v7353 = vmax.f32 %v6847, 0.0
    %v7354 = vmax.f32 %v6940, 0.0
    %v7355 = vmax.f32 %v6942, 0.0
    %v7356 = vmax.f32 %v7035, 0.0
    %v7357 = vmax.f32 %v7037, 0.0
    %v7358 = vmax.f32 %v7130, 0.0
    %v7359 = vmax.f32 %v7132, 0.0
    %v7360 = vmax.f32 %v7225, 0.0
    %v7361 = vmax.f32 %v7227, 0.0
    %v7362 = vmax.f32 %v7320, 0.0
    %v7363 = vmax.f32 %v7322, 0.0
    %v7364 = vmax.f32 %v6661, 0.0
    %v7365 = vmax.f32 %v6663, 0.0
    %v7366 = vmax.f32 %v6756, 0.0
    %v7367 = vmax.f32 %v6758, 0.0
    %v7368 = vmax.f32 %v6851, 0.0
    %v7369 = vmax.f32 %v6853, 0.0
    %v7370 = vmax.f32 %v6946, 0.0
    %v7371 = vmax.f32 %v6948, 0.0
    %v7372 = vmax.f32 %v7041, 0.0
    %v7373 = vmax.f32 %v7043, 0.0
    %v7374 = vmax.f32 %v7136, 0.0
    %v7375 = vmax.f32 %v7138, 0.0
    %v7376 = vmax.f32 %v7231, 0.0
    %v7377 = vmax.f32 %v7233, 0.0
    %v7378 = vmax.f32 %v7326, 0.0
    %v7379 = vmax.f32 %v7328, 0.0
    %v7380 = vmax.f32 %v6667, 0.0
    %v7381 = vmax.f32 %v6669, 0.0
    %v7382 = vmax.f32 %v6762, 0.0
    %v7383 = vmax.f32 %v6764, 0.0
    %v7384 = vmax.f32 %v6857, 0.0
    %v7385 = vmax.f32 %v6859, 0.0
    %v7386 = vmax.f32 %v6952, 0.0
    %v7387 = vmax.f32 %v6954, 0.0
    %v7388 = vmax.f32 %v7047, 0.0
    %v7389 = vmax.f32 %v7049, 0.0
    %v7390 = vmax.f32 %v7142, 0.0
    %v7391 = vmax.f32 %v7144, 0.0
    %v7392 = vmax.f32 %v7237, 0.0
    %v7393 = vmax.f32 %v7239, 0.0
    %v7394 = vmax.f32 %v7332, 0.0
    %v7395 = vmax.f32 %v7334, 0.0
    %v7396 = vmax.f32 %v6673, 0.0
    %v7397 = vmax.f32 %v6675, 0.0
    %v7398 = vmax.f32 %v6768, 0.0
    %v7399 = vmax.f32 %v6770, 0.0
    %v7400 = vmax.f32 %v6863, 0.0
    %v7401 = vmax.f32 %v6865, 0.0
    %v7402 = vmax.f32 %v6958, 0.0
    %v7403 = vmax.f32 %v6960, 0.0
    %v7404 = vmax.f32 %v7053, 0.0
    %v7405 = vmax.f32 %v7055, 0.0
    %v7406 = vmax.f32 %v7148, 0.0
    %v7407 = vmax.f32 %v7150, 0.0
    %v7408 = vmax.f32 %v7243, 0.0
    %v7409 = vmax.f32 %v7245, 0.0
    %v7410 = vmax.f32 %v7338, 0.0
    %v7411 = vmax.f32 %v7340, 0.0
    %v7412 = vmax.f32 %v6679, 0.0
    %v7413 = vmax.f32 %v6681, 0.0
    %v7414 = vmax.f32 %v6774, 0.0
    %v7415 = vmax.f32 %v6776, 0.0
    %v7416 = vmax.f32 %v6869, 0.0
    %v7417 = vmax.f32 %v6871, 0.0
    %v7418 = vmax.f32 %v6964, 0.0
    %v7419 = vmax.f32 %v6966, 0.0
    %v7420 = vmax.f32 %v7059, 0.0
    %v7421 = vmax.f32 %v7061, 0.0
    %v7422 = vmax.f32 %v7154, 0.0
    %v7423 = vmax.f32 %v7156, 0.0
    %v7424 = vmax.f32 %v7249, 0.0
    %v7425 = vmax.f32 %v7251, 0.0
    %v7426 = vmax.f32 %v7344, 0.0
    %v7427 = vmax.f32 %v7346, 0.0
    %v7428 = vld [vmem:[#allocation23] sm:$0xff]
    %v7429 = vld [vmem:[#allocation23 + $0x8] sm:$0xff]
    %v7430 = vld [vmem:[#allocation23 + $0x10] sm:$0xff]
    %v7431 = vld [vmem:[#allocation23 + $0x18] sm:$0xff]
    %v7432 = vld [vmem:[#allocation23 + $0x20] sm:$0xff]
    %v7433 = vld [vmem:[#allocation23 + $0x28] sm:$0xff]
    %v7434 = vld [vmem:[#allocation23 + $0x30] sm:$0xff]
    %v7435 = vld [vmem:[#allocation23 + $0x38] sm:$0xff]
    %v7436 = vld [vmem:[#allocation23 + $0x40] sm:$0xff]
    %v7437 = vld [vmem:[#allocation23 + $0x48] sm:$0xff]
    %v7438 = vld [vmem:[#allocation23 + $0x50] sm:$0xff]
    %v7439 = vld [vmem:[#allocation23 + $0x58] sm:$0xff]
    %v7440 = vld [vmem:[#allocation23 + $0x60] sm:$0xff]
    %v7441 = vld [vmem:[#allocation23 + $0x68] sm:$0xff]
    %v7442 = vld [vmem:[#allocation23 + $0x70] sm:$0xff]
    %v7443 = vld [vmem:[#allocation23 + $0x78] sm:$0xff]
    %v7444 = vld [vmem:[#allocation23 + $0x80] sm:$0xff]
    %v7445 = vld [vmem:[#allocation23 + $0x88] sm:$0xff]
    %v7446 = vld [vmem:[#allocation23 + $0x90] sm:$0xff]
    %v7447 = vld [vmem:[#allocation23 + $0x98] sm:$0xff]
    %v7448 = vld [vmem:[#allocation23 + $0xa0] sm:$0xff]
    %v7449 = vld [vmem:[#allocation23 + $0xa8] sm:$0xff]
    %v7450 = vld [vmem:[#allocation23 + $0xb0] sm:$0xff]
    %v7451 = vld [vmem:[#allocation23 + $0xb8] sm:$0xff]
    %v7452 = vld [vmem:[#allocation23 + $0xc0] sm:$0xff]
    %v7453 = vld [vmem:[#allocation23 + $0xc8] sm:$0xff]
    %v7454 = vld [vmem:[#allocation23 + $0xd0] sm:$0xff]
    %v7455 = vld [vmem:[#allocation23 + $0xd8] sm:$0xff]
    %v7456 = vld [vmem:[#allocation23 + $0xe0] sm:$0xff]
    %v7457 = vld [vmem:[#allocation23 + $0xe8] sm:$0xff]
    %v7458 = vld [vmem:[#allocation23 + $0xf0] sm:$0xff]
    %v7459 = vld [vmem:[#allocation23 + $0xf8] sm:$0xff]
    %v7460 = vld [vmem:[#allocation23 + $0x100] sm:$0xff]
    %v7461 = vld [vmem:[#allocation23 + $0x108] sm:$0xff]
    %v7462 = vld [vmem:[#allocation23 + $0x110] sm:$0xff]
    %v7463 = vld [vmem:[#allocation23 + $0x118] sm:$0xff]
    %v7464 = vld [vmem:[#allocation23 + $0x120] sm:$0xff]
    %v7465 = vld [vmem:[#allocation23 + $0x128] sm:$0xff]
    %v7466 = vld [vmem:[#allocation23 + $0x130] sm:$0xff]
    %v7467 = vld [vmem:[#allocation23 + $0x138] sm:$0xff]
    %v7468 = vld [vmem:[#allocation23 + $0x140] sm:$0xff]
    %v7469 = vld [vmem:[#allocation23 + $0x148] sm:$0xff]
    %v7470 = vld [vmem:[#allocation23 + $0x150] sm:$0xff]
    %v7471 = vld [vmem:[#allocation23 + $0x158] sm:$0xff]
    %v7472 = vld [vmem:[#allocation23 + $0x160] sm:$0xff]
    %v7473 = vld [vmem:[#allocation23 + $0x168] sm:$0xff]
    %v7474 = vld [vmem:[#allocation23 + $0x170] sm:$0xff]
    %v7475 = vld [vmem:[#allocation23 + $0x178] sm:$0xff]
    %v7476 = vld [vmem:[#allocation23 + $0x180] sm:$0xff]
    %v7477 = vld [vmem:[#allocation23 + $0x188] sm:$0xff]
    %v7478 = vld [vmem:[#allocation23 + $0x190] sm:$0xff]
    %v7479 = vld [vmem:[#allocation23 + $0x198] sm:$0xff]
    %v7480 = vld [vmem:[#allocation23 + $0x1a0] sm:$0xff]
    %v7481 = vld [vmem:[#allocation23 + $0x1a8] sm:$0xff]
    %v7482 = vld [vmem:[#allocation23 + $0x1b0] sm:$0xff]
    %v7483 = vld [vmem:[#allocation23 + $0x1b8] sm:$0xff]
    %v7484 = vld [vmem:[#allocation23 + $0x1c0] sm:$0xff]
    %v7485 = vld [vmem:[#allocation23 + $0x1c8] sm:$0xff]
    %v7486 = vld [vmem:[#allocation23 + $0x1d0] sm:$0xff]
    %v7487 = vld [vmem:[#allocation23 + $0x1d8] sm:$0xff]
    %v7488 = vld [vmem:[#allocation23 + $0x1e0] sm:$0xff]
    %v7489 = vld [vmem:[#allocation23 + $0x1e8] sm:$0xff]
    %v7490 = vld [vmem:[#allocation23 + $0x1f0] sm:$0xff]
    %v7491 = vld [vmem:[#allocation23 + $0x1f8] sm:$0xff]
    %v7492 = vld [vmem:[#allocation23 + $0x200] sm:$0xff]
    %v7493 = vld [vmem:[#allocation23 + $0x208] sm:$0xff]
    %v7494 = vld [vmem:[#allocation23 + $0x210] sm:$0xff]
    %v7495 = vld [vmem:[#allocation23 + $0x218] sm:$0xff]
    %v7496 = vld [vmem:[#allocation23 + $0x220] sm:$0xff]
    %v7497 = vld [vmem:[#allocation23 + $0x228] sm:$0xff]
    %v7498 = vld [vmem:[#allocation23 + $0x230] sm:$0xff]
    %v7499 = vld [vmem:[#allocation23 + $0x238] sm:$0xff]
    %v7500 = vld [vmem:[#allocation23 + $0x240] sm:$0xff]
    %v7501 = vld [vmem:[#allocation23 + $0x248] sm:$0xff]
    %v7502 = vld [vmem:[#allocation23 + $0x250] sm:$0xff]
    %v7503 = vld [vmem:[#allocation23 + $0x258] sm:$0xff]
    %v7504 = vld [vmem:[#allocation23 + $0x260] sm:$0xff]
    %v7505 = vld [vmem:[#allocation23 + $0x268] sm:$0xff]
    %v7506 = vld [vmem:[#allocation23 + $0x270] sm:$0xff]
    %v7507 = vld [vmem:[#allocation23 + $0x278] sm:$0xff]
    %v7508 = vld [vmem:[#allocation23 + $0x280] sm:$0xff]
    %v7509 = vld [vmem:[#allocation23 + $0x288] sm:$0xff]
    %v7510 = vld [vmem:[#allocation23 + $0x290] sm:$0xff]
    %v7511 = vld [vmem:[#allocation23 + $0x298] sm:$0xff]
    %v7512 = vld [vmem:[#allocation23 + $0x2a0] sm:$0xff]
    %v7513 = vld [vmem:[#allocation23 + $0x2a8] sm:$0xff]
    %v7514 = vld [vmem:[#allocation23 + $0x2b0] sm:$0xff]
    %v7515 = vld [vmem:[#allocation23 + $0x2b8] sm:$0xff]
    %v7516 = vld [vmem:[#allocation23 + $0x2c0] sm:$0xff]
    %v7517 = vld [vmem:[#allocation23 + $0x2c8] sm:$0xff]
    %v7518 = vld [vmem:[#allocation23 + $0x2d0] sm:$0xff]
    %v7519 = vld [vmem:[#allocation23 + $0x2d8] sm:$0xff]
    %v7520 = vld [vmem:[#allocation23 + $0x2e0] sm:$0xff]
    %v7521 = vld [vmem:[#allocation23 + $0x2e8] sm:$0xff]
    %v7522 = vld [vmem:[#allocation23 + $0x2f0] sm:$0xff]
    %v7523 = vld [vmem:[#allocation23 + $0x2f8] sm:$0xff]
    %v7524 = vld [vmem:[#allocation23 + $0x300] sm:$0xff]
    %v7525 = vld [vmem:[#allocation23 + $0x308] sm:$0xff]
    %v7526 = vld [vmem:[#allocation23 + $0x310] sm:$0xff]
    %v7527 = vld [vmem:[#allocation23 + $0x318] sm:$0xff]
    %v7528 = vld [vmem:[#allocation23 + $0x320] sm:$0xff]
    %v7529 = vld [vmem:[#allocation23 + $0x328] sm:$0xff]
    %v7530 = vld [vmem:[#allocation23 + $0x330] sm:$0xff]
    %v7531 = vld [vmem:[#allocation23 + $0x338] sm:$0xff]
    %v7532 = vld [vmem:[#allocation23 + $0x340] sm:$0xff]
    %v7533 = vld [vmem:[#allocation23 + $0x348] sm:$0xff]
    %v7534 = vld [vmem:[#allocation23 + $0x350] sm:$0xff]
    %v7535 = vld [vmem:[#allocation23 + $0x358] sm:$0xff]
    %v7536 = vld [vmem:[#allocation23 + $0x360] sm:$0xff]
    %v7537 = vld [vmem:[#allocation23 + $0x368] sm:$0xff]
    %v7538 = vld [vmem:[#allocation23 + $0x370] sm:$0xff]
    %v7539 = vld [vmem:[#allocation23 + $0x378] sm:$0xff]
    %v7540 = vld [vmem:[#allocation23 + $0x380] sm:$0xff]
    %v7541 = vld [vmem:[#allocation23 + $0x388] sm:$0xff]
    %v7542 = vld [vmem:[#allocation23 + $0x390] sm:$0xff]
    %v7543 = vld [vmem:[#allocation23 + $0x398] sm:$0xff]
    %v7544 = vld [vmem:[#allocation23 + $0x3a0] sm:$0xff]
    %v7545 = vld [vmem:[#allocation23 + $0x3a8] sm:$0xff]
    %v7546 = vld [vmem:[#allocation23 + $0x3b0] sm:$0xff]
    %v7547 = vld [vmem:[#allocation23 + $0x3b8] sm:$0xff]
    %v7548 = vld [vmem:[#allocation23 + $0x3c0] sm:$0xff]
    %v7549 = vld [vmem:[#allocation23 + $0x3c8] sm:$0xff]
    %v7550 = vld [vmem:[#allocation23 + $0x3d0] sm:$0xff]
    %v7551 = vld [vmem:[#allocation23 + $0x3d8] sm:$0xff]
    %v7552 = vld [vmem:[#allocation23 + $0x3e0] sm:$0xff]
    %v7553 = vld [vmem:[#allocation23 + $0x3e8] sm:$0xff]
    %v7554 = vld [vmem:[#allocation23 + $0x3f0] sm:$0xff]
    %v7555 = vld [vmem:[#allocation23 + $0x3f8] sm:$0xff]
    %v7556 = vld [vmem:[#allocation23 + $0x400] sm:$0xff]
    %v7557 = vld [vmem:[#allocation23 + $0x408] sm:$0xff]
    %v7558 = vld [vmem:[#allocation23 + $0x410] sm:$0xff]
    %v7559 = vld [vmem:[#allocation23 + $0x418] sm:$0xff]
    %v7560 = vld [vmem:[#allocation23 + $0x420] sm:$0xff]
    %v7561 = vld [vmem:[#allocation23 + $0x428] sm:$0xff]
    %v7562 = vld [vmem:[#allocation23 + $0x430] sm:$0xff]
    %v7563 = vld [vmem:[#allocation23 + $0x438] sm:$0xff]
    %v7564 = vld [vmem:[#allocation23 + $0x440] sm:$0xff]
    %v7565 = vld [vmem:[#allocation23 + $0x448] sm:$0xff]
    %v7566 = vld [vmem:[#allocation23 + $0x450] sm:$0xff]
    %v7567 = vld [vmem:[#allocation23 + $0x458] sm:$0xff]
    %v7568 = vld [vmem:[#allocation23 + $0x460] sm:$0xff]
    %v7569 = vld [vmem:[#allocation23 + $0x468] sm:$0xff]
    %v7570 = vld [vmem:[#allocation23 + $0x470] sm:$0xff]
    %v7571 = vld [vmem:[#allocation23 + $0x478] sm:$0xff]
    %v7572 = vld [vmem:[#allocation23 + $0x480] sm:$0xff]
    %v7573 = vld [vmem:[#allocation23 + $0x488] sm:$0xff]
    %v7574 = vld [vmem:[#allocation23 + $0x490] sm:$0xff]
    %v7575 = vld [vmem:[#allocation23 + $0x498] sm:$0xff]
    %v7576 = vld [vmem:[#allocation23 + $0x4a0] sm:$0xff]
    %v7577 = vld [vmem:[#allocation23 + $0x4a8] sm:$0xff]
    %v7578 = vld [vmem:[#allocation23 + $0x4b0] sm:$0xff]
    %v7579 = vld [vmem:[#allocation23 + $0x4b8] sm:$0xff]
    %v7580 = vld [vmem:[#allocation23 + $0x4c0] sm:$0xff]
    %v7581 = vld [vmem:[#allocation23 + $0x4c8] sm:$0xff]
    %v7582 = vld [vmem:[#allocation23 + $0x4d0] sm:$0xff]
    %v7583 = vld [vmem:[#allocation23 + $0x4d8] sm:$0xff]
    %v7584 = vld [vmem:[#allocation23 + $0x4e0] sm:$0xff]
    %v7585 = vld [vmem:[#allocation23 + $0x4e8] sm:$0xff]
    %v7586 = vld [vmem:[#allocation23 + $0x4f0] sm:$0xff]
    %v7587 = vld [vmem:[#allocation23 + $0x4f8] sm:$0xff]
    %v7588 = vld [vmem:[#allocation23 + $0x500] sm:$0xff]
    %v7589 = vld [vmem:[#allocation23 + $0x508] sm:$0xff]
    %v7590 = vld [vmem:[#allocation23 + $0x510] sm:$0xff]
    %v7591 = vld [vmem:[#allocation23 + $0x518] sm:$0xff]
    %v7592 = vld [vmem:[#allocation23 + $0x520] sm:$0xff]
    %v7593 = vld [vmem:[#allocation23 + $0x528] sm:$0xff]
    %v7594 = vld [vmem:[#allocation23 + $0x530] sm:$0xff]
    %v7595 = vld [vmem:[#allocation23 + $0x538] sm:$0xff]
    %v7596 = vld [vmem:[#allocation23 + $0x540] sm:$0xff]
    %v7597 = vld [vmem:[#allocation23 + $0x548] sm:$0xff]
    %v7598 = vld [vmem:[#allocation23 + $0x550] sm:$0xff]
    %v7599 = vld [vmem:[#allocation23 + $0x558] sm:$0xff]
    %v7600 = vld [vmem:[#allocation23 + $0x560] sm:$0xff]
    %v7601 = vld [vmem:[#allocation23 + $0x568] sm:$0xff]
    %v7602 = vld [vmem:[#allocation23 + $0x570] sm:$0xff]
    %v7603 = vld [vmem:[#allocation23 + $0x578] sm:$0xff]
    %v7604 = vld [vmem:[#allocation23 + $0x580] sm:$0xff]
    %v7605 = vld [vmem:[#allocation23 + $0x588] sm:$0xff]
    %v7606 = vld [vmem:[#allocation23 + $0x590] sm:$0xff]
    %v7607 = vld [vmem:[#allocation23 + $0x598] sm:$0xff]
    %v7608 = vld [vmem:[#allocation23 + $0x5a0] sm:$0xff]
    %v7609 = vld [vmem:[#allocation23 + $0x5a8] sm:$0xff]
    %v7610 = vld [vmem:[#allocation23 + $0x5b0] sm:$0xff]
    %v7611 = vld [vmem:[#allocation23 + $0x5b8] sm:$0xff]
    %v7612 = vld [vmem:[#allocation23 + $0x5c0] sm:$0xff]
    %v7613 = vld [vmem:[#allocation23 + $0x5c8] sm:$0xff]
    %v7614 = vld [vmem:[#allocation23 + $0x5d0] sm:$0xff]
    %v7615 = vld [vmem:[#allocation23 + $0x5d8] sm:$0xff]
    %v7616 = vld [vmem:[#allocation23 + $0x5e0] sm:$0xff]
    %v7617 = vld [vmem:[#allocation23 + $0x5e8] sm:$0xff]
    %v7618 = vld [vmem:[#allocation23 + $0x5f0] sm:$0xff]
    %v7619 = vld [vmem:[#allocation23 + $0x5f8] sm:$0xff]
    %v7620 = vld [vmem:[#allocation23 + $0x600] sm:$0xff]
    %v7621 = vld [vmem:[#allocation23 + $0x608] sm:$0xff]
    %v7622 = vld [vmem:[#allocation23 + $0x610] sm:$0xff]
    %v7623 = vld [vmem:[#allocation23 + $0x618] sm:$0xff]
    %v7624 = vld [vmem:[#allocation23 + $0x620] sm:$0xff]
    %v7625 = vld [vmem:[#allocation23 + $0x628] sm:$0xff]
    %v7626 = vld [vmem:[#allocation23 + $0x630] sm:$0xff]
    %v7627 = vld [vmem:[#allocation23 + $0x638] sm:$0xff]
    %v7628 = vld [vmem:[#allocation23 + $0x640] sm:$0xff]
    %v7629 = vld [vmem:[#allocation23 + $0x648] sm:$0xff]
    %v7630 = vld [vmem:[#allocation23 + $0x650] sm:$0xff]
    %v7631 = vld [vmem:[#allocation23 + $0x658] sm:$0xff]
    %v7632 = vld [vmem:[#allocation23 + $0x660] sm:$0xff]
    %v7633 = vld [vmem:[#allocation23 + $0x668] sm:$0xff]
    %v7634 = vld [vmem:[#allocation23 + $0x670] sm:$0xff]
    %v7635 = vld [vmem:[#allocation23 + $0x678] sm:$0xff]
    %v7636 = vld [vmem:[#allocation23 + $0x680] sm:$0xff]
    %v7637 = vld [vmem:[#allocation23 + $0x688] sm:$0xff]
    %v7638 = vld [vmem:[#allocation23 + $0x690] sm:$0xff]
    %v7639 = vld [vmem:[#allocation23 + $0x698] sm:$0xff]
    %v7640 = vld [vmem:[#allocation23 + $0x6a0] sm:$0xff]
    %v7641 = vld [vmem:[#allocation23 + $0x6a8] sm:$0xff]
    %v7642 = vld [vmem:[#allocation23 + $0x6b0] sm:$0xff]
    %v7643 = vld [vmem:[#allocation23 + $0x6b8] sm:$0xff]
    %v7644 = vld [vmem:[#allocation23 + $0x6c0] sm:$0xff]
    %v7645 = vld [vmem:[#allocation23 + $0x6c8] sm:$0xff]
    %v7646 = vld [vmem:[#allocation23 + $0x6d0] sm:$0xff]
    %v7647 = vld [vmem:[#allocation23 + $0x6d8] sm:$0xff]
    %v7648 = vld [vmem:[#allocation23 + $0x6e0] sm:$0xff]
    %v7649 = vld [vmem:[#allocation23 + $0x6e8] sm:$0xff]
    %v7650 = vld [vmem:[#allocation23 + $0x6f0] sm:$0xff]
    %v7651 = vld [vmem:[#allocation23 + $0x6f8] sm:$0xff]
    %v7652 = vld [vmem:[#allocation23 + $0x700] sm:$0xff]
    %v7653 = vld [vmem:[#allocation23 + $0x708] sm:$0xff]
    %v7654 = vld [vmem:[#allocation23 + $0x710] sm:$0xff]
    %v7655 = vld [vmem:[#allocation23 + $0x718] sm:$0xff]
    %v7656 = vld [vmem:[#allocation23 + $0x720] sm:$0xff]
    %v7657 = vld [vmem:[#allocation23 + $0x728] sm:$0xff]
    %v7658 = vld [vmem:[#allocation23 + $0x730] sm:$0xff]
    %v7659 = vld [vmem:[#allocation23 + $0x738] sm:$0xff]
    %v7660 = vld [vmem:[#allocation23 + $0x740] sm:$0xff]
    %v7661 = vld [vmem:[#allocation23 + $0x748] sm:$0xff]
    %v7662 = vld [vmem:[#allocation23 + $0x750] sm:$0xff]
    %v7663 = vld [vmem:[#allocation23 + $0x758] sm:$0xff]
    %v7664 = vld [vmem:[#allocation23 + $0x760] sm:$0xff]
    %v7665 = vld [vmem:[#allocation23 + $0x768] sm:$0xff]
    %v7666 = vld [vmem:[#allocation23 + $0x770] sm:$0xff]
    %v7667 = vld [vmem:[#allocation23 + $0x778] sm:$0xff]
    %v7668 = vld [vmem:[#allocation23 + $0x780] sm:$0xff]
    %v7669 = vld [vmem:[#allocation23 + $0x788] sm:$0xff]
    %v7670 = vld [vmem:[#allocation23 + $0x790] sm:$0xff]
    %v7671 = vld [vmem:[#allocation23 + $0x798] sm:$0xff]
    %v7672 = vld [vmem:[#allocation23 + $0x7a0] sm:$0xff]
    %v7673 = vld [vmem:[#allocation23 + $0x7a8] sm:$0xff]
    %v7674 = vld [vmem:[#allocation23 + $0x7b0] sm:$0xff]
    %v7675 = vld [vmem:[#allocation23 + $0x7b8] sm:$0xff]
    %v7676 = vld [vmem:[#allocation23 + $0x7c0] sm:$0xff]
    %v7677 = vld [vmem:[#allocation23 + $0x7c8] sm:$0xff]
    %v7678 = vld [vmem:[#allocation23 + $0x7d0] sm:$0xff]
    %v7679 = vld [vmem:[#allocation23 + $0x7d8] sm:$0xff]
    %v7680 = vld [vmem:[#allocation23 + $0x7e0] sm:$0xff]
    %v7681 = vld [vmem:[#allocation23 + $0x7e8] sm:$0xff]
    %v7682 = vld [vmem:[#allocation23 + $0x7f0] sm:$0xff]
    %v7683 = vld [vmem:[#allocation23 + $0x7f8] sm:$0xff]
    %v7684 = vld [vmem:[#allocation25] sm:$0x1]
    %v7686 = vlaneseq
    %v7687 = vshrl.u32 %v7686, 7
    %v7688 = vsub.s32 0, %v7687
    %v7689 = vrot.slane %v7684, %v7688
    %7691 = vmatprep.subr.mxu0 0.0
    %7692 = vmatpush1.msra.mxu0 %v7443
    %7693 = vmatprep.subr.mxu0 0.0
    %7694 = vmatpush1.msra.mxu0 %v7442
    %7695 = vmatprep.subr.mxu0 0.0
    %7696 = vmatpush1.msra.mxu0 %v7441
    %7697 = vmatprep.subr.mxu0 0.0
    %7698 = vmatpush1.msra.mxu0 %v7440
    %7699 = vmatprep.subr.mxu0 0.0
    %7700 = vmatpush1.msra.mxu0 %v7439
    %7701 = vmatprep.subr.mxu0 0.0
    %7702 = vmatpush1.msra.mxu0 %v7438
    %7703 = vmatprep.subr.mxu0 0.0
    %7704 = vmatpush1.msra.mxu0 %v7437
    %7705 = vmatprep.subr.mxu0 0.0
    %7706 = vmatpush1.msra.mxu0 %v7436
    %7707 = vmatprep.subr.mxu0 0.0
    %7708 = vmatpush1.msra.mxu0 %v7435
    %7709 = vmatprep.subr.mxu0 0.0
    %7710 = vmatpush1.msra.mxu0 %v7434
    %7711 = vmatprep.subr.mxu0 0.0
    %7712 = vmatpush1.msra.mxu0 %v7433
    %7713 = vmatprep.subr.mxu0 0.0
    %7714 = vmatpush1.msra.mxu0 %v7432
    %7715 = vmatprep.subr.mxu0 0.0
    %7716 = vmatpush1.msra.mxu0 %v7431
    %7717 = vmatprep.subr.mxu0 0.0
    %7718 = vmatpush1.msra.mxu0 %v7430
    %7719 = vmatprep.subr.mxu0 0.0
    %7720 = vmatpush1.msra.mxu0 %v7429
    %7721 = vmatprep.subr.mxu0 0.0
    %7722 = vmatpush1.msra.mxu0 %v7428
    %7723 = vmatprep.subr.mxu0 0.0
    %7724 = vmatpush2.msra.mxu0 %v7459
    %7725 = vmatprep.subr.mxu0 0.0
    %7726 = vmatpush2.msra.mxu0 %v7458
    %7727 = vmatprep.subr.mxu0 0.0
    %7728 = vmatpush2.msra.mxu0 %v7457
    %7729 = vmatprep.subr.mxu0 0.0
    %7730 = vmatpush2.msra.mxu0 %v7456
    %7731 = vmatprep.subr.mxu0 0.0
    %7732 = vmatpush2.msra.mxu0 %v7455
    %7733 = vmatprep.subr.mxu0 0.0
    %7734 = vmatpush2.msra.mxu0 %v7454
    %7735 = vmatprep.subr.mxu0 0.0
    %7736 = vmatpush2.msra.mxu0 %v7453
    %7737 = vmatprep.subr.mxu0 0.0
    %7738 = vmatpush2.msra.mxu0 %v7452
    %7739 = vmatprep.subr.mxu0 0.0
    %7740 = vmatpush2.msra.mxu0 %v7451
    %7741 = vmatprep.subr.mxu0 0.0
    %7742 = vmatpush2.msra.mxu0 %v7450
    %7743 = vmatprep.subr.mxu0 0.0
    %7744 = vmatpush2.msra.mxu0 %v7449
    %7745 = vmatprep.subr.mxu0 0.0
    %7746 = vmatpush2.msra.mxu0 %v7448
    %7747 = vmatprep.subr.mxu0 0.0
    %7748 = vmatpush2.msra.mxu0 %v7447
    %7749 = vmatprep.subr.mxu0 0.0
    %7750 = vmatpush2.msra.mxu0 %v7446
    %7751 = vmatprep.subr.mxu0 0.0
    %7752 = vmatpush2.msra.mxu0 %v7445
    %7753 = vmatprep.subr.mxu0 0.0
    %7754 = vmatpush2.msra.mxu0 %v7444
    %7755 = vmatprep.mubr.f32.mxu0 %v7349
    %7756 = vmatmul.mubr.f32.gmra.mxu0 %v7348
    %v7757 = vpop.f32.mrf.mxu0
    %v7758 = vadd.f32 %v7689, %v7757
    %v7759 = vpop.f32.mrf.mxu0
    %7760 = vmatprep.mubr.f32.mxu0 %v7365
    %7761 = vmatmul.mubr.f32.gmra.mxu0 %v7364
    %v7762 = vpop.f32.mrf.mxu0
    %v7763 = vadd.f32 %v7689, %v7762
    %v7764 = vpop.f32.mrf.mxu0
    %7765 = vmatprep.mubr.f32.mxu0 %v7381
    %7766 = vmatmul.mubr.f32.gmra.mxu0 %v7380
    %v7767 = vpop.f32.mrf.mxu0
    %v7768 = vadd.f32 %v7689, %v7767
    %v7769 = vpop.f32.mrf.mxu0
    %7770 = vmatprep.mubr.f32.mxu0 %v7397
    %7771 = vmatmul.mubr.f32.gmra.mxu0 %v7396
    %v7772 = vpop.f32.mrf.mxu0
    %v7773 = vadd.f32 %v7689, %v7772
    %v7774 = vpop.f32.mrf.mxu0
    %7775 = vmatprep.mubr.f32.mxu0 %v7413
    %7776 = vmatmul.mubr.f32.gmra.mxu0 %v7412
    %v7777 = vpop.f32.mrf.mxu0
    %v7778 = vadd.f32 %v7689, %v7777
    %v7779 = vpop.f32.mrf.mxu0
    %7780 = vdwg.mxu0
    %7781 = vmatprep.subr.mxu0 0.0
    %7782 = vmatpush1.msra.mxu0 %v7475
    %7783 = vmatprep.subr.mxu0 0.0
    %7784 = vmatpush1.msra.mxu0 %v7474
    %7785 = vmatprep.subr.mxu0 0.0
    %7786 = vmatpush1.msra.mxu0 %v7473
    %7787 = vmatprep.subr.mxu0 0.0
    %7788 = vmatpush1.msra.mxu0 %v7472
    %7789 = vmatprep.subr.mxu0 0.0
    %7790 = vmatpush1.msra.mxu0 %v7471
    %7791 = vmatprep.subr.mxu0 0.0
    %7792 = vmatpush1.msra.mxu0 %v7470
    %7793 = vmatprep.subr.mxu0 0.0
    %7794 = vmatpush1.msra.mxu0 %v7469
    %7795 = vmatprep.subr.mxu0 0.0
    %7796 = vmatpush1.msra.mxu0 %v7468
    %7797 = vmatprep.subr.mxu0 0.0
    %7798 = vmatpush1.msra.mxu0 %v7467
    %7799 = vmatprep.subr.mxu0 0.0
    %7800 = vmatpush1.msra.mxu0 %v7466
    %7801 = vmatprep.subr.mxu0 0.0
    %7802 = vmatpush1.msra.mxu0 %v7465
    %7803 = vmatprep.subr.mxu0 0.0
    %7804 = vmatpush1.msra.mxu0 %v7464
    %7805 = vmatprep.subr.mxu0 0.0
    %7806 = vmatpush1.msra.mxu0 %v7463
    %7807 = vmatprep.subr.mxu0 0.0
    %7808 = vmatpush1.msra.mxu0 %v7462
    %7809 = vmatprep.subr.mxu0 0.0
    %7810 = vmatpush1.msra.mxu0 %v7461
    %7811 = vmatprep.subr.mxu0 0.0
    %7812 = vmatpush1.msra.mxu0 %v7460
    %7813 = vmatprep.subr.mxu0 0.0
    %7814 = vmatpush2.msra.mxu0 %v7491
    %7815 = vmatprep.subr.mxu0 0.0
    %7816 = vmatpush2.msra.mxu0 %v7490
    %7817 = vmatprep.subr.mxu0 0.0
    %7818 = vmatpush2.msra.mxu0 %v7489
    %7819 = vmatprep.subr.mxu0 0.0
    %7820 = vmatpush2.msra.mxu0 %v7488
    %7821 = vmatprep.subr.mxu0 0.0
    %7822 = vmatpush2.msra.mxu0 %v7487
    %7823 = vmatprep.subr.mxu0 0.0
    %7824 = vmatpush2.msra.mxu0 %v7486
    %7825 = vmatprep.subr.mxu0 0.0
    %7826 = vmatpush2.msra.mxu0 %v7485
    %7827 = vmatprep.subr.mxu0 0.0
    %7828 = vmatpush2.msra.mxu0 %v7484
    %7829 = vmatprep.subr.mxu0 0.0
    %7830 = vmatpush2.msra.mxu0 %v7483
    %7831 = vmatprep.subr.mxu0 0.0
    %7832 = vmatpush2.msra.mxu0 %v7482
    %7833 = vmatprep.subr.mxu0 0.0
    %7834 = vmatpush2.msra.mxu0 %v7481
    %7835 = vmatprep.subr.mxu0 0.0
    %7836 = vmatpush2.msra.mxu0 %v7480
    %7837 = vmatprep.subr.mxu0 0.0
    %7838 = vmatpush2.msra.mxu0 %v7479
    %7839 = vmatprep.subr.mxu0 0.0
    %7840 = vmatpush2.msra.mxu0 %v7478
    %7841 = vmatprep.subr.mxu0 0.0
    %7842 = vmatpush2.msra.mxu0 %v7477
    %7843 = vmatprep.subr.mxu0 0.0
    %7844 = vmatpush2.msra.mxu0 %v7476
    %7845 = vmatprep.mubr.f32.mxu0 %v7351
    %7846 = vmatmul.mubr.f32.gmra.mxu0 %v7350
    %v7847 = vpop.f32.mrf.mxu0
    %v7848 = vadd.f32 %v7758, %v7847
    %v7849 = vpop.f32.mrf.mxu0
    %7850 = vmatprep.mubr.f32.mxu0 %v7367
    %7851 = vmatmul.mubr.f32.gmra.mxu0 %v7366
    %v7852 = vpop.f32.mrf.mxu0
    %v7853 = vadd.f32 %v7763, %v7852
    %v7854 = vpop.f32.mrf.mxu0
    %7855 = vmatprep.mubr.f32.mxu0 %v7383
    %7856 = vmatmul.mubr.f32.gmra.mxu0 %v7382
    %v7857 = vpop.f32.mrf.mxu0
    %v7858 = vadd.f32 %v7768, %v7857
    %v7859 = vpop.f32.mrf.mxu0
    %7860 = vmatprep.mubr.f32.mxu0 %v7399
    %7861 = vmatmul.mubr.f32.gmra.mxu0 %v7398
    %v7862 = vpop.f32.mrf.mxu0
    %v7863 = vadd.f32 %v7773, %v7862
    %v7864 = vpop.f32.mrf.mxu0
    %7865 = vmatprep.mubr.f32.mxu0 %v7415
    %7866 = vmatmul.mubr.f32.gmra.mxu0 %v7414
    %v7867 = vpop.f32.mrf.mxu0
    %v7868 = vadd.f32 %v7778, %v7867
    %v7869 = vpop.f32.mrf.mxu0
    %7870 = vdwg.mxu0
    %7871 = vmatprep.subr.mxu0 0.0
    %7872 = vmatpush1.msra.mxu0 %v7507
    %7873 = vmatprep.subr.mxu0 0.0
    %7874 = vmatpush1.msra.mxu0 %v7506
    %7875 = vmatprep.subr.mxu0 0.0
    %7876 = vmatpush1.msra.mxu0 %v7505
    %7877 = vmatprep.subr.mxu0 0.0
    %7878 = vmatpush1.msra.mxu0 %v7504
    %7879 = vmatprep.subr.mxu0 0.0
    %7880 = vmatpush1.msra.mxu0 %v7503
    %7881 = vmatprep.subr.mxu0 0.0
    %7882 = vmatpush1.msra.mxu0 %v7502
    %7883 = vmatprep.subr.mxu0 0.0
    %7884 = vmatpush1.msra.mxu0 %v7501
    %7885 = vmatprep.subr.mxu0 0.0
    %7886 = vmatpush1.msra.mxu0 %v7500
    %7887 = vmatprep.subr.mxu0 0.0
    %7888 = vmatpush1.msra.mxu0 %v7499
    %7889 = vmatprep.subr.mxu0 0.0
    %7890 = vmatpush1.msra.mxu0 %v7498
    %7891 = vmatprep.subr.mxu0 0.0
    %7892 = vmatpush1.msra.mxu0 %v7497
    %7893 = vmatprep.subr.mxu0 0.0
    %7894 = vmatpush1.msra.mxu0 %v7496
    %7895 = vmatprep.subr.mxu0 0.0
    %7896 = vmatpush1.msra.mxu0 %v7495
    %7897 = vmatprep.subr.mxu0 0.0
    %7898 = vmatpush1.msra.mxu0 %v7494
    %7899 = vmatprep.subr.mxu0 0.0
    %7900 = vmatpush1.msra.mxu0 %v7493
    %7901 = vmatprep.subr.mxu0 0.0
    %7902 = vmatpush1.msra.mxu0 %v7492
    %7903 = vmatprep.subr.mxu0 0.0
    %7904 = vmatpush2.msra.mxu0 %v7523
    %7905 = vmatprep.subr.mxu0 0.0
    %7906 = vmatpush2.msra.mxu0 %v7522
    %7907 = vmatprep.subr.mxu0 0.0
    %7908 = vmatpush2.msra.mxu0 %v7521
    %7909 = vmatprep.subr.mxu0 0.0
    %7910 = vmatpush2.msra.mxu0 %v7520
    %7911 = vmatprep.subr.mxu0 0.0
    %7912 = vmatpush2.msra.mxu0 %v7519
    %7913 = vmatprep.subr.mxu0 0.0
    %7914 = vmatpush2.msra.mxu0 %v7518
    %7915 = vmatprep.subr.mxu0 0.0
    %7916 = vmatpush2.msra.mxu0 %v7517
    %7917 = vmatprep.subr.mxu0 0.0
    %7918 = vmatpush2.msra.mxu0 %v7516
    %7919 = vmatprep.subr.mxu0 0.0
    %7920 = vmatpush2.msra.mxu0 %v7515
    %7921 = vmatprep.subr.mxu0 0.0
    %7922 = vmatpush2.msra.mxu0 %v7514
    %7923 = vmatprep.subr.mxu0 0.0
    %7924 = vmatpush2.msra.mxu0 %v7513
    %7925 = vmatprep.subr.mxu0 0.0
    %7926 = vmatpush2.msra.mxu0 %v7512
    %7927 = vmatprep.subr.mxu0 0.0
    %7928 = vmatpush2.msra.mxu0 %v7511
    %7929 = vmatprep.subr.mxu0 0.0
    %7930 = vmatpush2.msra.mxu0 %v7510
    %7931 = vmatprep.subr.mxu0 0.0
    %7932 = vmatpush2.msra.mxu0 %v7509
    %7933 = vmatprep.subr.mxu0 0.0
    %7934 = vmatpush2.msra.mxu0 %v7508
    %7935 = vmatprep.mubr.f32.mxu0 %v7353
    %7936 = vmatmul.mubr.f32.gmra.mxu0 %v7352
    %v7937 = vpop.f32.mrf.mxu0
    %v7938 = vadd.f32 %v7848, %v7937
    %v7939 = vpop.f32.mrf.mxu0
    %7940 = vmatprep.mubr.f32.mxu0 %v7369
    %7941 = vmatmul.mubr.f32.gmra.mxu0 %v7368
    %v7942 = vpop.f32.mrf.mxu0
    %v7943 = vadd.f32 %v7853, %v7942
    %v7944 = vpop.f32.mrf.mxu0
    %7945 = vmatprep.mubr.f32.mxu0 %v7385
    %7946 = vmatmul.mubr.f32.gmra.mxu0 %v7384
    %v7947 = vpop.f32.mrf.mxu0
    %v7948 = vadd.f32 %v7858, %v7947
    %v7949 = vpop.f32.mrf.mxu0
    %7950 = vmatprep.mubr.f32.mxu0 %v7401
    %7951 = vmatmul.mubr.f32.gmra.mxu0 %v7400
    %v7952 = vpop.f32.mrf.mxu0
    %v7953 = vadd.f32 %v7863, %v7952
    %v7954 = vpop.f32.mrf.mxu0
    %7955 = vmatprep.mubr.f32.mxu0 %v7417
    %7956 = vmatmul.mubr.f32.gmra.mxu0 %v7416
    %v7957 = vpop.f32.mrf.mxu0
    %v7958 = vadd.f32 %v7868, %v7957
    %v7959 = vpop.f32.mrf.mxu0
    %7960 = vdwg.mxu0
    %7961 = vmatprep.subr.mxu0 0.0
    %7962 = vmatpush1.msra.mxu0 %v7539
    %7963 = vmatprep.subr.mxu0 0.0
    %7964 = vmatpush1.msra.mxu0 %v7538
    %7965 = vmatprep.subr.mxu0 0.0
    %7966 = vmatpush1.msra.mxu0 %v7537
    %7967 = vmatprep.subr.mxu0 0.0
    %7968 = vmatpush1.msra.mxu0 %v7536
    %7969 = vmatprep.subr.mxu0 0.0
    %7970 = vmatpush1.msra.mxu0 %v7535
    %7971 = vmatprep.subr.mxu0 0.0
    %7972 = vmatpush1.msra.mxu0 %v7534
    %7973 = vmatprep.subr.mxu0 0.0
    %7974 = vmatpush1.msra.mxu0 %v7533
    %7975 = vmatprep.subr.mxu0 0.0
    %7976 = vmatpush1.msra.mxu0 %v7532
    %7977 = vmatprep.subr.mxu0 0.0
    %7978 = vmatpush1.msra.mxu0 %v7531
    %7979 = vmatprep.subr.mxu0 0.0
    %7980 = vmatpush1.msra.mxu0 %v7530
    %7981 = vmatprep.subr.mxu0 0.0
    %7982 = vmatpush1.msra.mxu0 %v7529
    %7983 = vmatprep.subr.mxu0 0.0
    %7984 = vmatpush1.msra.mxu0 %v7528
    %7985 = vmatprep.subr.mxu0 0.0
    %7986 = vmatpush1.msra.mxu0 %v7527
    %7987 = vmatprep.subr.mxu0 0.0
    %7988 = vmatpush1.msra.mxu0 %v7526
    %7989 = vmatprep.subr.mxu0 0.0
    %7990 = vmatpush1.msra.mxu0 %v7525
    %7991 = vmatprep.subr.mxu0 0.0
    %7992 = vmatpush1.msra.mxu0 %v7524
    %7993 = vmatprep.subr.mxu0 0.0
    %7994 = vmatpush2.msra.mxu0 %v7555
    %7995 = vmatprep.subr.mxu0 0.0
    %7996 = vmatpush2.msra.mxu0 %v7554
    %7997 = vmatprep.subr.mxu0 0.0
    %7998 = vmatpush2.msra.mxu0 %v7553
    %7999 = vmatprep.subr.mxu0 0.0
    %8000 = vmatpush2.msra.mxu0 %v7552
    %8001 = vmatprep.subr.mxu0 0.0
    %8002 = vmatpush2.msra.mxu0 %v7551
    %8003 = vmatprep.subr.mxu0 0.0
    %8004 = vmatpush2.msra.mxu0 %v7550
    %8005 = vmatprep.subr.mxu0 0.0
    %8006 = vmatpush2.msra.mxu0 %v7549
    %8007 = vmatprep.subr.mxu0 0.0
    %8008 = vmatpush2.msra.mxu0 %v7548
    %8009 = vmatprep.subr.mxu0 0.0
    %8010 = vmatpush2.msra.mxu0 %v7547
    %8011 = vmatprep.subr.mxu0 0.0
    %8012 = vmatpush2.msra.mxu0 %v7546
    %8013 = vmatprep.subr.mxu0 0.0
    %8014 = vmatpush2.msra.mxu0 %v7545
    %8015 = vmatprep.subr.mxu0 0.0
    %8016 = vmatpush2.msra.mxu0 %v7544
    %8017 = vmatprep.subr.mxu0 0.0
    %8018 = vmatpush2.msra.mxu0 %v7543
    %8019 = vmatprep.subr.mxu0 0.0
    %8020 = vmatpush2.msra.mxu0 %v7542
    %8021 = vmatprep.subr.mxu0 0.0
    %8022 = vmatpush2.msra.mxu0 %v7541
    %8023 = vmatprep.subr.mxu0 0.0
    %8024 = vmatpush2.msra.mxu0 %v7540
    %8025 = vmatprep.mubr.f32.mxu0 %v7355
    %8026 = vmatmul.mubr.f32.gmra.mxu0 %v7354
    %v8027 = vpop.f32.mrf.mxu0
    %v8028 = vadd.f32 %v7938, %v8027
    %v8029 = vpop.f32.mrf.mxu0
    %8030 = vmatprep.mubr.f32.mxu0 %v7371
    %8031 = vmatmul.mubr.f32.gmra.mxu0 %v7370
    %v8032 = vpop.f32.mrf.mxu0
    %v8033 = vadd.f32 %v7943, %v8032
    %v8034 = vpop.f32.mrf.mxu0
    %8035 = vmatprep.mubr.f32.mxu0 %v7387
    %8036 = vmatmul.mubr.f32.gmra.mxu0 %v7386
    %v8037 = vpop.f32.mrf.mxu0
    %v8038 = vadd.f32 %v7948, %v8037
    %v8039 = vpop.f32.mrf.mxu0
    %8040 = vmatprep.mubr.f32.mxu0 %v7403
    %8041 = vmatmul.mubr.f32.gmra.mxu0 %v7402
    %v8042 = vpop.f32.mrf.mxu0
    %v8043 = vadd.f32 %v7953, %v8042
    %v8044 = vpop.f32.mrf.mxu0
    %8045 = vmatprep.mubr.f32.mxu0 %v7419
    %8046 = vmatmul.mubr.f32.gmra.mxu0 %v7418
    %v8047 = vpop.f32.mrf.mxu0
    %v8048 = vadd.f32 %v7958, %v8047
    %v8049 = vpop.f32.mrf.mxu0
    %8050 = vdwg.mxu0
    %8051 = vmatprep.subr.mxu0 0.0
    %8052 = vmatpush1.msra.mxu0 %v7571
    %8053 = vmatprep.subr.mxu0 0.0
    %8054 = vmatpush1.msra.mxu0 %v7570
    %8055 = vmatprep.subr.mxu0 0.0
    %8056 = vmatpush1.msra.mxu0 %v7569
    %8057 = vmatprep.subr.mxu0 0.0
    %8058 = vmatpush1.msra.mxu0 %v7568
    %8059 = vmatprep.subr.mxu0 0.0
    %8060 = vmatpush1.msra.mxu0 %v7567
    %8061 = vmatprep.subr.mxu0 0.0
    %8062 = vmatpush1.msra.mxu0 %v7566
    %8063 = vmatprep.subr.mxu0 0.0
    %8064 = vmatpush1.msra.mxu0 %v7565
    %8065 = vmatprep.subr.mxu0 0.0
    %8066 = vmatpush1.msra.mxu0 %v7564
    %8067 = vmatprep.subr.mxu0 0.0
    %8068 = vmatpush1.msra.mxu0 %v7563
    %8069 = vmatprep.subr.mxu0 0.0
    %8070 = vmatpush1.msra.mxu0 %v7562
    %8071 = vmatprep.subr.mxu0 0.0
    %8072 = vmatpush1.msra.mxu0 %v7561
    %8073 = vmatprep.subr.mxu0 0.0
    %8074 = vmatpush1.msra.mxu0 %v7560
    %8075 = vmatprep.subr.mxu0 0.0
    %8076 = vmatpush1.msra.mxu0 %v7559
    %8077 = vmatprep.subr.mxu0 0.0
    %8078 = vmatpush1.msra.mxu0 %v7558
    %8079 = vmatprep.subr.mxu0 0.0
    %8080 = vmatpush1.msra.mxu0 %v7557
    %8081 = vmatprep.subr.mxu0 0.0
    %8082 = vmatpush1.msra.mxu0 %v7556
    %8083 = vmatprep.subr.mxu0 0.0
    %8084 = vmatpush2.msra.mxu0 %v7587
    %8085 = vmatprep.subr.mxu0 0.0
    %8086 = vmatpush2.msra.mxu0 %v7586
    %8087 = vmatprep.subr.mxu0 0.0
    %8088 = vmatpush2.msra.mxu0 %v7585
    %8089 = vmatprep.subr.mxu0 0.0
    %8090 = vmatpush2.msra.mxu0 %v7584
    %8091 = vmatprep.subr.mxu0 0.0
    %8092 = vmatpush2.msra.mxu0 %v7583
    %8093 = vmatprep.subr.mxu0 0.0
    %8094 = vmatpush2.msra.mxu0 %v7582
    %8095 = vmatprep.subr.mxu0 0.0
    %8096 = vmatpush2.msra.mxu0 %v7581
    %8097 = vmatprep.subr.mxu0 0.0
    %8098 = vmatpush2.msra.mxu0 %v7580
    %8099 = vmatprep.subr.mxu0 0.0
    %8100 = vmatpush2.msra.mxu0 %v7579
    %8101 = vmatprep.subr.mxu0 0.0
    %8102 = vmatpush2.msra.mxu0 %v7578
    %8103 = vmatprep.subr.mxu0 0.0
    %8104 = vmatpush2.msra.mxu0 %v7577
    %8105 = vmatprep.subr.mxu0 0.0
    %8106 = vmatpush2.msra.mxu0 %v7576
    %8107 = vmatprep.subr.mxu0 0.0
    %8108 = vmatpush2.msra.mxu0 %v7575
    %8109 = vmatprep.subr.mxu0 0.0
    %8110 = vmatpush2.msra.mxu0 %v7574
    %8111 = vmatprep.subr.mxu0 0.0
    %8112 = vmatpush2.msra.mxu0 %v7573
    %8113 = vmatprep.subr.mxu0 0.0
    %8114 = vmatpush2.msra.mxu0 %v7572
    %8115 = vmatprep.mubr.f32.mxu0 %v7357
    %8116 = vmatmul.mubr.f32.gmra.mxu0 %v7356
    %v8117 = vpop.f32.mrf.mxu0
    %v8118 = vadd.f32 %v8028, %v8117
    %v8119 = vpop.f32.mrf.mxu0
    %8120 = vmatprep.mubr.f32.mxu0 %v7373
    %8121 = vmatmul.mubr.f32.gmra.mxu0 %v7372
    %v8122 = vpop.f32.mrf.mxu0
    %v8123 = vadd.f32 %v8033, %v8122
    %v8124 = vpop.f32.mrf.mxu0
    %8125 = vmatprep.mubr.f32.mxu0 %v7389
    %8126 = vmatmul.mubr.f32.gmra.mxu0 %v7388
    %v8127 = vpop.f32.mrf.mxu0
    %v8128 = vadd.f32 %v8038, %v8127
    %v8129 = vpop.f32.mrf.mxu0
    %8130 = vmatprep.mubr.f32.mxu0 %v7405
    %8131 = vmatmul.mubr.f32.gmra.mxu0 %v7404
    %v8132 = vpop.f32.mrf.mxu0
    %v8133 = vadd.f32 %v8043, %v8132
    %v8134 = vpop.f32.mrf.mxu0
    %8135 = vmatprep.mubr.f32.mxu0 %v7421
    %8136 = vmatmul.mubr.f32.gmra.mxu0 %v7420
    %v8137 = vpop.f32.mrf.mxu0
    %v8138 = vadd.f32 %v8048, %v8137
    %v8139 = vpop.f32.mrf.mxu0
    %8140 = vdwg.mxu0
    %8141 = vmatprep.subr.mxu0 0.0
    %8142 = vmatpush1.msra.mxu0 %v7603
    %8143 = vmatprep.subr.mxu0 0.0
    %8144 = vmatpush1.msra.mxu0 %v7602
    %8145 = vmatprep.subr.mxu0 0.0
    %8146 = vmatpush1.msra.mxu0 %v7601
    %8147 = vmatprep.subr.mxu0 0.0
    %8148 = vmatpush1.msra.mxu0 %v7600
    %8149 = vmatprep.subr.mxu0 0.0
    %8150 = vmatpush1.msra.mxu0 %v7599
    %8151 = vmatprep.subr.mxu0 0.0
    %8152 = vmatpush1.msra.mxu0 %v7598
    %8153 = vmatprep.subr.mxu0 0.0
    %8154 = vmatpush1.msra.mxu0 %v7597
    %8155 = vmatprep.subr.mxu0 0.0
    %8156 = vmatpush1.msra.mxu0 %v7596
    %8157 = vmatprep.subr.mxu0 0.0
    %8158 = vmatpush1.msra.mxu0 %v7595
    %8159 = vmatprep.subr.mxu0 0.0
    %8160 = vmatpush1.msra.mxu0 %v7594
    %8161 = vmatprep.subr.mxu0 0.0
    %8162 = vmatpush1.msra.mxu0 %v7593
    %8163 = vmatprep.subr.mxu0 0.0
    %8164 = vmatpush1.msra.mxu0 %v7592
    %8165 = vmatprep.subr.mxu0 0.0
    %8166 = vmatpush1.msra.mxu0 %v7591
    %8167 = vmatprep.subr.mxu0 0.0
    %8168 = vmatpush1.msra.mxu0 %v7590
    %8169 = vmatprep.subr.mxu0 0.0
    %8170 = vmatpush1.msra.mxu0 %v7589
    %8171 = vmatprep.subr.mxu0 0.0
    %8172 = vmatpush1.msra.mxu0 %v7588
    %8173 = vmatprep.subr.mxu0 0.0
    %8174 = vmatpush2.msra.mxu0 %v7619
    %8175 = vmatprep.subr.mxu0 0.0
    %8176 = vmatpush2.msra.mxu0 %v7618
    %8177 = vmatprep.subr.mxu0 0.0
    %8178 = vmatpush2.msra.mxu0 %v7617
    %8179 = vmatprep.subr.mxu0 0.0
    %8180 = vmatpush2.msra.mxu0 %v7616
    %8181 = vmatprep.subr.mxu0 0.0
    %8182 = vmatpush2.msra.mxu0 %v7615
    %8183 = vmatprep.subr.mxu0 0.0
    %8184 = vmatpush2.msra.mxu0 %v7614
    %8185 = vmatprep.subr.mxu0 0.0
    %8186 = vmatpush2.msra.mxu0 %v7613
    %8187 = vmatprep.subr.mxu0 0.0
    %8188 = vmatpush2.msra.mxu0 %v7612
    %8189 = vmatprep.subr.mxu0 0.0
    %8190 = vmatpush2.msra.mxu0 %v7611
    %8191 = vmatprep.subr.mxu0 0.0
    %8192 = vmatpush2.msra.mxu0 %v7610
    %8193 = vmatprep.subr.mxu0 0.0
    %8194 = vmatpush2.msra.mxu0 %v7609
    %8195 = vmatprep.subr.mxu0 0.0
    %8196 = vmatpush2.msra.mxu0 %v7608
    %8197 = vmatprep.subr.mxu0 0.0
    %8198 = vmatpush2.msra.mxu0 %v7607
    %8199 = vmatprep.subr.mxu0 0.0
    %8200 = vmatpush2.msra.mxu0 %v7606
    %8201 = vmatprep.subr.mxu0 0.0
    %8202 = vmatpush2.msra.mxu0 %v7605
    %8203 = vmatprep.subr.mxu0 0.0
    %8204 = vmatpush2.msra.mxu0 %v7604
    %8205 = vmatprep.mubr.f32.mxu0 %v7359
    %8206 = vmatmul.mubr.f32.gmra.mxu0 %v7358
    %v8207 = vpop.f32.mrf.mxu0
    %v8208 = vadd.f32 %v8118, %v8207
    %v8209 = vpop.f32.mrf.mxu0
    %8210 = vmatprep.mubr.f32.mxu0 %v7375
    %8211 = vmatmul.mubr.f32.gmra.mxu0 %v7374
    %v8212 = vpop.f32.mrf.mxu0
    %v8213 = vadd.f32 %v8123, %v8212
    %v8214 = vpop.f32.mrf.mxu0
    %8215 = vmatprep.mubr.f32.mxu0 %v7391
    %8216 = vmatmul.mubr.f32.gmra.mxu0 %v7390
    %v8217 = vpop.f32.mrf.mxu0
    %v8218 = vadd.f32 %v8128, %v8217
    %v8219 = vpop.f32.mrf.mxu0
    %8220 = vmatprep.mubr.f32.mxu0 %v7407
    %8221 = vmatmul.mubr.f32.gmra.mxu0 %v7406
    %v8222 = vpop.f32.mrf.mxu0
    %v8223 = vadd.f32 %v8133, %v8222
    %v8224 = vpop.f32.mrf.mxu0
    %8225 = vmatprep.mubr.f32.mxu0 %v7423
    %8226 = vmatmul.mubr.f32.gmra.mxu0 %v7422
    %v8227 = vpop.f32.mrf.mxu0
    %v8228 = vadd.f32 %v8138, %v8227
    %v8229 = vpop.f32.mrf.mxu0
    %8230 = vdwg.mxu0
    %8231 = vmatprep.subr.mxu0 0.0
    %8232 = vmatpush1.msra.mxu0 %v7635
    %8233 = vmatprep.subr.mxu0 0.0
    %8234 = vmatpush1.msra.mxu0 %v7634
    %8235 = vmatprep.subr.mxu0 0.0
    %8236 = vmatpush1.msra.mxu0 %v7633
    %8237 = vmatprep.subr.mxu0 0.0
    %8238 = vmatpush1.msra.mxu0 %v7632
    %8239 = vmatprep.subr.mxu0 0.0
    %8240 = vmatpush1.msra.mxu0 %v7631
    %8241 = vmatprep.subr.mxu0 0.0
    %8242 = vmatpush1.msra.mxu0 %v7630
    %8243 = vmatprep.subr.mxu0 0.0
    %8244 = vmatpush1.msra.mxu0 %v7629
    %8245 = vmatprep.subr.mxu0 0.0
    %8246 = vmatpush1.msra.mxu0 %v7628
    %8247 = vmatprep.subr.mxu0 0.0
    %8248 = vmatpush1.msra.mxu0 %v7627
    %8249 = vmatprep.subr.mxu0 0.0
    %8250 = vmatpush1.msra.mxu0 %v7626
    %8251 = vmatprep.subr.mxu0 0.0
    %8252 = vmatpush1.msra.mxu0 %v7625
    %8253 = vmatprep.subr.mxu0 0.0
    %8254 = vmatpush1.msra.mxu0 %v7624
    %8255 = vmatprep.subr.mxu0 0.0
    %8256 = vmatpush1.msra.mxu0 %v7623
    %8257 = vmatprep.subr.mxu0 0.0
    %8258 = vmatpush1.msra.mxu0 %v7622
    %8259 = vmatprep.subr.mxu0 0.0
    %8260 = vmatpush1.msra.mxu0 %v7621
    %8261 = vmatprep.subr.mxu0 0.0
    %8262 = vmatpush1.msra.mxu0 %v7620
    %8263 = vmatprep.subr.mxu0 0.0
    %8264 = vmatpush2.msra.mxu0 %v7651
    %8265 = vmatprep.subr.mxu0 0.0
    %8266 = vmatpush2.msra.mxu0 %v7650
    %8267 = vmatprep.subr.mxu0 0.0
    %8268 = vmatpush2.msra.mxu0 %v7649
    %8269 = vmatprep.subr.mxu0 0.0
    %8270 = vmatpush2.msra.mxu0 %v7648
    %8271 = vmatprep.subr.mxu0 0.0
    %8272 = vmatpush2.msra.mxu0 %v7647
    %8273 = vmatprep.subr.mxu0 0.0
    %8274 = vmatpush2.msra.mxu0 %v7646
    %8275 = vmatprep.subr.mxu0 0.0
    %8276 = vmatpush2.msra.mxu0 %v7645
    %8277 = vmatprep.subr.mxu0 0.0
    %8278 = vmatpush2.msra.mxu0 %v7644
    %8279 = vmatprep.subr.mxu0 0.0
    %8280 = vmatpush2.msra.mxu0 %v7643
    %8281 = vmatprep.subr.mxu0 0.0
    %8282 = vmatpush2.msra.mxu0 %v7642
    %8283 = vmatprep.subr.mxu0 0.0
    %8284 = vmatpush2.msra.mxu0 %v7641
    %8285 = vmatprep.subr.mxu0 0.0
    %8286 = vmatpush2.msra.mxu0 %v7640
    %8287 = vmatprep.subr.mxu0 0.0
    %8288 = vmatpush2.msra.mxu0 %v7639
    %8289 = vmatprep.subr.mxu0 0.0
    %8290 = vmatpush2.msra.mxu0 %v7638
    %8291 = vmatprep.subr.mxu0 0.0
    %8292 = vmatpush2.msra.mxu0 %v7637
    %8293 = vmatprep.subr.mxu0 0.0
    %8294 = vmatpush2.msra.mxu0 %v7636
    %8295 = vmatprep.mubr.f32.mxu0 %v7361
    %8296 = vmatmul.mubr.f32.gmra.mxu0 %v7360
    %v8297 = vpop.f32.mrf.mxu0
    %v8298 = vadd.f32 %v8208, %v8297
    %v8299 = vpop.f32.mrf.mxu0
    %8300 = vmatprep.mubr.f32.mxu0 %v7377
    %8301 = vmatmul.mubr.f32.gmra.mxu0 %v7376
    %v8302 = vpop.f32.mrf.mxu0
    %v8303 = vadd.f32 %v8213, %v8302
    %v8304 = vpop.f32.mrf.mxu0
    %8305 = vmatprep.mubr.f32.mxu0 %v7393
    %8306 = vmatmul.mubr.f32.gmra.mxu0 %v7392
    %v8307 = vpop.f32.mrf.mxu0
    %v8308 = vadd.f32 %v8218, %v8307
    %v8309 = vpop.f32.mrf.mxu0
    %8310 = vmatprep.mubr.f32.mxu0 %v7409
    %8311 = vmatmul.mubr.f32.gmra.mxu0 %v7408
    %v8312 = vpop.f32.mrf.mxu0
    %v8313 = vadd.f32 %v8223, %v8312
    %v8314 = vpop.f32.mrf.mxu0
    %8315 = vmatprep.mubr.f32.mxu0 %v7425
    %8316 = vmatmul.mubr.f32.gmra.mxu0 %v7424
    %v8317 = vpop.f32.mrf.mxu0
    %v8318 = vadd.f32 %v8228, %v8317
    %v8319 = vpop.f32.mrf.mxu0
    %8320 = vdwg.mxu0
    %8321 = vmatprep.subr.mxu0 0.0
    %8322 = vmatpush1.msra.mxu0 %v7667
    %8323 = vmatprep.subr.mxu0 0.0
    %8324 = vmatpush1.msra.mxu0 %v7666
    %8325 = vmatprep.subr.mxu0 0.0
    %8326 = vmatpush1.msra.mxu0 %v7665
    %8327 = vmatprep.subr.mxu0 0.0
    %8328 = vmatpush1.msra.mxu0 %v7664
    %8329 = vmatprep.subr.mxu0 0.0
    %8330 = vmatpush1.msra.mxu0 %v7663
    %8331 = vmatprep.subr.mxu0 0.0
    %8332 = vmatpush1.msra.mxu0 %v7662
    %8333 = vmatprep.subr.mxu0 0.0
    %8334 = vmatpush1.msra.mxu0 %v7661
    %8335 = vmatprep.subr.mxu0 0.0
    %8336 = vmatpush1.msra.mxu0 %v7660
    %8337 = vmatprep.subr.mxu0 0.0
    %8338 = vmatpush1.msra.mxu0 %v7659
    %8339 = vmatprep.subr.mxu0 0.0
    %8340 = vmatpush1.msra.mxu0 %v7658
    %8341 = vmatprep.subr.mxu0 0.0
    %8342 = vmatpush1.msra.mxu0 %v7657
    %8343 = vmatprep.subr.mxu0 0.0
    %8344 = vmatpush1.msra.mxu0 %v7656
    %8345 = vmatprep.subr.mxu0 0.0
    %8346 = vmatpush1.msra.mxu0 %v7655
    %8347 = vmatprep.subr.mxu0 0.0
    %8348 = vmatpush1.msra.mxu0 %v7654
    %8349 = vmatprep.subr.mxu0 0.0
    %8350 = vmatpush1.msra.mxu0 %v7653
    %8351 = vmatprep.subr.mxu0 0.0
    %8352 = vmatpush1.msra.mxu0 %v7652
    %8353 = vmatprep.subr.mxu0 0.0
    %8354 = vmatpush2.msra.mxu0 %v7683
    %8355 = vmatprep.subr.mxu0 0.0
    %8356 = vmatpush2.msra.mxu0 %v7682
    %8357 = vmatprep.subr.mxu0 0.0
    %8358 = vmatpush2.msra.mxu0 %v7681
    %8359 = vmatprep.subr.mxu0 0.0
    %8360 = vmatpush2.msra.mxu0 %v7680
    %8361 = vmatprep.subr.mxu0 0.0
    %8362 = vmatpush2.msra.mxu0 %v7679
    %8363 = vmatprep.subr.mxu0 0.0
    %8364 = vmatpush2.msra.mxu0 %v7678
    %8365 = vmatprep.subr.mxu0 0.0
    %8366 = vmatpush2.msra.mxu0 %v7677
    %8367 = vmatprep.subr.mxu0 0.0
    %8368 = vmatpush2.msra.mxu0 %v7676
    %8369 = vmatprep.subr.mxu0 0.0
    %8370 = vmatpush2.msra.mxu0 %v7675
    %8371 = vmatprep.subr.mxu0 0.0
    %8372 = vmatpush2.msra.mxu0 %v7674
    %8373 = vmatprep.subr.mxu0 0.0
    %8374 = vmatpush2.msra.mxu0 %v7673
    %8375 = vmatprep.subr.mxu0 0.0
    %8376 = vmatpush2.msra.mxu0 %v7672
    %8377 = vmatprep.subr.mxu0 0.0
    %8378 = vmatpush2.msra.mxu0 %v7671
    %8379 = vmatprep.subr.mxu0 0.0
    %8380 = vmatpush2.msra.mxu0 %v7670
    %8381 = vmatprep.subr.mxu0 0.0
    %8382 = vmatpush2.msra.mxu0 %v7669
    %8383 = vmatprep.subr.mxu0 0.0
    %8384 = vmatpush2.msra.mxu0 %v7668
    %8385 = vmatprep.mubr.f32.mxu0 %v7363
    %8386 = vmatmul.mubr.f32.gmra.mxu0 %v7362
    %v8387 = vpop.f32.mrf.mxu0
    %v8388 = vadd.f32 %v8298, %v8387
    %v8389 = vpop.f32.mrf.mxu0
    %8390 = vmatprep.mubr.f32.mxu0 %v7379
    %8391 = vmatmul.mubr.f32.gmra.mxu0 %v7378
    %v8392 = vpop.f32.mrf.mxu0
    %v8393 = vadd.f32 %v8303, %v8392
    %v8394 = vpop.f32.mrf.mxu0
    %8395 = vmatprep.mubr.f32.mxu0 %v7395
    %8396 = vmatmul.mubr.f32.gmra.mxu0 %v7394
    %v8397 = vpop.f32.mrf.mxu0
    %v8398 = vadd.f32 %v8308, %v8397
    %v8399 = vpop.f32.mrf.mxu0
    %8400 = vmatprep.mubr.f32.mxu0 %v7411
    %8401 = vmatmul.mubr.f32.gmra.mxu0 %v7410
    %v8402 = vpop.f32.mrf.mxu0
    %v8403 = vadd.f32 %v8313, %v8402
    %v8404 = vpop.f32.mrf.mxu0
    %8405 = vmatprep.mubr.f32.mxu0 %v7427
    %8406 = vmatmul.mubr.f32.gmra.mxu0 %v7426
    %v8407 = vpop.f32.mrf.mxu0
    %v8408 = vadd.f32 %v8318, %v8407
    %v8409 = vpop.f32.mrf.mxu0
    %8410 = vdwg.mxu0
    %v8411 = vadd.f32 %v6243, %v8388
    %v8412 = vadd.f32 %v6244, %v8393
    %v8413 = vadd.f32 %v6245, %v8398
    %v8414 = vadd.f32 %v6246, %v8403
    %v8415 = vadd.f32 %v6247, %v8408
    %v8416 = vld [vmem:[#allocation26] sm:$0x1]
    %v8417 = vld [vmem:[#allocation28] sm:$0x1]
    %8418 = vadd.xlane.f32.xlu0 %v8411
    %v8419 = vpop.xlane.xlu0 %8418
    %8420 = vadd.xlane.f32.xlu0 %v8412
    %v8421 = vpop.xlane.xlu0 %8420
    %8422 = vadd.xlane.f32.xlu0 %v8413
    %v8423 = vpop.xlane.xlu0 %8422
    %8424 = vadd.xlane.f32.xlu0 %v8414
    %v8425 = vpop.xlane.xlu0 %8424
    %8426 = vadd.xlane.f32.xlu0 %v8415
    %v8427 = vpop.xlane.xlu0 %8426
    %v8428 = vmul.f32 %v8419, %v6180
    %v8429 = vmul.f32 %v8421, %v6180
    %v8430 = vmul.f32 %v8423, %v6180
    %v8431 = vmul.f32 %v8425, %v6180
    %v8432 = vmul.f32 %v8427, %v6180
    %v8433 = vsub.f32 %v8411, %v8428
    %v8434 = vsub.f32 %v8412, %v8429
    %v8435 = vsub.f32 %v8413, %v8430
    %v8436 = vsub.f32 %v8414, %v8431
    %v8437 = vsub.f32 %v8415, %v8432
    %v8438 = vmul.f32 %v8433, %v8433
    %v8439 = vmul.f32 %v8434, %v8434
    %v8440 = vmul.f32 %v8435, %v8435
    %v8441 = vmul.f32 %v8436, %v8436
    %v8442 = vmul.f32 %v8437, %v8437
    %8443 = vadd.xlane.f32.xlu0 %v8438
    %v8444 = vpop.xlane.xlu0 %8443
    %8445 = vadd.xlane.f32.xlu0 %v8439
    %v8446 = vpop.xlane.xlu0 %8445
    %8447 = vadd.xlane.f32.xlu0 %v8440
    %v8448 = vpop.xlane.xlu0 %8447
    %8449 = vadd.xlane.f32.xlu0 %v8441
    %v8450 = vpop.xlane.xlu0 %8449
    %8451 = vadd.xlane.f32.xlu0 %v8442
    %v8452 = vpop.xlane.xlu0 %8451
    %v8453 = vmul.f32 %v8444, %v6180
    %v8454 = vmul.f32 %v8446, %v6180
    %v8455 = vmul.f32 %v8448, %v6180
    %v8456 = vmul.f32 %v8450, %v6180
    %v8457 = vmul.f32 %v8452, %v6180
    %v8458 = vadd.f32 %v8453, 1e-05
    %v8459 = vadd.f32 %v8454, 1e-05
    %v8460 = vadd.f32 %v8455, 1e-05
    %v8461 = vadd.f32 %v8456, 1e-05
    %v8462 = vadd.f32 %v8457, 1e-05
    %v8463 = vrsqrt.pop %v8458
    %v8464 = vrsqrt.pop %v8459
    %v8465 = vrsqrt.pop %v8460
    %v8466 = vrsqrt.pop %v8461
    %v8467 = vrsqrt.pop %v8462
    %v8468 = vmul.f32 %v8433, %v8463
    %v8469 = vmul.f32 %v8434, %v8464
    %v8470 = vmul.f32 %v8435, %v8465
    %v8471 = vmul.f32 %v8436, %v8466
    %v8472 = vmul.f32 %v8437, %v8467
    %v8474 = vlaneseq
    %v8475 = vshrl.u32 %v8474, 7
    %v8476 = vsub.s32 0, %v8475
    %v8477 = vrot.slane %v8416, %v8476
    %v8479 = vmul.f32 %v8468, %v8477
    %v8480 = vmul.f32 %v8469, %v8477
    %v8481 = vmul.f32 %v8470, %v8477
    %v8482 = vmul.f32 %v8471, %v8477
    %v8483 = vmul.f32 %v8472, %v8477
    %v8485 = vlaneseq
    %v8486 = vshrl.u32 %v8485, 7
    %v8487 = vsub.s32 0, %v8486
    %v8488 = vrot.slane %v8417, %v8487
    %v8490 = vadd.f32 %v8479, %v8488
    %v8491 = vadd.f32 %v8480, %v8488
    %v8492 = vadd.f32 %v8481, %v8488
    %v8493 = vadd.f32 %v8482, %v8488
    %v8494 = vadd.f32 %v8483, %v8488
    %v8495 = vsel %vm597, %v8490, 0.0
    %v8496 = vrot.slane %v8490, 4
    %v8497 = vsel %vm600, %v8496, %v8495
    %v8498 = vsel %vm603, %v8491, %v8497
    %v8499 = vrot.slane %v8491, 4
    %v8500 = vsel %vm606, %v8499, %v8498
    %v8501 = vsel %vm609, %v8492, %v8500
    %v8502 = vrot.slane %v8493, 4
    %v8503 = vsel %vm612, %v8502, %v8501
    %v8504 = vsel %vm615, %v8493, %v8503
    %v8505 = vrot.slane %v8494, 4
    %v8506 = vsel %vm618, %v8505, %v8504
    %v8507 = vrot.slane %v8490, 1
    %v8508 = vsel %vm597, %v8507, 0.0
    %v8509 = vrot.slane %v8490, 5
    %v8510 = vsel %vm600, %v8509, %v8508
    %v8511 = vrot.slane %v8491, 1
    %v8512 = vsel %vm603, %v8511, %v8510
    %v8513 = vrot.slane %v8492, 5
    %v8514 = vsel %vm606, %v8513, %v8512
    %v8515 = vrot.slane %v8492, 1
    %v8516 = vsel %vm609, %v8515, %v8514
    %v8517 = vrot.slane %v8493, 5
    %v8518 = vsel %vm612, %v8517, %v8516
    %v8519 = vrot.slane %v8493, 1
    %v8520 = vsel %vm615, %v8519, %v8518
    %v8521 = vrot.slane %v8494, 5
    %v8522 = vsel %vm618, %v8521, %v8520
    %v8523 = vrot.slane %v8490, 2
    %v8524 = vsel %vm597, %v8523, 0.0
    %v8525 = vrot.slane %v8490, 6
    %v8526 = vsel %vm600, %v8525, %v8524
    %v8527 = vrot.slane %v8491, 2
    %v8528 = vsel %vm603, %v8527, %v8526
    %v8529 = vrot.slane %v8492, 6
    %v8530 = vsel %vm606, %v8529, %v8528
    %v8531 = vrot.slane %v8492, 2
    %v8532 = vsel %vm609, %v8531, %v8530
    %v8533 = vrot.slane %v8493, 6
    %v8534 = vsel %vm612, %v8533, %v8532
    %v8535 = vrot.slane %v8494, 2
    %v8536 = vsel %vm615, %v8535, %v8534
    %v8537 = vrot.slane %v8494, 6
    %v8538 = vsel %vm618, %v8537, %v8536
    %v8539 = vrot.slane %v8490, 3
    %v8540 = vsel %vm597, %v8539, 0.0
    %v8541 = vrot.slane %v8491, 7
    %v8542 = vsel %vm600, %v8541, %v8540
    %v8543 = vrot.slane %v8491, 3
    %v8544 = vsel %vm603, %v8543, %v8542
    %v8545 = vrot.slane %v8492, 7
    %v8546 = vsel %vm606, %v8545, %v8544
    %v8547 = vrot.slane %v8492, 3
    %v8548 = vsel %vm609, %v8547, %v8546
    %v8549 = vrot.slane %v8493, 7
    %v8550 = vsel %vm612, %v8549, %v8548
    %v8551 = vrot.slane %v8494, 3
    %v8552 = vsel %vm615, %v8551, %v8550
    %v8553 = vrot.slane %v8494, 7
    %v8554 = vsel %vm618, %v8553, %v8552
    %v8555 = vsel %vm597, %v8496, 0.0
    %v8556 = vsel %vm600, %v8491, %v8555
    %v8557 = vsel %vm603, %v8499, %v8556
    %v8558 = vsel %vm606, %v8492, %v8557
    %v8559 = vsel %vm609, %v8502, %v8558
    %v8560 = vsel %vm612, %v8493, %v8559
    %v8561 = vsel %vm615, %v8505, %v8560
    %v8562 = vsel %vm618, %v8494, %v8561
    %v8563 = vld [vmem:[#allocation29] sm:$0xff]
    %v8564 = vld [vmem:[#allocation29 + $0x8] sm:$0xff]
    %v8565 = vld [vmem:[#allocation29 + $0x10] sm:$0xff]
    %v8566 = vld [vmem:[#allocation29 + $0x18] sm:$0xff]
    %v8567 = vld [vmem:[#allocation29 + $0x20] sm:$0xff]
    %v8568 = vld [vmem:[#allocation29 + $0x28] sm:$0xff]
    %v8569 = vld [vmem:[#allocation29 + $0x30] sm:$0xff]
    %v8570 = vld [vmem:[#allocation29 + $0x38] sm:$0xff]
    %v8571 = vld [vmem:[#allocation29 + $0x40] sm:$0xff]
    %v8572 = vld [vmem:[#allocation29 + $0x48] sm:$0xff]
    %v8573 = vld [vmem:[#allocation29 + $0x50] sm:$0xff]
    %v8574 = vld [vmem:[#allocation29 + $0x58] sm:$0xff]
    %v8575 = vld [vmem:[#allocation29 + $0x60] sm:$0xff]
    %v8576 = vld [vmem:[#allocation29 + $0x68] sm:$0xff]
    %v8577 = vld [vmem:[#allocation29 + $0x70] sm:$0xff]
    %v8578 = vld [vmem:[#allocation29 + $0x78] sm:$0xff]
    %v8579 = vld [vmem:[#allocation29 + $0x80] sm:$0xff]
    %v8580 = vld [vmem:[#allocation29 + $0x88] sm:$0xff]
    %v8581 = vld [vmem:[#allocation29 + $0x90] sm:$0xff]
    %v8582 = vld [vmem:[#allocation29 + $0x98] sm:$0xff]
    %v8583 = vld [vmem:[#allocation29 + $0xa0] sm:$0xff]
    %v8584 = vld [vmem:[#allocation29 + $0xa8] sm:$0xff]
    %v8585 = vld [vmem:[#allocation29 + $0xb0] sm:$0xff]
    %v8586 = vld [vmem:[#allocation29 + $0xb8] sm:$0xff]
    %v8587 = vld [vmem:[#allocation29 + $0xc0] sm:$0xff]
    %v8588 = vld [vmem:[#allocation29 + $0xc8] sm:$0xff]
    %v8589 = vld [vmem:[#allocation29 + $0xd0] sm:$0xff]
    %v8590 = vld [vmem:[#allocation29 + $0xd8] sm:$0xff]
    %v8591 = vld [vmem:[#allocation29 + $0xe0] sm:$0xff]
    %v8592 = vld [vmem:[#allocation29 + $0xe8] sm:$0xff]
    %v8593 = vld [vmem:[#allocation29 + $0xf0] sm:$0xff]
    %v8594 = vld [vmem:[#allocation29 + $0xf8] sm:$0xff]
    %v8595 = vld [vmem:[#allocation29 + $0x100] sm:$0xff]
    %v8596 = vld [vmem:[#allocation29 + $0x108] sm:$0xff]
    %v8597 = vld [vmem:[#allocation29 + $0x110] sm:$0xff]
    %v8598 = vld [vmem:[#allocation29 + $0x118] sm:$0xff]
    %v8599 = vld [vmem:[#allocation29 + $0x120] sm:$0xff]
    %v8600 = vld [vmem:[#allocation29 + $0x128] sm:$0xff]
    %v8601 = vld [vmem:[#allocation29 + $0x130] sm:$0xff]
    %v8602 = vld [vmem:[#allocation29 + $0x138] sm:$0xff]
    %v8603 = vld [vmem:[#allocation29 + $0x140] sm:$0xff]
    %v8604 = vld [vmem:[#allocation29 + $0x148] sm:$0xff]
    %v8605 = vld [vmem:[#allocation29 + $0x150] sm:$0xff]
    %v8606 = vld [vmem:[#allocation29 + $0x158] sm:$0xff]
    %v8607 = vld [vmem:[#allocation29 + $0x160] sm:$0xff]
    %v8608 = vld [vmem:[#allocation29 + $0x168] sm:$0xff]
    %v8609 = vld [vmem:[#allocation29 + $0x170] sm:$0xff]
    %v8610 = vld [vmem:[#allocation29 + $0x178] sm:$0xff]
    %v8611 = vld [vmem:[#allocation29 + $0x180] sm:$0xff]
    %v8612 = vld [vmem:[#allocation29 + $0x188] sm:$0xff]
    %v8613 = vld [vmem:[#allocation29 + $0x190] sm:$0xff]
    %v8614 = vld [vmem:[#allocation29 + $0x198] sm:$0xff]
    %v8615 = vld [vmem:[#allocation29 + $0x1a0] sm:$0xff]
    %v8616 = vld [vmem:[#allocation29 + $0x1a8] sm:$0xff]
    %v8617 = vld [vmem:[#allocation29 + $0x1b0] sm:$0xff]
    %v8618 = vld [vmem:[#allocation29 + $0x1b8] sm:$0xff]
    %v8619 = vld [vmem:[#allocation29 + $0x1c0] sm:$0xff]
    %v8620 = vld [vmem:[#allocation29 + $0x1c8] sm:$0xff]
    %v8621 = vld [vmem:[#allocation29 + $0x1d0] sm:$0xff]
    %v8622 = vld [vmem:[#allocation29 + $0x1d8] sm:$0xff]
    %v8623 = vld [vmem:[#allocation29 + $0x1e0] sm:$0xff]
    %v8624 = vld [vmem:[#allocation29 + $0x1e8] sm:$0xff]
    %v8625 = vld [vmem:[#allocation29 + $0x1f0] sm:$0xff]
    %v8626 = vld [vmem:[#allocation29 + $0x1f8] sm:$0xff]
    %v8627 = vld [vmem:[#allocation29 + $0x200] sm:$0xff]
    %v8628 = vld [vmem:[#allocation29 + $0x208] sm:$0xff]
    %v8629 = vld [vmem:[#allocation29 + $0x210] sm:$0xff]
    %v8630 = vld [vmem:[#allocation29 + $0x218] sm:$0xff]
    %v8631 = vld [vmem:[#allocation29 + $0x220] sm:$0xff]
    %v8632 = vld [vmem:[#allocation29 + $0x228] sm:$0xff]
    %v8633 = vld [vmem:[#allocation29 + $0x230] sm:$0xff]
    %v8634 = vld [vmem:[#allocation29 + $0x238] sm:$0xff]
    %v8635 = vld [vmem:[#allocation29 + $0x240] sm:$0xff]
    %v8636 = vld [vmem:[#allocation29 + $0x248] sm:$0xff]
    %v8637 = vld [vmem:[#allocation29 + $0x250] sm:$0xff]
    %v8638 = vld [vmem:[#allocation29 + $0x258] sm:$0xff]
    %v8639 = vld [vmem:[#allocation29 + $0x260] sm:$0xff]
    %v8640 = vld [vmem:[#allocation29 + $0x268] sm:$0xff]
    %v8641 = vld [vmem:[#allocation29 + $0x270] sm:$0xff]
    %v8642 = vld [vmem:[#allocation29 + $0x278] sm:$0xff]
    %v8643 = vld [vmem:[#allocation29 + $0x280] sm:$0xff]
    %v8644 = vld [vmem:[#allocation29 + $0x288] sm:$0xff]
    %v8645 = vld [vmem:[#allocation29 + $0x290] sm:$0xff]
    %v8646 = vld [vmem:[#allocation29 + $0x298] sm:$0xff]
    %v8647 = vld [vmem:[#allocation29 + $0x2a0] sm:$0xff]
    %v8648 = vld [vmem:[#allocation29 + $0x2a8] sm:$0xff]
    %v8649 = vld [vmem:[#allocation29 + $0x2b0] sm:$0xff]
    %v8650 = vld [vmem:[#allocation29 + $0x2b8] sm:$0xff]
    %v8651 = vld [vmem:[#allocation29 + $0x2c0] sm:$0xff]
    %v8652 = vld [vmem:[#allocation29 + $0x2c8] sm:$0xff]
    %v8653 = vld [vmem:[#allocation29 + $0x2d0] sm:$0xff]
    %v8654 = vld [vmem:[#allocation29 + $0x2d8] sm:$0xff]
    %v8655 = vld [vmem:[#allocation29 + $0x2e0] sm:$0xff]
    %v8656 = vld [vmem:[#allocation29 + $0x2e8] sm:$0xff]
    %v8657 = vld [vmem:[#allocation29 + $0x2f0] sm:$0xff]
    %v8658 = vld [vmem:[#allocation29 + $0x2f8] sm:$0xff]
    %v8659 = vld [vmem:[#allocation29 + $0x300] sm:$0xff]
    %v8660 = vld [vmem:[#allocation29 + $0x308] sm:$0xff]
    %v8661 = vld [vmem:[#allocation29 + $0x310] sm:$0xff]
    %v8662 = vld [vmem:[#allocation29 + $0x318] sm:$0xff]
    %v8663 = vld [vmem:[#allocation29 + $0x320] sm:$0xff]
    %v8664 = vld [vmem:[#allocation29 + $0x328] sm:$0xff]
    %v8665 = vld [vmem:[#allocation29 + $0x330] sm:$0xff]
    %v8666 = vld [vmem:[#allocation29 + $0x338] sm:$0xff]
    %v8667 = vld [vmem:[#allocation29 + $0x340] sm:$0xff]
    %v8668 = vld [vmem:[#allocation29 + $0x348] sm:$0xff]
    %v8669 = vld [vmem:[#allocation29 + $0x350] sm:$0xff]
    %v8670 = vld [vmem:[#allocation29 + $0x358] sm:$0xff]
    %v8671 = vld [vmem:[#allocation29 + $0x360] sm:$0xff]
    %v8672 = vld [vmem:[#allocation29 + $0x368] sm:$0xff]
    %v8673 = vld [vmem:[#allocation29 + $0x370] sm:$0xff]
    %v8674 = vld [vmem:[#allocation29 + $0x378] sm:$0xff]
    %v8675 = vld [vmem:[#allocation29 + $0x380] sm:$0xff]
    %v8676 = vld [vmem:[#allocation29 + $0x388] sm:$0xff]
    %v8677 = vld [vmem:[#allocation29 + $0x390] sm:$0xff]
    %v8678 = vld [vmem:[#allocation29 + $0x398] sm:$0xff]
    %v8679 = vld [vmem:[#allocation29 + $0x3a0] sm:$0xff]
    %v8680 = vld [vmem:[#allocation29 + $0x3a8] sm:$0xff]
    %v8681 = vld [vmem:[#allocation29 + $0x3b0] sm:$0xff]
    %v8682 = vld [vmem:[#allocation29 + $0x3b8] sm:$0xff]
    %v8683 = vld [vmem:[#allocation29 + $0x3c0] sm:$0xff]
    %v8684 = vld [vmem:[#allocation29 + $0x3c8] sm:$0xff]
    %v8685 = vld [vmem:[#allocation29 + $0x3d0] sm:$0xff]
    %v8686 = vld [vmem:[#allocation29 + $0x3d8] sm:$0xff]
    %v8687 = vld [vmem:[#allocation29 + $0x3e0] sm:$0xff]
    %v8688 = vld [vmem:[#allocation29 + $0x3e8] sm:$0xff]
    %v8689 = vld [vmem:[#allocation29 + $0x3f0] sm:$0xff]
    %v8690 = vld [vmem:[#allocation29 + $0x3f8] sm:$0xff]
    %v8691 = vld [vmem:[#allocation29 + $0x400] sm:$0xff]
    %v8692 = vld [vmem:[#allocation29 + $0x408] sm:$0xff]
    %v8693 = vld [vmem:[#allocation29 + $0x410] sm:$0xff]
    %v8694 = vld [vmem:[#allocation29 + $0x418] sm:$0xff]
    %v8695 = vld [vmem:[#allocation29 + $0x420] sm:$0xff]
    %v8696 = vld [vmem:[#allocation29 + $0x428] sm:$0xff]
    %v8697 = vld [vmem:[#allocation29 + $0x430] sm:$0xff]
    %v8698 = vld [vmem:[#allocation29 + $0x438] sm:$0xff]
    %v8699 = vld [vmem:[#allocation29 + $0x440] sm:$0xff]
    %v8700 = vld [vmem:[#allocation29 + $0x448] sm:$0xff]
    %v8701 = vld [vmem:[#allocation29 + $0x450] sm:$0xff]
    %v8702 = vld [vmem:[#allocation29 + $0x458] sm:$0xff]
    %v8703 = vld [vmem:[#allocation29 + $0x460] sm:$0xff]
    %v8704 = vld [vmem:[#allocation29 + $0x468] sm:$0xff]
    %v8705 = vld [vmem:[#allocation29 + $0x470] sm:$0xff]
    %v8706 = vld [vmem:[#allocation29 + $0x478] sm:$0xff]
    %v8707 = vld [vmem:[#allocation29 + $0x480] sm:$0xff]
    %v8708 = vld [vmem:[#allocation29 + $0x488] sm:$0xff]
    %v8709 = vld [vmem:[#allocation29 + $0x490] sm:$0xff]
    %v8710 = vld [vmem:[#allocation29 + $0x498] sm:$0xff]
    %v8711 = vld [vmem:[#allocation29 + $0x4a0] sm:$0xff]
    %v8712 = vld [vmem:[#allocation29 + $0x4a8] sm:$0xff]
    %v8713 = vld [vmem:[#allocation29 + $0x4b0] sm:$0xff]
    %v8714 = vld [vmem:[#allocation29 + $0x4b8] sm:$0xff]
    %v8715 = vld [vmem:[#allocation29 + $0x4c0] sm:$0xff]
    %v8716 = vld [vmem:[#allocation29 + $0x4c8] sm:$0xff]
    %v8717 = vld [vmem:[#allocation29 + $0x4d0] sm:$0xff]
    %v8718 = vld [vmem:[#allocation29 + $0x4d8] sm:$0xff]
    %v8719 = vld [vmem:[#allocation29 + $0x4e0] sm:$0xff]
    %v8720 = vld [vmem:[#allocation29 + $0x4e8] sm:$0xff]
    %v8721 = vld [vmem:[#allocation29 + $0x4f0] sm:$0xff]
    %v8722 = vld [vmem:[#allocation29 + $0x4f8] sm:$0xff]
    %v8723 = vld [vmem:[#allocation29 + $0x500] sm:$0xff]
    %v8724 = vld [vmem:[#allocation29 + $0x508] sm:$0xff]
    %v8725 = vld [vmem:[#allocation29 + $0x510] sm:$0xff]
    %v8726 = vld [vmem:[#allocation29 + $0x518] sm:$0xff]
    %v8727 = vld [vmem:[#allocation29 + $0x520] sm:$0xff]
    %v8728 = vld [vmem:[#allocation29 + $0x528] sm:$0xff]
    %v8729 = vld [vmem:[#allocation29 + $0x530] sm:$0xff]
    %v8730 = vld [vmem:[#allocation29 + $0x538] sm:$0xff]
    %v8731 = vld [vmem:[#allocation29 + $0x540] sm:$0xff]
    %v8732 = vld [vmem:[#allocation29 + $0x548] sm:$0xff]
    %v8733 = vld [vmem:[#allocation29 + $0x550] sm:$0xff]
    %v8734 = vld [vmem:[#allocation29 + $0x558] sm:$0xff]
    %v8735 = vld [vmem:[#allocation29 + $0x560] sm:$0xff]
    %v8736 = vld [vmem:[#allocation29 + $0x568] sm:$0xff]
    %v8737 = vld [vmem:[#allocation29 + $0x570] sm:$0xff]
    %v8738 = vld [vmem:[#allocation29 + $0x578] sm:$0xff]
    %v8739 = vld [vmem:[#allocation29 + $0x580] sm:$0xff]
    %v8740 = vld [vmem:[#allocation29 + $0x588] sm:$0xff]
    %v8741 = vld [vmem:[#allocation29 + $0x590] sm:$0xff]
    %v8742 = vld [vmem:[#allocation29 + $0x598] sm:$0xff]
    %v8743 = vld [vmem:[#allocation29 + $0x5a0] sm:$0xff]
    %v8744 = vld [vmem:[#allocation29 + $0x5a8] sm:$0xff]
    %v8745 = vld [vmem:[#allocation29 + $0x5b0] sm:$0xff]
    %v8746 = vld [vmem:[#allocation29 + $0x5b8] sm:$0xff]
    %v8747 = vld [vmem:[#allocation29 + $0x5c0] sm:$0xff]
    %v8748 = vld [vmem:[#allocation29 + $0x5c8] sm:$0xff]
    %v8749 = vld [vmem:[#allocation29 + $0x5d0] sm:$0xff]
    %v8750 = vld [vmem:[#allocation29 + $0x5d8] sm:$0xff]
    %v8751 = vld [vmem:[#allocation29 + $0x5e0] sm:$0xff]
    %v8752 = vld [vmem:[#allocation29 + $0x5e8] sm:$0xff]
    %v8753 = vld [vmem:[#allocation29 + $0x5f0] sm:$0xff]
    %v8754 = vld [vmem:[#allocation29 + $0x5f8] sm:$0xff]
    %v8755 = vld [vmem:[#allocation29 + $0x600] sm:$0xff]
    %v8756 = vld [vmem:[#allocation29 + $0x608] sm:$0xff]
    %v8757 = vld [vmem:[#allocation29 + $0x610] sm:$0xff]
    %v8758 = vld [vmem:[#allocation29 + $0x618] sm:$0xff]
    %v8759 = vld [vmem:[#allocation29 + $0x620] sm:$0xff]
    %v8760 = vld [vmem:[#allocation29 + $0x628] sm:$0xff]
    %v8761 = vld [vmem:[#allocation29 + $0x630] sm:$0xff]
    %v8762 = vld [vmem:[#allocation29 + $0x638] sm:$0xff]
    %v8763 = vld [vmem:[#allocation29 + $0x640] sm:$0xff]
    %v8764 = vld [vmem:[#allocation29 + $0x648] sm:$0xff]
    %v8765 = vld [vmem:[#allocation29 + $0x650] sm:$0xff]
    %v8766 = vld [vmem:[#allocation29 + $0x658] sm:$0xff]
    %v8767 = vld [vmem:[#allocation29 + $0x660] sm:$0xff]
    %v8768 = vld [vmem:[#allocation29 + $0x668] sm:$0xff]
    %v8769 = vld [vmem:[#allocation29 + $0x670] sm:$0xff]
    %v8770 = vld [vmem:[#allocation29 + $0x678] sm:$0xff]
    %v8771 = vld [vmem:[#allocation29 + $0x680] sm:$0xff]
    %v8772 = vld [vmem:[#allocation29 + $0x688] sm:$0xff]
    %v8773 = vld [vmem:[#allocation29 + $0x690] sm:$0xff]
    %v8774 = vld [vmem:[#allocation29 + $0x698] sm:$0xff]
    %v8775 = vld [vmem:[#allocation29 + $0x6a0] sm:$0xff]
    %v8776 = vld [vmem:[#allocation29 + $0x6a8] sm:$0xff]
    %v8777 = vld [vmem:[#allocation29 + $0x6b0] sm:$0xff]
    %v8778 = vld [vmem:[#allocation29 + $0x6b8] sm:$0xff]
    %v8779 = vld [vmem:[#allocation29 + $0x6c0] sm:$0xff]
    %v8780 = vld [vmem:[#allocation29 + $0x6c8] sm:$0xff]
    %v8781 = vld [vmem:[#allocation29 + $0x6d0] sm:$0xff]
    %v8782 = vld [vmem:[#allocation29 + $0x6d8] sm:$0xff]
    %v8783 = vld [vmem:[#allocation29 + $0x6e0] sm:$0xff]
    %v8784 = vld [vmem:[#allocation29 + $0x6e8] sm:$0xff]
    %v8785 = vld [vmem:[#allocation29 + $0x6f0] sm:$0xff]
    %v8786 = vld [vmem:[#allocation29 + $0x6f8] sm:$0xff]
    %v8787 = vld [vmem:[#allocation29 + $0x700] sm:$0xff]
    %v8788 = vld [vmem:[#allocation29 + $0x708] sm:$0xff]
    %v8789 = vld [vmem:[#allocation29 + $0x710] sm:$0xff]
    %v8790 = vld [vmem:[#allocation29 + $0x718] sm:$0xff]
    %v8791 = vld [vmem:[#allocation29 + $0x720] sm:$0xff]
    %v8792 = vld [vmem:[#allocation29 + $0x728] sm:$0xff]
    %v8793 = vld [vmem:[#allocation29 + $0x730] sm:$0xff]
    %v8794 = vld [vmem:[#allocation29 + $0x738] sm:$0xff]
    %v8795 = vld [vmem:[#allocation29 + $0x740] sm:$0xff]
    %v8796 = vld [vmem:[#allocation29 + $0x748] sm:$0xff]
    %v8797 = vld [vmem:[#allocation29 + $0x750] sm:$0xff]
    %v8798 = vld [vmem:[#allocation29 + $0x758] sm:$0xff]
    %v8799 = vld [vmem:[#allocation29 + $0x760] sm:$0xff]
    %v8800 = vld [vmem:[#allocation29 + $0x768] sm:$0xff]
    %v8801 = vld [vmem:[#allocation29 + $0x770] sm:$0xff]
    %v8802 = vld [vmem:[#allocation29 + $0x778] sm:$0xff]
    %v8803 = vld [vmem:[#allocation31] sm:$0x7]
    %v8805 = vlaneseq
    %v8806 = vshrl.u32 %v8805, 7
    %v8807 = vsub.s32 0, %v8806
    %v8808 = vrot.slane %v8803, %v8807
    %v8809 = vlaneseq
    %v8810 = vshrl.u32 %v8809, 7
    %v8811 = vsub.s32 1, %v8810
    %v8812 = vrot.slane %v8803, %v8811
    %v8813 = vlaneseq
    %v8814 = vshrl.u32 %v8813, 7
    %v8815 = vsub.s32 2, %v8814
    %v8816 = vrot.slane %v8803, %v8815
    %8820 = vmatprep.subr.mxu0 %v8609
    %8821 = vmatpush1.msra.mxu0 %v8608
    %8822 = vmatprep.subr.mxu0 %v8606
    %8823 = vmatpush1.msra.mxu0 %v8605
    %8824 = vmatprep.subr.mxu0 %v8603
    %8825 = vmatpush1.msra.mxu0 %v8602
    %8826 = vmatprep.subr.mxu0 %v8600
    %8827 = vmatpush1.msra.mxu0 %v8599
    %8828 = vmatprep.subr.mxu0 %v8597
    %8829 = vmatpush1.msra.mxu0 %v8596
    %8830 = vmatprep.subr.mxu0 %v8594
    %8831 = vmatpush1.msra.mxu0 %v8593
    %8832 = vmatprep.subr.mxu0 %v8591
    %8833 = vmatpush1.msra.mxu0 %v8590
    %8834 = vmatprep.subr.mxu0 %v8588
    %8835 = vmatpush1.msra.mxu0 %v8587
    %8836 = vmatprep.subr.mxu0 %v8585
    %8837 = vmatpush1.msra.mxu0 %v8584
    %8838 = vmatprep.subr.mxu0 %v8582
    %8839 = vmatpush1.msra.mxu0 %v8581
    %8840 = vmatprep.subr.mxu0 %v8579
    %8841 = vmatpush1.msra.mxu0 %v8578
    %8842 = vmatprep.subr.mxu0 %v8576
    %8843 = vmatpush1.msra.mxu0 %v8575
    %8844 = vmatprep.subr.mxu0 %v8573
    %8845 = vmatpush1.msra.mxu0 %v8572
    %8846 = vmatprep.subr.mxu0 %v8570
    %8847 = vmatpush1.msra.mxu0 %v8569
    %8848 = vmatprep.subr.mxu0 %v8567
    %8849 = vmatpush1.msra.mxu0 %v8566
    %8850 = vmatprep.subr.mxu0 %v8564
    %8851 = vmatpush1.msra.mxu0 %v8563
    %8852 = vmatprep.subr.mxu0 %v8657
    %8853 = vmatpush2.msra.mxu0 %v8656
    %8854 = vmatprep.subr.mxu0 %v8654
    %8855 = vmatpush2.msra.mxu0 %v8653
    %8856 = vmatprep.subr.mxu0 %v8651
    %8857 = vmatpush2.msra.mxu0 %v8650
    %8858 = vmatprep.subr.mxu0 %v8648
    %8859 = vmatpush2.msra.mxu0 %v8647
    %8860 = vmatprep.subr.mxu0 %v8645
    %8861 = vmatpush2.msra.mxu0 %v8644
    %8862 = vmatprep.subr.mxu0 %v8642
    %8863 = vmatpush2.msra.mxu0 %v8641
    %8864 = vmatprep.subr.mxu0 %v8639
    %8865 = vmatpush2.msra.mxu0 %v8638
    %8866 = vmatprep.subr.mxu0 %v8636
    %8867 = vmatpush2.msra.mxu0 %v8635
    %8868 = vmatprep.subr.mxu0 %v8633
    %8869 = vmatpush2.msra.mxu0 %v8632
    %8870 = vmatprep.subr.mxu0 %v8630
    %8871 = vmatpush2.msra.mxu0 %v8629
    %8872 = vmatprep.subr.mxu0 %v8627
    %8873 = vmatpush2.msra.mxu0 %v8626
    %8874 = vmatprep.subr.mxu0 %v8624
    %8875 = vmatpush2.msra.mxu0 %v8623
    %8876 = vmatprep.subr.mxu0 %v8621
    %8877 = vmatpush2.msra.mxu0 %v8620
    %8878 = vmatprep.subr.mxu0 %v8618
    %8879 = vmatpush2.msra.mxu0 %v8617
    %8880 = vmatprep.subr.mxu0 %v8615
    %8881 = vmatpush2.msra.mxu0 %v8614
    %8882 = vmatprep.subr.mxu0 %v8612
    %8883 = vmatpush2.msra.mxu0 %v8611
    %8884 = vmatprep.mubr.f32.mxu0 %v8522
    %8885 = vmatmul.mubr.f32.gmra.mxu0 %v8506
    %v8886 = vpop.f32.mrf.mxu0
    %v8887 = vadd.f32 %v8808, %v8886
    %v8888 = vpop.f32.mrf.mxu0
    %v8889 = vadd.f32 %v8812, %v8888
    %8890 = vdwg.mxu0
    %8891 = vmatprep.subr.mxu0 %v8705
    %8892 = vmatpush1.msra.mxu0 %v8704
    %8893 = vmatprep.subr.mxu0 %v8702
    %8894 = vmatpush1.msra.mxu0 %v8701
    %8895 = vmatprep.subr.mxu0 %v8699
    %8896 = vmatpush1.msra.mxu0 %v8698
    %8897 = vmatprep.subr.mxu0 %v8696
    %8898 = vmatpush1.msra.mxu0 %v8695
    %8899 = vmatprep.subr.mxu0 %v8693
    %8900 = vmatpush1.msra.mxu0 %v8692
    %8901 = vmatprep.subr.mxu0 %v8690
    %8902 = vmatpush1.msra.mxu0 %v8689
    %8903 = vmatprep.subr.mxu0 %v8687
    %8904 = vmatpush1.msra.mxu0 %v8686
    %8905 = vmatprep.subr.mxu0 %v8684
    %8906 = vmatpush1.msra.mxu0 %v8683
    %8907 = vmatprep.subr.mxu0 %v8681
    %8908 = vmatpush1.msra.mxu0 %v8680
    %8909 = vmatprep.subr.mxu0 %v8678
    %8910 = vmatpush1.msra.mxu0 %v8677
    %8911 = vmatprep.subr.mxu0 %v8675
    %8912 = vmatpush1.msra.mxu0 %v8674
    %8913 = vmatprep.subr.mxu0 %v8672
    %8914 = vmatpush1.msra.mxu0 %v8671
    %8915 = vmatprep.subr.mxu0 %v8669
    %8916 = vmatpush1.msra.mxu0 %v8668
    %8917 = vmatprep.subr.mxu0 %v8666
    %8918 = vmatpush1.msra.mxu0 %v8665
    %8919 = vmatprep.subr.mxu0 %v8663
    %8920 = vmatpush1.msra.mxu0 %v8662
    %8921 = vmatprep.subr.mxu0 %v8660
    %8922 = vmatpush1.msra.mxu0 %v8659
    %8923 = vmatprep.subr.mxu0 %v8753
    %8924 = vmatpush2.msra.mxu0 %v8752
    %8925 = vmatprep.subr.mxu0 %v8750
    %8926 = vmatpush2.msra.mxu0 %v8749
    %8927 = vmatprep.subr.mxu0 %v8747
    %8928 = vmatpush2.msra.mxu0 %v8746
    %8929 = vmatprep.subr.mxu0 %v8744
    %8930 = vmatpush2.msra.mxu0 %v8743
    %8931 = vmatprep.subr.mxu0 %v8741
    %8932 = vmatpush2.msra.mxu0 %v8740
    %8933 = vmatprep.subr.mxu0 %v8738
    %8934 = vmatpush2.msra.mxu0 %v8737
    %8935 = vmatprep.subr.mxu0 %v8735
    %8936 = vmatpush2.msra.mxu0 %v8734
    %8937 = vmatprep.subr.mxu0 %v8732
    %8938 = vmatpush2.msra.mxu0 %v8731
    %8939 = vmatprep.subr.mxu0 %v8729
    %8940 = vmatpush2.msra.mxu0 %v8728
    %8941 = vmatprep.subr.mxu0 %v8726
    %8942 = vmatpush2.msra.mxu0 %v8725
    %8943 = vmatprep.subr.mxu0 %v8723
    %8944 = vmatpush2.msra.mxu0 %v8722
    %8945 = vmatprep.subr.mxu0 %v8720
    %8946 = vmatpush2.msra.mxu0 %v8719
    %8947 = vmatprep.subr.mxu0 %v8717
    %8948 = vmatpush2.msra.mxu0 %v8716
    %8949 = vmatprep.subr.mxu0 %v8714
    %8950 = vmatpush2.msra.mxu0 %v8713
    %8951 = vmatprep.subr.mxu0 %v8711
    %8952 = vmatpush2.msra.mxu0 %v8710
    %8953 = vmatprep.subr.mxu0 %v8708
    %8954 = vmatpush2.msra.mxu0 %v8707
    %8955 = vmatprep.mubr.f32.mxu0 %v8554
    %8956 = vmatmul.mubr.f32.gmra.mxu0 %v8538
    %v8957 = vpop.f32.mrf.mxu0
    %v8958 = vadd.f32 %v8887, %v8957
    %v8959 = vpop.f32.mrf.mxu0
    %v8960 = vadd.f32 %v8889, %v8959
    %8961 = vdwg.mxu0
    %8962 = vmatprep.subr.mxu0 %v8801
    %8963 = vmatpush1.msra.mxu0 %v8800
    %8964 = vmatprep.subr.mxu0 %v8798
    %8965 = vmatpush1.msra.mxu0 %v8797
    %8966 = vmatprep.subr.mxu0 %v8795
    %8967 = vmatpush1.msra.mxu0 %v8794
    %8968 = vmatprep.subr.mxu0 %v8792
    %8969 = vmatpush1.msra.mxu0 %v8791
    %8970 = vmatprep.subr.mxu0 %v8789
    %8971 = vmatpush1.msra.mxu0 %v8788
    %8972 = vmatprep.subr.mxu0 %v8786
    %8973 = vmatpush1.msra.mxu0 %v8785
    %8974 = vmatprep.subr.mxu0 %v8783
    %8975 = vmatpush1.msra.mxu0 %v8782
    %8976 = vmatprep.subr.mxu0 %v8780
    %8977 = vmatpush1.msra.mxu0 %v8779
    %8978 = vmatprep.subr.mxu0 %v8777
    %8979 = vmatpush1.msra.mxu0 %v8776
    %8980 = vmatprep.subr.mxu0 %v8774
    %8981 = vmatpush1.msra.mxu0 %v8773
    %8982 = vmatprep.subr.mxu0 %v8771
    %8983 = vmatpush1.msra.mxu0 %v8770
    %8984 = vmatprep.subr.mxu0 %v8768
    %8985 = vmatpush1.msra.mxu0 %v8767
    %8986 = vmatprep.subr.mxu0 %v8765
    %8987 = vmatpush1.msra.mxu0 %v8764
    %8988 = vmatprep.subr.mxu0 %v8762
    %8989 = vmatpush1.msra.mxu0 %v8761
    %8990 = vmatprep.subr.mxu0 %v8759
    %8991 = vmatpush1.msra.mxu0 %v8758
    %8992 = vmatprep.subr.mxu0 %v8756
    %8993 = vmatpush1.msra.mxu0 %v8755
    %8994 = vmatprep.subr.mxu0 0.0
    %8995 = vmatpush2.msra.mxu0 0.0
    %8996 = vmatprep.subr.mxu0 0.0
    %8997 = vmatpush2.msra.mxu0 0.0
    %8998 = vmatprep.subr.mxu0 0.0
    %8999 = vmatpush2.msra.mxu0 0.0
    %9000 = vmatprep.subr.mxu0 0.0
    %9001 = vmatpush2.msra.mxu0 0.0
    %9002 = vmatprep.subr.mxu0 0.0
    %9003 = vmatpush2.msra.mxu0 0.0
    %9004 = vmatprep.subr.mxu0 0.0
    %9005 = vmatpush2.msra.mxu0 0.0
    %9006 = vmatprep.subr.mxu0 0.0
    %9007 = vmatpush2.msra.mxu0 0.0
    %9008 = vmatprep.subr.mxu0 0.0
    %9009 = vmatpush2.msra.mxu0 0.0
    %9010 = vmatprep.subr.mxu0 0.0
    %9011 = vmatpush2.msra.mxu0 0.0
    %9012 = vmatprep.subr.mxu0 0.0
    %9013 = vmatpush2.msra.mxu0 0.0
    %9014 = vmatprep.subr.mxu0 0.0
    %9015 = vmatpush2.msra.mxu0 0.0
    %9016 = vmatprep.subr.mxu0 0.0
    %9017 = vmatpush2.msra.mxu0 0.0
    %9018 = vmatprep.subr.mxu0 0.0
    %9019 = vmatpush2.msra.mxu0 0.0
    %9020 = vmatprep.subr.mxu0 0.0
    %9021 = vmatpush2.msra.mxu0 0.0
    %9022 = vmatprep.subr.mxu0 0.0
    %9023 = vmatpush2.msra.mxu0 0.0
    %9024 = vmatprep.subr.mxu0 0.0
    %9025 = vmatpush2.msra.mxu0 0.0
    %9026 = vmatprep.mubr.f32.mxu0 0.0
    %9027 = vmatmul.mubr.f32.gmra.mxu0 %v8562
    %v9028 = vpop.f32.mrf.mxu0
    %v9029 = vadd.f32 %v8958, %v9028
    %v9030 = vpop.f32.mrf.mxu0
    %v9031 = vadd.f32 %v8960, %v9030
    %9032 = vdwg.mxu0
    %9033 = vmatprep.subr.mxu0 0.0
    %9034 = vmatpush1.msra.mxu0 %v8610
    %9035 = vmatprep.subr.mxu0 0.0
    %9036 = vmatpush1.msra.mxu0 %v8607
    %9037 = vmatprep.subr.mxu0 0.0
    %9038 = vmatpush1.msra.mxu0 %v8604
    %9039 = vmatprep.subr.mxu0 0.0
    %9040 = vmatpush1.msra.mxu0 %v8601
    %9041 = vmatprep.subr.mxu0 0.0
    %9042 = vmatpush1.msra.mxu0 %v8598
    %9043 = vmatprep.subr.mxu0 0.0
    %9044 = vmatpush1.msra.mxu0 %v8595
    %9045 = vmatprep.subr.mxu0 0.0
    %9046 = vmatpush1.msra.mxu0 %v8592
    %9047 = vmatprep.subr.mxu0 0.0
    %9048 = vmatpush1.msra.mxu0 %v8589
    %9049 = vmatprep.subr.mxu0 0.0
    %9050 = vmatpush1.msra.mxu0 %v8586
    %9051 = vmatprep.subr.mxu0 0.0
    %9052 = vmatpush1.msra.mxu0 %v8583
    %9053 = vmatprep.subr.mxu0 0.0
    %9054 = vmatpush1.msra.mxu0 %v8580
    %9055 = vmatprep.subr.mxu0 0.0
    %9056 = vmatpush1.msra.mxu0 %v8577
    %9057 = vmatprep.subr.mxu0 0.0
    %9058 = vmatpush1.msra.mxu0 %v8574
    %9059 = vmatprep.subr.mxu0 0.0
    %9060 = vmatpush1.msra.mxu0 %v8571
    %9061 = vmatprep.subr.mxu0 0.0
    %9062 = vmatpush1.msra.mxu0 %v8568
    %9063 = vmatprep.subr.mxu0 0.0
    %9064 = vmatpush1.msra.mxu0 %v8565
    %9065 = vmatprep.subr.mxu0 0.0
    %9066 = vmatpush2.msra.mxu0 %v8658
    %9067 = vmatprep.subr.mxu0 0.0
    %9068 = vmatpush2.msra.mxu0 %v8655
    %9069 = vmatprep.subr.mxu0 0.0
    %9070 = vmatpush2.msra.mxu0 %v8652
    %9071 = vmatprep.subr.mxu0 0.0
    %9072 = vmatpush2.msra.mxu0 %v8649
    %9073 = vmatprep.subr.mxu0 0.0
    %9074 = vmatpush2.msra.mxu0 %v8646
    %9075 = vmatprep.subr.mxu0 0.0
    %9076 = vmatpush2.msra.mxu0 %v8643
    %9077 = vmatprep.subr.mxu0 0.0
    %9078 = vmatpush2.msra.mxu0 %v8640
    %9079 = vmatprep.subr.mxu0 0.0
    %9080 = vmatpush2.msra.mxu0 %v8637
    %9081 = vmatprep.subr.mxu0 0.0
    %9082 = vmatpush2.msra.mxu0 %v8634
    %9083 = vmatprep.subr.mxu0 0.0
    %9084 = vmatpush2.msra.mxu0 %v8631
    %9085 = vmatprep.subr.mxu0 0.0
    %9086 = vmatpush2.msra.mxu0 %v8628
    %9087 = vmatprep.subr.mxu0 0.0
    %9088 = vmatpush2.msra.mxu0 %v8625
    %9089 = vmatprep.subr.mxu0 0.0
    %9090 = vmatpush2.msra.mxu0 %v8622
    %9091 = vmatprep.subr.mxu0 0.0
    %9092 = vmatpush2.msra.mxu0 %v8619
    %9093 = vmatprep.subr.mxu0 0.0
    %9094 = vmatpush2.msra.mxu0 %v8616
    %9095 = vmatprep.subr.mxu0 0.0
    %9096 = vmatpush2.msra.mxu0 %v8613
    %9097 = vmatprep.mubr.f32.mxu0 %v8522
    %9098 = vmatmul.mubr.f32.gmra.mxu0 %v8506
    %v9099 = vpop.f32.mrf.mxu0
    %v9100 = vadd.f32 %v8816, %v9099
    %v9101 = vpop.f32.mrf.mxu0
    %9102 = vdwg.mxu0
    %9103 = vmatprep.subr.mxu0 0.0
    %9104 = vmatpush1.msra.mxu0 %v8706
    %9105 = vmatprep.subr.mxu0 0.0
    %9106 = vmatpush1.msra.mxu0 %v8703
    %9107 = vmatprep.subr.mxu0 0.0
    %9108 = vmatpush1.msra.mxu0 %v8700
    %9109 = vmatprep.subr.mxu0 0.0
    %9110 = vmatpush1.msra.mxu0 %v8697
    %9111 = vmatprep.subr.mxu0 0.0
    %9112 = vmatpush1.msra.mxu0 %v8694
    %9113 = vmatprep.subr.mxu0 0.0
    %9114 = vmatpush1.msra.mxu0 %v8691
    %9115 = vmatprep.subr.mxu0 0.0
    %9116 = vmatpush1.msra.mxu0 %v8688
    %9117 = vmatprep.subr.mxu0 0.0
    %9118 = vmatpush1.msra.mxu0 %v8685
    %9119 = vmatprep.subr.mxu0 0.0
    %9120 = vmatpush1.msra.mxu0 %v8682
    %9121 = vmatprep.subr.mxu0 0.0
    %9122 = vmatpush1.msra.mxu0 %v8679
    %9123 = vmatprep.subr.mxu0 0.0
    %9124 = vmatpush1.msra.mxu0 %v8676
    %9125 = vmatprep.subr.mxu0 0.0
    %9126 = vmatpush1.msra.mxu0 %v8673
    %9127 = vmatprep.subr.mxu0 0.0
    %9128 = vmatpush1.msra.mxu0 %v8670
    %9129 = vmatprep.subr.mxu0 0.0
    %9130 = vmatpush1.msra.mxu0 %v8667
    %9131 = vmatprep.subr.mxu0 0.0
    %9132 = vmatpush1.msra.mxu0 %v8664
    %9133 = vmatprep.subr.mxu0 0.0
    %9134 = vmatpush1.msra.mxu0 %v8661
    %9135 = vmatprep.subr.mxu0 0.0
    %9136 = vmatpush2.msra.mxu0 %v8754
    %9137 = vmatprep.subr.mxu0 0.0
    %9138 = vmatpush2.msra.mxu0 %v8751
    %9139 = vmatprep.subr.mxu0 0.0
    %9140 = vmatpush2.msra.mxu0 %v8748
    %9141 = vmatprep.subr.mxu0 0.0
    %9142 = vmatpush2.msra.mxu0 %v8745
    %9143 = vmatprep.subr.mxu0 0.0
    %9144 = vmatpush2.msra.mxu0 %v8742
    %9145 = vmatprep.subr.mxu0 0.0
    %9146 = vmatpush2.msra.mxu0 %v8739
    %9147 = vmatprep.subr.mxu0 0.0
    %9148 = vmatpush2.msra.mxu0 %v8736
    %9149 = vmatprep.subr.mxu0 0.0
    %9150 = vmatpush2.msra.mxu0 %v8733
    %9151 = vmatprep.subr.mxu0 0.0
    %9152 = vmatpush2.msra.mxu0 %v8730
    %9153 = vmatprep.subr.mxu0 0.0
    %9154 = vmatpush2.msra.mxu0 %v8727
    %9155 = vmatprep.subr.mxu0 0.0
    %9156 = vmatpush2.msra.mxu0 %v8724
    %9157 = vmatprep.subr.mxu0 0.0
    %9158 = vmatpush2.msra.mxu0 %v8721
    %9159 = vmatprep.subr.mxu0 0.0
    %9160 = vmatpush2.msra.mxu0 %v8718
    %9161 = vmatprep.subr.mxu0 0.0
    %9162 = vmatpush2.msra.mxu0 %v8715
    %9163 = vmatprep.subr.mxu0 0.0
    %9164 = vmatpush2.msra.mxu0 %v8712
    %9165 = vmatprep.subr.mxu0 0.0
    %9166 = vmatpush2.msra.mxu0 %v8709
    %9167 = vmatprep.mubr.f32.mxu0 %v8554
    %9168 = vmatmul.mubr.f32.gmra.mxu0 %v8538
    %v9169 = vpop.f32.mrf.mxu0
    %v9170 = vadd.f32 %v9100, %v9169
    %v9171 = vpop.f32.mrf.mxu0
    %9172 = vdwg.mxu0
    %9173 = vmatprep.subr.mxu0 0.0
    %9174 = vmatpush1.msra.mxu0 %v8802
    %9175 = vmatprep.subr.mxu0 0.0
    %9176 = vmatpush1.msra.mxu0 %v8799
    %9177 = vmatprep.subr.mxu0 0.0
    %9178 = vmatpush1.msra.mxu0 %v8796
    %9179 = vmatprep.subr.mxu0 0.0
    %9180 = vmatpush1.msra.mxu0 %v8793
    %9181 = vmatprep.subr.mxu0 0.0
    %9182 = vmatpush1.msra.mxu0 %v8790
    %9183 = vmatprep.subr.mxu0 0.0
    %9184 = vmatpush1.msra.mxu0 %v8787
    %9185 = vmatprep.subr.mxu0 0.0
    %9186 = vmatpush1.msra.mxu0 %v8784
    %9187 = vmatprep.subr.mxu0 0.0
    %9188 = vmatpush1.msra.mxu0 %v8781
    %9189 = vmatprep.subr.mxu0 0.0
    %9190 = vmatpush1.msra.mxu0 %v8778
    %9191 = vmatprep.subr.mxu0 0.0
    %9192 = vmatpush1.msra.mxu0 %v8775
    %9193 = vmatprep.subr.mxu0 0.0
    %9194 = vmatpush1.msra.mxu0 %v8772
    %9195 = vmatprep.subr.mxu0 0.0
    %9196 = vmatpush1.msra.mxu0 %v8769
    %9197 = vmatprep.subr.mxu0 0.0
    %9198 = vmatpush1.msra.mxu0 %v8766
    %9199 = vmatprep.subr.mxu0 0.0
    %9200 = vmatpush1.msra.mxu0 %v8763
    %9201 = vmatprep.subr.mxu0 0.0
    %9202 = vmatpush1.msra.mxu0 %v8760
    %9203 = vmatprep.subr.mxu0 0.0
    %9204 = vmatpush1.msra.mxu0 %v8757
    %9205 = vmatprep.subr.mxu0 0.0
    %9206 = vmatpush2.msra.mxu0 0.0
    %9207 = vmatprep.subr.mxu0 0.0
    %9208 = vmatpush2.msra.mxu0 0.0
    %9209 = vmatprep.subr.mxu0 0.0
    %9210 = vmatpush2.msra.mxu0 0.0
    %9211 = vmatprep.subr.mxu0 0.0
    %9212 = vmatpush2.msra.mxu0 0.0
    %9213 = vmatprep.subr.mxu0 0.0
    %9214 = vmatpush2.msra.mxu0 0.0
    %9215 = vmatprep.subr.mxu0 0.0
    %9216 = vmatpush2.msra.mxu0 0.0
    %9217 = vmatprep.subr.mxu0 0.0
    %9218 = vmatpush2.msra.mxu0 0.0
    %9219 = vmatprep.subr.mxu0 0.0
    %9220 = vmatpush2.msra.mxu0 0.0
    %9221 = vmatprep.subr.mxu0 0.0
    %9222 = vmatpush2.msra.mxu0 0.0
    %9223 = vmatprep.subr.mxu0 0.0
    %9224 = vmatpush2.msra.mxu0 0.0
    %9225 = vmatprep.subr.mxu0 0.0
    %9226 = vmatpush2.msra.mxu0 0.0
    %9227 = vmatprep.subr.mxu0 0.0
    %9228 = vmatpush2.msra.mxu0 0.0
    %9229 = vmatprep.subr.mxu0 0.0
    %9230 = vmatpush2.msra.mxu0 0.0
    %9231 = vmatprep.subr.mxu0 0.0
    %9232 = vmatpush2.msra.mxu0 0.0
    %9233 = vmatprep.subr.mxu0 0.0
    %9234 = vmatpush2.msra.mxu0 0.0
    %9235 = vmatprep.subr.mxu0 0.0
    %9236 = vmatpush2.msra.mxu0 0.0
    %9237 = vmatprep.mubr.f32.mxu0 0.0
    %9238 = vmatmul.mubr.f32.gmra.mxu0 %v8562
    %v9239 = vpop.f32.mrf.mxu0
    %v9240 = vadd.f32 %v9170, %v9239
    %v9241 = vpop.f32.mrf.mxu0
    %9242 = vdwg.mxu0
    %9243 = vst [vmem:[#allocation32] sm:$0xff] %v9029
    %9244 = vst [vmem:[#allocation32 + $0x8] sm:$0xff] %v9031
    %9245 = vst [vmem:[#allocation32 + $0x10] sm:$0xff] %v9240
    // Predicated region
    $region154: #{tpu_custom_call.1} parent=1 // pred_check
      _
    $region155: #{tpu_custom_call.1} parent=1 // pred_check_branch
      %9247 = sbr.rel (0) target = $region157
    $region156: #{tpu_custom_call.1} parent=1 // pred_region
      %s9249 = ssub.s32 384, 384
      %9250 = vsyncadd [#allocation4], %s9249
      %s9252 = sshll.u32 [#allocation32], 4
      %s9253 = int_to_ptr.vmem [resolvable:$true] %s9252
      %9255 = dma.vmem_to_hbm [thread:$0]  %s9253, 384, %s19, [#allocation4]
    $region157: #{tpu_custom_call.1} parent=1 // pred_fallthru
      _
    // Predicated region
    $region158: #{tpu_custom_call.1} parent=1 // pred_check
      _
    $region159: #{tpu_custom_call.1} parent=1 // pred_check_branch
      %9257 = sbr.rel (0) target = $region161
    $region160: #{tpu_custom_call.1} parent=1 // pred_region
      %9258 = dma.done [#allocation4], 384
    $region161: #{tpu_custom_call.1} parent=1 // pred_fallthru
      _
    %9259 = vsyncpa [#allocation3], 1
    %9260 = vsyncpa [#allocation6], 1
    %9261 = vsyncpa [#allocation9], 1
    %9262 = vsyncpa [#allocation12], 1
    %9263 = vsyncpa [#allocation15], 1
    %9264 = vsyncpa [#allocation18], 1
    %9265 = vsyncpa [#allocation21], 1
    %9266 = vsyncpa [#allocation24], 1
    %9267 = vsyncpa [#allocation27], 1
    %9268 = vsyncpa [#allocation30], 1
    %9269 = vsyncpa [#allocation4], 1

</llo_original>
